<compile_context>
chip_gen: v7x
topology: tpu7x:2x2x1
jax: 0.10.0
libtpu: 0.0.40
codegen_flags: <defaults>
</compile_context>

<pallas_src>
import functools

import jax
import jax.numpy as jnp
from jax.experimental import pallas as pl
from jax.experimental.pallas import tpu as pltpu

BN_EPS = 1e-5
_VMEM_LIMIT = 32 * 1024 * 1024  # safe on v5e/v6e/v7x; tiles use only a few MiB


def _round_up(x, m):
    return (x + m - 1) // m * m


def _pick_k_tile(kp, cap=512):
    """Largest multiple of 128 that divides kp (itself a multiple of 128) and
    is <= cap.  Keeps the K grid exact (no padded-zero K tiles)."""
    best = 128
    t = 128
    while t <= min(cap, kp):
        if kp % t == 0:
            best = t
        t += 128
    return best


# ----------------------------------------------------------------------------
# Pallas kernels
# ----------------------------------------------------------------------------
def _conv_mm_kernel(x_ref, w_ref, scale_ref, bias_ref, o_ref, acc_ref,
                    *, apply_relu):
    """Tiled (tm,tk)@(tk,tn) MXU matmul with f32 accumulator; epilogue =
    folded-BN scale/shift + optional ReLU on the last K step."""
    @pl.when(pl.program_id(2) == 0)
    def _():
        acc_ref[...] = jnp.zeros_like(acc_ref)

    acc_ref[...] += jnp.dot(x_ref[...], w_ref[...],
                            preferred_element_type=jnp.float32)

    @pl.when(pl.program_id(2) == pl.num_programs(2) - 1)
    def _():
        out = acc_ref[...] * scale_ref[...] + bias_ref[...]
        if apply_relu:
            out = jnp.maximum(out, 0.0)
        o_ref[...] = out


def _conv_mm_res_kernel(x_ref, w_ref, scale_ref, bias_ref, res_ref, o_ref,
                        acc_ref, *, apply_relu):
    """Same as _conv_mm_kernel plus a residual add before the ReLU."""
    @pl.when(pl.program_id(2) == 0)
    def _():
        acc_ref[...] = jnp.zeros_like(acc_ref)

    acc_ref[...] += jnp.dot(x_ref[...], w_ref[...],
                            preferred_element_type=jnp.float32)

    @pl.when(pl.program_id(2) == pl.num_programs(2) - 1)
    def _():
        out = acc_ref[...] * scale_ref[...] + bias_ref[...] + res_ref[...]
        if apply_relu:
            out = jnp.maximum(out, 0.0)
        o_ref[...] = out


def _maxpool9_kernel(*refs):
    """Elementwise max over the 9 shifted window views (9 in refs, 1 out)."""
    o_ref = refs[-1]
    acc = refs[0][...]
    for r in refs[1:-1]:
        acc = jnp.maximum(acc, r[...])
    o_ref[...] = acc


# ----------------------------------------------------------------------------
# Wrappers (padding / strided slicing / reshapes stay in plain JAX glue)
# ----------------------------------------------------------------------------
def _im2col(x_nhwc, kh, kw, stride, pad):
    N, H, W, C = x_nhwc.shape
    xp = jnp.pad(x_nhwc, ((0, 0), (pad, pad), (pad, pad), (0, 0)))
    Ho = (H + 2 * pad - kh) // stride + 1
    Wo = (W + 2 * pad - kw) // stride + 1
    cols = []
    for i in range(kh):
        for j in range(kw):
            cols.append(xp[:, i:i + stride * Ho:stride, j:j + stride * Wo:stride, :])
    patches = jnp.stack(cols, axis=3)                 # (N, Ho, Wo, kh*kw, C)
    return patches.reshape(N * Ho * Wo, kh * kw * C), (N, Ho, Wo)


def conv2d_fused(x_nhwc, w_oihw, *, stride, pad, scale=None, bias=None,
                 residual=None, relu=False):
    """Conv2d(bias=False) [+ folded BN] [+ residual] [+ ReLU], lowered to a
    tiled, pipelined Pallas matmul (bf16 MXU inputs, f32 accumulate)."""
    Cout, Cin, KH, KW = w_oihw.shape
    patches, (N, Ho, Wo) = _im2col(x_nhwc, KH, KW, stride, pad)
    M, K = patches.shape

    # ---- tile sizes (lane/sublane aligned, per-generation safe) -------------
    Coutp = _round_up(Cout, 128)
    tn = 256 if (Coutp % 256 == 0) else 128          # 256-wide for layer3/4
    Kp = _round_up(K, 128)
    tk = _pick_k_tile(Kp, 512)
    if M >= 512:
        tm = 512
        Mp = _round_up(M, tm)
    else:
        tm = _round_up(M, 8)
        Mp = tm

    # ---- operands: bf16 matmul inputs, f32 epilogue inputs ------------------
    xmat = jnp.pad(patches.astype(jnp.bfloat16), ((0, Mp - M), (0, Kp - K)))
    # (Cout, Cin, KH, KW) -> (KH*KW*Cin, Cout), matching im2col K ordering.
    wmat = jnp.transpose(w_oihw, (2, 3, 1, 0)).reshape(K, Cout)
    wmat = jnp.pad(wmat.astype(jnp.bfloat16), ((0, Kp - K), (0, Coutp - Cout)))

    scale_v = (jnp.ones((Cout,), jnp.float32) if scale is None
               else scale.astype(jnp.float32))
    bias_v = (jnp.zeros((Cout,), jnp.float32) if bias is None
              else bias.astype(jnp.float32))
    scale_v = jnp.pad(scale_v.reshape(1, Cout), ((0, 0), (0, Coutp - Cout)))
    bias_v = jnp.pad(bias_v.reshape(1, Cout), ((0, 0), (0, Coutp - Cout)))

    grid = (Mp // tm, Coutp // tn, Kp // tk)
    x_spec = pl.BlockSpec((tm, tk), lambda i, j, kk: (i, kk))
    w_spec = pl.BlockSpec((tk, tn), lambda i, j, kk: (kk, j))
    s_spec = pl.BlockSpec((1, tn), lambda i, j, kk: (0, j))   # resident over K
    o_spec = pl.BlockSpec((tm, tn), lambda i, j, kk: (i, j))

    operands = [xmat, wmat, scale_v, bias_v]
    in_specs = [x_spec, w_spec, s_spec, s_spec]
    if residual is not None:
        res = residual.reshape(M, Cout).astype(jnp.float32)
        res = jnp.pad(res, ((0, Mp - M), (0, Coutp - Cout)))
        operands.append(res)
        in_specs.append(o_spec)
        kern = functools.partial(_conv_mm_res_kernel, apply_relu=relu)
        out_bytes = 2 * Mp * Coutp * 4
    else:
        kern = functools.partial(_conv_mm_kernel, apply_relu=relu)
        out_bytes = Mp * Coutp * 4

    out = pl.pallas_call(
        kern,
        out_shape=jax.ShapeDtypeStruct((Mp, Coutp), jnp.float32),
        grid_spec=pltpu.PrefetchScalarGridSpec(
            num_scalar_prefetch=0,
            grid=grid,
            in_specs=in_specs,
            out_specs=o_spec,
            scratch_shapes=[pltpu.VMEM((tm, tn), jnp.float32)]),
        compiler_params=pltpu.CompilerParams(
            dimension_semantics=("parallel", "parallel", "arbitrary"),
            vmem_limit_bytes=_VMEM_LIMIT),
        cost_estimate=pl.CostEstimate(
            flops=2 * Mp * Kp * Coutp,
            transcendentals=0,
            bytes_accessed=(Mp * Kp + Kp * Coutp) * 2 + out_bytes),
    )(*operands)

    return out[:M, :Cout].reshape(N, Ho, Wo, Cout)


def maxpool_2d(x_nhwc, k=3, stride=2, pad=1):
    """MaxPool2d(k=3, s=2, p=1): 9 shifted views passed as 9 refs to a tiled
    Pallas max-reduce (no (9, M, C) stack materialized)."""
    N, H, W, C = x_nhwc.shape
    x = x_nhwc.astype(jnp.float32)
    neg = float(jnp.finfo(jnp.float32).min)
    xp = jnp.pad(x, ((0, 0), (pad, pad), (pad, pad), (0, 0)),
                 constant_values=neg)
    Ho = (H + 2 * pad - k) // stride + 1
    Wo = (W + 2 * pad - k) // stride + 1
    M = N * Ho * Wo

    Cp = _round_up(C, 128)
    if M >= 512:
        tm = 512
        Mp = _round_up(M, tm)
    else:
        tm = _round_up(M, 8)
        Mp = tm

    views = []
    for i in range(k):
        for j in range(k):
            v = xp[:, i:i + stride * Ho:stride, j:j + stride * Wo:stride, :]
            v = v.reshape(M, C)
            views.append(jnp.pad(v, ((0, Mp - M), (0, Cp - C))))

    spec = pl.BlockSpec((tm, 128), lambda i, j: (i, j))
    out = pl.pallas_call(
        _maxpool9_kernel,
        out_shape=jax.ShapeDtypeStruct((Mp, Cp), jnp.float32),
        grid_spec=pltpu.PrefetchScalarGridSpec(
            num_scalar_prefetch=0,
            grid=(Mp // tm, Cp // 128),
            in_specs=[spec] * (k * k),
            out_specs=spec),
        compiler_params=pltpu.CompilerParams(
            dimension_semantics=("parallel", "parallel"),
            vmem_limit_bytes=_VMEM_LIMIT),
    )(*views)
    return out[:M, :C].reshape(N, Ho, Wo, C)


# ----------------------------------------------------------------------------
# Parameters (deterministic, matching the module's __init__ shapes / init)
# ----------------------------------------------------------------------------
def _kaiming_conv(key, cout, cin, kh, kw):
    # kaiming_normal_(mode='fan_out', nonlinearity='relu'): std = sqrt(2/fan_out)
    fan_out = cout * kh * kw
    std = (2.0 / fan_out) ** 0.5
    return jax.random.normal(key, (cout, cin, kh, kw), jnp.float32) * std


def _bn_params(c):
    # gamma=1, beta=0 (per __init__), running stats at defaults (inference mode)
    return dict(gamma=jnp.ones((c,), jnp.float32),
                beta=jnp.zeros((c,), jnp.float32),
                mean=jnp.zeros((c,), jnp.float32),
                var=jnp.ones((c,), jnp.float32))


def _bn_fold(p):
    scale = p['gamma'] / jnp.sqrt(p['var'] + BN_EPS)
    shift = p['beta'] - p['mean'] * scale
    return scale, shift


def init_encoder_params(key, num_input_channels, layers):
    keys = list(jax.random.split(key, 128))
    kit = iter(keys)
    params = {'conv1': _kaiming_conv(next(kit), 64, num_input_channels, 7, 7),
              'layers': []}
    inplanes = 64
    for li, (planes, nblocks) in enumerate(zip([64, 128, 256, 512], layers)):
        layer_stride = 1 if li == 0 else 2
        blocks = []
        for bi in range(nblocks):
            s = layer_stride if bi == 0 else 1
            blk = {'stride': s,
                   'conv1': _kaiming_conv(next(kit), planes, inplanes, 3, 3),
                   'bn1': _bn_params(planes),
                   'conv2': _kaiming_conv(next(kit), planes, planes, 3, 3),
                   'bn2': _bn_params(planes)}
            if s != 1 or inplanes != planes:   # BasicBlock.expansion == 1
                blk['downsample'] = _kaiming_conv(next(kit), planes, inplanes, 1, 1)
            blocks.append(blk)
            inplanes = planes
        params['layers'].append(blocks)
    return params


# ----------------------------------------------------------------------------
# Forward pass (mirrors _ResNetEncoder.forward with CustomBasicBlock / 'relu')
# ----------------------------------------------------------------------------
def _basic_block_forward(x, blk):
    s = blk['stride']
    sc1, sh1 = _bn_fold(blk['bn1'])
    sc2, sh2 = _bn_fold(blk['bn2'])
    if 'downsample' in blk:
        # downsample is a bare conv1x1 (no norm) in this module
        identity = conv2d_fused(x, blk['downsample'], stride=s, pad=0)
    else:
        identity = x
    out = conv2d_fused(x, blk['conv1'], stride=s, pad=1,
                       scale=sc1, bias=sh1, relu=True)
    out = conv2d_fused(out, blk['conv2'], stride=1, pad=1,
                       scale=sc2, bias=sh2, residual=identity, relu=True)
    return out


def resnet_encoder_forward(x_nchw, params):
    assert x_nchw.shape[1] == params['conv1'].shape[1]  # check_sizes equivalent
    x = jnp.transpose(x_nchw, (0, 2, 3, 1)).astype(jnp.float32)        # -> NHWC
    x0 = conv2d_fused(x, params['conv1'], stride=2, pad=3, relu=True)  # conv1+relu
    x = maxpool_2d(x0, k=3, stride=2, pad=1)
    for blocks in params['layers']:
        for blk in blocks:
            x = _basic_block_forward(x, blk)
    x4 = x
    return jnp.transpose(x4, (0, 3, 1, 2))                             # -> NCHW


if __name__ == "__main__":
    key = jax.random.PRNGKey(0)
    k_in, k_par = jax.random.split(key)

    num_input_channels = 4
    layers = [1, 1, 1, 1]
    x = jax.random.normal(k_in, (2, num_input_channels, 16, 16), jnp.float32)

    params = init_encoder_params(k_par, num_input_channels, layers)

    fwd = jax.jit(lambda inp: resnet_encoder_forward(inp, params))
    out = fwd(x)
    jax.block_until_ready(out)

    assert out.shape == (2, 512, 1, 1), out.shape
    assert out.dtype == jnp.float32
    print("KERNEL_OK")
</pallas_src>

<mosaic_0001>
module attributes {stable_mosaic.version = 11 : i64} {
  func.func @_conv_mm_kernel(%arg0: i32, %arg1: i32, %arg2: i32, %arg3: memref<128x256xbf16, #tpu.memory_space<vmem>>, %arg4: memref<256x128xbf16, #tpu.memory_space<vmem>>, %arg5: memref<1x128xf32, #tpu.memory_space<vmem>>, %arg6: memref<1x128xf32, #tpu.memory_space<vmem>>, %arg7: memref<128x128xf32, #tpu.memory_space<vmem>>, %arg8: memref<128x128xf32, #tpu.memory_space<vmem>>) attributes {dimension_semantics = [#tpu.dimension_semantics<parallel>, #tpu.dimension_semantics<parallel>, #tpu.dimension_semantics<arbitrary>], iteration_bounds = array<i64: 1, 1, 1>, scalar_prefetch = 0 : i64, scratch_operands = 1 : i64, tpu.core_type = #tpu.core_type<tc>, window_params = [{transform_indices = @transform_0, window_bounds = array<i64: 128, 256>}, {transform_indices = @transform_1, window_bounds = array<i64: 256, 128>}, {transform_indices = @transform_2, window_bounds = array<i64: 1, 128>}, {transform_indices = @transform_3, window_bounds = array<i64: 1, 128>}, {transform_indices = @transform_4, window_bounds = array<i64: 128, 128>}]} {
    %c0_i32 = arith.constant 0 : i32
    %0 = arith.cmpi eq, %arg2, %c0_i32 : i32
    %1 = arith.extui %0 : i1 to i32
    %c0_i32_0 = arith.constant 0 : i32
    %2 = arith.cmpi ne, %1, %c0_i32_0 : i32
    scf.if %2 {
      %cst_10 = arith.constant 0.000000e+00 : f32
      %12 = vector.broadcast %cst_10 : f32 to vector<128x128xf32>
      %c0_11 = arith.constant 0 : index
      %c0_12 = arith.constant 0 : index
      %13 = vector.load %arg8[%c0_11, %c0_12] : memref<128x128xf32, #tpu.memory_space<vmem>>, vector<128x128xf32>
      tpu.vector_store %arg8[%c0_11, %c0_12], %12 {strides = array<i32>} : memref<128x128xf32, #tpu.memory_space<vmem>>, vector<128x128xf32>,
    } else {
    }
    %c0 = arith.constant 0 : index
    %c0_1 = arith.constant 0 : index
    %3 = vector.load %arg8[%c0, %c0_1] : memref<128x128xf32, #tpu.memory_space<vmem>>, vector<128x128xf32>
    %c0_2 = arith.constant 0 : index
    %c0_3 = arith.constant 0 : index
    %4 = vector.load %arg3[%c0_2, %c0_3] : memref<128x256xbf16, #tpu.memory_space<vmem>>, vector<128x256xbf16>
    %c0_4 = arith.constant 0 : index
    %c0_5 = arith.constant 0 : index
    %5 = vector.load %arg4[%c0_4, %c0_5] : memref<256x128xbf16, #tpu.memory_space<vmem>>, vector<256x128xbf16>
    %cst = arith.constant dense<0.000000e+00> : vector<128x128xf32>
    %6 = tpu.matmul %4, %5, %cst {dimension_numbers = #tpu.dot_dimension_numbers<[1], [0], [0], [1], [0, 0, 1, 1], [], []>} : vector<128x256xbf16>, vector<256x128xbf16>, vector<128x128xf32> -> vector<128x128xf32>
    %7 = arith.addf %3, %6 : vector<128x128xf32>
    %c0_6 = arith.constant 0 : index
    %c0_7 = arith.constant 0 : index
    %8 = vector.load %arg8[%c0_6, %c0_7] : memref<128x128xf32, #tpu.memory_space<vmem>>, vector<128x128xf32>
    tpu.vector_store %arg8[%c0_6, %c0_7], %7 {strides = array<i32>} : memref<128x128xf32, #tpu.memory_space<vmem>>, vector<128x128xf32>,
    %c0_i32_8 = arith.constant 0 : i32
    %9 = arith.cmpi eq, %arg2, %c0_i32_8 : i32
    %10 = arith.extui %9 : i1 to i32
    %c0_i32_9 = arith.constant 0 : i32
    %11 = arith.cmpi ne, %10, %c0_i32_9 : i32
    scf.if %11 {
      %c0_10 = arith.constant 0 : index
      %c0_11 = arith.constant 0 : index
      %12 = vector.load %arg8[%c0_10, %c0_11] : memref<128x128xf32, #tpu.memory_space<vmem>>, vector<128x128xf32>
      %c0_12 = arith.constant 0 : index
      %c0_13 = arith.constant 0 : index
      %13 = vector.load %arg5[%c0_12, %c0_13] : memref<1x128xf32, #tpu.memory_space<vmem>>, vector<1x128xf32>
      %14 = vector.broadcast %13 : vector<1x128xf32> to vector<128x128xf32>
      %15 = arith.mulf %12, %14 : vector<128x128xf32>
      %c0_14 = arith.constant 0 : index
      %c0_15 = arith.constant 0 : index
      %16 = vector.load %arg6[%c0_14, %c0_15] : memref<1x128xf32, #tpu.memory_space<vmem>>, vector<1x128xf32>
      %17 = vector.broadcast %16 : vector<1x128xf32> to vector<128x128xf32>
      %18 = arith.addf %15, %17 : vector<128x128xf32>
      %cst_16 = arith.constant 0.000000e+00 : f32
      %19 = vector.broadcast %cst_16 : f32 to vector<128x128xf32>
      %20 = arith.maximumf %18, %19 : vector<128x128xf32>
      %c0_17 = arith.constant 0 : index
      %c0_18 = arith.constant 0 : index
      %21 = vector.load %arg7[%c0_17, %c0_18] : memref<128x128xf32, #tpu.memory_space<vmem>>, vector<128x128xf32>
      tpu.vector_store %arg7[%c0_17, %c0_18], %20 {strides = array<i32>} : memref<128x128xf32, #tpu.memory_space<vmem>>, vector<128x128xf32>,
    } else {
    }
    return
  }
  func.func @transform_0(%arg0: i32, %arg1: i32, %arg2: i32) -> (i32, i32) {
    %c0_i32 = arith.constant 0 : i32
    return %arg0, %arg2 : i32, i32
  }
  func.func @transform_1(%arg0: i32, %arg1: i32, %arg2: i32) -> (i32, i32) {
    %c0_i32 = arith.constant 0 : i32
    return %arg2, %arg1 : i32, i32
  }
  func.func @transform_2(%arg0: i32, %arg1: i32, %arg2: i32) -> (i32, i32) {
    %c0_i32 = arith.constant 0 : i32
    %c0_i32_0 = arith.constant 0 : i32
    return %c0_i32, %arg1 : i32, i32
  }
  func.func @transform_3(%arg0: i32, %arg1: i32, %arg2: i32) -> (i32, i32) {
    %c0_i32 = arith.constant 0 : i32
    %c0_i32_0 = arith.constant 0 : i32
    return %c0_i32, %arg1 : i32, i32
  }
  func.func @transform_4(%arg0: i32, %arg1: i32, %arg2: i32) -> (i32, i32) {
    %c0_i32 = arith.constant 0 : i32
    return %arg0, %arg1 : i32, i32
  }
}

module attributes {stable_mosaic.version = 11 : i64} {
  func.func @_maxpool9_kernel(%arg0: i32, %arg1: i32, %arg2: memref<32x128xf32, #tpu.memory_space<vmem>>, %arg3: memref<32x128xf32, #tpu.memory_space<vmem>>, %arg4: memref<32x128xf32, #tpu.memory_space<vmem>>, %arg5: memref<32x128xf32, #tpu.memory_space<vmem>>, %arg6: memref<32x128xf32, #tpu.memory_space<vmem>>, %arg7: memref<32x128xf32, #tpu.memory_space<vmem>>, %arg8: memref<32x128xf32, #tpu.memory_space<vmem>>, %arg9: memref<32x128xf32, #tpu.memory_space<vmem>>, %arg10: memref<32x128xf32, #tpu.memory_space<vmem>>, %arg11: memref<32x128xf32, #tpu.memory_space<vmem>>) attributes {dimension_semantics = [#tpu.dimension_semantics<parallel>, #tpu.dimension_semantics<parallel>], iteration_bounds = array<i64: 1, 1>, scalar_prefetch = 0 : i64, scratch_operands = 0 : i64, tpu.core_type = #tpu.core_type<tc>, window_params = [{transform_indices = @transform_0, window_bounds = array<i64: 32, 128>}, {transform_indices = @transform_1, window_bounds = array<i64: 32, 128>}, {transform_indices = @transform_2, window_bounds = array<i64: 32, 128>}, {transform_indices = @transform_3, window_bounds = array<i64: 32, 128>}, {transform_indices = @transform_4, window_bounds = array<i64: 32, 128>}, {transform_indices = @transform_5, window_bounds = array<i64: 32, 128>}, {transform_indices = @transform_6, window_bounds = array<i64: 32, 128>}, {transform_indices = @transform_7, window_bounds = array<i64: 32, 128>}, {transform_indices = @transform_8, window_bounds = array<i64: 32, 128>}, {transform_indices = @transform_9, window_bounds = array<i64: 32, 128>}]} {
    %c0 = arith.constant 0 : index
    %c0_0 = arith.constant 0 : index
    %0 = vector.load %arg2[%c0, %c0_0] : memref<32x128xf32, #tpu.memory_space<vmem>>, vector<32x128xf32>
    %c0_1 = arith.constant 0 : index
    %c0_2 = arith.constant 0 : index
    %1 = vector.load %arg3[%c0_1, %c0_2] : memref<32x128xf32, #tpu.memory_space<vmem>>, vector<32x128xf32>
    %2 = arith.maximumf %0, %1 : vector<32x128xf32>
    %c0_3 = arith.constant 0 : index
    %c0_4 = arith.constant 0 : index
    %3 = vector.load %arg4[%c0_3, %c0_4] : memref<32x128xf32, #tpu.memory_space<vmem>>, vector<32x128xf32>
    %4 = arith.maximumf %2, %3 : vector<32x128xf32>
    %c0_5 = arith.constant 0 : index
    %c0_6 = arith.constant 0 : index
    %5 = vector.load %arg5[%c0_5, %c0_6] : memref<32x128xf32, #tpu.memory_space<vmem>>, vector<32x128xf32>
    %6 = arith.maximumf %4, %5 : vector<32x128xf32>
    %c0_7 = arith.constant 0 : index
    %c0_8 = arith.constant 0 : index
    %7 = vector.load %arg6[%c0_7, %c0_8] : memref<32x128xf32, #tpu.memory_space<vmem>>, vector<32x128xf32>
    %8 = arith.maximumf %6, %7 : vector<32x128xf32>
    %c0_9 = arith.constant 0 : index
    %c0_10 = arith.constant 0 : index
    %9 = vector.load %arg7[%c0_9, %c0_10] : memref<32x128xf32, #tpu.memory_space<vmem>>, vector<32x128xf32>
    %10 = arith.maximumf %8, %9 : vector<32x128xf32>
    %c0_11 = arith.constant 0 : index
    %c0_12 = arith.constant 0 : index
    %11 = vector.load %arg8[%c0_11, %c0_12] : memref<32x128xf32, #tpu.memory_space<vmem>>, vector<32x128xf32>
    %12 = arith.maximumf %10, %11 : vector<32x128xf32>
    %c0_13 = arith.constant 0 : index
    %c0_14 = arith.constant 0 : index
    %13 = vector.load %arg9[%c0_13, %c0_14] : memref<32x128xf32, #tpu.memory_space<vmem>>, vector<32x128xf32>
    %14 = arith.maximumf %12, %13 : vector<32x128xf32>
    %c0_15 = arith.constant 0 : index
    %c0_16 = arith.constant 0 : index
    %15 = vector.load %arg10[%c0_15, %c0_16] : memref<32x128xf32, #tpu.memory_space<vmem>>, vector<32x128xf32>
    %16 = arith.maximumf %14, %15 : vector<32x128xf32>
    %c0_17 = arith.constant 0 : index
    %c0_18 = arith.constant 0 : index
    %17 = vector.load %arg11[%c0_17, %c0_18] : memref<32x128xf32, #tpu.memory_space<vmem>>, vector<32x128xf32>
    tpu.vector_store %arg11[%c0_17, %c0_18], %16 {strides = array<i32>} : memref<32x128xf32, #tpu.memory_space<vmem>>, vector<32x128xf32>,
    return
  }
  func.func @transform_0(%arg0: i32, %arg1: i32) -> (i32, i32) {
    %c0_i32 = arith.constant 0 : i32
    return %arg0, %arg1 : i32, i32
  }
  func.func @transform_1(%arg0: i32, %arg1: i32) -> (i32, i32) {
    %c0_i32 = arith.constant 0 : i32
    return %arg0, %arg1 : i32, i32
  }
  func.func @transform_2(%arg0: i32, %arg1: i32) -> (i32, i32) {
    %c0_i32 = arith.constant 0 : i32
    return %arg0, %arg1 : i32, i32
  }
  func.func @transform_3(%arg0: i32, %arg1: i32) -> (i32, i32) {
    %c0_i32 = arith.constant 0 : i32
    return %arg0, %arg1 : i32, i32
  }
  func.func @transform_4(%arg0: i32, %arg1: i32) -> (i32, i32) {
    %c0_i32 = arith.constant 0 : i32
    return %arg0, %arg1 : i32, i32
  }
  func.func @transform_5(%arg0: i32, %arg1: i32) -> (i32, i32) {
    %c0_i32 = arith.constant 0 : i32
    return %arg0, %arg1 : i32, i32
  }
  func.func @transform_6(%arg0: i32, %arg1: i32) -> (i32, i32) {
    %c0_i32 = arith.constant 0 : i32
    return %arg0, %arg1 : i32, i32
  }
  func.func @transform_7(%arg0: i32, %arg1: i32) -> (i32, i32) {
    %c0_i32 = arith.constant 0 : i32
    return %arg0, %arg1 : i32, i32
  }
  func.func @transform_8(%arg0: i32, %arg1: i32) -> (i32, i32) {
    %c0_i32 = arith.constant 0 : i32
    return %arg0, %arg1 : i32, i32
  }
  func.func @transform_9(%arg0: i32, %arg1: i32) -> (i32, i32) {
    %c0_i32 = arith.constant 0 : i32
    return %arg0, %arg1 : i32, i32
  }
}

module attributes {stable_mosaic.version = 11 : i64} {
  func.func @_conv_mm_kernel(%arg0: i32, %arg1: i32, %arg2: i32, %arg3: memref<32x128xbf16, #tpu.memory_space<vmem>>, %arg4: memref<128x128xbf16, #tpu.memory_space<vmem>>, %arg5: memref<1x128xf32, #tpu.memory_space<vmem>>, %arg6: memref<1x128xf32, #tpu.memory_space<vmem>>, %arg7: memref<32x128xf32, #tpu.memory_space<vmem>>, %arg8: memref<32x128xf32, #tpu.memory_space<vmem>>) attributes {dimension_semantics = [#tpu.dimension_semantics<parallel>, #tpu.dimension_semantics<parallel>, #tpu.dimension_semantics<arbitrary>], iteration_bounds = array<i64: 1, 1, 5>, scalar_prefetch = 0 : i64, scratch_operands = 1 : i64, tpu.core_type = #tpu.core_type<tc>, window_params = [{transform_indices = @transform_0, window_bounds = array<i64: 32, 128>}, {transform_indices = @transform_1, window_bounds = array<i64: 128, 128>}, {transform_indices = @transform_2, window_bounds = array<i64: 1, 128>}, {transform_indices = @transform_3, window_bounds = array<i64: 1, 128>}, {transform_indices = @transform_4, window_bounds = array<i64: 32, 128>}]} {
    %c0_i32 = arith.constant 0 : i32
    %0 = arith.cmpi eq, %arg2, %c0_i32 : i32
    %1 = arith.extui %0 : i1 to i32
    %c0_i32_0 = arith.constant 0 : i32
    %2 = arith.cmpi ne, %1, %c0_i32_0 : i32
    scf.if %2 {
      %cst_9 = arith.constant 0.000000e+00 : f32
      %12 = vector.broadcast %cst_9 : f32 to vector<32x128xf32>
      %c0_10 = arith.constant 0 : index
      %c0_11 = arith.constant 0 : index
      %13 = vector.load %arg8[%c0_10, %c0_11] : memref<32x128xf32, #tpu.memory_space<vmem>>, vector<32x128xf32>
      tpu.vector_store %arg8[%c0_10, %c0_11], %12 {strides = array<i32>} : memref<32x128xf32, #tpu.memory_space<vmem>>, vector<32x128xf32>,
    } else {
    }
    %c0 = arith.constant 0 : index
    %c0_1 = arith.constant 0 : index
    %3 = vector.load %arg8[%c0, %c0_1] : memref<32x128xf32, #tpu.memory_space<vmem>>, vector<32x128xf32>
    %c0_2 = arith.constant 0 : index
    %c0_3 = arith.constant 0 : index
    %4 = vector.load %arg3[%c0_2, %c0_3] : memref<32x128xbf16, #tpu.memory_space<vmem>>, vector<32x128xbf16>
    %c0_4 = arith.constant 0 : index
    %c0_5 = arith.constant 0 : index
    %5 = vector.load %arg4[%c0_4, %c0_5] : memref<128x128xbf16, #tpu.memory_space<vmem>>, vector<128x128xbf16>
    %cst = arith.constant dense<0.000000e+00> : vector<32x128xf32>
    %6 = tpu.matmul %4, %5, %cst {dimension_numbers = #tpu.dot_dimension_numbers<[1], [0], [0], [1], [0, 0, 1, 1], [], []>} : vector<32x128xbf16>, vector<128x128xbf16>, vector<32x128xf32> -> vector<32x128xf32>
    %7 = arith.addf %3, %6 : vector<32x128xf32>
    %c0_6 = arith.constant 0 : index
    %c0_7 = arith.constant 0 : index
    %8 = vector.load %arg8[%c0_6, %c0_7] : memref<32x128xf32, #tpu.memory_space<vmem>>, vector<32x128xf32>
    tpu.vector_store %arg8[%c0_6, %c0_7], %7 {strides = array<i32>} : memref<32x128xf32, #tpu.memory_space<vmem>>, vector<32x128xf32>,
    %c4_i32 = arith.constant 4 : i32
    %9 = arith.cmpi eq, %arg2, %c4_i32 : i32
    %10 = arith.extui %9 : i1 to i32
    %c0_i32_8 = arith.constant 0 : i32
    %11 = arith.cmpi ne, %10, %c0_i32_8 : i32
    scf.if %11 {
      %c0_9 = arith.constant 0 : index
      %c0_10 = arith.constant 0 : index
      %12 = vector.load %arg8[%c0_9, %c0_10] : memref<32x128xf32, #tpu.memory_space<vmem>>, vector<32x128xf32>
      %c0_11 = arith.constant 0 : index
      %c0_12 = arith.constant 0 : index
      %13 = vector.load %arg5[%c0_11, %c0_12] : memref<1x128xf32, #tpu.memory_space<vmem>>, vector<1x128xf32>
      %14 = vector.broadcast %13 : vector<1x128xf32> to vector<32x128xf32>
      %15 = arith.mulf %12, %14 : vector<32x128xf32>
      %c0_13 = arith.constant 0 : index
      %c0_14 = arith.constant 0 : index
      %16 = vector.load %arg6[%c0_13, %c0_14] : memref<1x128xf32, #tpu.memory_space<vmem>>, vector<1x128xf32>
      %17 = vector.broadcast %16 : vector<1x128xf32> to vector<32x128xf32>
      %18 = arith.addf %15, %17 : vector<32x128xf32>
      %cst_15 = arith.constant 0.000000e+00 : f32
      %19 = vector.broadcast %cst_15 : f32 to vector<32x128xf32>
      %20 = arith.maximumf %18, %19 : vector<32x128xf32>
      %c0_16 = arith.constant 0 : index
      %c0_17 = arith.constant 0 : index
      %21 = vector.load %arg7[%c0_16, %c0_17] : memref<32x128xf32, #tpu.memory_space<vmem>>, vector<32x128xf32>
      tpu.vector_store %arg7[%c0_16, %c0_17], %20 {strides = array<i32>} : memref<32x128xf32, #tpu.memory_space<vmem>>, vector<32x128xf32>,
    } else {
    }
    return
  }
  func.func @transform_0(%arg0: i32, %arg1: i32, %arg2: i32) -> (i32, i32) {
    %c0_i32 = arith.constant 0 : i32
    return %arg0, %arg2 : i32, i32
  }
  func.func @transform_1(%arg0: i32, %arg1: i32, %arg2: i32) -> (i32, i32) {
    %c0_i32 = arith.constant 0 : i32
    return %arg2, %arg1 : i32, i32
  }
  func.func @transform_2(%arg0: i32, %arg1: i32, %arg2: i32) -> (i32, i32) {
    %c0_i32 = arith.constant 0 : i32
    %c0_i32_0 = arith.constant 0 : i32
    return %c0_i32, %arg1 : i32, i32
  }
  func.func @transform_3(%arg0: i32, %arg1: i32, %arg2: i32) -> (i32, i32) {
    %c0_i32 = arith.constant 0 : i32
    %c0_i32_0 = arith.constant 0 : i32
    return %c0_i32, %arg1 : i32, i32
  }
  func.func @transform_4(%arg0: i32, %arg1: i32, %arg2: i32) -> (i32, i32) {
    %c0_i32 = arith.constant 0 : i32
    return %arg0, %arg1 : i32, i32
  }
}

module attributes {stable_mosaic.version = 11 : i64} {
  func.func @_conv_mm_kernel(%arg0: i32, %arg1: i32, %arg2: i32, %arg3: memref<8x128xbf16, #tpu.memory_space<vmem>>, %arg4: memref<128x128xbf16, #tpu.memory_space<vmem>>, %arg5: memref<1x128xf32, #tpu.memory_space<vmem>>, %arg6: memref<1x128xf32, #tpu.memory_space<vmem>>, %arg7: memref<8x128xf32, #tpu.memory_space<vmem>>, %arg8: memref<8x128xf32, #tpu.memory_space<vmem>>) attributes {dimension_semantics = [#tpu.dimension_semantics<parallel>, #tpu.dimension_semantics<parallel>, #tpu.dimension_semantics<arbitrary>], iteration_bounds = array<i64: 1, 1, 1>, scalar_prefetch = 0 : i64, scratch_operands = 1 : i64, tpu.core_type = #tpu.core_type<tc>, window_params = [{transform_indices = @transform_0, window_bounds = array<i64: 8, 128>}, {transform_indices = @transform_1, window_bounds = array<i64: 128, 128>}, {transform_indices = @transform_2, window_bounds = array<i64: 1, 128>}, {transform_indices = @transform_3, window_bounds = array<i64: 1, 128>}, {transform_indices = @transform_4, window_bounds = array<i64: 8, 128>}]} {
    %c0_i32 = arith.constant 0 : i32
    %0 = arith.cmpi eq, %arg2, %c0_i32 : i32
    %1 = arith.extui %0 : i1 to i32
    %c0_i32_0 = arith.constant 0 : i32
    %2 = arith.cmpi ne, %1, %c0_i32_0 : i32
    scf.if %2 {
      %cst_10 = arith.constant 0.000000e+00 : f32
      %12 = vector.broadcast %cst_10 : f32 to vector<8x128xf32>
      %c0_11 = arith.constant 0 : index
      %c0_12 = arith.constant 0 : index
      %13 = vector.load %arg8[%c0_11, %c0_12] : memref<8x128xf32, #tpu.memory_space<vmem>>, vector<8x128xf32>
      tpu.vector_store %arg8[%c0_11, %c0_12], %12 {strides = array<i32>} : memref<8x128xf32, #tpu.memory_space<vmem>>, vector<8x128xf32>,
    } else {
    }
    %c0 = arith.constant 0 : index
    %c0_1 = arith.constant 0 : index
    %3 = vector.load %arg8[%c0, %c0_1] : memref<8x128xf32, #tpu.memory_space<vmem>>, vector<8x128xf32>
    %c0_2 = arith.constant 0 : index
    %c0_3 = arith.constant 0 : index
    %4 = vector.load %arg3[%c0_2, %c0_3] : memref<8x128xbf16, #tpu.memory_space<vmem>>, vector<8x128xbf16>
    %c0_4 = arith.constant 0 : index
    %c0_5 = arith.constant 0 : index
    %5 = vector.load %arg4[%c0_4, %c0_5] : memref<128x128xbf16, #tpu.memory_space<vmem>>, vector<128x128xbf16>
    %cst = arith.constant dense<0.000000e+00> : vector<8x128xf32>
    %6 = tpu.matmul %4, %5, %cst {dimension_numbers = #tpu.dot_dimension_numbers<[1], [0], [0], [1], [0, 0, 1, 1], [], []>} : vector<8x128xbf16>, vector<128x128xbf16>, vector<8x128xf32> -> vector<8x128xf32>
    %7 = arith.addf %3, %6 : vector<8x128xf32>
    %c0_6 = arith.constant 0 : index
    %c0_7 = arith.constant 0 : index
    %8 = vector.load %arg8[%c0_6, %c0_7] : memref<8x128xf32, #tpu.memory_space<vmem>>, vector<8x128xf32>
    tpu.vector_store %arg8[%c0_6, %c0_7], %7 {strides = array<i32>} : memref<8x128xf32, #tpu.memory_space<vmem>>, vector<8x128xf32>,
    %c0_i32_8 = arith.constant 0 : i32
    %9 = arith.cmpi eq, %arg2, %c0_i32_8 : i32
    %10 = arith.extui %9 : i1 to i32
    %c0_i32_9 = arith.constant 0 : i32
    %11 = arith.cmpi ne, %10, %c0_i32_9 : i32
    scf.if %11 {
      %c0_10 = arith.constant 0 : index
      %c0_11 = arith.constant 0 : index
      %12 = vector.load %arg8[%c0_10, %c0_11] : memref<8x128xf32, #tpu.memory_space<vmem>>, vector<8x128xf32>
      %c0_12 = arith.constant 0 : index
      %c0_13 = arith.constant 0 : index
      %13 = vector.load %arg5[%c0_12, %c0_13] : memref<1x128xf32, #tpu.memory_space<vmem>>, vector<1x128xf32>
      %14 = vector.broadcast %13 : vector<1x128xf32> to vector<8x128xf32>
      %15 = arith.mulf %12, %14 : vector<8x128xf32>
      %c0_14 = arith.constant 0 : index
      %c0_15 = arith.constant 0 : index
      %16 = vector.load %arg6[%c0_14, %c0_15] : memref<1x128xf32, #tpu.memory_space<vmem>>, vector<1x128xf32>
      %17 = vector.broadcast %16 : vector<1x128xf32> to vector<8x128xf32>
      %18 = arith.addf %15, %17 : vector<8x128xf32>
      %c0_16 = arith.constant 0 : index
      %c0_17 = arith.constant 0 : index
      %19 = vector.load %arg7[%c0_16, %c0_17] : memref<8x128xf32, #tpu.memory_space<vmem>>, vector<8x128xf32>
      tpu.vector_store %arg7[%c0_16, %c0_17], %18 {strides = array<i32>} : memref<8x128xf32, #tpu.memory_space<vmem>>, vector<8x128xf32>,
    } else {
    }
    return
  }
  func.func @transform_0(%arg0: i32, %arg1: i32, %arg2: i32) -> (i32, i32) {
    %c0_i32 = arith.constant 0 : i32
    return %arg0, %arg2 : i32, i32
  }
  func.func @transform_1(%arg0: i32, %arg1: i32, %arg2: i32) -> (i32, i32) {
    %c0_i32 = arith.constant 0 : i32
    return %arg2, %arg1 : i32, i32
  }
  func.func @transform_2(%arg0: i32, %arg1: i32, %arg2: i32) -> (i32, i32) {
    %c0_i32 = arith.constant 0 : i32
    %c0_i32_0 = arith.constant 0 : i32
    return %c0_i32, %arg1 : i32, i32
  }
  func.func @transform_3(%arg0: i32, %arg1: i32, %arg2: i32) -> (i32, i32) {
    %c0_i32 = arith.constant 0 : i32
    %c0_i32_0 = arith.constant 0 : i32
    return %c0_i32, %arg1 : i32, i32
  }
  func.func @transform_4(%arg0: i32, %arg1: i32, %arg2: i32) -> (i32, i32) {
    %c0_i32 = arith.constant 0 : i32
    return %arg0, %arg1 : i32, i32
  }
}

module attributes {stable_mosaic.version = 11 : i64} {
  func.func @_conv_mm_res_kernel(%arg0: i32, %arg1: i32, %arg2: i32, %arg3: memref<32x128xbf16, #tpu.memory_space<vmem>>, %arg4: memref<128x128xbf16, #tpu.memory_space<vmem>>, %arg5: memref<1x128xf32, #tpu.memory_space<vmem>>, %arg6: memref<1x128xf32, #tpu.memory_space<vmem>>, %arg7: memref<32x128xf32, #tpu.memory_space<vmem>>, %arg8: memref<32x128xf32, #tpu.memory_space<vmem>>, %arg9: memref<32x128xf32, #tpu.memory_space<vmem>>) attributes {dimension_semantics = [#tpu.dimension_semantics<parallel>, #tpu.dimension_semantics<parallel>, #tpu.dimension_semantics<arbitrary>], iteration_bounds = array<i64: 1, 1, 5>, scalar_prefetch = 0 : i64, scratch_operands = 1 : i64, tpu.core_type = #tpu.core_type<tc>, window_params = [{transform_indices = @transform_0, window_bounds = array<i64: 32, 128>}, {transform_indices = @transform_1, window_bounds = array<i64: 128, 128>}, {transform_indices = @transform_2, window_bounds = array<i64: 1, 128>}, {transform_indices = @transform_3, window_bounds = array<i64: 1, 128>}, {transform_indices = @transform_4, window_bounds = array<i64: 32, 128>}, {transform_indices = @transform_5, window_bounds = array<i64: 32, 128>}]} {
    %c0_i32 = arith.constant 0 : i32
    %0 = arith.cmpi eq, %arg2, %c0_i32 : i32
    %1 = arith.extui %0 : i1 to i32
    %c0_i32_0 = arith.constant 0 : i32
    %2 = arith.cmpi ne, %1, %c0_i32_0 : i32
    scf.if %2 {
      %cst_9 = arith.constant 0.000000e+00 : f32
      %12 = vector.broadcast %cst_9 : f32 to vector<32x128xf32>
      %c0_10 = arith.constant 0 : index
      %c0_11 = arith.constant 0 : index
      %13 = vector.load %arg9[%c0_10, %c0_11] : memref<32x128xf32, #tpu.memory_space<vmem>>, vector<32x128xf32>
      tpu.vector_store %arg9[%c0_10, %c0_11], %12 {strides = array<i32>} : memref<32x128xf32, #tpu.memory_space<vmem>>, vector<32x128xf32>,
    } else {
    }
    %c0 = arith.constant 0 : index
    %c0_1 = arith.constant 0 : index
    %3 = vector.load %arg9[%c0, %c0_1] : memref<32x128xf32, #tpu.memory_space<vmem>>, vector<32x128xf32>
    %c0_2 = arith.constant 0 : index
    %c0_3 = arith.constant 0 : index
    %4 = vector.load %arg3[%c0_2, %c0_3] : memref<32x128xbf16, #tpu.memory_space<vmem>>, vector<32x128xbf16>
    %c0_4 = arith.constant 0 : index
    %c0_5 = arith.constant 0 : index
    %5 = vector.load %arg4[%c0_4, %c0_5] : memref<128x128xbf16, #tpu.memory_space<vmem>>, vector<128x128xbf16>
    %cst = arith.constant dense<0.000000e+00> : vector<32x128xf32>
    %6 = tpu.matmul %4, %5, %cst {dimension_numbers = #tpu.dot_dimension_numbers<[1], [0], [0], [1], [0, 0, 1, 1], [], []>} : vector<32x128xbf16>, vector<128x128xbf16>, vector<32x128xf32> -> vector<32x128xf32>
    %7 = arith.addf %3, %6 : vector<32x128xf32>
    %c0_6 = arith.constant 0 : index
    %c0_7 = arith.constant 0 : index
    %8 = vector.load %arg9[%c0_6, %c0_7] : memref<32x128xf32, #tpu.memory_space<vmem>>, vector<32x128xf32>
    tpu.vector_store %arg9[%c0_6, %c0_7], %7 {strides = array<i32>} : memref<32x128xf32, #tpu.memory_space<vmem>>, vector<32x128xf32>,
    %c4_i32 = arith.constant 4 : i32
    %9 = arith.cmpi eq, %arg2, %c4_i32 : i32
    %10 = arith.extui %9 : i1 to i32
    %c0_i32_8 = arith.constant 0 : i32
    %11 = arith.cmpi ne, %10, %c0_i32_8 : i32
    scf.if %11 {
      %c0_9 = arith.constant 0 : index
      %c0_10 = arith.constant 0 : index
      %12 = vector.load %arg9[%c0_9, %c0_10] : memref<32x128xf32, #tpu.memory_space<vmem>>, vector<32x128xf32>
      %c0_11 = arith.constant 0 : index
      %c0_12 = arith.constant 0 : index
      %13 = vector.load %arg5[%c0_11, %c0_12] : memref<1x128xf32, #tpu.memory_space<vmem>>, vector<1x128xf32>
      %14 = vector.broadcast %13 : vector<1x128xf32> to vector<32x128xf32>
      %15 = arith.mulf %12, %14 : vector<32x128xf32>
      %c0_13 = arith.constant 0 : index
      %c0_14 = arith.constant 0 : index
      %16 = vector.load %arg6[%c0_13, %c0_14] : memref<1x128xf32, #tpu.memory_space<vmem>>, vector<1x128xf32>
      %17 = vector.broadcast %16 : vector<1x128xf32> to vector<32x128xf32>
      %18 = arith.addf %15, %17 : vector<32x128xf32>
      %c0_15 = arith.constant 0 : index
      %c0_16 = arith.constant 0 : index
      %19 = vector.load %arg7[%c0_15, %c0_16] : memref<32x128xf32, #tpu.memory_space<vmem>>, vector<32x128xf32>
      %20 = arith.addf %18, %19 : vector<32x128xf32>
      %cst_17 = arith.constant 0.000000e+00 : f32
      %21 = vector.broadcast %cst_17 : f32 to vector<32x128xf32>
      %22 = arith.maximumf %20, %21 : vector<32x128xf32>
      %c0_18 = arith.constant 0 : index
      %c0_19 = arith.constant 0 : index
      %23 = vector.load %arg8[%c0_18, %c0_19] : memref<32x128xf32, #tpu.memory_space<vmem>>, vector<32x128xf32>
      tpu.vector_store %arg8[%c0_18, %c0_19], %22 {strides = array<i32>} : memref<32x128xf32, #tpu.memory_space<vmem>>, vector<32x128xf32>,
    } else {
    }
    return
  }
  func.func @transform_0(%arg0: i32, %arg1: i32, %arg2: i32) -> (i32, i32) {
    %c0_i32 = arith.constant 0 : i32
    return %arg0, %arg2 : i32, i32
  }
  func.func @transform_1(%arg0: i32, %arg1: i32, %arg2: i32) -> (i32, i32) {
    %c0_i32 = arith.constant 0 : i32
    return %arg2, %arg1 : i32, i32
  }
  func.func @transform_2(%arg0: i32, %arg1: i32, %arg2: i32) -> (i32, i32) {
    %c0_i32 = arith.constant 0 : i32
    %c0_i32_0 = arith.constant 0 : i32
    return %c0_i32, %arg1 : i32, i32
  }
  func.func @transform_3(%arg0: i32, %arg1: i32, %arg2: i32) -> (i32, i32) {
    %c0_i32 = arith.constant 0 : i32
    %c0_i32_0 = arith.constant 0 : i32
    return %c0_i32, %arg1 : i32, i32
  }
  func.func @transform_4(%arg0: i32, %arg1: i32, %arg2: i32) -> (i32, i32) {
    %c0_i32 = arith.constant 0 : i32
    return %arg0, %arg1 : i32, i32
  }
  func.func @transform_5(%arg0: i32, %arg1: i32, %arg2: i32) -> (i32, i32) {
    %c0_i32 = arith.constant 0 : i32
    return %arg0, %arg1 : i32, i32
  }
}

module attributes {stable_mosaic.version = 11 : i64} {
  func.func @_conv_mm_kernel(%arg0: i32, %arg1: i32, %arg2: i32, %arg3: memref<8x128xbf16, #tpu.memory_space<vmem>>, %arg4: memref<128x128xbf16, #tpu.memory_space<vmem>>, %arg5: memref<1x128xf32, #tpu.memory_space<vmem>>, %arg6: memref<1x128xf32, #tpu.memory_space<vmem>>, %arg7: memref<8x128xf32, #tpu.memory_space<vmem>>, %arg8: memref<8x128xf32, #tpu.memory_space<vmem>>) attributes {dimension_semantics = [#tpu.dimension_semantics<parallel>, #tpu.dimension_semantics<parallel>, #tpu.dimension_semantics<arbitrary>], iteration_bounds = array<i64: 1, 1, 5>, scalar_prefetch = 0 : i64, scratch_operands = 1 : i64, tpu.core_type = #tpu.core_type<tc>, window_params = [{transform_indices = @transform_0, window_bounds = array<i64: 8, 128>}, {transform_indices = @transform_1, window_bounds = array<i64: 128, 128>}, {transform_indices = @transform_2, window_bounds = array<i64: 1, 128>}, {transform_indices = @transform_3, window_bounds = array<i64: 1, 128>}, {transform_indices = @transform_4, window_bounds = array<i64: 8, 128>}]} {
    %c0_i32 = arith.constant 0 : i32
    %0 = arith.cmpi eq, %arg2, %c0_i32 : i32
    %1 = arith.extui %0 : i1 to i32
    %c0_i32_0 = arith.constant 0 : i32
    %2 = arith.cmpi ne, %1, %c0_i32_0 : i32
    scf.if %2 {
      %cst_9 = arith.constant 0.000000e+00 : f32
      %12 = vector.broadcast %cst_9 : f32 to vector<8x128xf32>
      %c0_10 = arith.constant 0 : index
      %c0_11 = arith.constant 0 : index
      %13 = vector.load %arg8[%c0_10, %c0_11] : memref<8x128xf32, #tpu.memory_space<vmem>>, vector<8x128xf32>
      tpu.vector_store %arg8[%c0_10, %c0_11], %12 {strides = array<i32>} : memref<8x128xf32, #tpu.memory_space<vmem>>, vector<8x128xf32>,
    } else {
    }
    %c0 = arith.constant 0 : index
    %c0_1 = arith.constant 0 : index
    %3 = vector.load %arg8[%c0, %c0_1] : memref<8x128xf32, #tpu.memory_space<vmem>>, vector<8x128xf32>
    %c0_2 = arith.constant 0 : index
    %c0_3 = arith.constant 0 : index
    %4 = vector.load %arg3[%c0_2, %c0_3] : memref<8x128xbf16, #tpu.memory_space<vmem>>, vector<8x128xbf16>
    %c0_4 = arith.constant 0 : index
    %c0_5 = arith.constant 0 : index
    %5 = vector.load %arg4[%c0_4, %c0_5] : memref<128x128xbf16, #tpu.memory_space<vmem>>, vector<128x128xbf16>
    %cst = arith.constant dense<0.000000e+00> : vector<8x128xf32>
    %6 = tpu.matmul %4, %5, %cst {dimension_numbers = #tpu.dot_dimension_numbers<[1], [0], [0], [1], [0, 0, 1, 1], [], []>} : vector<8x128xbf16>, vector<128x128xbf16>, vector<8x128xf32> -> vector<8x128xf32>
    %7 = arith.addf %3, %6 : vector<8x128xf32>
    %c0_6 = arith.constant 0 : index
    %c0_7 = arith.constant 0 : index
    %8 = vector.load %arg8[%c0_6, %c0_7] : memref<8x128xf32, #tpu.memory_space<vmem>>, vector<8x128xf32>
    tpu.vector_store %arg8[%c0_6, %c0_7], %7 {strides = array<i32>} : memref<8x128xf32, #tpu.memory_space<vmem>>, vector<8x128xf32>,
    %c4_i32 = arith.constant 4 : i32
    %9 = arith.cmpi eq, %arg2, %c4_i32 : i32
    %10 = arith.extui %9 : i1 to i32
    %c0_i32_8 = arith.constant 0 : i32
    %11 = arith.cmpi ne, %10, %c0_i32_8 : i32
    scf.if %11 {
      %c0_9 = arith.constant 0 : index
      %c0_10 = arith.constant 0 : index
      %12 = vector.load %arg8[%c0_9, %c0_10] : memref<8x128xf32, #tpu.memory_space<vmem>>, vector<8x128xf32>
      %c0_11 = arith.constant 0 : index
      %c0_12 = arith.constant 0 : index
      %13 = vector.load %arg5[%c0_11, %c0_12] : memref<1x128xf32, #tpu.memory_space<vmem>>, vector<1x128xf32>
      %14 = vector.broadcast %13 : vector<1x128xf32> to vector<8x128xf32>
      %15 = arith.mulf %12, %14 : vector<8x128xf32>
      %c0_13 = arith.constant 0 : index
      %c0_14 = arith.constant 0 : index
      %16 = vector.load %arg6[%c0_13, %c0_14] : memref<1x128xf32, #tpu.memory_space<vmem>>, vector<1x128xf32>
      %17 = vector.broadcast %16 : vector<1x128xf32> to vector<8x128xf32>
      %18 = arith.addf %15, %17 : vector<8x128xf32>
      %cst_15 = arith.constant 0.000000e+00 : f32
      %19 = vector.broadcast %cst_15 : f32 to vector<8x128xf32>
      %20 = arith.maximumf %18, %19 : vector<8x128xf32>
      %c0_16 = arith.constant 0 : index
      %c0_17 = arith.constant 0 : index
      %21 = vector.load %arg7[%c0_16, %c0_17] : memref<8x128xf32, #tpu.memory_space<vmem>>, vector<8x128xf32>
      tpu.vector_store %arg7[%c0_16, %c0_17], %20 {strides = array<i32>} : memref<8x128xf32, #tpu.memory_space<vmem>>, vector<8x128xf32>,
    } else {
    }
    return
  }
  func.func @transform_0(%arg0: i32, %arg1: i32, %arg2: i32) -> (i32, i32) {
    %c0_i32 = arith.constant 0 : i32
    return %arg0, %arg2 : i32, i32
  }
  func.func @transform_1(%arg0: i32, %arg1: i32, %arg2: i32) -> (i32, i32) {
    %c0_i32 = arith.constant 0 : i32
    return %arg2, %arg1 : i32, i32
  }
  func.func @transform_2(%arg0: i32, %arg1: i32, %arg2: i32) -> (i32, i32) {
    %c0_i32 = arith.constant 0 : i32
    %c0_i32_0 = arith.constant 0 : i32
    return %c0_i32, %arg1 : i32, i32
  }
  func.func @transform_3(%arg0: i32, %arg1: i32, %arg2: i32) -> (i32, i32) {
    %c0_i32 = arith.constant 0 : i32
    %c0_i32_0 = arith.constant 0 : i32
    return %c0_i32, %arg1 : i32, i32
  }
  func.func @transform_4(%arg0: i32, %arg1: i32, %arg2: i32) -> (i32, i32) {
    %c0_i32 = arith.constant 0 : i32
    return %arg0, %arg1 : i32, i32
  }
}

module attributes {stable_mosaic.version = 11 : i64} {
  func.func @_conv_mm_res_kernel(%arg0: i32, %arg1: i32, %arg2: i32, %arg3: memref<8x384xbf16, #tpu.memory_space<vmem>>, %arg4: memref<384x128xbf16, #tpu.memory_space<vmem>>, %arg5: memref<1x128xf32, #tpu.memory_space<vmem>>, %arg6: memref<1x128xf32, #tpu.memory_space<vmem>>, %arg7: memref<8x128xf32, #tpu.memory_space<vmem>>, %arg8: memref<8x128xf32, #tpu.memory_space<vmem>>, %arg9: memref<8x128xf32, #tpu.memory_space<vmem>>) attributes {dimension_semantics = [#tpu.dimension_semantics<parallel>, #tpu.dimension_semantics<parallel>, #tpu.dimension_semantics<arbitrary>], iteration_bounds = array<i64: 1, 1, 3>, scalar_prefetch = 0 : i64, scratch_operands = 1 : i64, tpu.core_type = #tpu.core_type<tc>, window_params = [{transform_indices = @transform_0, window_bounds = array<i64: 8, 384>}, {transform_indices = @transform_1, window_bounds = array<i64: 384, 128>}, {transform_indices = @transform_2, window_bounds = array<i64: 1, 128>}, {transform_indices = @transform_3, window_bounds = array<i64: 1, 128>}, {transform_indices = @transform_4, window_bounds = array<i64: 8, 128>}, {transform_indices = @transform_5, window_bounds = array<i64: 8, 128>}]} {
    %c0_i32 = arith.constant 0 : i32
    %0 = arith.cmpi eq, %arg2, %c0_i32 : i32
    %1 = arith.extui %0 : i1 to i32
    %c0_i32_0 = arith.constant 0 : i32
    %2 = arith.cmpi ne, %1, %c0_i32_0 : i32
    scf.if %2 {
      %cst_9 = arith.constant 0.000000e+00 : f32
      %12 = vector.broadcast %cst_9 : f32 to vector<8x128xf32>
      %c0_10 = arith.constant 0 : index
      %c0_11 = arith.constant 0 : index
      %13 = vector.load %arg9[%c0_10, %c0_11] : memref<8x128xf32, #tpu.memory_space<vmem>>, vector<8x128xf32>
      tpu.vector_store %arg9[%c0_10, %c0_11], %12 {strides = array<i32>} : memref<8x128xf32, #tpu.memory_space<vmem>>, vector<8x128xf32>,
    } else {
    }
    %c0 = arith.constant 0 : index
    %c0_1 = arith.constant 0 : index
    %3 = vector.load %arg9[%c0, %c0_1] : memref<8x128xf32, #tpu.memory_space<vmem>>, vector<8x128xf32>
    %c0_2 = arith.constant 0 : index
    %c0_3 = arith.constant 0 : index
    %4 = vector.load %arg3[%c0_2, %c0_3] : memref<8x384xbf16, #tpu.memory_space<vmem>>, vector<8x384xbf16>
    %c0_4 = arith.constant 0 : index
    %c0_5 = arith.constant 0 : index
    %5 = vector.load %arg4[%c0_4, %c0_5] : memref<384x128xbf16, #tpu.memory_space<vmem>>, vector<384x128xbf16>
    %cst = arith.constant dense<0.000000e+00> : vector<8x128xf32>
    %6 = tpu.matmul %4, %5, %cst {dimension_numbers = #tpu.dot_dimension_numbers<[1], [0], [0], [1], [0, 0, 1, 1], [], []>} : vector<8x384xbf16>, vector<384x128xbf16>, vector<8x128xf32> -> vector<8x128xf32>
    %7 = arith.addf %3, %6 : vector<8x128xf32>
    %c0_6 = arith.constant 0 : index
    %c0_7 = arith.constant 0 : index
    %8 = vector.load %arg9[%c0_6, %c0_7] : memref<8x128xf32, #tpu.memory_space<vmem>>, vector<8x128xf32>
    tpu.vector_store %arg9[%c0_6, %c0_7], %7 {strides = array<i32>} : memref<8x128xf32, #tpu.memory_space<vmem>>, vector<8x128xf32>,
    %c2_i32 = arith.constant 2 : i32
    %9 = arith.cmpi eq, %arg2, %c2_i32 : i32
    %10 = arith.extui %9 : i1 to i32
    %c0_i32_8 = arith.constant 0 : i32
    %11 = arith.cmpi ne, %10, %c0_i32_8 : i32
    scf.if %11 {
      %c0_9 = arith.constant 0 : index
      %c0_10 = arith.constant 0 : index
      %12 = vector.load %arg9[%c0_9, %c0_10] : memref<8x128xf32, #tpu.memory_space<vmem>>, vector<8x128xf32>
      %c0_11 = arith.constant 0 : index
      %c0_12 = arith.constant 0 : index
      %13 = vector.load %arg5[%c0_11, %c0_12] : memref<1x128xf32, #tpu.memory_space<vmem>>, vector<1x128xf32>
      %14 = vector.broadcast %13 : vector<1x128xf32> to vector<8x128xf32>
      %15 = arith.mulf %12, %14 : vector<8x128xf32>
      %c0_13 = arith.constant 0 : index
      %c0_14 = arith.constant 0 : index
      %16 = vector.load %arg6[%c0_13, %c0_14] : memref<1x128xf32, #tpu.memory_space<vmem>>, vector<1x128xf32>
      %17 = vector.broadcast %16 : vector<1x128xf32> to vector<8x128xf32>
      %18 = arith.addf %15, %17 : vector<8x128xf32>
      %c0_15 = arith.constant 0 : index
      %c0_16 = arith.constant 0 : index
      %19 = vector.load %arg7[%c0_15, %c0_16] : memref<8x128xf32, #tpu.memory_space<vmem>>, vector<8x128xf32>
      %20 = arith.addf %18, %19 : vector<8x128xf32>
      %cst_17 = arith.constant 0.000000e+00 : f32
      %21 = vector.broadcast %cst_17 : f32 to vector<8x128xf32>
      %22 = arith.maximumf %20, %21 : vector<8x128xf32>
      %c0_18 = arith.constant 0 : index
      %c0_19 = arith.constant 0 : index
      %23 = vector.load %arg8[%c0_18, %c0_19] : memref<8x128xf32, #tpu.memory_space<vmem>>, vector<8x128xf32>
      tpu.vector_store %arg8[%c0_18, %c0_19], %22 {strides = array<i32>} : memref<8x128xf32, #tpu.memory_space<vmem>>, vector<8x128xf32>,
    } else {
    }
    return
  }
  func.func @transform_0(%arg0: i32, %arg1: i32, %arg2: i32) -> (i32, i32) {
    %c0_i32 = arith.constant 0 : i32
    return %arg0, %arg2 : i32, i32
  }
  func.func @transform_1(%arg0: i32, %arg1: i32, %arg2: i32) -> (i32, i32) {
    %c0_i32 = arith.constant 0 : i32
    return %arg2, %arg1 : i32, i32
  }
  func.func @transform_2(%arg0: i32, %arg1: i32, %arg2: i32) -> (i32, i32) {
    %c0_i32 = arith.constant 0 : i32
    %c0_i32_0 = arith.constant 0 : i32
    return %c0_i32, %arg1 : i32, i32
  }
  func.func @transform_3(%arg0: i32, %arg1: i32, %arg2: i32) -> (i32, i32) {
    %c0_i32 = arith.constant 0 : i32
    %c0_i32_0 = arith.constant 0 : i32
    return %c0_i32, %arg1 : i32, i32
  }
  func.func @transform_4(%arg0: i32, %arg1: i32, %arg2: i32) -> (i32, i32) {
    %c0_i32 = arith.constant 0 : i32
    return %arg0, %arg1 : i32, i32
  }
  func.func @transform_5(%arg0: i32, %arg1: i32, %arg2: i32) -> (i32, i32) {
    %c0_i32 = arith.constant 0 : i32
    return %arg0, %arg1 : i32, i32
  }
}

module attributes {stable_mosaic.version = 11 : i64} {
  func.func @_conv_mm_kernel(%arg0: i32, %arg1: i32, %arg2: i32, %arg3: memref<8x384xbf16, #tpu.memory_space<vmem>>, %arg4: memref<384x256xbf16, #tpu.memory_space<vmem>>, %arg5: memref<1x256xf32, #tpu.memory_space<vmem>>, %arg6: memref<1x256xf32, #tpu.memory_space<vmem>>, %arg7: memref<8x256xf32, #tpu.memory_space<vmem>>, %arg8: memref<8x256xf32, #tpu.memory_space<vmem>>) attributes {dimension_semantics = [#tpu.dimension_semantics<parallel>, #tpu.dimension_semantics<parallel>, #tpu.dimension_semantics<arbitrary>], iteration_bounds = array<i64: 1, 1, 3>, scalar_prefetch = 0 : i64, scratch_operands = 1 : i64, tpu.core_type = #tpu.core_type<tc>, window_params = [{transform_indices = @transform_0, window_bounds = array<i64: 8, 384>}, {transform_indices = @transform_1, window_bounds = array<i64: 384, 256>}, {transform_indices = @transform_2, window_bounds = array<i64: 1, 256>}, {transform_indices = @transform_3, window_bounds = array<i64: 1, 256>}, {transform_indices = @transform_4, window_bounds = array<i64: 8, 256>}]} {
    %c0_i32 = arith.constant 0 : i32
    %0 = arith.cmpi eq, %arg2, %c0_i32 : i32
    %1 = arith.extui %0 : i1 to i32
    %c0_i32_0 = arith.constant 0 : i32
    %2 = arith.cmpi ne, %1, %c0_i32_0 : i32
    scf.if %2 {
      %cst_9 = arith.constant 0.000000e+00 : f32
      %12 = vector.broadcast %cst_9 : f32 to vector<8x256xf32>
      %c0_10 = arith.constant 0 : index
      %c0_11 = arith.constant 0 : index
      %13 = vector.load %arg8[%c0_10, %c0_11] : memref<8x256xf32, #tpu.memory_space<vmem>>, vector<8x256xf32>
      tpu.vector_store %arg8[%c0_10, %c0_11], %12 {strides = array<i32>} : memref<8x256xf32, #tpu.memory_space<vmem>>, vector<8x256xf32>,
    } else {
    }
    %c0 = arith.constant 0 : index
    %c0_1 = arith.constant 0 : index
    %3 = vector.load %arg8[%c0, %c0_1] : memref<8x256xf32, #tpu.memory_space<vmem>>, vector<8x256xf32>
    %c0_2 = arith.constant 0 : index
    %c0_3 = arith.constant 0 : index
    %4 = vector.load %arg3[%c0_2, %c0_3] : memref<8x384xbf16, #tpu.memory_space<vmem>>, vector<8x384xbf16>
    %c0_4 = arith.constant 0 : index
    %c0_5 = arith.constant 0 : index
    %5 = vector.load %arg4[%c0_4, %c0_5] : memref<384x256xbf16, #tpu.memory_space<vmem>>, vector<384x256xbf16>
    %cst = arith.constant dense<0.000000e+00> : vector<8x256xf32>
    %6 = tpu.matmul %4, %5, %cst {dimension_numbers = #tpu.dot_dimension_numbers<[1], [0], [0], [1], [0, 0, 1, 1], [], []>} : vector<8x384xbf16>, vector<384x256xbf16>, vector<8x256xf32> -> vector<8x256xf32>
    %7 = arith.addf %3, %6 : vector<8x256xf32>
    %c0_6 = arith.constant 0 : index
    %c0_7 = arith.constant 0 : index
    %8 = vector.load %arg8[%c0_6, %c0_7] : memref<8x256xf32, #tpu.memory_space<vmem>>, vector<8x256xf32>
    tpu.vector_store %arg8[%c0_6, %c0_7], %7 {strides = array<i32>} : memref<8x256xf32, #tpu.memory_space<vmem>>, vector<8x256xf32>,
    %c2_i32 = arith.constant 2 : i32
    %9 = arith.cmpi eq, %arg2, %c2_i32 : i32
    %10 = arith.extui %9 : i1 to i32
    %c0_i32_8 = arith.constant 0 : i32
    %11 = arith.cmpi ne, %10, %c0_i32_8 : i32
    scf.if %11 {
      %c0_9 = arith.constant 0 : index
      %c0_10 = arith.constant 0 : index
      %12 = vector.load %arg8[%c0_9, %c0_10] : memref<8x256xf32, #tpu.memory_space<vmem>>, vector<8x256xf32>
      %c0_11 = arith.constant 0 : index
      %c0_12 = arith.constant 0 : index
      %13 = vector.load %arg5[%c0_11, %c0_12] : memref<1x256xf32, #tpu.memory_space<vmem>>, vector<1x256xf32>
      %14 = vector.broadcast %13 : vector<1x256xf32> to vector<8x256xf32>
      %15 = arith.mulf %12, %14 : vector<8x256xf32>
      %c0_13 = arith.constant 0 : index
      %c0_14 = arith.constant 0 : index
      %16 = vector.load %arg6[%c0_13, %c0_14] : memref<1x256xf32, #tpu.memory_space<vmem>>, vector<1x256xf32>
      %17 = vector.broadcast %16 : vector<1x256xf32> to vector<8x256xf32>
      %18 = arith.addf %15, %17 : vector<8x256xf32>
      %cst_15 = arith.constant 0.000000e+00 : f32
      %19 = vector.broadcast %cst_15 : f32 to vector<8x256xf32>
      %20 = arith.maximumf %18, %19 : vector<8x256xf32>
      %c0_16 = arith.constant 0 : index
      %c0_17 = arith.constant 0 : index
      %21 = vector.load %arg7[%c0_16, %c0_17] : memref<8x256xf32, #tpu.memory_space<vmem>>, vector<8x256xf32>
      tpu.vector_store %arg7[%c0_16, %c0_17], %20 {strides = array<i32>} : memref<8x256xf32, #tpu.memory_space<vmem>>, vector<8x256xf32>,
    } else {
    }
    return
  }
  func.func @transform_0(%arg0: i32, %arg1: i32, %arg2: i32) -> (i32, i32) {
    %c0_i32 = arith.constant 0 : i32
    return %arg0, %arg2 : i32, i32
  }
  func.func @transform_1(%arg0: i32, %arg1: i32, %arg2: i32) -> (i32, i32) {
    %c0_i32 = arith.constant 0 : i32
    return %arg2, %arg1 : i32, i32
  }
  func.func @transform_2(%arg0: i32, %arg1: i32, %arg2: i32) -> (i32, i32) {
    %c0_i32 = arith.constant 0 : i32
    %c0_i32_0 = arith.constant 0 : i32
    return %c0_i32, %arg1 : i32, i32
  }
  func.func @transform_3(%arg0: i32, %arg1: i32, %arg2: i32) -> (i32, i32) {
    %c0_i32 = arith.constant 0 : i32
    %c0_i32_0 = arith.constant 0 : i32
    return %c0_i32, %arg1 : i32, i32
  }
  func.func @transform_4(%arg0: i32, %arg1: i32, %arg2: i32) -> (i32, i32) {
    %c0_i32 = arith.constant 0 : i32
    return %arg0, %arg1 : i32, i32
  }
}

module attributes {stable_mosaic.version = 11 : i64} {
  func.func @_conv_mm_kernel(%arg0: i32, %arg1: i32, %arg2: i32, %arg3: memref<8x128xbf16, #tpu.memory_space<vmem>>, %arg4: memref<128x256xbf16, #tpu.memory_space<vmem>>, %arg5: memref<1x256xf32, #tpu.memory_space<vmem>>, %arg6: memref<1x256xf32, #tpu.memory_space<vmem>>, %arg7: memref<8x256xf32, #tpu.memory_space<vmem>>, %arg8: memref<8x256xf32, #tpu.memory_space<vmem>>) attributes {dimension_semantics = [#tpu.dimension_semantics<parallel>, #tpu.dimension_semantics<parallel>, #tpu.dimension_semantics<arbitrary>], iteration_bounds = array<i64: 1, 1, 1>, scalar_prefetch = 0 : i64, scratch_operands = 1 : i64, tpu.core_type = #tpu.core_type<tc>, window_params = [{transform_indices = @transform_0, window_bounds = array<i64: 8, 128>}, {transform_indices = @transform_1, window_bounds = array<i64: 128, 256>}, {transform_indices = @transform_2, window_bounds = array<i64: 1, 256>}, {transform_indices = @transform_3, window_bounds = array<i64: 1, 256>}, {transform_indices = @transform_4, window_bounds = array<i64: 8, 256>}]} {
    %c0_i32 = arith.constant 0 : i32
    %0 = arith.cmpi eq, %arg2, %c0_i32 : i32
    %1 = arith.extui %0 : i1 to i32
    %c0_i32_0 = arith.constant 0 : i32
    %2 = arith.cmpi ne, %1, %c0_i32_0 : i32
    scf.if %2 {
      %cst_10 = arith.constant 0.000000e+00 : f32
      %12 = vector.broadcast %cst_10 : f32 to vector<8x256xf32>
      %c0_11 = arith.constant 0 : index
      %c0_12 = arith.constant 0 : index
      %13 = vector.load %arg8[%c0_11, %c0_12] : memref<8x256xf32, #tpu.memory_space<vmem>>, vector<8x256xf32>
      tpu.vector_store %arg8[%c0_11, %c0_12], %12 {strides = array<i32>} : memref<8x256xf32, #tpu.memory_space<vmem>>, vector<8x256xf32>,
    } else {
    }
    %c0 = arith.constant 0 : index
    %c0_1 = arith.constant 0 : index
    %3 = vector.load %arg8[%c0, %c0_1] : memref<8x256xf32, #tpu.memory_space<vmem>>, vector<8x256xf32>
    %c0_2 = arith.constant 0 : index
    %c0_3 = arith.constant 0 : index
    %4 = vector.load %arg3[%c0_2, %c0_3] : memref<8x128xbf16, #tpu.memory_space<vmem>>, vector<8x128xbf16>
    %c0_4 = arith.constant 0 : index
    %c0_5 = arith.constant 0 : index
    %5 = vector.load %arg4[%c0_4, %c0_5] : memref<128x256xbf16, #tpu.memory_space<vmem>>, vector<128x256xbf16>
    %cst = arith.constant dense<0.000000e+00> : vector<8x256xf32>
    %6 = tpu.matmul %4, %5, %cst {dimension_numbers = #tpu.dot_dimension_numbers<[1], [0], [0], [1], [0, 0, 1, 1], [], []>} : vector<8x128xbf16>, vector<128x256xbf16>, vector<8x256xf32> -> vector<8x256xf32>
    %7 = arith.addf %3, %6 : vector<8x256xf32>
    %c0_6 = arith.constant 0 : index
    %c0_7 = arith.constant 0 : index
    %8 = vector.load %arg8[%c0_6, %c0_7] : memref<8x256xf32, #tpu.memory_space<vmem>>, vector<8x256xf32>
    tpu.vector_store %arg8[%c0_6, %c0_7], %7 {strides = array<i32>} : memref<8x256xf32, #tpu.memory_space<vmem>>, vector<8x256xf32>,
    %c0_i32_8 = arith.constant 0 : i32
    %9 = arith.cmpi eq, %arg2, %c0_i32_8 : i32
    %10 = arith.extui %9 : i1 to i32
    %c0_i32_9 = arith.constant 0 : i32
    %11 = arith.cmpi ne, %10, %c0_i32_9 : i32
    scf.if %11 {
      %c0_10 = arith.constant 0 : index
      %c0_11 = arith.constant 0 : index
      %12 = vector.load %arg8[%c0_10, %c0_11] : memref<8x256xf32, #tpu.memory_space<vmem>>, vector<8x256xf32>
      %c0_12 = arith.constant 0 : index
      %c0_13 = arith.constant 0 : index
      %13 = vector.load %arg5[%c0_12, %c0_13] : memref<1x256xf32, #tpu.memory_space<vmem>>, vector<1x256xf32>
      %14 = vector.broadcast %13 : vector<1x256xf32> to vector<8x256xf32>
      %15 = arith.mulf %12, %14 : vector<8x256xf32>
      %c0_14 = arith.constant 0 : index
      %c0_15 = arith.constant 0 : index
      %16 = vector.load %arg6[%c0_14, %c0_15] : memref<1x256xf32, #tpu.memory_space<vmem>>, vector<1x256xf32>
      %17 = vector.broadcast %16 : vector<1x256xf32> to vector<8x256xf32>
      %18 = arith.addf %15, %17 : vector<8x256xf32>
      %c0_16 = arith.constant 0 : index
      %c0_17 = arith.constant 0 : index
      %19 = vector.load %arg7[%c0_16, %c0_17] : memref<8x256xf32, #tpu.memory_space<vmem>>, vector<8x256xf32>
      tpu.vector_store %arg7[%c0_16, %c0_17], %18 {strides = array<i32>} : memref<8x256xf32, #tpu.memory_space<vmem>>, vector<8x256xf32>,
    } else {
    }
    return
  }
  func.func @transform_0(%arg0: i32, %arg1: i32, %arg2: i32) -> (i32, i32) {
    %c0_i32 = arith.constant 0 : i32
    return %arg0, %arg2 : i32, i32
  }
  func.func @transform_1(%arg0: i32, %arg1: i32, %arg2: i32) -> (i32, i32) {
    %c0_i32 = arith.constant 0 : i32
    return %arg2, %arg1 : i32, i32
  }
  func.func @transform_2(%arg0: i32, %arg1: i32, %arg2: i32) -> (i32, i32) {
    %c0_i32 = arith.constant 0 : i32
    %c0_i32_0 = arith.constant 0 : i32
    return %c0_i32, %arg1 : i32, i32
  }
  func.func @transform_3(%arg0: i32, %arg1: i32, %arg2: i32) -> (i32, i32) {
    %c0_i32 = arith.constant 0 : i32
    %c0_i32_0 = arith.constant 0 : i32
    return %c0_i32, %arg1 : i32, i32
  }
  func.func @transform_4(%arg0: i32, %arg1: i32, %arg2: i32) -> (i32, i32) {
    %c0_i32 = arith.constant 0 : i32
    return %arg0, %arg1 : i32, i32
  }
}

module attributes {stable_mosaic.version = 11 : i64} {
  func.func @_conv_mm_res_kernel(%arg0: i32, %arg1: i32, %arg2: i32, %arg3: memref<8x384xbf16, #tpu.memory_space<vmem>>, %arg4: memref<384x256xbf16, #tpu.memory_space<vmem>>, %arg5: memref<1x256xf32, #tpu.memory_space<vmem>>, %arg6: memref<1x256xf32, #tpu.memory_space<vmem>>, %arg7: memref<8x256xf32, #tpu.memory_space<vmem>>, %arg8: memref<8x256xf32, #tpu.memory_space<vmem>>, %arg9: memref<8x256xf32, #tpu.memory_space<vmem>>) attributes {dimension_semantics = [#tpu.dimension_semantics<parallel>, #tpu.dimension_semantics<parallel>, #tpu.dimension_semantics<arbitrary>], iteration_bounds = array<i64: 1, 1, 6>, scalar_prefetch = 0 : i64, scratch_operands = 1 : i64, tpu.core_type = #tpu.core_type<tc>, window_params = [{transform_indices = @transform_0, window_bounds = array<i64: 8, 384>}, {transform_indices = @transform_1, window_bounds = array<i64: 384, 256>}, {transform_indices = @transform_2, window_bounds = array<i64: 1, 256>}, {transform_indices = @transform_3, window_bounds = array<i64: 1, 256>}, {transform_indices = @transform_4, window_bounds = array<i64: 8, 256>}, {transform_indices = @transform_5, window_bounds = array<i64: 8, 256>}]} {
    %c0_i32 = arith.constant 0 : i32
    %0 = arith.cmpi eq, %arg2, %c0_i32 : i32
    %1 = arith.extui %0 : i1 to i32
    %c0_i32_0 = arith.constant 0 : i32
    %2 = arith.cmpi ne, %1, %c0_i32_0 : i32
    scf.if %2 {
      %cst_9 = arith.constant 0.000000e+00 : f32
      %12 = vector.broadcast %cst_9 : f32 to vector<8x256xf32>
      %c0_10 = arith.constant 0 : index
      %c0_11 = arith.constant 0 : index
      %13 = vector.load %arg9[%c0_10, %c0_11] : memref<8x256xf32, #tpu.memory_space<vmem>>, vector<8x256xf32>
      tpu.vector_store %arg9[%c0_10, %c0_11], %12 {strides = array<i32>} : memref<8x256xf32, #tpu.memory_space<vmem>>, vector<8x256xf32>,
    } else {
    }
    %c0 = arith.constant 0 : index
    %c0_1 = arith.constant 0 : index
    %3 = vector.load %arg9[%c0, %c0_1] : memref<8x256xf32, #tpu.memory_space<vmem>>, vector<8x256xf32>
    %c0_2 = arith.constant 0 : index
    %c0_3 = arith.constant 0 : index
    %4 = vector.load %arg3[%c0_2, %c0_3] : memref<8x384xbf16, #tpu.memory_space<vmem>>, vector<8x384xbf16>
    %c0_4 = arith.constant 0 : index
    %c0_5 = arith.constant 0 : index
    %5 = vector.load %arg4[%c0_4, %c0_5] : memref<384x256xbf16, #tpu.memory_space<vmem>>, vector<384x256xbf16>
    %cst = arith.constant dense<0.000000e+00> : vector<8x256xf32>
    %6 = tpu.matmul %4, %5, %cst {dimension_numbers = #tpu.dot_dimension_numbers<[1], [0], [0], [1], [0, 0, 1, 1], [], []>} : vector<8x384xbf16>, vector<384x256xbf16>, vector<8x256xf32> -> vector<8x256xf32>
    %7 = arith.addf %3, %6 : vector<8x256xf32>
    %c0_6 = arith.constant 0 : index
    %c0_7 = arith.constant 0 : index
    %8 = vector.load %arg9[%c0_6, %c0_7] : memref<8x256xf32, #tpu.memory_space<vmem>>, vector<8x256xf32>
    tpu.vector_store %arg9[%c0_6, %c0_7], %7 {strides = array<i32>} : memref<8x256xf32, #tpu.memory_space<vmem>>, vector<8x256xf32>,
    %c5_i32 = arith.constant 5 : i32
    %9 = arith.cmpi eq, %arg2, %c5_i32 : i32
    %10 = arith.extui %9 : i1 to i32
    %c0_i32_8 = arith.constant 0 : i32
    %11 = arith.cmpi ne, %10, %c0_i32_8 : i32
    scf.if %11 {
      %c0_9 = arith.constant 0 : index
      %c0_10 = arith.constant 0 : index
      %12 = vector.load %arg9[%c0_9, %c0_10] : memref<8x256xf32, #tpu.memory_space<vmem>>, vector<8x256xf32>
      %c0_11 = arith.constant 0 : index
      %c0_12 = arith.constant 0 : index
      %13 = vector.load %arg5[%c0_11, %c0_12] : memref<1x256xf32, #tpu.memory_space<vmem>>, vector<1x256xf32>
      %14 = vector.broadcast %13 : vector<1x256xf32> to vector<8x256xf32>
      %15 = arith.mulf %12, %14 : vector<8x256xf32>
      %c0_13 = arith.constant 0 : index
      %c0_14 = arith.constant 0 : index
      %16 = vector.load %arg6[%c0_13, %c0_14] : memref<1x256xf32, #tpu.memory_space<vmem>>, vector<1x256xf32>
      %17 = vector.broadcast %16 : vector<1x256xf32> to vector<8x256xf32>
      %18 = arith.addf %15, %17 : vector<8x256xf32>
      %c0_15 = arith.constant 0 : index
      %c0_16 = arith.constant 0 : index
      %19 = vector.load %arg7[%c0_15, %c0_16] : memref<8x256xf32, #tpu.memory_space<vmem>>, vector<8x256xf32>
      %20 = arith.addf %18, %19 : vector<8x256xf32>
      %cst_17 = arith.constant 0.000000e+00 : f32
      %21 = vector.broadcast %cst_17 : f32 to vector<8x256xf32>
      %22 = arith.maximumf %20, %21 : vector<8x256xf32>
      %c0_18 = arith.constant 0 : index
      %c0_19 = arith.constant 0 : index
      %23 = vector.load %arg8[%c0_18, %c0_19] : memref<8x256xf32, #tpu.memory_space<vmem>>, vector<8x256xf32>
      tpu.vector_store %arg8[%c0_18, %c0_19], %22 {strides = array<i32>} : memref<8x256xf32, #tpu.memory_space<vmem>>, vector<8x256xf32>,
    } else {
    }
    return
  }
  func.func @transform_0(%arg0: i32, %arg1: i32, %arg2: i32) -> (i32, i32) {
    %c0_i32 = arith.constant 0 : i32
    return %arg0, %arg2 : i32, i32
  }
  func.func @transform_1(%arg0: i32, %arg1: i32, %arg2: i32) -> (i32, i32) {
    %c0_i32 = arith.constant 0 : i32
    return %arg2, %arg1 : i32, i32
  }
  func.func @transform_2(%arg0: i32, %arg1: i32, %arg2: i32) -> (i32, i32) {
    %c0_i32 = arith.constant 0 : i32
    %c0_i32_0 = arith.constant 0 : i32
    return %c0_i32, %arg1 : i32, i32
  }
  func.func @transform_3(%arg0: i32, %arg1: i32, %arg2: i32) -> (i32, i32) {
    %c0_i32 = arith.constant 0 : i32
    %c0_i32_0 = arith.constant 0 : i32
    return %c0_i32, %arg1 : i32, i32
  }
  func.func @transform_4(%arg0: i32, %arg1: i32, %arg2: i32) -> (i32, i32) {
    %c0_i32 = arith.constant 0 : i32
    return %arg0, %arg1 : i32, i32
  }
  func.func @transform_5(%arg0: i32, %arg1: i32, %arg2: i32) -> (i32, i32) {
    %c0_i32 = arith.constant 0 : i32
    return %arg0, %arg1 : i32, i32
  }
}

module attributes {stable_mosaic.version = 11 : i64} {
  func.func @_conv_mm_kernel(%arg0: i32, %arg1: i32, %arg2: i32, %arg3: memref<8x256xbf16, #tpu.memory_space<vmem>>, %arg4: memref<256x256xbf16, #tpu.memory_space<vmem>>, %arg5: memref<1x256xf32, #tpu.memory_space<vmem>>, %arg6: memref<1x256xf32, #tpu.memory_space<vmem>>, %arg7: memref<8x256xf32, #tpu.memory_space<vmem>>, %arg8: memref<8x256xf32, #tpu.memory_space<vmem>>) attributes {dimension_semantics = [#tpu.dimension_semantics<parallel>, #tpu.dimension_semantics<parallel>, #tpu.dimension_semantics<arbitrary>], iteration_bounds = array<i64: 1, 2, 1>, scalar_prefetch = 0 : i64, scratch_operands = 1 : i64, tpu.core_type = #tpu.core_type<tc>, window_params = [{transform_indices = @transform_0, window_bounds = array<i64: 8, 256>}, {transform_indices = @transform_1, window_bounds = array<i64: 256, 256>}, {transform_indices = @transform_2, window_bounds = array<i64: 1, 256>}, {transform_indices = @transform_3, window_bounds = array<i64: 1, 256>}, {transform_indices = @transform_4, window_bounds = array<i64: 8, 256>}]} {
    %c0_i32 = arith.constant 0 : i32
    %0 = arith.cmpi eq, %arg2, %c0_i32 : i32
    %1 = arith.extui %0 : i1 to i32
    %c0_i32_0 = arith.constant 0 : i32
    %2 = arith.cmpi ne, %1, %c0_i32_0 : i32
    scf.if %2 {
      %cst_10 = arith.constant 0.000000e+00 : f32
      %12 = vector.broadcast %cst_10 : f32 to vector<8x256xf32>
      %c0_11 = arith.constant 0 : index
      %c0_12 = arith.constant 0 : index
      %13 = vector.load %arg8[%c0_11, %c0_12] : memref<8x256xf32, #tpu.memory_space<vmem>>, vector<8x256xf32>
      tpu.vector_store %arg8[%c0_11, %c0_12], %12 {strides = array<i32>} : memref<8x256xf32, #tpu.memory_space<vmem>>, vector<8x256xf32>,
    } else {
    }
    %c0 = arith.constant 0 : index
    %c0_1 = arith.constant 0 : index
    %3 = vector.load %arg8[%c0, %c0_1] : memref<8x256xf32, #tpu.memory_space<vmem>>, vector<8x256xf32>
    %c0_2 = arith.constant 0 : index
    %c0_3 = arith.constant 0 : index
    %4 = vector.load %arg3[%c0_2, %c0_3] : memref<8x256xbf16, #tpu.memory_space<vmem>>, vector<8x256xbf16>
    %c0_4 = arith.constant 0 : index
    %c0_5 = arith.constant 0 : index
    %5 = vector.load %arg4[%c0_4, %c0_5] : memref<256x256xbf16, #tpu.memory_space<vmem>>, vector<256x256xbf16>
    %cst = arith.constant dense<0.000000e+00> : vector<8x256xf32>
    %6 = tpu.matmul %4, %5, %cst {dimension_numbers = #tpu.dot_dimension_numbers<[1], [0], [0], [1], [0, 0, 1, 1], [], []>} : vector<8x256xbf16>, vector<256x256xbf16>, vector<8x256xf32> -> vector<8x256xf32>
    %7 = arith.addf %3, %6 : vector<8x256xf32>
    %c0_6 = arith.constant 0 : index
    %c0_7 = arith.constant 0 : index
    %8 = vector.load %arg8[%c0_6, %c0_7] : memref<8x256xf32, #tpu.memory_space<vmem>>, vector<8x256xf32>
    tpu.vector_store %arg8[%c0_6, %c0_7], %7 {strides = array<i32>} : memref<8x256xf32, #tpu.memory_space<vmem>>, vector<8x256xf32>,
    %c0_i32_8 = arith.constant 0 : i32
    %9 = arith.cmpi eq, %arg2, %c0_i32_8 : i32
    %10 = arith.extui %9 : i1 to i32
    %c0_i32_9 = arith.constant 0 : i32
    %11 = arith.cmpi ne, %10, %c0_i32_9 : i32
    scf.if %11 {
      %c0_10 = arith.constant 0 : index
      %c0_11 = arith.constant 0 : index
      %12 = vector.load %arg8[%c0_10, %c0_11] : memref<8x256xf32, #tpu.memory_space<vmem>>, vector<8x256xf32>
      %c0_12 = arith.constant 0 : index
      %c0_13 = arith.constant 0 : index
      %13 = vector.load %arg5[%c0_12, %c0_13] : memref<1x256xf32, #tpu.memory_space<vmem>>, vector<1x256xf32>
      %14 = vector.broadcast %13 : vector<1x256xf32> to vector<8x256xf32>
      %15 = arith.mulf %12, %14 : vector<8x256xf32>
      %c0_14 = arith.constant 0 : index
      %c0_15 = arith.constant 0 : index
      %16 = vector.load %arg6[%c0_14, %c0_15] : memref<1x256xf32, #tpu.memory_space<vmem>>, vector<1x256xf32>
      %17 = vector.broadcast %16 : vector<1x256xf32> to vector<8x256xf32>
      %18 = arith.addf %15, %17 : vector<8x256xf32>
      %c0_16 = arith.constant 0 : index
      %c0_17 = arith.constant 0 : index
      %19 = vector.load %arg7[%c0_16, %c0_17] : memref<8x256xf32, #tpu.memory_space<vmem>>, vector<8x256xf32>
      tpu.vector_store %arg7[%c0_16, %c0_17], %18 {strides = array<i32>} : memref<8x256xf32, #tpu.memory_space<vmem>>, vector<8x256xf32>,
    } else {
    }
    return
  }
  func.func @transform_0(%arg0: i32, %arg1: i32, %arg2: i32) -> (i32, i32) {
    %c0_i32 = arith.constant 0 : i32
    return %arg0, %arg2 : i32, i32
  }
  func.func @transform_1(%arg0: i32, %arg1: i32, %arg2: i32) -> (i32, i32) {
    %c0_i32 = arith.constant 0 : i32
    return %arg2, %arg1 : i32, i32
  }
  func.func @transform_2(%arg0: i32, %arg1: i32, %arg2: i32) -> (i32, i32) {
    %c0_i32 = arith.constant 0 : i32
    %c0_i32_0 = arith.constant 0 : i32
    return %c0_i32, %arg1 : i32, i32
  }
  func.func @transform_3(%arg0: i32, %arg1: i32, %arg2: i32) -> (i32, i32) {
    %c0_i32 = arith.constant 0 : i32
    %c0_i32_0 = arith.constant 0 : i32
    return %c0_i32, %arg1 : i32, i32
  }
  func.func @transform_4(%arg0: i32, %arg1: i32, %arg2: i32) -> (i32, i32) {
    %c0_i32 = arith.constant 0 : i32
    return %arg0, %arg1 : i32, i32
  }
}

module attributes {stable_mosaic.version = 11 : i64} {
  func.func @_conv_mm_kernel(%arg0: i32, %arg1: i32, %arg2: i32, %arg3: memref<8x384xbf16, #tpu.memory_space<vmem>>, %arg4: memref<384x256xbf16, #tpu.memory_space<vmem>>, %arg5: memref<1x256xf32, #tpu.memory_space<vmem>>, %arg6: memref<1x256xf32, #tpu.memory_space<vmem>>, %arg7: memref<8x256xf32, #tpu.memory_space<vmem>>, %arg8: memref<8x256xf32, #tpu.memory_space<vmem>>) attributes {dimension_semantics = [#tpu.dimension_semantics<parallel>, #tpu.dimension_semantics<parallel>, #tpu.dimension_semantics<arbitrary>], iteration_bounds = array<i64: 1, 2, 6>, scalar_prefetch = 0 : i64, scratch_operands = 1 : i64, tpu.core_type = #tpu.core_type<tc>, window_params = [{transform_indices = @transform_0, window_bounds = array<i64: 8, 384>}, {transform_indices = @transform_1, window_bounds = array<i64: 384, 256>}, {transform_indices = @transform_2, window_bounds = array<i64: 1, 256>}, {transform_indices = @transform_3, window_bounds = array<i64: 1, 256>}, {transform_indices = @transform_4, window_bounds = array<i64: 8, 256>}]} {
    %c0_i32 = arith.constant 0 : i32
    %0 = arith.cmpi eq, %arg2, %c0_i32 : i32
    %1 = arith.extui %0 : i1 to i32
    %c0_i32_0 = arith.constant 0 : i32
    %2 = arith.cmpi ne, %1, %c0_i32_0 : i32
    scf.if %2 {
      %cst_9 = arith.constant 0.000000e+00 : f32
      %12 = vector.broadcast %cst_9 : f32 to vector<8x256xf32>
      %c0_10 = arith.constant 0 : index
      %c0_11 = arith.constant 0 : index
      %13 = vector.load %arg8[%c0_10, %c0_11] : memref<8x256xf32, #tpu.memory_space<vmem>>, vector<8x256xf32>
      tpu.vector_store %arg8[%c0_10, %c0_11], %12 {strides = array<i32>} : memref<8x256xf32, #tpu.memory_space<vmem>>, vector<8x256xf32>,
    } else {
    }
    %c0 = arith.constant 0 : index
    %c0_1 = arith.constant 0 : index
    %3 = vector.load %arg8[%c0, %c0_1] : memref<8x256xf32, #tpu.memory_space<vmem>>, vector<8x256xf32>
    %c0_2 = arith.constant 0 : index
    %c0_3 = arith.constant 0 : index
    %4 = vector.load %arg3[%c0_2, %c0_3] : memref<8x384xbf16, #tpu.memory_space<vmem>>, vector<8x384xbf16>
    %c0_4 = arith.constant 0 : index
    %c0_5 = arith.constant 0 : index
    %5 = vector.load %arg4[%c0_4, %c0_5] : memref<384x256xbf16, #tpu.memory_space<vmem>>, vector<384x256xbf16>
    %cst = arith.constant dense<0.000000e+00> : vector<8x256xf32>
    %6 = tpu.matmul %4, %5, %cst {dimension_numbers = #tpu.dot_dimension_numbers<[1], [0], [0], [1], [0, 0, 1, 1], [], []>} : vector<8x384xbf16>, vector<384x256xbf16>, vector<8x256xf32> -> vector<8x256xf32>
    %7 = arith.addf %3, %6 : vector<8x256xf32>
    %c0_6 = arith.constant 0 : index
    %c0_7 = arith.constant 0 : index
    %8 = vector.load %arg8[%c0_6, %c0_7] : memref<8x256xf32, #tpu.memory_space<vmem>>, vector<8x256xf32>
    tpu.vector_store %arg8[%c0_6, %c0_7], %7 {strides = array<i32>} : memref<8x256xf32, #tpu.memory_space<vmem>>, vector<8x256xf32>,
    %c5_i32 = arith.constant 5 : i32
    %9 = arith.cmpi eq, %arg2, %c5_i32 : i32
    %10 = arith.extui %9 : i1 to i32
    %c0_i32_8 = arith.constant 0 : i32
    %11 = arith.cmpi ne, %10, %c0_i32_8 : i32
    scf.if %11 {
      %c0_9 = arith.constant 0 : index
      %c0_10 = arith.constant 0 : index
      %12 = vector.load %arg8[%c0_9, %c0_10] : memref<8x256xf32, #tpu.memory_space<vmem>>, vector<8x256xf32>
      %c0_11 = arith.constant 0 : index
      %c0_12 = arith.constant 0 : index
      %13 = vector.load %arg5[%c0_11, %c0_12] : memref<1x256xf32, #tpu.memory_space<vmem>>, vector<1x256xf32>
      %14 = vector.broadcast %13 : vector<1x256xf32> to vector<8x256xf32>
      %15 = arith.mulf %12, %14 : vector<8x256xf32>
      %c0_13 = arith.constant 0 : index
      %c0_14 = arith.constant 0 : index
      %16 = vector.load %arg6[%c0_13, %c0_14] : memref<1x256xf32, #tpu.memory_space<vmem>>, vector<1x256xf32>
      %17 = vector.broadcast %16 : vector<1x256xf32> to vector<8x256xf32>
      %18 = arith.addf %15, %17 : vector<8x256xf32>
      %cst_15 = arith.constant 0.000000e+00 : f32
      %19 = vector.broadcast %cst_15 : f32 to vector<8x256xf32>
      %20 = arith.maximumf %18, %19 : vector<8x256xf32>
      %c0_16 = arith.constant 0 : index
      %c0_17 = arith.constant 0 : index
      %21 = vector.load %arg7[%c0_16, %c0_17] : memref<8x256xf32, #tpu.memory_space<vmem>>, vector<8x256xf32>
      tpu.vector_store %arg7[%c0_16, %c0_17], %20 {strides = array<i32>} : memref<8x256xf32, #tpu.memory_space<vmem>>, vector<8x256xf32>,
    } else {
    }
    return
  }
  func.func @transform_0(%arg0: i32, %arg1: i32, %arg2: i32) -> (i32, i32) {
    %c0_i32 = arith.constant 0 : i32
    return %arg0, %arg2 : i32, i32
  }
  func.func @transform_1(%arg0: i32, %arg1: i32, %arg2: i32) -> (i32, i32) {
    %c0_i32 = arith.constant 0 : i32
    return %arg2, %arg1 : i32, i32
  }
  func.func @transform_2(%arg0: i32, %arg1: i32, %arg2: i32) -> (i32, i32) {
    %c0_i32 = arith.constant 0 : i32
    %c0_i32_0 = arith.constant 0 : i32
    return %c0_i32, %arg1 : i32, i32
  }
  func.func @transform_3(%arg0: i32, %arg1: i32, %arg2: i32) -> (i32, i32) {
    %c0_i32 = arith.constant 0 : i32
    %c0_i32_0 = arith.constant 0 : i32
    return %c0_i32, %arg1 : i32, i32
  }
  func.func @transform_4(%arg0: i32, %arg1: i32, %arg2: i32) -> (i32, i32) {
    %c0_i32 = arith.constant 0 : i32
    return %arg0, %arg1 : i32, i32
  }
}

module attributes {stable_mosaic.version = 11 : i64} {
  func.func @_conv_mm_res_kernel(%arg0: i32, %arg1: i32, %arg2: i32, %arg3: memref<8x512xbf16, #tpu.memory_space<vmem>>, %arg4: memref<512x256xbf16, #tpu.memory_space<vmem>>, %arg5: memref<1x256xf32, #tpu.memory_space<vmem>>, %arg6: memref<1x256xf32, #tpu.memory_space<vmem>>, %arg7: memref<8x256xf32, #tpu.memory_space<vmem>>, %arg8: memref<8x256xf32, #tpu.memory_space<vmem>>, %arg9: memref<8x256xf32, #tpu.memory_space<vmem>>) attributes {dimension_semantics = [#tpu.dimension_semantics<parallel>, #tpu.dimension_semantics<parallel>, #tpu.dimension_semantics<arbitrary>], iteration_bounds = array<i64: 1, 2, 9>, scalar_prefetch = 0 : i64, scratch_operands = 1 : i64, tpu.core_type = #tpu.core_type<tc>, window_params = [{transform_indices = @transform_0, window_bounds = array<i64: 8, 512>}, {transform_indices = @transform_1, window_bounds = array<i64: 512, 256>}, {transform_indices = @transform_2, window_bounds = array<i64: 1, 256>}, {transform_indices = @transform_3, window_bounds = array<i64: 1, 256>}, {transform_indices = @transform_4, window_bounds = array<i64: 8, 256>}, {transform_indices = @transform_5, window_bounds = array<i64: 8, 256>}]} {
    %c0_i32 = arith.constant 0 : i32
    %0 = arith.cmpi eq, %arg2, %c0_i32 : i32
    %1 = arith.extui %0 : i1 to i32
    %c0_i32_0 = arith.constant 0 : i32
    %2 = arith.cmpi ne, %1, %c0_i32_0 : i32
    scf.if %2 {
      %cst_9 = arith.constant 0.000000e+00 : f32
      %12 = vector.broadcast %cst_9 : f32 to vector<8x256xf32>
      %c0_10 = arith.constant 0 : index
      %c0_11 = arith.constant 0 : index
      %13 = vector.load %arg9[%c0_10, %c0_11] : memref<8x256xf32, #tpu.memory_space<vmem>>, vector<8x256xf32>
      tpu.vector_store %arg9[%c0_10, %c0_11], %12 {strides = array<i32>} : memref<8x256xf32, #tpu.memory_space<vmem>>, vector<8x256xf32>,
    } else {
    }
    %c0 = arith.constant 0 : index
    %c0_1 = arith.constant 0 : index
    %3 = vector.load %arg9[%c0, %c0_1] : memref<8x256xf32, #tpu.memory_space<vmem>>, vector<8x256xf32>
    %c0_2 = arith.constant 0 : index
    %c0_3 = arith.constant 0 : index
    %4 = vector.load %arg3[%c0_2, %c0_3] : memref<8x512xbf16, #tpu.memory_space<vmem>>, vector<8x512xbf16>
    %c0_4 = arith.constant 0 : index
    %c0_5 = arith.constant 0 : index
    %5 = vector.load %arg4[%c0_4, %c0_5] : memref<512x256xbf16, #tpu.memory_space<vmem>>, vector<512x256xbf16>
    %cst = arith.constant dense<0.000000e+00> : vector<8x256xf32>
    %6 = tpu.matmul %4, %5, %cst {dimension_numbers = #tpu.dot_dimension_numbers<[1], [0], [0], [1], [0, 0, 1, 1], [], []>} : vector<8x512xbf16>, vector<512x256xbf16>, vector<8x256xf32> -> vector<8x256xf32>
    %7 = arith.addf %3, %6 : vector<8x256xf32>
    %c0_6 = arith.constant 0 : index
    %c0_7 = arith.constant 0 : index
    %8 = vector.load %arg9[%c0_6, %c0_7] : memref<8x256xf32, #tpu.memory_space<vmem>>, vector<8x256xf32>
    tpu.vector_store %arg9[%c0_6, %c0_7], %7 {strides = array<i32>} : memref<8x256xf32, #tpu.memory_space<vmem>>, vector<8x256xf32>,
    %c8_i32 = arith.constant 8 : i32
    %9 = arith.cmpi eq, %arg2, %c8_i32 : i32
    %10 = arith.extui %9 : i1 to i32
    %c0_i32_8 = arith.constant 0 : i32
    %11 = arith.cmpi ne, %10, %c0_i32_8 : i32
    scf.if %11 {
      %c0_9 = arith.constant 0 : index
      %c0_10 = arith.constant 0 : index
      %12 = vector.load %arg9[%c0_9, %c0_10] : memref<8x256xf32, #tpu.memory_space<vmem>>, vector<8x256xf32>
      %c0_11 = arith.constant 0 : index
      %c0_12 = arith.constant 0 : index
      %13 = vector.load %arg5[%c0_11, %c0_12] : memref<1x256xf32, #tpu.memory_space<vmem>>, vector<1x256xf32>
      %14 = vector.broadcast %13 : vector<1x256xf32> to vector<8x256xf32>
      %15 = arith.mulf %12, %14 : vector<8x256xf32>
      %c0_13 = arith.constant 0 : index
      %c0_14 = arith.constant 0 : index
      %16 = vector.load %arg6[%c0_13, %c0_14] : memref<1x256xf32, #tpu.memory_space<vmem>>, vector<1x256xf32>
      %17 = vector.broadcast %16 : vector<1x256xf32> to vector<8x256xf32>
      %18 = arith.addf %15, %17 : vector<8x256xf32>
      %c0_15 = arith.constant 0 : index
      %c0_16 = arith.constant 0 : index
      %19 = vector.load %arg7[%c0_15, %c0_16] : memref<8x256xf32, #tpu.memory_space<vmem>>, vector<8x256xf32>
      %20 = arith.addf %18, %19 : vector<8x256xf32>
      %cst_17 = arith.constant 0.000000e+00 : f32
      %21 = vector.broadcast %cst_17 : f32 to vector<8x256xf32>
      %22 = arith.maximumf %20, %21 : vector<8x256xf32>
      %c0_18 = arith.constant 0 : index
      %c0_19 = arith.constant 0 : index
      %23 = vector.load %arg8[%c0_18, %c0_19] : memref<8x256xf32, #tpu.memory_space<vmem>>, vector<8x256xf32>
      tpu.vector_store %arg8[%c0_18, %c0_19], %22 {strides = array<i32>} : memref<8x256xf32, #tpu.memory_space<vmem>>, vector<8x256xf32>,
    } else {
    }
    return
  }
  func.func @transform_0(%arg0: i32, %arg1: i32, %arg2: i32) -> (i32, i32) {
    %c0_i32 = arith.constant 0 : i32
    return %arg0, %arg2 : i32, i32
  }
  func.func @transform_1(%arg0: i32, %arg1: i32, %arg2: i32) -> (i32, i32) {
    %c0_i32 = arith.constant 0 : i32
    return %arg2, %arg1 : i32, i32
  }
  func.func @transform_2(%arg0: i32, %arg1: i32, %arg2: i32) -> (i32, i32) {
    %c0_i32 = arith.constant 0 : i32
    %c0_i32_0 = arith.constant 0 : i32
    return %c0_i32, %arg1 : i32, i32
  }
  func.func @transform_3(%arg0: i32, %arg1: i32, %arg2: i32) -> (i32, i32) {
    %c0_i32 = arith.constant 0 : i32
    %c0_i32_0 = arith.constant 0 : i32
    return %c0_i32, %arg1 : i32, i32
  }
  func.func @transform_4(%arg0: i32, %arg1: i32, %arg2: i32) -> (i32, i32) {
    %c0_i32 = arith.constant 0 : i32
    return %arg0, %arg1 : i32, i32
  }
  func.func @transform_5(%arg0: i32, %arg1: i32, %arg2: i32) -> (i32, i32) {
    %c0_i32 = arith.constant 0 : i32
    return %arg0, %arg1 : i32, i32
  }
}

</mosaic_0001>

<llo_original>
// kernel: _lambda_.13
$region0: #{_lambda_.13}
  #allocation0 [shape = 'u32[]', space=smem, size = 0x4, offset = 0x4, fixed_abs, tag = 'smem constant byte address 0x4 - core index']
  #allocation1 [shape = 'u32[144,128]{1,0:T(1,128)}', space=vmem, size = 0x12000, scoped, tag = 'internal scratch']
  #allocation2 [shape = 'f32[128,128]{1,0:T(8,128)}', space=vmem, size = 0x10000, scoped, tag = 'scratch operand']
  %s0 = inlined_call_operand.vmem [shape: bf16[128,256], index: 0, kind: input, shape index: {}]
  %s1 = inlined_call_operand.vmem [shape: bf16[256,128], index: 1, kind: input, shape index: {}]
  %s2 = inlined_call_operand.vmem [shape: f32[1,128], index: 2, kind: input, shape index: {}]
  %s3 = inlined_call_operand.vmem [shape: f32[1,128], index: 3, kind: input, shape index: {}]
  %s4 = inlined_call_operand.vmem [shape: f32[128,128], index: 4, kind: output, shape index: {}]
  %s5 = sld [smem:[#allocation0]]
  $region34: #{_lambda_.13} parent=0
    _
  %s7 = ssub.s32 1, %s5
  %s8 = scalar_select 0, %s7, %s5
  // Predicated region
  $region2: #{_lambda_.13} parent=0 // pred_check
    _
  $region3: #{_lambda_.13} parent=0 // pred_check_branch
    %10 = sbr.rel (0) target = $region5
  $region4: #{_lambda_.13} parent=0 // pred_region
    _
  $region5: #{_lambda_.13} parent=0 // pred_fallthru
    _
  // Predicated region
  $region6: #{_lambda_.13} parent=0 // pred_check
    _
  $region7: #{_lambda_.13} parent=0 // pred_check_branch
    %12 = sbr.rel (0) target = $region9
  $region8: #{_lambda_.13} parent=0 // pred_region
    _
  $region9: #{_lambda_.13} parent=0 // pred_fallthru
    _
  // Predicated region
  $region10: #{_lambda_.13} parent=0 // pred_check
    _
  $region11: #{_lambda_.13} parent=0 // pred_check_branch
    %14 = sbr.rel (0) target = $region13
  $region12: #{_lambda_.13} parent=0 // pred_region
    _
  $region13: #{_lambda_.13} parent=0 // pred_fallthru
    _
  // Predicated region
  $region14: #{_lambda_.13} parent=0 // pred_check
    _
  $region15: #{_lambda_.13} parent=0 // pred_check_branch
    %16 = sbr.rel (0) target = $region17
  $region16: #{_lambda_.13} parent=0 // pred_region
    _
  $region17: #{_lambda_.13} parent=0 // pred_fallthru
    _
  %p18 = scmp.eq.s32.totalorder 0, 0
  // Predicated region
  $region18: #{_lambda_.13} parent=0 // pred_check
    %p19 = pneg %p18
  $region19: #{_lambda_.13} parent=0 // pred_check_branch
    %21 = sbr.rel (%p19) target = $region21
  $region20: #{_lambda_.13} parent=0 // pred_region
    %22 = vst [vmem:[#allocation2] sm:$0xff] 0.0
    %23 = vst [vmem:[#allocation2 + $0x8] sm:$0xff] 0.0
    %24 = vst [vmem:[#allocation2 + $0x10] sm:$0xff] 0.0
    %25 = vst [vmem:[#allocation2 + $0x18] sm:$0xff] 0.0
    %26 = vst [vmem:[#allocation2 + $0x20] sm:$0xff] 0.0
    %27 = vst [vmem:[#allocation2 + $0x28] sm:$0xff] 0.0
    %28 = vst [vmem:[#allocation2 + $0x30] sm:$0xff] 0.0
    %29 = vst [vmem:[#allocation2 + $0x38] sm:$0xff] 0.0
    %30 = vst [vmem:[#allocation2 + $0x40] sm:$0xff] 0.0
    %31 = vst [vmem:[#allocation2 + $0x48] sm:$0xff] 0.0
    %32 = vst [vmem:[#allocation2 + $0x50] sm:$0xff] 0.0
    %33 = vst [vmem:[#allocation2 + $0x58] sm:$0xff] 0.0
    %34 = vst [vmem:[#allocation2 + $0x60] sm:$0xff] 0.0
    %35 = vst [vmem:[#allocation2 + $0x68] sm:$0xff] 0.0
    %36 = vst [vmem:[#allocation2 + $0x70] sm:$0xff] 0.0
    %37 = vst [vmem:[#allocation2 + $0x78] sm:$0xff] 0.0
  $region21: #{_lambda_.13} parent=0 // pred_fallthru
    _
  %v38 = vld [vmem:[#allocation2] sm:$0xff]
  %v39 = vld [vmem:[#allocation2 + $0x8] sm:$0xff]
  %v40 = vld [vmem:[#allocation2 + $0x10] sm:$0xff]
  %v41 = vld [vmem:[#allocation2 + $0x18] sm:$0xff]
  %v42 = vld [vmem:[#allocation2 + $0x20] sm:$0xff]
  %v43 = vld [vmem:[#allocation2 + $0x28] sm:$0xff]
  %v44 = vld [vmem:[#allocation2 + $0x30] sm:$0xff]
  %v45 = vld [vmem:[#allocation2 + $0x38] sm:$0xff]
  %v46 = vld [vmem:[#allocation2 + $0x40] sm:$0xff]
  %v47 = vld [vmem:[#allocation2 + $0x48] sm:$0xff]
  %v48 = vld [vmem:[#allocation2 + $0x50] sm:$0xff]
  %v49 = vld [vmem:[#allocation2 + $0x58] sm:$0xff]
  %v50 = vld [vmem:[#allocation2 + $0x60] sm:$0xff]
  %v51 = vld [vmem:[#allocation2 + $0x68] sm:$0xff]
  %v52 = vld [vmem:[#allocation2 + $0x70] sm:$0xff]
  %v53 = vld [vmem:[#allocation2 + $0x78] sm:$0xff]
  %v54 = vld [vmem:[%s0] sm:$0xff]
  %v55 = vld [vmem:[%s0 + $0x8] sm:$0xff]
  %v56 = vld [vmem:[%s0 + $0x10] sm:$0xff]
  %v57 = vld [vmem:[%s0 + $0x18] sm:$0xff]
  %v58 = vld [vmem:[%s0 + $0x20] sm:$0xff]
  %v59 = vld [vmem:[%s0 + $0x28] sm:$0xff]
  %v60 = vld [vmem:[%s0 + $0x30] sm:$0xff]
  %v61 = vld [vmem:[%s0 + $0x38] sm:$0xff]
  %v62 = vld [vmem:[%s0 + $0x40] sm:$0xff]
  %v63 = vld [vmem:[%s0 + $0x48] sm:$0xff]
  %v64 = vld [vmem:[%s0 + $0x50] sm:$0xff]
  %v65 = vld [vmem:[%s0 + $0x58] sm:$0xff]
  %v66 = vld [vmem:[%s0 + $0x60] sm:$0xff]
  %v67 = vld [vmem:[%s0 + $0x68] sm:$0xff]
  %v68 = vld [vmem:[%s0 + $0x70] sm:$0xff]
  %v69 = vld [vmem:[%s0 + $0x78] sm:$0xff]
  %v70 = vld [vmem:[%s1] sm:$0xf]
  %v71 = vld [vmem:[%s1 + $0x4] sm:$0xf]
  %v72 = vld [vmem:[%s1 + $0x8] sm:$0xf]
  %v73 = vld [vmem:[%s1 + $0xc] sm:$0xf]
  %v74 = vld [vmem:[%s1 + $0x10] sm:$0xf]
  %v75 = vld [vmem:[%s1 + $0x14] sm:$0xf]
  %v76 = vld [vmem:[%s1 + $0x18] sm:$0xf]
  %v77 = vld [vmem:[%s1 + $0x1c] sm:$0xf]
  %v78 = vld [vmem:[%s1 + $0x20] sm:$0xf]
  %v79 = vld [vmem:[%s1 + $0x24] sm:$0xf]
  %v80 = vld [vmem:[%s1 + $0x28] sm:$0xf]
  %v81 = vld [vmem:[%s1 + $0x2c] sm:$0xf]
  %v82 = vld [vmem:[%s1 + $0x30] sm:$0xf]
  %v83 = vld [vmem:[%s1 + $0x34] sm:$0xf]
  %v84 = vld [vmem:[%s1 + $0x38] sm:$0xf]
  %v85 = vld [vmem:[%s1 + $0x3c] sm:$0xf]
  %v86 = vld [vmem:[%s1 + $0x40] sm:$0xf]
  %v87 = vld [vmem:[%s1 + $0x44] sm:$0xf]
  %v88 = vld [vmem:[%s1 + $0x48] sm:$0xf]
  %v89 = vld [vmem:[%s1 + $0x4c] sm:$0xf]
  %v90 = vld [vmem:[%s1 + $0x50] sm:$0xf]
  %v91 = vld [vmem:[%s1 + $0x54] sm:$0xf]
  %v92 = vld [vmem:[%s1 + $0x58] sm:$0xf]
  %v93 = vld [vmem:[%s1 + $0x5c] sm:$0xf]
  %v94 = vld [vmem:[%s1 + $0x60] sm:$0xf]
  %v95 = vld [vmem:[%s1 + $0x64] sm:$0xf]
  %v96 = vld [vmem:[%s1 + $0x68] sm:$0xf]
  %v97 = vld [vmem:[%s1 + $0x6c] sm:$0xf]
  %v98 = vld [vmem:[%s1 + $0x70] sm:$0xf]
  %v99 = vld [vmem:[%s1 + $0x74] sm:$0xf]
  %v100 = vld [vmem:[%s1 + $0x78] sm:$0xf]
  %v101 = vld [vmem:[%s1 + $0x7c] sm:$0xf]
  %v118 = vunpack.c.l.b16 %v54
  %v119 = vunpack.c.h.b16 %v54
  %v120 = vunpack.c.l.b16 %v55
  %v121 = vunpack.c.h.b16 %v55
  %v122 = vunpack.c.l.b16 %v56
  %v123 = vunpack.c.h.b16 %v56
  %v124 = vunpack.c.l.b16 %v57
  %v125 = vunpack.c.h.b16 %v57
  %v126 = vunpack.c.l.b16 %v58
  %v127 = vunpack.c.h.b16 %v58
  %v128 = vunpack.c.l.b16 %v59
  %v129 = vunpack.c.h.b16 %v59
  %v130 = vunpack.c.l.b16 %v60
  %v131 = vunpack.c.h.b16 %v60
  %v132 = vunpack.c.l.b16 %v61
  %v133 = vunpack.c.h.b16 %v61
  %v134 = vunpack.c.l.b16 %v62
  %v135 = vunpack.c.h.b16 %v62
  %v136 = vunpack.c.l.b16 %v63
  %v137 = vunpack.c.h.b16 %v63
  %v138 = vunpack.c.l.b16 %v64
  %v139 = vunpack.c.h.b16 %v64
  %v140 = vunpack.c.l.b16 %v65
  %v141 = vunpack.c.h.b16 %v65
  %v142 = vunpack.c.l.b16 %v66
  %v143 = vunpack.c.h.b16 %v66
  %v144 = vunpack.c.l.b16 %v67
  %v145 = vunpack.c.h.b16 %v67
  %v146 = vunpack.c.l.b16 %v68
  %v147 = vunpack.c.h.b16 %v68
  %v148 = vunpack.c.l.b16 %v69
  %v149 = vunpack.c.h.b16 %v69
  %v150 = vpack.c.b16 %v120, %v118
  %v151 = vpack.c.b16 %v121, %v119
  %v152 = vpack.c.b16 %v124, %v122
  %v153 = vpack.c.b16 %v125, %v123
  %v154 = vpack.c.b16 %v128, %v126
  %v155 = vpack.c.b16 %v129, %v127
  %v156 = vpack.c.b16 %v132, %v130
  %v157 = vpack.c.b16 %v133, %v131
  %v158 = vpack.c.b16 %v136, %v134
  %v159 = vpack.c.b16 %v137, %v135
  %v160 = vpack.c.b16 %v140, %v138
  %v161 = vpack.c.b16 %v141, %v139
  %v162 = vpack.c.b16 %v144, %v142
  %v163 = vpack.c.b16 %v145, %v143
  %v164 = vpack.c.b16 %v148, %v146
  %v165 = vpack.c.b16 %v149, %v147
  %v214 = vunpack.c.l.b16 %v70
  %v215 = vunpack.c.l.b16 %v71
  %v216 = vunpack.c.l.b16 %v72
  %v217 = vunpack.c.l.b16 %v73
  %v218 = vunpack.c.l.b16 %v74
  %v219 = vunpack.c.l.b16 %v75
  %v220 = vunpack.c.l.b16 %v76
  %v221 = vunpack.c.l.b16 %v77
  %v222 = vunpack.c.l.b16 %v78
  %v223 = vunpack.c.l.b16 %v79
  %v224 = vunpack.c.l.b16 %v80
  %v225 = vunpack.c.l.b16 %v81
  %v226 = vunpack.c.l.b16 %v82
  %v227 = vunpack.c.l.b16 %v83
  %v228 = vunpack.c.l.b16 %v84
  %v229 = vunpack.c.l.b16 %v85
  %v230 = vunpack.c.l.b16 %v86
  %v231 = vunpack.c.l.b16 %v87
  %v232 = vunpack.c.l.b16 %v88
  %v233 = vunpack.c.l.b16 %v89
  %v234 = vunpack.c.l.b16 %v90
  %v235 = vunpack.c.l.b16 %v91
  %v236 = vunpack.c.l.b16 %v92
  %v237 = vunpack.c.l.b16 %v93
  %v238 = vunpack.c.l.b16 %v94
  %v239 = vunpack.c.l.b16 %v95
  %v240 = vunpack.c.l.b16 %v96
  %v241 = vunpack.c.l.b16 %v97
  %v242 = vunpack.c.l.b16 %v98
  %v243 = vunpack.c.l.b16 %v99
  %v244 = vunpack.c.l.b16 %v100
  %v245 = vunpack.c.l.b16 %v101
  %v246 = vpack.c.b16 %v215, %v214
  %v247 = vpack.c.b16 %v217, %v216
  %v248 = vpack.c.b16 %v219, %v218
  %v249 = vpack.c.b16 %v221, %v220
  %v250 = vpack.c.b16 %v223, %v222
  %v251 = vpack.c.b16 %v225, %v224
  %v252 = vpack.c.b16 %v227, %v226
  %v253 = vpack.c.b16 %v229, %v228
  %v254 = vpack.c.b16 %v231, %v230
  %v255 = vpack.c.b16 %v233, %v232
  %v256 = vpack.c.b16 %v235, %v234
  %v257 = vpack.c.b16 %v237, %v236
  %v258 = vpack.c.b16 %v239, %v238
  %v259 = vpack.c.b16 %v241, %v240
  %v260 = vpack.c.b16 %v243, %v242
  %v261 = vpack.c.b16 %v245, %v244
  %278 = vmatprep.subr.bf16.mxu0 0
  %279 = vmatpush1.bf16.msra.mxu0 %v246
  %280 = vmatprep.subr.bf16.mxu0 0
  %281 = vmatpush1.bf16.msra.mxu0 %v247
  %282 = vmatprep.subr.bf16.mxu0 0
  %283 = vmatpush1.bf16.msra.mxu0 %v248
  %284 = vmatprep.subr.bf16.mxu0 0
  %285 = vmatpush1.bf16.msra.mxu0 %v249
  %286 = vmatprep.subr.bf16.mxu0 0
  %287 = vmatpush1.bf16.msra.mxu0 %v250
  %288 = vmatprep.subr.bf16.mxu0 0
  %289 = vmatpush1.bf16.msra.mxu0 %v251
  %290 = vmatprep.subr.bf16.mxu0 0
  %291 = vmatpush1.bf16.msra.mxu0 %v252
  %292 = vmatprep.subr.bf16.mxu0 0
  %293 = vmatpush1.bf16.msra.mxu0 %v253
  %294 = vmatprep.subr.bf16.mxu0 0
  %295 = vmatpush1.bf16.msra.mxu0 %v254
  %296 = vmatprep.subr.bf16.mxu0 0
  %297 = vmatpush1.bf16.msra.mxu0 %v255
  %298 = vmatprep.subr.bf16.mxu0 0
  %299 = vmatpush1.bf16.msra.mxu0 %v256
  %300 = vmatprep.subr.bf16.mxu0 0
  %301 = vmatpush1.bf16.msra.mxu0 %v257
  %302 = vmatprep.subr.bf16.mxu0 0
  %303 = vmatpush1.bf16.msra.mxu0 %v258
  %304 = vmatprep.subr.bf16.mxu0 0
  %305 = vmatpush1.bf16.msra.mxu0 %v259
  %306 = vmatprep.subr.bf16.mxu0 0
  %307 = vmatpush1.bf16.msra.mxu0 %v260
  %308 = vmatprep.subr.bf16.mxu0 0
  %309 = vmatpush1.bf16.msra.mxu0 %v261
  %310 = vmatprep.mubr.bf16.mxu0 %v151
  %311 = vmatmul.mubr.bf16.gmra.mrb[0].mxu0 %v150
  %v312 = vpop.f32.mrb[0].mxu0
  %v313 = vadd.f32 0.0, %v312
  %v314 = vpop.f32.mrb[0].mxu0
  %v315 = vpop.f32.mrb[0].mxu0
  %v316 = vadd.f32 0.0, %v315
  %v317 = vpop.f32.mrb[0].mxu0
  %318 = vmatprep.mubr.bf16.mxu0 %v153
  %319 = vmatmul.mubr.bf16.gmra.mrb[0].mxu0 %v152
  %v320 = vpop.f32.mrb[0].mxu0
  %v321 = vadd.f32 0.0, %v320
  %v322 = vpop.f32.mrb[0].mxu0
  %v323 = vpop.f32.mrb[0].mxu0
  %v324 = vadd.f32 0.0, %v323
  %v325 = vpop.f32.mrb[0].mxu0
  %326 = vmatprep.mubr.bf16.mxu0 %v155
  %327 = vmatmul.mubr.bf16.gmra.mrb[0].mxu0 %v154
  %v328 = vpop.f32.mrb[0].mxu0
  %v329 = vadd.f32 0.0, %v328
  %v330 = vpop.f32.mrb[0].mxu0
  %v331 = vpop.f32.mrb[0].mxu0
  %v332 = vadd.f32 0.0, %v331
  %v333 = vpop.f32.mrb[0].mxu0
  %334 = vmatprep.mubr.bf16.mxu0 %v157
  %335 = vmatmul.mubr.bf16.gmra.mrb[0].mxu0 %v156
  %v336 = vpop.f32.mrb[0].mxu0
  %v337 = vadd.f32 0.0, %v336
  %v338 = vpop.f32.mrb[0].mxu0
  %v339 = vpop.f32.mrb[0].mxu0
  %v340 = vadd.f32 0.0, %v339
  %v341 = vpop.f32.mrb[0].mxu0
  %342 = vmatprep.mubr.bf16.mxu0 %v159
  %343 = vmatmul.mubr.bf16.gmra.mrb[0].mxu0 %v158
  %v344 = vpop.f32.mrb[0].mxu0
  %v345 = vadd.f32 0.0, %v344
  %v346 = vpop.f32.mrb[0].mxu0
  %v347 = vpop.f32.mrb[0].mxu0
  %v348 = vadd.f32 0.0, %v347
  %v349 = vpop.f32.mrb[0].mxu0
  %350 = vmatprep.mubr.bf16.mxu0 %v161
  %351 = vmatmul.mubr.bf16.gmra.mrb[0].mxu0 %v160
  %v352 = vpop.f32.mrb[0].mxu0
  %v353 = vadd.f32 0.0, %v352
  %v354 = vpop.f32.mrb[0].mxu0
  %v355 = vpop.f32.mrb[0].mxu0
  %v356 = vadd.f32 0.0, %v355
  %v357 = vpop.f32.mrb[0].mxu0
  %358 = vmatprep.mubr.bf16.mxu0 %v163
  %359 = vmatmul.mubr.bf16.gmra.mrb[0].mxu0 %v162
  %v360 = vpop.f32.mrb[0].mxu0
  %v361 = vadd.f32 0.0, %v360
  %v362 = vpop.f32.mrb[0].mxu0
  %v363 = vpop.f32.mrb[0].mxu0
  %v364 = vadd.f32 0.0, %v363
  %v365 = vpop.f32.mrb[0].mxu0
  %366 = vmatprep.mubr.bf16.mxu0 %v165
  %367 = vmatmul.mubr.bf16.gmra.mrb[0].mxu0 %v164
  %v368 = vpop.f32.mrb[0].mxu0
  %v369 = vadd.f32 0.0, %v368
  %v370 = vpop.f32.mrb[0].mxu0
  %v371 = vpop.f32.mrb[0].mxu0
  %v372 = vadd.f32 0.0, %v371
  %v373 = vpop.f32.mrb[0].mxu0
  %374 = vdwg.mxu0
  %v375 = vadd.f32 %v38, %v313
  %v376 = vadd.f32 %v39, %v316
  %v377 = vadd.f32 %v40, %v321
  %v378 = vadd.f32 %v41, %v324
  %v379 = vadd.f32 %v42, %v329
  %v380 = vadd.f32 %v43, %v332
  %v381 = vadd.f32 %v44, %v337
  %v382 = vadd.f32 %v45, %v340
  %v383 = vadd.f32 %v46, %v345
  %v384 = vadd.f32 %v47, %v348
  %v385 = vadd.f32 %v48, %v353
  %v386 = vadd.f32 %v49, %v356
  %v387 = vadd.f32 %v50, %v361
  %v388 = vadd.f32 %v51, %v364
  %v389 = vadd.f32 %v52, %v369
  %v390 = vadd.f32 %v53, %v372
  %391 = vst [vmem:[#allocation2] sm:$0xff] %v375
  %392 = vst [vmem:[#allocation2 + $0x8] sm:$0xff] %v376
  %393 = vst [vmem:[#allocation2 + $0x10] sm:$0xff] %v377
  %394 = vst [vmem:[#allocation2 + $0x18] sm:$0xff] %v378
  %395 = vst [vmem:[#allocation2 + $0x20] sm:$0xff] %v379
  %396 = vst [vmem:[#allocation2 + $0x28] sm:$0xff] %v380
  %397 = vst [vmem:[#allocation2 + $0x30] sm:$0xff] %v381
  %398 = vst [vmem:[#allocation2 + $0x38] sm:$0xff] %v382
  %399 = vst [vmem:[#allocation2 + $0x40] sm:$0xff] %v383
  %400 = vst [vmem:[#allocation2 + $0x48] sm:$0xff] %v384
  %401 = vst [vmem:[#allocation2 + $0x50] sm:$0xff] %v385
  %402 = vst [vmem:[#allocation2 + $0x58] sm:$0xff] %v386
  %403 = vst [vmem:[#allocation2 + $0x60] sm:$0xff] %v387
  %404 = vst [vmem:[#allocation2 + $0x68] sm:$0xff] %v388
  %405 = vst [vmem:[#allocation2 + $0x70] sm:$0xff] %v389
  %406 = vst [vmem:[#allocation2 + $0x78] sm:$0xff] %v390
  // Predicated region
  $region22: #{_lambda_.13} parent=0 // pred_check
    %p407 = pneg %p18
  $region23: #{_lambda_.13} parent=0 // pred_check_branch
    %409 = sbr.rel (%p407) target = $region25
  $region24: #{_lambda_.13} parent=0 // pred_region
    %v410 = vld [vmem:[#allocation2] sm:$0xff]
    %v411 = vld [vmem:[#allocation2 + $0x8] sm:$0xff]
    %v412 = vld [vmem:[#allocation2 + $0x10] sm:$0xff]
    %v413 = vld [vmem:[#allocation2 + $0x18] sm:$0xff]
    %v414 = vld [vmem:[#allocation2 + $0x20] sm:$0xff]
    %v415 = vld [vmem:[#allocation2 + $0x28] sm:$0xff]
    %v416 = vld [vmem:[#allocation2 + $0x30] sm:$0xff]
    %v417 = vld [vmem:[#allocation2 + $0x38] sm:$0xff]
    %v418 = vld [vmem:[#allocation2 + $0x40] sm:$0xff]
    %v419 = vld [vmem:[#allocation2 + $0x48] sm:$0xff]
    %v420 = vld [vmem:[#allocation2 + $0x50] sm:$0xff]
    %v421 = vld [vmem:[#allocation2 + $0x58] sm:$0xff]
    %v422 = vld [vmem:[#allocation2 + $0x60] sm:$0xff]
    %v423 = vld [vmem:[#allocation2 + $0x68] sm:$0xff]
    %v424 = vld [vmem:[#allocation2 + $0x70] sm:$0xff]
    %v425 = vld [vmem:[#allocation2 + $0x78] sm:$0xff]
    %v426 = vld [vmem:[%s2] sm:$0x1]
    %v428 = vlaneseq
    %v429 = vshrl.u32 %v428, 7
    %v430 = vsub.s32 0, %v429
    %v431 = vrot.slane %v426, %v430
    %v433 = vmul.f32 %v410, %v431
    %v434 = vmul.f32 %v411, %v431
    %v435 = vmul.f32 %v412, %v431
    %v436 = vmul.f32 %v413, %v431
    %v437 = vmul.f32 %v414, %v431
    %v438 = vmul.f32 %v415, %v431
    %v439 = vmul.f32 %v416, %v431
    %v440 = vmul.f32 %v417, %v431
    %v441 = vmul.f32 %v418, %v431
    %v442 = vmul.f32 %v419, %v431
    %v443 = vmul.f32 %v420, %v431
    %v444 = vmul.f32 %v421, %v431
    %v445 = vmul.f32 %v422, %v431
    %v446 = vmul.f32 %v423, %v431
    %v447 = vmul.f32 %v424, %v431
    %v448 = vmul.f32 %v425, %v431
    %v449 = vld [vmem:[%s3] sm:$0x1]
    %v451 = vlaneseq
    %v452 = vshrl.u32 %v451, 7
    %v453 = vsub.s32 0, %v452
    %v454 = vrot.slane %v449, %v453
    %v456 = vadd.f32 %v433, %v454
    %v457 = vadd.f32 %v434, %v454
    %v458 = vadd.f32 %v435, %v454
    %v459 = vadd.f32 %v436, %v454
    %v460 = vadd.f32 %v437, %v454
    %v461 = vadd.f32 %v438, %v454
    %v462 = vadd.f32 %v439, %v454
    %v463 = vadd.f32 %v440, %v454
    %v464 = vadd.f32 %v441, %v454
    %v465 = vadd.f32 %v442, %v454
    %v466 = vadd.f32 %v443, %v454
    %v467 = vadd.f32 %v444, %v454
    %v468 = vadd.f32 %v445, %v454
    %v469 = vadd.f32 %v446, %v454
    %v470 = vadd.f32 %v447, %v454
    %v471 = vadd.f32 %v448, %v454
    %v472 = vmax.f32 %v456, 0.0
    %v473 = vmax.f32 %v457, 0.0
    %v474 = vmax.f32 %v458, 0.0
    %v475 = vmax.f32 %v459, 0.0
    %v476 = vmax.f32 %v460, 0.0
    %v477 = vmax.f32 %v461, 0.0
    %v478 = vmax.f32 %v462, 0.0
    %v479 = vmax.f32 %v463, 0.0
    %v480 = vmax.f32 %v464, 0.0
    %v481 = vmax.f32 %v465, 0.0
    %v482 = vmax.f32 %v466, 0.0
    %v483 = vmax.f32 %v467, 0.0
    %v484 = vmax.f32 %v468, 0.0
    %v485 = vmax.f32 %v469, 0.0
    %v486 = vmax.f32 %v470, 0.0
    %v487 = vmax.f32 %v471, 0.0
    %488 = vst [vmem:[%s4] sm:$0xff] %v472
    %489 = vst [vmem:[%s4 + $0x8] sm:$0xff] %v473
    %490 = vst [vmem:[%s4 + $0x10] sm:$0xff] %v474
    %491 = vst [vmem:[%s4 + $0x18] sm:$0xff] %v475
    %492 = vst [vmem:[%s4 + $0x20] sm:$0xff] %v476
    %493 = vst [vmem:[%s4 + $0x28] sm:$0xff] %v477
    %494 = vst [vmem:[%s4 + $0x30] sm:$0xff] %v478
    %495 = vst [vmem:[%s4 + $0x38] sm:$0xff] %v479
    %496 = vst [vmem:[%s4 + $0x40] sm:$0xff] %v480
    %497 = vst [vmem:[%s4 + $0x48] sm:$0xff] %v481
    %498 = vst [vmem:[%s4 + $0x50] sm:$0xff] %v482
    %499 = vst [vmem:[%s4 + $0x58] sm:$0xff] %v483
    %500 = vst [vmem:[%s4 + $0x60] sm:$0xff] %v484
    %501 = vst [vmem:[%s4 + $0x68] sm:$0xff] %v485
    %502 = vst [vmem:[%s4 + $0x70] sm:$0xff] %v486
    %503 = vst [vmem:[%s4 + $0x78] sm:$0xff] %v487
  $region25: #{_lambda_.13} parent=0 // pred_fallthru
    _
  // Predicated region
  $region26: #{_lambda_.13} parent=0 // pred_check
    _
  $region27: #{_lambda_.13} parent=0 // pred_check_branch
    %505 = sbr.rel (0) target = $region29
  $region28: #{_lambda_.13} parent=0 // pred_region
    _
  $region29: #{_lambda_.13} parent=0 // pred_fallthru
    _
  // Predicated region
  $region30: #{_lambda_.13} parent=0 // pred_check
    _
  $region31: #{_lambda_.13} parent=0 // pred_check_branch
    %507 = sbr.rel (0) target = $region33
  $region32: #{_lambda_.13} parent=0 // pred_region
    _
  $region33: #{_lambda_.13} parent=0 // pred_fallthru
    _

// kernel: _lambda_.14
$region0: #{_lambda_.14}
  #allocation0 [shape = 'u32[]', space=smem, size = 0x4, offset = 0x4, fixed_abs, tag = 'smem constant byte address 0x4 - core index']
  #allocation1 [shape = 'u32[144,128]{1,0:T(1,128)}', space=vmem, size = 0x12000, scoped, tag = 'internal scratch']
  %s0 = inlined_call_operand.vmem [shape: f32[32,128], index: 0, kind: input, shape index: {}]
  %s1 = inlined_call_operand.vmem [shape: f32[32,128], index: 1, kind: input, shape index: {}]
  %s2 = inlined_call_operand.vmem [shape: f32[32,128], index: 2, kind: input, shape index: {}]
  %s3 = inlined_call_operand.vmem [shape: f32[32,128], index: 3, kind: input, shape index: {}]
  %s4 = inlined_call_operand.vmem [shape: f32[32,128], index: 4, kind: input, shape index: {}]
  %s5 = inlined_call_operand.vmem [shape: f32[32,128], index: 5, kind: input, shape index: {}]
  %s6 = inlined_call_operand.vmem [shape: f32[32,128], index: 6, kind: input, shape index: {}]
  %s7 = inlined_call_operand.vmem [shape: f32[32,128], index: 7, kind: input, shape index: {}]
  %s8 = inlined_call_operand.vmem [shape: f32[32,128], index: 8, kind: input, shape index: {}]
  %s9 = inlined_call_operand.vmem [shape: f32[32,128], index: 9, kind: output, shape index: {}]
  %s10 = sld [smem:[#allocation0]]
  $region46: #{_lambda_.14} parent=0
    _
  %s12 = ssub.s32 1, %s10
  %s13 = scalar_select 0, %s12, %s10
  // Predicated region
  $region2: #{_lambda_.14} parent=0 // pred_check
    _
  $region3: #{_lambda_.14} parent=0 // pred_check_branch
    %15 = sbr.rel (0) target = $region5
  $region4: #{_lambda_.14} parent=0 // pred_region
    _
  $region5: #{_lambda_.14} parent=0 // pred_fallthru
    _
  // Predicated region
  $region6: #{_lambda_.14} parent=0 // pred_check
    _
  $region7: #{_lambda_.14} parent=0 // pred_check_branch
    %17 = sbr.rel (0) target = $region9
  $region8: #{_lambda_.14} parent=0 // pred_region
    _
  $region9: #{_lambda_.14} parent=0 // pred_fallthru
    _
  // Predicated region
  $region10: #{_lambda_.14} parent=0 // pred_check
    _
  $region11: #{_lambda_.14} parent=0 // pred_check_branch
    %19 = sbr.rel (0) target = $region13
  $region12: #{_lambda_.14} parent=0 // pred_region
    _
  $region13: #{_lambda_.14} parent=0 // pred_fallthru
    _
  // Predicated region
  $region14: #{_lambda_.14} parent=0 // pred_check
    _
  $region15: #{_lambda_.14} parent=0 // pred_check_branch
    %21 = sbr.rel (0) target = $region17
  $region16: #{_lambda_.14} parent=0 // pred_region
    _
  $region17: #{_lambda_.14} parent=0 // pred_fallthru
    _
  // Predicated region
  $region18: #{_lambda_.14} parent=0 // pred_check
    _
  $region19: #{_lambda_.14} parent=0 // pred_check_branch
    %23 = sbr.rel (0) target = $region21
  $region20: #{_lambda_.14} parent=0 // pred_region
    _
  $region21: #{_lambda_.14} parent=0 // pred_fallthru
    _
  // Predicated region
  $region22: #{_lambda_.14} parent=0 // pred_check
    _
  $region23: #{_lambda_.14} parent=0 // pred_check_branch
    %25 = sbr.rel (0) target = $region25
  $region24: #{_lambda_.14} parent=0 // pred_region
    _
  $region25: #{_lambda_.14} parent=0 // pred_fallthru
    _
  // Predicated region
  $region26: #{_lambda_.14} parent=0 // pred_check
    _
  $region27: #{_lambda_.14} parent=0 // pred_check_branch
    %27 = sbr.rel (0) target = $region29
  $region28: #{_lambda_.14} parent=0 // pred_region
    _
  $region29: #{_lambda_.14} parent=0 // pred_fallthru
    _
  // Predicated region
  $region30: #{_lambda_.14} parent=0 // pred_check
    _
  $region31: #{_lambda_.14} parent=0 // pred_check_branch
    %29 = sbr.rel (0) target = $region33
  $region32: #{_lambda_.14} parent=0 // pred_region
    _
  $region33: #{_lambda_.14} parent=0 // pred_fallthru
    _
  // Predicated region
  $region34: #{_lambda_.14} parent=0 // pred_check
    _
  $region35: #{_lambda_.14} parent=0 // pred_check_branch
    %31 = sbr.rel (0) target = $region37
  $region36: #{_lambda_.14} parent=0 // pred_region
    _
  $region37: #{_lambda_.14} parent=0 // pred_fallthru
    _
  %v32 = vld [vmem:[%s0] sm:$0xff]
  %v33 = vld [vmem:[%s0 + $0x8] sm:$0xff]
  %v34 = vld [vmem:[%s0 + $0x10] sm:$0xff]
  %v35 = vld [vmem:[%s0 + $0x18] sm:$0xff]
  %v36 = vld [vmem:[%s1] sm:$0xff]
  %v37 = vld [vmem:[%s1 + $0x8] sm:$0xff]
  %v38 = vld [vmem:[%s1 + $0x10] sm:$0xff]
  %v39 = vld [vmem:[%s1 + $0x18] sm:$0xff]
  %v40 = vmax.f32 %v32, %v36
  %v41 = vmax.f32 %v33, %v37
  %v42 = vmax.f32 %v34, %v38
  %v43 = vmax.f32 %v35, %v39
  %v44 = vld [vmem:[%s2] sm:$0xff]
  %v45 = vld [vmem:[%s2 + $0x8] sm:$0xff]
  %v46 = vld [vmem:[%s2 + $0x10] sm:$0xff]
  %v47 = vld [vmem:[%s2 + $0x18] sm:$0xff]
  %v48 = vmax.f32 %v40, %v44
  %v49 = vmax.f32 %v41, %v45
  %v50 = vmax.f32 %v42, %v46
  %v51 = vmax.f32 %v43, %v47
  %v52 = vld [vmem:[%s3] sm:$0xff]
  %v53 = vld [vmem:[%s3 + $0x8] sm:$0xff]
  %v54 = vld [vmem:[%s3 + $0x10] sm:$0xff]
  %v55 = vld [vmem:[%s3 + $0x18] sm:$0xff]
  %v56 = vmax.f32 %v48, %v52
  %v57 = vmax.f32 %v49, %v53
  %v58 = vmax.f32 %v50, %v54
  %v59 = vmax.f32 %v51, %v55
  %v60 = vld [vmem:[%s4] sm:$0xff]
  %v61 = vld [vmem:[%s4 + $0x8] sm:$0xff]
  %v62 = vld [vmem:[%s4 + $0x10] sm:$0xff]
  %v63 = vld [vmem:[%s4 + $0x18] sm:$0xff]
  %v64 = vmax.f32 %v56, %v60
  %v65 = vmax.f32 %v57, %v61
  %v66 = vmax.f32 %v58, %v62
  %v67 = vmax.f32 %v59, %v63
  %v68 = vld [vmem:[%s5] sm:$0xff]
  %v69 = vld [vmem:[%s5 + $0x8] sm:$0xff]
  %v70 = vld [vmem:[%s5 + $0x10] sm:$0xff]
  %v71 = vld [vmem:[%s5 + $0x18] sm:$0xff]
  %v72 = vmax.f32 %v64, %v68
  %v73 = vmax.f32 %v65, %v69
  %v74 = vmax.f32 %v66, %v70
  %v75 = vmax.f32 %v67, %v71
  %v76 = vld [vmem:[%s6] sm:$0xff]
  %v77 = vld [vmem:[%s6 + $0x8] sm:$0xff]
  %v78 = vld [vmem:[%s6 + $0x10] sm:$0xff]
  %v79 = vld [vmem:[%s6 + $0x18] sm:$0xff]
  %v80 = vmax.f32 %v72, %v76
  %v81 = vmax.f32 %v73, %v77
  %v82 = vmax.f32 %v74, %v78
  %v83 = vmax.f32 %v75, %v79
  %v84 = vld [vmem:[%s7] sm:$0xff]
  %v85 = vld [vmem:[%s7 + $0x8] sm:$0xff]
  %v86 = vld [vmem:[%s7 + $0x10] sm:$0xff]
  %v87 = vld [vmem:[%s7 + $0x18] sm:$0xff]
  %v88 = vmax.f32 %v80, %v84
  %v89 = vmax.f32 %v81, %v85
  %v90 = vmax.f32 %v82, %v86
  %v91 = vmax.f32 %v83, %v87
  %v92 = vld [vmem:[%s8] sm:$0xff]
  %v93 = vld [vmem:[%s8 + $0x8] sm:$0xff]
  %v94 = vld [vmem:[%s8 + $0x10] sm:$0xff]
  %v95 = vld [vmem:[%s8 + $0x18] sm:$0xff]
  %v96 = vmax.f32 %v88, %v92
  %v97 = vmax.f32 %v89, %v93
  %v98 = vmax.f32 %v90, %v94
  %v99 = vmax.f32 %v91, %v95
  %100 = vst [vmem:[%s9] sm:$0xff] %v96
  %101 = vst [vmem:[%s9 + $0x8] sm:$0xff] %v97
  %102 = vst [vmem:[%s9 + $0x10] sm:$0xff] %v98
  %103 = vst [vmem:[%s9 + $0x18] sm:$0xff] %v99
  // Predicated region
  $region38: #{_lambda_.14} parent=0 // pred_check
    _
  $region39: #{_lambda_.14} parent=0 // pred_check_branch
    %105 = sbr.rel (0) target = $region41
  $region40: #{_lambda_.14} parent=0 // pred_region
    _
  $region41: #{_lambda_.14} parent=0 // pred_fallthru
    _
  // Predicated region
  $region42: #{_lambda_.14} parent=0 // pred_check
    _
  $region43: #{_lambda_.14} parent=0 // pred_check_branch
    %107 = sbr.rel (0) target = $region45
  $region44: #{_lambda_.14} parent=0 // pred_region
    _
  $region45: #{_lambda_.14} parent=0 // pred_fallthru
    _

// kernel: _lambda_.15
$region0: #{_lambda_.15}
  #allocation0 [shape = 'u32[]', space=smem, size = 0x4, offset = 0x4, fixed_abs, tag = 'smem constant byte address 0x4 - core index']
  #allocation1 [shape = 'u32[144,128]{1,0:T(1,128)}', space=vmem, size = 0x12000, scoped, tag = 'internal scratch']
  #allocation2 [shape = 'f32[32,128]{1,0:T(8,128)}', space=vmem, size = 0x4000, scoped, tag = 'scratch operand']
  %s0 = inlined_call_operand.vmem [shape: bf16[32,640], index: 0, kind: input, shape index: {}]
  %s1 = inlined_call_operand.vmem [shape: bf16[640,128], index: 1, kind: input, shape index: {}]
  %s2 = inlined_call_operand.vmem [shape: f32[1,128], index: 2, kind: input, shape index: {}]
  %s3 = inlined_call_operand.vmem [shape: f32[1,128], index: 3, kind: input, shape index: {}]
  %s4 = inlined_call_operand.vmem [shape: f32[32,128], index: 4, kind: output, shape index: {}]
  %s5 = sld [smem:[#allocation0]]
  $region98: #{_lambda_.15} parent=0
    _
  %s7 = ssub.s32 1, %s5
  %s8 = scalar_select 0, %s7, %s5
  $region1: #{_lambda_.15} parent=0
    #allocation3 [shape = 'u8[16384]{0}', space=vmem, size = 0x4000, scoped, tag = 'input window, operand 0']
    loop: start=0, step=1, limit=7
    $region2: #{_lambda_.15} parent=1 // loop_pre_header
      _
    $region3: #{_lambda_.15} parent=1 // loop_header
      %s10 = sphi 0, %s14
      %p11 = scmp.ge.s32.totalorder %s10, 7
      %s17 = sphi 0, %s36
      %s18 = sphi 0, %s32
      %s19 = sphi 0, %s28
      %s20 = sphi 0, %s17
      %s21 = sphi 0, %s18
      %s22 = sphi 0, %s19
      %s23 = sphi 0, %s20
      %s24 = sphi 0, %s21
      %s25 = sphi 0, %s22
      %s41 = sphi 0, %s43
      %s44 = sphi 0, %s41
      %s45 = sphi 0, %s44
      %s61 = sphi 0, %s45
      %s69 = sphi 0, %s71
      %s72 = sphi 0, %s69
      %s73 = sphi 0, %s72
      %s89 = sphi 0, %s73
      %s95 = sphi 0, %s97
      %s98 = sphi 0, %s95
      %s99 = sphi 0, %s98
      %s115 = sphi 0, %s99
      %s121 = sphi 0, %s123
      %s124 = sphi 0, %s121
      %s125 = sphi 0, %s124
      %s141 = sphi 0, %s125
      %s149 = sphi 0, %s151
      %s152 = sphi 0, %s149
      %s153 = sphi 0, %s152
      %s169 = sphi 0, %s153
    $region4: #{_lambda_.15} parent=1 // loop_header_branch
      %13 = sbr.rel (%p11) target = $region8
    $region5: #{_lambda_.15} parent=1 // loop_body
      %s15 = ssub.s32 %s10, 1
      %s16 = ssub.s32 %s10, 2
      %s26 = sadd.s32 1, %s19
      %p27 = scmp.ge.s32.totalorder %s26, 5
      %s28 = scalar_select %p27, 0, %s26
      %s29 = sadd.s32 1, %s18
      %s30 = scalar_select %p27, %s29, %s18
      %p31 = scmp.ge.s32.totalorder %s30, 1
      %s32 = scalar_select %p31, 0, %s30
      %s33 = sadd.s32 1, %s17
      %s34 = scalar_select %p31, %s33, %s17
      %p35 = scmp.ge.s32.totalorder %s34, 1
      %s36 = scalar_select %p35, 0, %s34
      %s37 = ssub.s32 %s17, %s36
      %s38 = ssub.s32 %s19, %s28
      %s39 = sor.u32 %s37, %s38
      %p40 = scmp.eq.s32.totalorder %s39, 0
      %s42 = sadd.s32 %s41, 1
      %s43 = scalar_select %p40, %s41, %s42
      %p46 = pneg %p40
      %p47 = scmp.eq.s32.totalorder %s10, 4
      %p48 = por %p46, %p47
      %p49 = scmp.ne.s32.totalorder %s41, %s44
      %p50 = scmp.eq.s32.totalorder %s10, 0
      %p51 = por %p49, %p50
      %p52 = scmp.ne.s32.totalorder %s41, %s44
      %p53 = scmp.eq.s32.totalorder %s15, 4
      %p54 = por %p52, %p53
      %p55 = scmp.ne.s32.totalorder %s44, %s45
      %p56 = scmp.eq.s32.totalorder %s15, 0
      %p57 = por %p55, %p56
      %p58 = scmp.ne.s32.totalorder %s44, %s45
      %p59 = scmp.eq.s32.totalorder %s16, 4
      %p60 = por %p58, %p59
      %p62 = scmp.ne.s32.totalorder %s45, %s61
      %p63 = scmp.eq.s32.totalorder %s16, 0
      %p64 = por %p62, %p63
      %s65 = ssub.s32 %s19, %s28
      %s66 = ssub.s32 %s18, %s32
      %s67 = sor.u32 %s65, %s66
      %p68 = scmp.eq.s32.totalorder %s67, 0
      %s70 = sadd.s32 %s69, 1
      %s71 = scalar_select %p68, %s69, %s70
      %p74 = pneg %p68
      %p75 = scmp.eq.s32.totalorder %s10, 4
      %p76 = por %p74, %p75
      %p77 = scmp.ne.s32.totalorder %s69, %s72
      %p78 = scmp.eq.s32.totalorder %s10, 0
      %p79 = por %p77, %p78
      %p80 = scmp.ne.s32.totalorder %s69, %s72
      %p81 = scmp.eq.s32.totalorder %s15, 4
      %p82 = por %p80, %p81
      %p83 = scmp.ne.s32.totalorder %s72, %s73
      %p84 = scmp.eq.s32.totalorder %s15, 0
      %p85 = por %p83, %p84
      %p86 = scmp.ne.s32.totalorder %s72, %s73
      %p87 = scmp.eq.s32.totalorder %s16, 4
      %p88 = por %p86, %p87
      %p90 = scmp.ne.s32.totalorder %s73, %s89
      %p91 = scmp.eq.s32.totalorder %s16, 0
      %p92 = por %p90, %p91
      %s93 = ssub.s32 %s18, %s32
      %p94 = scmp.eq.s32.totalorder %s93, 0
      %s96 = sadd.s32 %s95, 1
      %s97 = scalar_select %p94, %s95, %s96
      %p100 = pneg %p94
      %p101 = scmp.eq.s32.totalorder %s10, 4
      %p102 = por %p100, %p101
      %p103 = scmp.ne.s32.totalorder %s95, %s98
      %p104 = scmp.eq.s32.totalorder %s10, 0
      %p105 = por %p103, %p104
      %p106 = scmp.ne.s32.totalorder %s95, %s98
      %p107 = scmp.eq.s32.totalorder %s15, 4
      %p108 = por %p106, %p107
      %p109 = scmp.ne.s32.totalorder %s98, %s99
      %p110 = scmp.eq.s32.totalorder %s15, 0
      %p111 = por %p109, %p110
      %p112 = scmp.ne.s32.totalorder %s98, %s99
      %p113 = scmp.eq.s32.totalorder %s16, 4
      %p114 = por %p112, %p113
      %p116 = scmp.ne.s32.totalorder %s99, %s115
      %p117 = scmp.eq.s32.totalorder %s16, 0
      %p118 = por %p116, %p117
      %s119 = ssub.s32 %s18, %s32
      %p120 = scmp.eq.s32.totalorder %s119, 0
      %s122 = sadd.s32 %s121, 1
      %s123 = scalar_select %p120, %s121, %s122
      %p126 = pneg %p120
      %p127 = scmp.eq.s32.totalorder %s10, 4
      %p128 = por %p126, %p127
      %p129 = scmp.ne.s32.totalorder %s121, %s124
      %p130 = scmp.eq.s32.totalorder %s10, 0
      %p131 = por %p129, %p130
      %p132 = scmp.ne.s32.totalorder %s121, %s124
      %p133 = scmp.eq.s32.totalorder %s15, 4
      %p134 = por %p132, %p133
      %p135 = scmp.ne.s32.totalorder %s124, %s125
      %p136 = scmp.eq.s32.totalorder %s15, 0
      %p137 = por %p135, %p136
      %p138 = scmp.ne.s32.totalorder %s124, %s125
      %p139 = scmp.eq.s32.totalorder %s16, 4
      %p140 = por %p138, %p139
      %p142 = scmp.ne.s32.totalorder %s125, %s141
      %p143 = scmp.eq.s32.totalorder %s16, 0
      %p144 = por %p142, %p143
      %s145 = ssub.s32 %s17, %s36
      %s146 = ssub.s32 %s18, %s32
      %s147 = sor.u32 %s145, %s146
      %p148 = scmp.eq.s32.totalorder %s147, 0
      %s150 = sadd.s32 %s149, 1
      %s151 = scalar_select %p148, %s149, %s150
      %p154 = pneg %p148
      %p155 = scmp.eq.s32.totalorder %s10, 4
      %p156 = por %p154, %p155
      %p157 = scmp.ne.s32.totalorder %s149, %s152
      %p158 = scmp.eq.s32.totalorder %s10, 0
      %p159 = por %p157, %p158
      %p160 = scmp.ne.s32.totalorder %s149, %s152
      %p161 = scmp.eq.s32.totalorder %s15, 4
      %p162 = por %p160, %p161
      %p163 = scmp.ne.s32.totalorder %s152, %s153
      %p164 = scmp.eq.s32.totalorder %s15, 0
      %p165 = por %p163, %p164
      %p166 = scmp.ne.s32.totalorder %s152, %s153
      %p167 = scmp.eq.s32.totalorder %s16, 4
      %p168 = por %p166, %p167
      %p170 = scmp.ne.s32.totalorder %s153, %s169
      %p171 = scmp.eq.s32.totalorder %s16, 0
      %p172 = por %p170, %p171
      %p173 = scmp.le.s32.totalorder 1, %s10
      %p174 = scmp.lt.s32.totalorder %s10, 6
      %p175 = pnand %p173, %p174
      %p176 = pneg %p175
      // Predicated region
      $region9: #{_lambda_.15} parent=5 // pred_check
        _
      $region10: #{_lambda_.15} parent=5 // pred_check_branch
        %178 = sbr.rel (%p175) target = $region12
      $region11: #{_lambda_.15} parent=5 // pred_region
        %s179 = ssub.s32 %s10, 1
        // Predicated region
        $region13: #{_lambda_.15} parent=11 // pred_check
          %p180 = pneg %p111
        $region14: #{_lambda_.15} parent=11 // pred_check_branch
          %182 = sbr.rel (%p180) target = $region16
        $region15: #{_lambda_.15} parent=11 // pred_region
          %p183 = scmp.lt.s32.totalorder %s21, 0
          %s184 = scalar_select %p183, %s21, 0
          %s185 = scalar_lea.vmem %s2, %s184
        $region16: #{_lambda_.15} parent=11 // pred_fallthru
          _
        // Predicated region
        $region17: #{_lambda_.15} parent=11 // pred_check
          %p186 = pneg %p137
        $region18: #{_lambda_.15} parent=11 // pred_check_branch
          %188 = sbr.rel (%p186) target = $region20
        $region19: #{_lambda_.15} parent=11 // pred_region
          %p189 = scmp.lt.s32.totalorder %s21, 0
          %s190 = scalar_select %p189, %s21, 0
          %s191 = scalar_lea.vmem %s3, %s190
        $region20: #{_lambda_.15} parent=11 // pred_fallthru
          _
      $region12: #{_lambda_.15} parent=5 // pred_fallthru
        _
      %p192 = scmp.lt.s32.totalorder %s10, 5
      // Predicated region
      $region21: #{_lambda_.15} parent=5 // pred_check
        %p193 = pneg %p192
      $region22: #{_lambda_.15} parent=5 // pred_check_branch
        %195 = sbr.rel (%p193) target = $region24
      $region23: #{_lambda_.15} parent=5 // pred_region
        // Predicated region
        $region25: #{_lambda_.15} parent=23 // pred_check
          %p196 = pneg %p51
        $region26: #{_lambda_.15} parent=23 // pred_check_branch
          %198 = sbr.rel (%p196) target = $region28
        $region27: #{_lambda_.15} parent=23 // pred_region
          %s199 = sand.u32 %s41, 1
          %s200 = sand.u32 %s41, 1
          %s201 = smul.addr %s200, 16
          %s202 = scalar_lea.vmem [#allocation3], %s201
          %s203 = smul.u32 4, %s17
          %s204 = smul.addr %s203, 5
          %s205 = sadd.s32 %s19, %s204
          %s206 = smul.addr %s205, 4
          %s207 = scalar_lea.vmem %s0, %s206
          // Predicated region
          $region29: #{_lambda_.15} parent=27 // pred_check
            _
          $region30: #{_lambda_.15} parent=27 // pred_check_branch
            %209 = sbr.rel (0) target = $region32
          $region31: #{_lambda_.15} parent=27 // pred_region
            // Predicated region
            $region33: #{_lambda_.15} parent=31 // pred_check
              _
            $region34: #{_lambda_.15} parent=31 // pred_check_branch
              %211 = sbr.rel target = $region36
            $region35: #{_lambda_.15} parent=31 // pred_region
              // Predicated region
              $region48: #{_lambda_.15} parent=35 // pred_check
                _
              $region49: #{_lambda_.15} parent=35 // pred_check_branch
                %232 = sbr.rel (0) target = $region51
              $region50: #{_lambda_.15} parent=35 // pred_region
                loop: start=0, step=1, limit=1
                $region52: #{_lambda_.15} parent=50 // loop_pre_header
                  _
                $region53: #{_lambda_.15} parent=50 // loop_header
                  %s234 = sphi 0, %s238
                  %p235 = scmp.ge.s32.totalorder %s234, 1
                  %s239 = sphi %s207, %s207
                  %s240 = sphi %s202, %s202
                $region54: #{_lambda_.15} parent=50 // loop_header_branch
                  %237 = sbr.rel (%p235) target = $region58
                $region55: #{_lambda_.15} parent=50 // loop_body
                  _
                $region56: #{_lambda_.15} parent=50 // loop_footer
                  %s238 = sadd.s32 1, %s234
                $region57: #{_lambda_.15} parent=50 // loop_footer_branch
                  %233 = sbr.rel target = $region53
                $region58: #{_lambda_.15} parent=50 // loop_exit
                  _
                loop: start=0, step=1, limit=1
                $region59: #{_lambda_.15} parent=50 // loop_pre_header
                  _
                $region60: #{_lambda_.15} parent=50 // loop_header
                  %s243 = sphi 0, %s247
                  %p244 = scmp.ge.s32.totalorder %s243, 1
                  %s248 = sphi %s207, %s207
                  %s249 = sphi %s202, %s202
                $region61: #{_lambda_.15} parent=50 // loop_header_branch
                  %246 = sbr.rel (%p244) target = $region65
                $region62: #{_lambda_.15} parent=50 // loop_body
                  %v250 = vld [vmem:[%s248] sm:$0xf]
                  %251 = vst [vmem:[%s249] sm:$0xf] %v250
                  %v252 = vld [vmem:[%s248 + $0x14] sm:$0xf]
                  %253 = vst [vmem:[%s249 + $0x4] sm:$0xf] %v252
                  %v254 = vld [vmem:[%s248 + $0x28] sm:$0xf]
                  %255 = vst [vmem:[%s249 + $0x8] sm:$0xf] %v254
                  %v256 = vld [vmem:[%s248 + $0x3c] sm:$0xf]
                  %257 = vst [vmem:[%s249 + $0xc] sm:$0xf] %v256
                $region63: #{_lambda_.15} parent=50 // loop_footer
                  %s247 = sadd.s32 1, %s243
                $region64: #{_lambda_.15} parent=50 // loop_footer_branch
                  %242 = sbr.rel target = $region60
                $region65: #{_lambda_.15} parent=50 // loop_exit
                  _
              $region51: #{_lambda_.15} parent=35 // pred_fallthru
                _
            $region36: #{_lambda_.15} parent=31 // pred_fallthru
              _
            // Predicated region
            $region37: #{_lambda_.15} parent=31 // pred_check
              _
            $region38: #{_lambda_.15} parent=31 // pred_check_branch
              %213 = sbr.rel (0) target = $region40
            $region39: #{_lambda_.15} parent=31 // pred_region
              loop: start=0, step=1, limit=1
              $region41: #{_lambda_.15} parent=39 // loop_pre_header
                _
              $region42: #{_lambda_.15} parent=39 // loop_header
                %s216 = sphi 0, %s220
                %p217 = scmp.ge.s32.totalorder %s216, 1
                %s221 = sphi %s207, %s207
                %s222 = sphi %s202, %s202
              $region43: #{_lambda_.15} parent=39 // loop_header_branch
                %219 = sbr.rel (%p217) target = $region47
              $region44: #{_lambda_.15} parent=39 // loop_body
                %v223 = vld [vmem:[%s221] sm:$0xf]
                %224 = vst [vmem:[%s222] sm:$0xf] %v223
                %v225 = vld [vmem:[%s221 + $0x14] sm:$0xf]
                %226 = vst [vmem:[%s222 + $0x4] sm:$0xf] %v225
                %v227 = vld [vmem:[%s221 + $0x28] sm:$0xf]
                %228 = vst [vmem:[%s222 + $0x8] sm:$0xf] %v227
                %v229 = vld [vmem:[%s221 + $0x3c] sm:$0xf]
                %230 = vst [vmem:[%s222 + $0xc] sm:$0xf] %v229
              $region45: #{_lambda_.15} parent=39 // loop_footer
                %s220 = sadd.s32 1, %s216
              $region46: #{_lambda_.15} parent=39 // loop_footer_branch
                %215 = sbr.rel target = $region42
              $region47: #{_lambda_.15} parent=39 // loop_exit
                _
            $region40: #{_lambda_.15} parent=31 // pred_fallthru
              _
          $region32: #{_lambda_.15} parent=27 // pred_fallthru
            _
          %258 = vnop
        $region28: #{_lambda_.15} parent=23 // pred_fallthru
          _
        // Predicated region
        $region66: #{_lambda_.15} parent=23 // pred_check
          %p259 = pneg %p79
        $region67: #{_lambda_.15} parent=23 // pred_check_branch
          %261 = sbr.rel (%p259) target = $region69
        $region68: #{_lambda_.15} parent=23 // pred_region
          %s262 = smul.u32 16, %s19
          %p263 = scmp.lt.s32.totalorder %s262, 79
          %s264 = scalar_select %p263, %s262, 79
          %p265 = scmp.lt.s32.totalorder %s18, 0
          %s266 = scalar_select %p265, %s18, 0
          %s267 = sadd.s32 %s266, %s264
          %s268 = smul.addr %s267, 4
          %s269 = scalar_lea.vmem %s1, %s268
          %s270 = smul.u32 16, %s19
        $region69: #{_lambda_.15} parent=23 // pred_fallthru
          _
      $region24: #{_lambda_.15} parent=5 // pred_fallthru
        _
      %p271 = scmp.le.s32.totalorder 1, %s10
      %p272 = scmp.lt.s32.totalorder %s10, 6
      %p273 = pnand %p271, %p272
      %p274 = pneg %p273
      // Predicated region
      $region70: #{_lambda_.15} parent=5 // pred_check
        _
      $region71: #{_lambda_.15} parent=5 // pred_check_branch
        %276 = sbr.rel (%p273) target = $region73
      $region72: #{_lambda_.15} parent=5 // pred_region
        %s277 = ssub.s32 %s10, 1
        %s278 = sand.u32 %s44, 1
        %s279 = sand.u32 %s44, 1
        %s280 = smul.addr %s279, 16
        %s281 = scalar_lea.vmem [#allocation3], %s280
        // Predicated region
        $region74: #{_lambda_.15} parent=72 // pred_check
          %p282 = pneg %p57
        $region75: #{_lambda_.15} parent=72 // pred_check_branch
          %284 = sbr.rel (%p282) target = $region77
        $region76: #{_lambda_.15} parent=72 // pred_region
          _
        $region77: #{_lambda_.15} parent=72 // pred_fallthru
          _
        %s285 = sand.u32 %s44, 1
        %s286 = sand.u32 %s44, 1
        %s287 = smul.addr %s286, 16
        %s288 = scalar_lea.vmem [#allocation3], %s287
        %p289 = pneg %p57
        %p290 = pneg %p54
        %s291 = smul.u32 16, %s22
        %p292 = scmp.lt.s32.totalorder %s291, 79
        %s293 = scalar_select %p292, %s291, 79
        %p294 = scmp.lt.s32.totalorder %s21, 0
        %s295 = scalar_select %p294, %s21, 0
        %s296 = sadd.s32 %s295, %s293
        %s297 = smul.addr %s296, 4
        %s298 = scalar_lea.vmem %s1, %s297
        %p299 = pneg %p85
        %p300 = pneg %p82
        %p301 = scmp.lt.s32.totalorder %s21, 0
        %s302 = scalar_select %p301, %s21, 0
        %s303 = scalar_lea.vmem %s2, %s302
        %p304 = pneg %p111
        %p305 = pneg %p108
        %p306 = scmp.lt.s32.totalorder %s21, 0
        %s307 = scalar_select %p306, %s21, 0
        %s308 = scalar_lea.vmem %s3, %s307
        %p309 = pneg %p137
        %p310 = pneg %p134
        %p311 = pneg %p165
        %p312 = pneg %p162
        %s313 = smul.u32 4, %s20
        %p314 = scmp.lt.s32.totalorder %s313, 3
        %s315 = scalar_select %p314, %s313, 3
        %p316 = scmp.lt.s32.totalorder %s21, 0
        %s317 = scalar_select %p316, %s21, 0
        %s318 = sadd.s32 %s317, %s315
        %s319 = smul.addr %s318, 8
        %s320 = scalar_lea.vmem %s4, %s319
        %s321 = smul.u32 4, %s20
        %s322 = smul.u32 16, %s22
        %p323 = scmp.lt.s32.totalorder %s322, 79
        %s324 = scalar_select %p323, %s322, 79
        %p325 = scmp.lt.s32.totalorder %s21, 0
        %s326 = scalar_select %p325, %s21, 0
        %s327 = sadd.s32 %s326, %s324
        %s328 = smul.addr %s327, 4
        %s329 = scalar_lea.vmem %s1, %s328
        %s330 = smul.u32 16, %s22
        %p331 = scmp.lt.s32.totalorder %s21, 0
        %s332 = scalar_select %p331, %s21, 0
        %s333 = scalar_lea.vmem %s2, %s332
        %p334 = scmp.lt.s32.totalorder %s21, 0
        %s335 = scalar_select %p334, %s21, 0
        %s336 = scalar_lea.vmem %s3, %s335
        %s337 = smul.u32 4, %s20
        %p338 = scmp.lt.s32.totalorder %s337, 3
        %s339 = scalar_select %p338, %s337, 3
        %p340 = scmp.lt.s32.totalorder %s21, 0
        %s341 = scalar_select %p340, %s21, 0
        %s342 = sadd.s32 %s341, %s339
        %s343 = smul.addr %s342, 8
        %s344 = scalar_lea.vmem %s4, %s343
        %s345 = smul.u32 4, %s20
        %p347 = scmp.eq.s32.totalorder %s22, 0
        // Predicated region
        $region78: #{_lambda_.15} parent=72 // pred_check
          %p348 = pneg %p347
        $region79: #{_lambda_.15} parent=72 // pred_check_branch
          %350 = sbr.rel (%p348) target = $region81
        $region80: #{_lambda_.15} parent=72 // pred_region
          %351 = vst [vmem:[#allocation2] sm:$0xff] 0.0
          %352 = vst [vmem:[#allocation2 + $0x8] sm:$0xff] 0.0
          %353 = vst [vmem:[#allocation2 + $0x10] sm:$0xff] 0.0
          %354 = vst [vmem:[#allocation2 + $0x18] sm:$0xff] 0.0
        $region81: #{_lambda_.15} parent=72 // pred_fallthru
          _
        %v355 = vld [vmem:[#allocation2] sm:$0xff]
        %v356 = vld [vmem:[#allocation2 + $0x8] sm:$0xff]
        %v357 = vld [vmem:[#allocation2 + $0x10] sm:$0xff]
        %v358 = vld [vmem:[#allocation2 + $0x18] sm:$0xff]
        %v359 = vld [vmem:[%s281] sm:$0xf]
        %v360 = vld [vmem:[%s281 + $0x4] sm:$0xf]
        %v361 = vld [vmem:[%s281 + $0x8] sm:$0xf]
        %v362 = vld [vmem:[%s281 + $0xc] sm:$0xf]
        %v363 = vld [vmem:[%s329] sm:$0xf]
        %v364 = vld [vmem:[%s329 + $0x4] sm:$0xf]
        %v365 = vld [vmem:[%s329 + $0x8] sm:$0xf]
        %v366 = vld [vmem:[%s329 + $0xc] sm:$0xf]
        %v367 = vld [vmem:[%s329 + $0x10] sm:$0xf]
        %v368 = vld [vmem:[%s329 + $0x14] sm:$0xf]
        %v369 = vld [vmem:[%s329 + $0x18] sm:$0xf]
        %v370 = vld [vmem:[%s329 + $0x1c] sm:$0xf]
        %v371 = vld [vmem:[%s329 + $0x20] sm:$0xf]
        %v372 = vld [vmem:[%s329 + $0x24] sm:$0xf]
        %v373 = vld [vmem:[%s329 + $0x28] sm:$0xf]
        %v374 = vld [vmem:[%s329 + $0x2c] sm:$0xf]
        %v375 = vld [vmem:[%s329 + $0x30] sm:$0xf]
        %v376 = vld [vmem:[%s329 + $0x34] sm:$0xf]
        %v377 = vld [vmem:[%s329 + $0x38] sm:$0xf]
        %v378 = vld [vmem:[%s329 + $0x3c] sm:$0xf]
        %v383 = vunpack.c.l.b16 %v359
        %v384 = vunpack.c.l.b16 %v360
        %v385 = vunpack.c.l.b16 %v361
        %v386 = vunpack.c.l.b16 %v362
        %v387 = vpack.c.b16 %v384, %v383
        %v388 = vpack.c.b16 %v386, %v385
        %v407 = vunpack.c.l.b16 %v363
        %v408 = vunpack.c.l.b16 %v364
        %v409 = vunpack.c.l.b16 %v365
        %v410 = vunpack.c.l.b16 %v366
        %v411 = vunpack.c.l.b16 %v367
        %v412 = vunpack.c.l.b16 %v368
        %v413 = vunpack.c.l.b16 %v369
        %v414 = vunpack.c.l.b16 %v370
        %v415 = vunpack.c.l.b16 %v371
        %v416 = vunpack.c.l.b16 %v372
        %v417 = vunpack.c.l.b16 %v373
        %v418 = vunpack.c.l.b16 %v374
        %v419 = vunpack.c.l.b16 %v375
        %v420 = vunpack.c.l.b16 %v376
        %v421 = vunpack.c.l.b16 %v377
        %v422 = vunpack.c.l.b16 %v378
        %v423 = vpack.c.b16 %v408, %v407
        %v424 = vpack.c.b16 %v410, %v409
        %v425 = vpack.c.b16 %v412, %v411
        %v426 = vpack.c.b16 %v414, %v413
        %v427 = vpack.c.b16 %v416, %v415
        %v428 = vpack.c.b16 %v418, %v417
        %v429 = vpack.c.b16 %v420, %v419
        %v430 = vpack.c.b16 %v422, %v421
        %439 = vmatprep.subr.bf16.mxu0 0
        %440 = vmatpush1.bf16.msra.mxu0 %v423
        %441 = vmatprep.subr.bf16.mxu0 0
        %442 = vmatpush1.bf16.msra.mxu0 %v424
        %443 = vmatprep.subr.bf16.mxu0 0
        %444 = vmatpush1.bf16.msra.mxu0 %v425
        %445 = vmatprep.subr.bf16.mxu0 0
        %446 = vmatpush1.bf16.msra.mxu0 %v426
        %447 = vmatprep.subr.bf16.mxu0 0
        %448 = vmatpush1.bf16.msra.mxu0 %v427
        %449 = vmatprep.subr.bf16.mxu0 0
        %450 = vmatpush1.bf16.msra.mxu0 %v428
        %451 = vmatprep.subr.bf16.mxu0 0
        %452 = vmatpush1.bf16.msra.mxu0 %v429
        %453 = vmatprep.subr.bf16.mxu0 0
        %454 = vmatpush1.bf16.msra.mxu0 %v430
        %455 = vmatprep.subr.bf16.mxu0 0
        %456 = vmatpush1.bf16.msra.mxu0 0
        %457 = vmatprep.subr.bf16.mxu0 0
        %458 = vmatpush1.bf16.msra.mxu0 0
        %459 = vmatprep.subr.bf16.mxu0 0
        %460 = vmatpush1.bf16.msra.mxu0 0
        %461 = vmatprep.subr.bf16.mxu0 0
        %462 = vmatpush1.bf16.msra.mxu0 0
        %463 = vmatprep.subr.bf16.mxu0 0
        %464 = vmatpush1.bf16.msra.mxu0 0
        %465 = vmatprep.subr.bf16.mxu0 0
        %466 = vmatpush1.bf16.msra.mxu0 0
        %467 = vmatprep.subr.bf16.mxu0 0
        %468 = vmatpush1.bf16.msra.mxu0 0
        %469 = vmatprep.subr.bf16.mxu0 0
        %470 = vmatpush1.bf16.msra.mxu0 0
        %471 = vmatprep.mubr.bf16.mxu0 0
        %472 = vmatmul.mubr.bf16.gmra.mrb[0].mxu0 %v387
        %v473 = vpop.f32.mrb[0].mxu0
        %v474 = vadd.f32 0.0, %v473
        %v475 = vpop.f32.mrb[0].mxu0
        %v476 = vpop.f32.mrb[0].mxu0
        %v477 = vadd.f32 0.0, %v476
        %v478 = vpop.f32.mrb[0].mxu0
        %479 = vmatprep.mubr.bf16.mxu0 0
        %480 = vmatmul.mubr.bf16.gmra.mrb[0].mxu0 %v388
        %v481 = vpop.f32.mrb[0].mxu0
        %v482 = vadd.f32 0.0, %v481
        %v483 = vpop.f32.mrb[0].mxu0
        %v484 = vpop.f32.mrb[0].mxu0
        %v485 = vadd.f32 0.0, %v484
        %v486 = vpop.f32.mrb[0].mxu0
        %487 = vdwg.mxu0
        %v488 = vadd.f32 %v355, %v474
        %v489 = vadd.f32 %v356, %v477
        %v490 = vadd.f32 %v357, %v482
        %v491 = vadd.f32 %v358, %v485
        %492 = vst [vmem:[#allocation2] sm:$0xff] %v488
        %493 = vst [vmem:[#allocation2 + $0x8] sm:$0xff] %v489
        %494 = vst [vmem:[#allocation2 + $0x10] sm:$0xff] %v490
        %495 = vst [vmem:[#allocation2 + $0x18] sm:$0xff] %v491
        %p496 = scmp.eq.s32.totalorder %s22, 4
        // Predicated region
        $region82: #{_lambda_.15} parent=72 // pred_check
          %p497 = pneg %p496
        $region83: #{_lambda_.15} parent=72 // pred_check_branch
          %499 = sbr.rel (%p497) target = $region85
        $region84: #{_lambda_.15} parent=72 // pred_region
          %v500 = vld [vmem:[#allocation2] sm:$0xff]
          %v501 = vld [vmem:[#allocation2 + $0x8] sm:$0xff]
          %v502 = vld [vmem:[#allocation2 + $0x10] sm:$0xff]
          %v503 = vld [vmem:[#allocation2 + $0x18] sm:$0xff]
          %v504 = vld [vmem:[%s333] sm:$0x1]
          %v506 = vlaneseq
          %v507 = vshrl.u32 %v506, 7
          %v508 = vsub.s32 0, %v507
          %v509 = vrot.slane %v504, %v508
          %v511 = vmul.f32 %v500, %v509
          %v512 = vmul.f32 %v501, %v509
          %v513 = vmul.f32 %v502, %v509
          %v514 = vmul.f32 %v503, %v509
          %v515 = vld [vmem:[%s336] sm:$0x1]
          %v517 = vlaneseq
          %v518 = vshrl.u32 %v517, 7
          %v519 = vsub.s32 0, %v518
          %v520 = vrot.slane %v515, %v519
          %v522 = vadd.f32 %v511, %v520
          %v523 = vadd.f32 %v512, %v520
          %v524 = vadd.f32 %v513, %v520
          %v525 = vadd.f32 %v514, %v520
          %v526 = vmax.f32 %v522, 0.0
          %v527 = vmax.f32 %v523, 0.0
          %v528 = vmax.f32 %v524, 0.0
          %v529 = vmax.f32 %v525, 0.0
          %530 = vst [vmem:[%s344] sm:$0xff] %v526
          %531 = vst [vmem:[%s344 + $0x8] sm:$0xff] %v527
          %532 = vst [vmem:[%s344 + $0x10] sm:$0xff] %v528
          %533 = vst [vmem:[%s344 + $0x18] sm:$0xff] %v529
        $region85: #{_lambda_.15} parent=72 // pred_fallthru
          _
        %s534 = smul.u32 4, %s20
        %p535 = scmp.lt.s32.totalorder %s534, 3
        %s536 = scalar_select %p535, %s534, 3
        %p537 = scmp.lt.s32.totalorder %s21, 0
        %s538 = scalar_select %p537, %s21, 0
        %s539 = sadd.s32 %s538, %s536
        %s540 = smul.addr %s539, 8
        %s541 = scalar_lea.vmem %s4, %s540
        // Predicated region
        $region86: #{_lambda_.15} parent=72 // pred_check
          %p542 = pneg %p162
        $region87: #{_lambda_.15} parent=72 // pred_check_branch
          %544 = sbr.rel (%p542) target = $region89
        $region88: #{_lambda_.15} parent=72 // pred_region
          %s545 = smul.u32 4, %s20
        $region89: #{_lambda_.15} parent=72 // pred_fallthru
          _
        // Predicated region
        $region90: #{_lambda_.15} parent=72 // pred_check
          %p546 = pneg %p162
        $region91: #{_lambda_.15} parent=72 // pred_check_branch
          %548 = sbr.rel (%p546) target = $region93
        $region92: #{_lambda_.15} parent=72 // pred_region
          %s549 = smul.u32 4, %s20
          %p550 = scmp.lt.s32.totalorder %s549, 3
          %s551 = scalar_select %p550, %s549, 3
          %p552 = scmp.lt.s32.totalorder %s21, 0
          %s553 = scalar_select %p552, %s21, 0
          %s554 = sadd.s32 %s553, %s551
          %s555 = smul.addr %s554, 8
          %s556 = scalar_lea.vmem %s4, %s555
        $region93: #{_lambda_.15} parent=72 // pred_fallthru
          _
      $region73: #{_lambda_.15} parent=5 // pred_fallthru
        _
      %p557 = scmp.le.s32.totalorder 2, %s10
      // Predicated region
      $region94: #{_lambda_.15} parent=5 // pred_check
        %p558 = pneg %p557
      $region95: #{_lambda_.15} parent=5 // pred_check_branch
        %560 = sbr.rel (%p558) target = $region97
      $region96: #{_lambda_.15} parent=5 // pred_region
        %s561 = ssub.s32 %s10, 2
      $region97: #{_lambda_.15} parent=5 // pred_fallthru
        _
    $region6: #{_lambda_.15} parent=1 // loop_footer
      %s14 = sadd.s32 1, %s10
    $region7: #{_lambda_.15} parent=1 // loop_footer_branch
      %9 = sbr.rel target = $region3
    $region8: #{_lambda_.15} parent=1 // loop_exit
      _

// kernel: _lambda_.17
$region0: #{_lambda_.17}
  #allocation0 [shape = 'u32[]', space=smem, size = 0x4, offset = 0x4, fixed_abs, tag = 'smem constant byte address 0x4 - core index']
  #allocation1 [shape = 'u32[144,128]{1,0:T(1,128)}', space=vmem, size = 0x12000, scoped, tag = 'internal scratch']
  #allocation2 [shape = 'f32[8,128]{1,0:T(8,128)}', space=vmem, size = 0x1000, scoped, tag = 'scratch operand']
  %s0 = inlined_call_operand.vmem [shape: bf16[8,128], index: 0, kind: input, shape index: {}]
  %s1 = inlined_call_operand.vmem [shape: bf16[128,128], index: 1, kind: input, shape index: {}]
  %s2 = inlined_call_operand.vmem [shape: f32[1,128], index: 2, kind: input, shape index: {}]
  %s3 = inlined_call_operand.vmem [shape: f32[1,128], index: 3, kind: input, shape index: {}]
  %s4 = inlined_call_operand.vmem [shape: f32[8,128], index: 4, kind: output, shape index: {}]
  %s5 = sld [smem:[#allocation0]]
  $region34: #{_lambda_.17} parent=0
    _
  %s7 = ssub.s32 1, %s5
  %s8 = scalar_select 0, %s7, %s5
  // Predicated region
  $region2: #{_lambda_.17} parent=0 // pred_check
    _
  $region3: #{_lambda_.17} parent=0 // pred_check_branch
    %10 = sbr.rel (0) target = $region5
  $region4: #{_lambda_.17} parent=0 // pred_region
    _
  $region5: #{_lambda_.17} parent=0 // pred_fallthru
    _
  // Predicated region
  $region6: #{_lambda_.17} parent=0 // pred_check
    _
  $region7: #{_lambda_.17} parent=0 // pred_check_branch
    %12 = sbr.rel (0) target = $region9
  $region8: #{_lambda_.17} parent=0 // pred_region
    _
  $region9: #{_lambda_.17} parent=0 // pred_fallthru
    _
  // Predicated region
  $region10: #{_lambda_.17} parent=0 // pred_check
    _
  $region11: #{_lambda_.17} parent=0 // pred_check_branch
    %14 = sbr.rel (0) target = $region13
  $region12: #{_lambda_.17} parent=0 // pred_region
    _
  $region13: #{_lambda_.17} parent=0 // pred_fallthru
    _
  // Predicated region
  $region14: #{_lambda_.17} parent=0 // pred_check
    _
  $region15: #{_lambda_.17} parent=0 // pred_check_branch
    %16 = sbr.rel (0) target = $region17
  $region16: #{_lambda_.17} parent=0 // pred_region
    _
  $region17: #{_lambda_.17} parent=0 // pred_fallthru
    _
  %p18 = scmp.eq.s32.totalorder 0, 0
  // Predicated region
  $region18: #{_lambda_.17} parent=0 // pred_check
    %p19 = pneg %p18
  $region19: #{_lambda_.17} parent=0 // pred_check_branch
    %21 = sbr.rel (%p19) target = $region21
  $region20: #{_lambda_.17} parent=0 // pred_region
    %22 = vst [vmem:[#allocation2] sm:$0xff] 0.0
  $region21: #{_lambda_.17} parent=0 // pred_fallthru
    _
  %v23 = vld [vmem:[#allocation2] sm:$0xff]
  %v24 = vld [vmem:[%s0] sm:$0xf]
  %v25 = vld [vmem:[%s1] sm:$0xf]
  %v26 = vld [vmem:[%s1 + $0x4] sm:$0xf]
  %v27 = vld [vmem:[%s1 + $0x8] sm:$0xf]
  %v28 = vld [vmem:[%s1 + $0xc] sm:$0xf]
  %v29 = vld [vmem:[%s1 + $0x10] sm:$0xf]
  %v30 = vld [vmem:[%s1 + $0x14] sm:$0xf]
  %v31 = vld [vmem:[%s1 + $0x18] sm:$0xf]
  %v32 = vld [vmem:[%s1 + $0x1c] sm:$0xf]
  %v33 = vld [vmem:[%s1 + $0x20] sm:$0xf]
  %v34 = vld [vmem:[%s1 + $0x24] sm:$0xf]
  %v35 = vld [vmem:[%s1 + $0x28] sm:$0xf]
  %v36 = vld [vmem:[%s1 + $0x2c] sm:$0xf]
  %v37 = vld [vmem:[%s1 + $0x30] sm:$0xf]
  %v38 = vld [vmem:[%s1 + $0x34] sm:$0xf]
  %v39 = vld [vmem:[%s1 + $0x38] sm:$0xf]
  %v40 = vld [vmem:[%s1 + $0x3c] sm:$0xf]
  %v57 = vunpack.c.l.b16 %v25
  %v58 = vunpack.c.l.b16 %v26
  %v59 = vunpack.c.l.b16 %v27
  %v60 = vunpack.c.l.b16 %v28
  %v61 = vunpack.c.l.b16 %v29
  %v62 = vunpack.c.l.b16 %v30
  %v63 = vunpack.c.l.b16 %v31
  %v64 = vunpack.c.l.b16 %v32
  %v65 = vunpack.c.l.b16 %v33
  %v66 = vunpack.c.l.b16 %v34
  %v67 = vunpack.c.l.b16 %v35
  %v68 = vunpack.c.l.b16 %v36
  %v69 = vunpack.c.l.b16 %v37
  %v70 = vunpack.c.l.b16 %v38
  %v71 = vunpack.c.l.b16 %v39
  %v72 = vunpack.c.l.b16 %v40
  %v73 = vpack.c.b16 %v58, %v57
  %v74 = vpack.c.b16 %v60, %v59
  %v75 = vpack.c.b16 %v62, %v61
  %v76 = vpack.c.b16 %v64, %v63
  %v77 = vpack.c.b16 %v66, %v65
  %v78 = vpack.c.b16 %v68, %v67
  %v79 = vpack.c.b16 %v70, %v69
  %v80 = vpack.c.b16 %v72, %v71
  %89 = vmatprep.subr.bf16.mxu0 0
  %90 = vmatpush1.bf16.msra.mxu0 %v73
  %91 = vmatprep.subr.bf16.mxu0 0
  %92 = vmatpush1.bf16.msra.mxu0 %v74
  %93 = vmatprep.subr.bf16.mxu0 0
  %94 = vmatpush1.bf16.msra.mxu0 %v75
  %95 = vmatprep.subr.bf16.mxu0 0
  %96 = vmatpush1.bf16.msra.mxu0 %v76
  %97 = vmatprep.subr.bf16.mxu0 0
  %98 = vmatpush1.bf16.msra.mxu0 %v77
  %99 = vmatprep.subr.bf16.mxu0 0
  %100 = vmatpush1.bf16.msra.mxu0 %v78
  %101 = vmatprep.subr.bf16.mxu0 0
  %102 = vmatpush1.bf16.msra.mxu0 %v79
  %103 = vmatprep.subr.bf16.mxu0 0
  %104 = vmatpush1.bf16.msra.mxu0 %v80
  %105 = vmatprep.subr.bf16.mxu0 0
  %106 = vmatpush1.bf16.msra.mxu0 0
  %107 = vmatprep.subr.bf16.mxu0 0
  %108 = vmatpush1.bf16.msra.mxu0 0
  %109 = vmatprep.subr.bf16.mxu0 0
  %110 = vmatpush1.bf16.msra.mxu0 0
  %111 = vmatprep.subr.bf16.mxu0 0
  %112 = vmatpush1.bf16.msra.mxu0 0
  %113 = vmatprep.subr.bf16.mxu0 0
  %114 = vmatpush1.bf16.msra.mxu0 0
  %115 = vmatprep.subr.bf16.mxu0 0
  %116 = vmatpush1.bf16.msra.mxu0 0
  %117 = vmatprep.subr.bf16.mxu0 0
  %118 = vmatpush1.bf16.msra.mxu0 0
  %119 = vmatprep.subr.bf16.mxu0 0
  %120 = vmatpush1.bf16.msra.mxu0 0
  %121 = vmatprep.mubr.bf16.mxu0 0
  %122 = vmatmul.mubr.bf16.gmra.mrb[0].mxu0 %v24
  %v123 = vpop.f32.mrb[0].mxu0
  %v124 = vadd.f32 0.0, %v123
  %v125 = vpop.f32.mrb[0].mxu0
  %v126 = vpop.f32.mrb[0].mxu0
  %v127 = vpop.f32.mrb[0].mxu0
  %128 = vdwg.mxu0
  %v129 = vadd.f32 %v23, %v124
  %130 = vst [vmem:[#allocation2] sm:$0xff] %v129
  // Predicated region
  $region22: #{_lambda_.17} parent=0 // pred_check
    %p131 = pneg %p18
  $region23: #{_lambda_.17} parent=0 // pred_check_branch
    %133 = sbr.rel (%p131) target = $region25
  $region24: #{_lambda_.17} parent=0 // pred_region
    %v134 = vld [vmem:[#allocation2] sm:$0xff]
    %v135 = vld [vmem:[%s2] sm:$0x1]
    %v137 = vlaneseq
    %v138 = vshrl.u32 %v137, 7
    %v139 = vsub.s32 0, %v138
    %v140 = vrot.slane %v135, %v139
    %v142 = vmul.f32 %v134, %v140
    %v143 = vld [vmem:[%s3] sm:$0x1]
    %v145 = vlaneseq
    %v146 = vshrl.u32 %v145, 7
    %v147 = vsub.s32 0, %v146
    %v148 = vrot.slane %v143, %v147
    %v150 = vadd.f32 %v142, %v148
    %151 = vst [vmem:[%s4] sm:$0xff] %v150
  $region25: #{_lambda_.17} parent=0 // pred_fallthru
    _
  // Predicated region
  $region26: #{_lambda_.17} parent=0 // pred_check
    _
  $region27: #{_lambda_.17} parent=0 // pred_check_branch
    %153 = sbr.rel (0) target = $region29
  $region28: #{_lambda_.17} parent=0 // pred_region
    _
  $region29: #{_lambda_.17} parent=0 // pred_fallthru
    _
  // Predicated region
  $region30: #{_lambda_.17} parent=0 // pred_check
    _
  $region31: #{_lambda_.17} parent=0 // pred_check_branch
    %155 = sbr.rel (0) target = $region33
  $region32: #{_lambda_.17} parent=0 // pred_region
    _
  $region33: #{_lambda_.17} parent=0 // pred_fallthru
    _

// kernel: _lambda_.16
$region0: #{_lambda_.16}
  #allocation0 [shape = 'u32[]', space=smem, size = 0x4, offset = 0x4, fixed_abs, tag = 'smem constant byte address 0x4 - core index']
  #allocation1 [shape = 'u32[144,128]{1,0:T(1,128)}', space=vmem, size = 0x12000, scoped, tag = 'internal scratch']
  #allocation2 [shape = 'f32[32,128]{1,0:T(8,128)}', space=vmem, size = 0x4000, scoped, tag = 'scratch operand']
  %s0 = inlined_call_operand.vmem [shape: bf16[32,640], index: 0, kind: input, shape index: {}]
  %s1 = inlined_call_operand.vmem [shape: bf16[640,128], index: 1, kind: input, shape index: {}]
  %s2 = inlined_call_operand.vmem [shape: f32[1,128], index: 2, kind: input, shape index: {}]
  %s3 = inlined_call_operand.vmem [shape: f32[1,128], index: 3, kind: input, shape index: {}]
  %s4 = inlined_call_operand.vmem [shape: f32[32,128], index: 4, kind: input, shape index: {}]
  %s5 = inlined_call_operand.vmem [shape: f32[32,128], index: 5, kind: output, shape index: {}]
  %s6 = sld [smem:[#allocation0]]
  $region102: #{_lambda_.16} parent=0
    _
  %s8 = ssub.s32 1, %s6
  %s9 = scalar_select 0, %s8, %s6
  $region1: #{_lambda_.16} parent=0
    #allocation3 [shape = 'u8[16384]{0}', space=vmem, size = 0x4000, scoped, tag = 'input window, operand 0']
    loop: start=0, step=1, limit=7
    $region2: #{_lambda_.16} parent=1 // loop_pre_header
      _
    $region3: #{_lambda_.16} parent=1 // loop_header
      %s11 = sphi 0, %s15
      %p12 = scmp.ge.s32.totalorder %s11, 7
      %s18 = sphi 0, %s37
      %s19 = sphi 0, %s33
      %s20 = sphi 0, %s29
      %s21 = sphi 0, %s18
      %s22 = sphi 0, %s19
      %s23 = sphi 0, %s20
      %s24 = sphi 0, %s21
      %s25 = sphi 0, %s22
      %s26 = sphi 0, %s23
      %s42 = sphi 0, %s44
      %s45 = sphi 0, %s42
      %s46 = sphi 0, %s45
      %s62 = sphi 0, %s46
      %s70 = sphi 0, %s72
      %s73 = sphi 0, %s70
      %s74 = sphi 0, %s73
      %s90 = sphi 0, %s74
      %s96 = sphi 0, %s98
      %s99 = sphi 0, %s96
      %s100 = sphi 0, %s99
      %s116 = sphi 0, %s100
      %s122 = sphi 0, %s124
      %s125 = sphi 0, %s122
      %s126 = sphi 0, %s125
      %s142 = sphi 0, %s126
      %s150 = sphi 0, %s152
      %s153 = sphi 0, %s150
      %s154 = sphi 0, %s153
      %s170 = sphi 0, %s154
      %s178 = sphi 0, %s180
      %s181 = sphi 0, %s178
      %s182 = sphi 0, %s181
      %s198 = sphi 0, %s182
    $region4: #{_lambda_.16} parent=1 // loop_header_branch
      %14 = sbr.rel (%p12) target = $region8
    $region5: #{_lambda_.16} parent=1 // loop_body
      %s16 = ssub.s32 %s11, 1
      %s17 = ssub.s32 %s11, 2
      %s27 = sadd.s32 1, %s20
      %p28 = scmp.ge.s32.totalorder %s27, 5
      %s29 = scalar_select %p28, 0, %s27
      %s30 = sadd.s32 1, %s19
      %s31 = scalar_select %p28, %s30, %s19
      %p32 = scmp.ge.s32.totalorder %s31, 1
      %s33 = scalar_select %p32, 0, %s31
      %s34 = sadd.s32 1, %s18
      %s35 = scalar_select %p32, %s34, %s18
      %p36 = scmp.ge.s32.totalorder %s35, 1
      %s37 = scalar_select %p36, 0, %s35
      %s38 = ssub.s32 %s18, %s37
      %s39 = ssub.s32 %s20, %s29
      %s40 = sor.u32 %s38, %s39
      %p41 = scmp.eq.s32.totalorder %s40, 0
      %s43 = sadd.s32 %s42, 1
      %s44 = scalar_select %p41, %s42, %s43
      %p47 = pneg %p41
      %p48 = scmp.eq.s32.totalorder %s11, 4
      %p49 = por %p47, %p48
      %p50 = scmp.ne.s32.totalorder %s42, %s45
      %p51 = scmp.eq.s32.totalorder %s11, 0
      %p52 = por %p50, %p51
      %p53 = scmp.ne.s32.totalorder %s42, %s45
      %p54 = scmp.eq.s32.totalorder %s16, 4
      %p55 = por %p53, %p54
      %p56 = scmp.ne.s32.totalorder %s45, %s46
      %p57 = scmp.eq.s32.totalorder %s16, 0
      %p58 = por %p56, %p57
      %p59 = scmp.ne.s32.totalorder %s45, %s46
      %p60 = scmp.eq.s32.totalorder %s17, 4
      %p61 = por %p59, %p60
      %p63 = scmp.ne.s32.totalorder %s46, %s62
      %p64 = scmp.eq.s32.totalorder %s17, 0
      %p65 = por %p63, %p64
      %s66 = ssub.s32 %s20, %s29
      %s67 = ssub.s32 %s19, %s33
      %s68 = sor.u32 %s66, %s67
      %p69 = scmp.eq.s32.totalorder %s68, 0
      %s71 = sadd.s32 %s70, 1
      %s72 = scalar_select %p69, %s70, %s71
      %p75 = pneg %p69
      %p76 = scmp.eq.s32.totalorder %s11, 4
      %p77 = por %p75, %p76
      %p78 = scmp.ne.s32.totalorder %s70, %s73
      %p79 = scmp.eq.s32.totalorder %s11, 0
      %p80 = por %p78, %p79
      %p81 = scmp.ne.s32.totalorder %s70, %s73
      %p82 = scmp.eq.s32.totalorder %s16, 4
      %p83 = por %p81, %p82
      %p84 = scmp.ne.s32.totalorder %s73, %s74
      %p85 = scmp.eq.s32.totalorder %s16, 0
      %p86 = por %p84, %p85
      %p87 = scmp.ne.s32.totalorder %s73, %s74
      %p88 = scmp.eq.s32.totalorder %s17, 4
      %p89 = por %p87, %p88
      %p91 = scmp.ne.s32.totalorder %s74, %s90
      %p92 = scmp.eq.s32.totalorder %s17, 0
      %p93 = por %p91, %p92
      %s94 = ssub.s32 %s19, %s33
      %p95 = scmp.eq.s32.totalorder %s94, 0
      %s97 = sadd.s32 %s96, 1
      %s98 = scalar_select %p95, %s96, %s97
      %p101 = pneg %p95
      %p102 = scmp.eq.s32.totalorder %s11, 4
      %p103 = por %p101, %p102
      %p104 = scmp.ne.s32.totalorder %s96, %s99
      %p105 = scmp.eq.s32.totalorder %s11, 0
      %p106 = por %p104, %p105
      %p107 = scmp.ne.s32.totalorder %s96, %s99
      %p108 = scmp.eq.s32.totalorder %s16, 4
      %p109 = por %p107, %p108
      %p110 = scmp.ne.s32.totalorder %s99, %s100
      %p111 = scmp.eq.s32.totalorder %s16, 0
      %p112 = por %p110, %p111
      %p113 = scmp.ne.s32.totalorder %s99, %s100
      %p114 = scmp.eq.s32.totalorder %s17, 4
      %p115 = por %p113, %p114
      %p117 = scmp.ne.s32.totalorder %s100, %s116
      %p118 = scmp.eq.s32.totalorder %s17, 0
      %p119 = por %p117, %p118
      %s120 = ssub.s32 %s19, %s33
      %p121 = scmp.eq.s32.totalorder %s120, 0
      %s123 = sadd.s32 %s122, 1
      %s124 = scalar_select %p121, %s122, %s123
      %p127 = pneg %p121
      %p128 = scmp.eq.s32.totalorder %s11, 4
      %p129 = por %p127, %p128
      %p130 = scmp.ne.s32.totalorder %s122, %s125
      %p131 = scmp.eq.s32.totalorder %s11, 0
      %p132 = por %p130, %p131
      %p133 = scmp.ne.s32.totalorder %s122, %s125
      %p134 = scmp.eq.s32.totalorder %s16, 4
      %p135 = por %p133, %p134
      %p136 = scmp.ne.s32.totalorder %s125, %s126
      %p137 = scmp.eq.s32.totalorder %s16, 0
      %p138 = por %p136, %p137
      %p139 = scmp.ne.s32.totalorder %s125, %s126
      %p140 = scmp.eq.s32.totalorder %s17, 4
      %p141 = por %p139, %p140
      %p143 = scmp.ne.s32.totalorder %s126, %s142
      %p144 = scmp.eq.s32.totalorder %s17, 0
      %p145 = por %p143, %p144
      %s146 = ssub.s32 %s18, %s37
      %s147 = ssub.s32 %s19, %s33
      %s148 = sor.u32 %s146, %s147
      %p149 = scmp.eq.s32.totalorder %s148, 0
      %s151 = sadd.s32 %s150, 1
      %s152 = scalar_select %p149, %s150, %s151
      %p155 = pneg %p149
      %p156 = scmp.eq.s32.totalorder %s11, 4
      %p157 = por %p155, %p156
      %p158 = scmp.ne.s32.totalorder %s150, %s153
      %p159 = scmp.eq.s32.totalorder %s11, 0
      %p160 = por %p158, %p159
      %p161 = scmp.ne.s32.totalorder %s150, %s153
      %p162 = scmp.eq.s32.totalorder %s16, 4
      %p163 = por %p161, %p162
      %p164 = scmp.ne.s32.totalorder %s153, %s154
      %p165 = scmp.eq.s32.totalorder %s16, 0
      %p166 = por %p164, %p165
      %p167 = scmp.ne.s32.totalorder %s153, %s154
      %p168 = scmp.eq.s32.totalorder %s17, 4
      %p169 = por %p167, %p168
      %p171 = scmp.ne.s32.totalorder %s154, %s170
      %p172 = scmp.eq.s32.totalorder %s17, 0
      %p173 = por %p171, %p172
      %s174 = ssub.s32 %s18, %s37
      %s175 = ssub.s32 %s19, %s33
      %s176 = sor.u32 %s174, %s175
      %p177 = scmp.eq.s32.totalorder %s176, 0
      %s179 = sadd.s32 %s178, 1
      %s180 = scalar_select %p177, %s178, %s179
      %p183 = pneg %p177
      %p184 = scmp.eq.s32.totalorder %s11, 4
      %p185 = por %p183, %p184
      %p186 = scmp.ne.s32.totalorder %s178, %s181
      %p187 = scmp.eq.s32.totalorder %s11, 0
      %p188 = por %p186, %p187
      %p189 = scmp.ne.s32.totalorder %s178, %s181
      %p190 = scmp.eq.s32.totalorder %s16, 4
      %p191 = por %p189, %p190
      %p192 = scmp.ne.s32.totalorder %s181, %s182
      %p193 = scmp.eq.s32.totalorder %s16, 0
      %p194 = por %p192, %p193
      %p195 = scmp.ne.s32.totalorder %s181, %s182
      %p196 = scmp.eq.s32.totalorder %s17, 4
      %p197 = por %p195, %p196
      %p199 = scmp.ne.s32.totalorder %s182, %s198
      %p200 = scmp.eq.s32.totalorder %s17, 0
      %p201 = por %p199, %p200
      %p202 = scmp.le.s32.totalorder 1, %s11
      %p203 = scmp.lt.s32.totalorder %s11, 6
      %p204 = pnand %p202, %p203
      %p205 = pneg %p204
      // Predicated region
      $region9: #{_lambda_.16} parent=5 // pred_check
        _
      $region10: #{_lambda_.16} parent=5 // pred_check_branch
        %207 = sbr.rel (%p204) target = $region12
      $region11: #{_lambda_.16} parent=5 // pred_region
        %s208 = ssub.s32 %s11, 1
        // Predicated region
        $region13: #{_lambda_.16} parent=11 // pred_check
          %p209 = pneg %p112
        $region14: #{_lambda_.16} parent=11 // pred_check_branch
          %211 = sbr.rel (%p209) target = $region16
        $region15: #{_lambda_.16} parent=11 // pred_region
          %p212 = scmp.lt.s32.totalorder %s22, 0
          %s213 = scalar_select %p212, %s22, 0
          %s214 = scalar_lea.vmem %s2, %s213
        $region16: #{_lambda_.16} parent=11 // pred_fallthru
          _
        // Predicated region
        $region17: #{_lambda_.16} parent=11 // pred_check
          %p215 = pneg %p138
        $region18: #{_lambda_.16} parent=11 // pred_check_branch
          %217 = sbr.rel (%p215) target = $region20
        $region19: #{_lambda_.16} parent=11 // pred_region
          %p218 = scmp.lt.s32.totalorder %s22, 0
          %s219 = scalar_select %p218, %s22, 0
          %s220 = scalar_lea.vmem %s3, %s219
        $region20: #{_lambda_.16} parent=11 // pred_fallthru
          _
        // Predicated region
        $region21: #{_lambda_.16} parent=11 // pred_check
          %p221 = pneg %p166
        $region22: #{_lambda_.16} parent=11 // pred_check_branch
          %223 = sbr.rel (%p221) target = $region24
        $region23: #{_lambda_.16} parent=11 // pred_region
          %s224 = smul.u32 4, %s21
          %p225 = scmp.lt.s32.totalorder %s224, 3
          %s226 = scalar_select %p225, %s224, 3
          %p227 = scmp.lt.s32.totalorder %s22, 0
          %s228 = scalar_select %p227, %s22, 0
          %s229 = sadd.s32 %s228, %s226
          %s230 = smul.addr %s229, 8
          %s231 = scalar_lea.vmem %s4, %s230
          %s232 = smul.u32 4, %s21
        $region24: #{_lambda_.16} parent=11 // pred_fallthru
          _
      $region12: #{_lambda_.16} parent=5 // pred_fallthru
        _
      %p233 = scmp.lt.s32.totalorder %s11, 5
      // Predicated region
      $region25: #{_lambda_.16} parent=5 // pred_check
        %p234 = pneg %p233
      $region26: #{_lambda_.16} parent=5 // pred_check_branch
        %236 = sbr.rel (%p234) target = $region28
      $region27: #{_lambda_.16} parent=5 // pred_region
        // Predicated region
        $region29: #{_lambda_.16} parent=27 // pred_check
          %p237 = pneg %p52
        $region30: #{_lambda_.16} parent=27 // pred_check_branch
          %239 = sbr.rel (%p237) target = $region32
        $region31: #{_lambda_.16} parent=27 // pred_region
          %s240 = sand.u32 %s42, 1
          %s241 = sand.u32 %s42, 1
          %s242 = smul.addr %s241, 16
          %s243 = scalar_lea.vmem [#allocation3], %s242
          %s244 = smul.u32 4, %s18
          %s245 = smul.addr %s244, 5
          %s246 = sadd.s32 %s20, %s245
          %s247 = smul.addr %s246, 4
          %s248 = scalar_lea.vmem %s0, %s247
          // Predicated region
          $region33: #{_lambda_.16} parent=31 // pred_check
            _
          $region34: #{_lambda_.16} parent=31 // pred_check_branch
            %250 = sbr.rel (0) target = $region36
          $region35: #{_lambda_.16} parent=31 // pred_region
            // Predicated region
            $region37: #{_lambda_.16} parent=35 // pred_check
              _
            $region38: #{_lambda_.16} parent=35 // pred_check_branch
              %252 = sbr.rel target = $region40
            $region39: #{_lambda_.16} parent=35 // pred_region
              // Predicated region
              $region52: #{_lambda_.16} parent=39 // pred_check
                _
              $region53: #{_lambda_.16} parent=39 // pred_check_branch
                %273 = sbr.rel (0) target = $region55
              $region54: #{_lambda_.16} parent=39 // pred_region
                loop: start=0, step=1, limit=1
                $region56: #{_lambda_.16} parent=54 // loop_pre_header
                  _
                $region57: #{_lambda_.16} parent=54 // loop_header
                  %s275 = sphi 0, %s279
                  %p276 = scmp.ge.s32.totalorder %s275, 1
                  %s280 = sphi %s248, %s248
                  %s281 = sphi %s243, %s243
                $region58: #{_lambda_.16} parent=54 // loop_header_branch
                  %278 = sbr.rel (%p276) target = $region62
                $region59: #{_lambda_.16} parent=54 // loop_body
                  _
                $region60: #{_lambda_.16} parent=54 // loop_footer
                  %s279 = sadd.s32 1, %s275
                $region61: #{_lambda_.16} parent=54 // loop_footer_branch
                  %274 = sbr.rel target = $region57
                $region62: #{_lambda_.16} parent=54 // loop_exit
                  _
                loop: start=0, step=1, limit=1
                $region63: #{_lambda_.16} parent=54 // loop_pre_header
                  _
                $region64: #{_lambda_.16} parent=54 // loop_header
                  %s284 = sphi 0, %s288
                  %p285 = scmp.ge.s32.totalorder %s284, 1
                  %s289 = sphi %s248, %s248
                  %s290 = sphi %s243, %s243
                $region65: #{_lambda_.16} parent=54 // loop_header_branch
                  %287 = sbr.rel (%p285) target = $region69
                $region66: #{_lambda_.16} parent=54 // loop_body
                  %v291 = vld [vmem:[%s289] sm:$0xf]
                  %292 = vst [vmem:[%s290] sm:$0xf] %v291
                  %v293 = vld [vmem:[%s289 + $0x14] sm:$0xf]
                  %294 = vst [vmem:[%s290 + $0x4] sm:$0xf] %v293
                  %v295 = vld [vmem:[%s289 + $0x28] sm:$0xf]
                  %296 = vst [vmem:[%s290 + $0x8] sm:$0xf] %v295
                  %v297 = vld [vmem:[%s289 + $0x3c] sm:$0xf]
                  %298 = vst [vmem:[%s290 + $0xc] sm:$0xf] %v297
                $region67: #{_lambda_.16} parent=54 // loop_footer
                  %s288 = sadd.s32 1, %s284
                $region68: #{_lambda_.16} parent=54 // loop_footer_branch
                  %283 = sbr.rel target = $region64
                $region69: #{_lambda_.16} parent=54 // loop_exit
                  _
              $region55: #{_lambda_.16} parent=39 // pred_fallthru
                _
            $region40: #{_lambda_.16} parent=35 // pred_fallthru
              _
            // Predicated region
            $region41: #{_lambda_.16} parent=35 // pred_check
              _
            $region42: #{_lambda_.16} parent=35 // pred_check_branch
              %254 = sbr.rel (0) target = $region44
            $region43: #{_lambda_.16} parent=35 // pred_region
              loop: start=0, step=1, limit=1
              $region45: #{_lambda_.16} parent=43 // loop_pre_header
                _
              $region46: #{_lambda_.16} parent=43 // loop_header
                %s257 = sphi 0, %s261
                %p258 = scmp.ge.s32.totalorder %s257, 1
                %s262 = sphi %s248, %s248
                %s263 = sphi %s243, %s243
              $region47: #{_lambda_.16} parent=43 // loop_header_branch
                %260 = sbr.rel (%p258) target = $region51
              $region48: #{_lambda_.16} parent=43 // loop_body
                %v264 = vld [vmem:[%s262] sm:$0xf]
                %265 = vst [vmem:[%s263] sm:$0xf] %v264
                %v266 = vld [vmem:[%s262 + $0x14] sm:$0xf]
                %267 = vst [vmem:[%s263 + $0x4] sm:$0xf] %v266
                %v268 = vld [vmem:[%s262 + $0x28] sm:$0xf]
                %269 = vst [vmem:[%s263 + $0x8] sm:$0xf] %v268
                %v270 = vld [vmem:[%s262 + $0x3c] sm:$0xf]
                %271 = vst [vmem:[%s263 + $0xc] sm:$0xf] %v270
              $region49: #{_lambda_.16} parent=43 // loop_footer
                %s261 = sadd.s32 1, %s257
              $region50: #{_lambda_.16} parent=43 // loop_footer_branch
                %256 = sbr.rel target = $region46
              $region51: #{_lambda_.16} parent=43 // loop_exit
                _
            $region44: #{_lambda_.16} parent=35 // pred_fallthru
              _
          $region36: #{_lambda_.16} parent=31 // pred_fallthru
            _
          %299 = vnop
        $region32: #{_lambda_.16} parent=27 // pred_fallthru
          _
        // Predicated region
        $region70: #{_lambda_.16} parent=27 // pred_check
          %p300 = pneg %p80
        $region71: #{_lambda_.16} parent=27 // pred_check_branch
          %302 = sbr.rel (%p300) target = $region73
        $region72: #{_lambda_.16} parent=27 // pred_region
          %s303 = smul.u32 16, %s20
          %p304 = scmp.lt.s32.totalorder %s303, 79
          %s305 = scalar_select %p304, %s303, 79
          %p306 = scmp.lt.s32.totalorder %s19, 0
          %s307 = scalar_select %p306, %s19, 0
          %s308 = sadd.s32 %s307, %s305
          %s309 = smul.addr %s308, 4
          %s310 = scalar_lea.vmem %s1, %s309
          %s311 = smul.u32 16, %s20
        $region73: #{_lambda_.16} parent=27 // pred_fallthru
          _
      $region28: #{_lambda_.16} parent=5 // pred_fallthru
        _
      %p312 = scmp.le.s32.totalorder 1, %s11
      %p313 = scmp.lt.s32.totalorder %s11, 6
      %p314 = pnand %p312, %p313
      %p315 = pneg %p314
      // Predicated region
      $region74: #{_lambda_.16} parent=5 // pred_check
        _
      $region75: #{_lambda_.16} parent=5 // pred_check_branch
        %317 = sbr.rel (%p314) target = $region77
      $region76: #{_lambda_.16} parent=5 // pred_region
        %s318 = ssub.s32 %s11, 1
        %s319 = sand.u32 %s45, 1
        %s320 = sand.u32 %s45, 1
        %s321 = smul.addr %s320, 16
        %s322 = scalar_lea.vmem [#allocation3], %s321
        // Predicated region
        $region78: #{_lambda_.16} parent=76 // pred_check
          %p323 = pneg %p58
        $region79: #{_lambda_.16} parent=76 // pred_check_branch
          %325 = sbr.rel (%p323) target = $region81
        $region80: #{_lambda_.16} parent=76 // pred_region
          _
        $region81: #{_lambda_.16} parent=76 // pred_fallthru
          _
        %s326 = sand.u32 %s45, 1
        %s327 = sand.u32 %s45, 1
        %s328 = smul.addr %s327, 16
        %s329 = scalar_lea.vmem [#allocation3], %s328
        %p330 = pneg %p58
        %p331 = pneg %p55
        %s332 = smul.u32 16, %s23
        %p333 = scmp.lt.s32.totalorder %s332, 79
        %s334 = scalar_select %p333, %s332, 79
        %p335 = scmp.lt.s32.totalorder %s22, 0
        %s336 = scalar_select %p335, %s22, 0
        %s337 = sadd.s32 %s336, %s334
        %s338 = smul.addr %s337, 4
        %s339 = scalar_lea.vmem %s1, %s338
        %p340 = pneg %p86
        %p341 = pneg %p83
        %p342 = scmp.lt.s32.totalorder %s22, 0
        %s343 = scalar_select %p342, %s22, 0
        %s344 = scalar_lea.vmem %s2, %s343
        %p345 = pneg %p112
        %p346 = pneg %p109
        %p347 = scmp.lt.s32.totalorder %s22, 0
        %s348 = scalar_select %p347, %s22, 0
        %s349 = scalar_lea.vmem %s3, %s348
        %p350 = pneg %p138
        %p351 = pneg %p135
        %s352 = smul.u32 4, %s21
        %p353 = scmp.lt.s32.totalorder %s352, 3
        %s354 = scalar_select %p353, %s352, 3
        %p355 = scmp.lt.s32.totalorder %s22, 0
        %s356 = scalar_select %p355, %s22, 0
        %s357 = sadd.s32 %s356, %s354
        %s358 = smul.addr %s357, 8
        %s359 = scalar_lea.vmem %s4, %s358
        %p360 = pneg %p166
        %p361 = pneg %p163
        %p362 = pneg %p194
        %p363 = pneg %p191
        %s364 = smul.u32 4, %s21
        %p365 = scmp.lt.s32.totalorder %s364, 3
        %s366 = scalar_select %p365, %s364, 3
        %p367 = scmp.lt.s32.totalorder %s22, 0
        %s368 = scalar_select %p367, %s22, 0
        %s369 = sadd.s32 %s368, %s366
        %s370 = smul.addr %s369, 8
        %s371 = scalar_lea.vmem %s5, %s370
        %s372 = smul.u32 4, %s21
        %s373 = smul.u32 16, %s23
        %p374 = scmp.lt.s32.totalorder %s373, 79
        %s375 = scalar_select %p374, %s373, 79
        %p376 = scmp.lt.s32.totalorder %s22, 0
        %s377 = scalar_select %p376, %s22, 0
        %s378 = sadd.s32 %s377, %s375
        %s379 = smul.addr %s378, 4
        %s380 = scalar_lea.vmem %s1, %s379
        %s381 = smul.u32 16, %s23
        %p382 = scmp.lt.s32.totalorder %s22, 0
        %s383 = scalar_select %p382, %s22, 0
        %s384 = scalar_lea.vmem %s2, %s383
        %p385 = scmp.lt.s32.totalorder %s22, 0
        %s386 = scalar_select %p385, %s22, 0
        %s387 = scalar_lea.vmem %s3, %s386
        %s388 = smul.u32 4, %s21
        %p389 = scmp.lt.s32.totalorder %s388, 3
        %s390 = scalar_select %p389, %s388, 3
        %p391 = scmp.lt.s32.totalorder %s22, 0
        %s392 = scalar_select %p391, %s22, 0
        %s393 = sadd.s32 %s392, %s390
        %s394 = smul.addr %s393, 8
        %s395 = scalar_lea.vmem %s4, %s394
        %s396 = smul.u32 4, %s21
        %s397 = smul.u32 4, %s21
        %p398 = scmp.lt.s32.totalorder %s397, 3
        %s399 = scalar_select %p398, %s397, 3
        %p400 = scmp.lt.s32.totalorder %s22, 0
        %s401 = scalar_select %p400, %s22, 0
        %s402 = sadd.s32 %s401, %s399
        %s403 = smul.addr %s402, 8
        %s404 = scalar_lea.vmem %s5, %s403
        %s405 = smul.u32 4, %s21
        %p407 = scmp.eq.s32.totalorder %s23, 0
        // Predicated region
        $region82: #{_lambda_.16} parent=76 // pred_check
          %p408 = pneg %p407
        $region83: #{_lambda_.16} parent=76 // pred_check_branch
          %410 = sbr.rel (%p408) target = $region85
        $region84: #{_lambda_.16} parent=76 // pred_region
          %411 = vst [vmem:[#allocation2] sm:$0xff] 0.0
          %412 = vst [vmem:[#allocation2 + $0x8] sm:$0xff] 0.0
          %413 = vst [vmem:[#allocation2 + $0x10] sm:$0xff] 0.0
          %414 = vst [vmem:[#allocation2 + $0x18] sm:$0xff] 0.0
        $region85: #{_lambda_.16} parent=76 // pred_fallthru
          _
        %v415 = vld [vmem:[#allocation2] sm:$0xff]
        %v416 = vld [vmem:[#allocation2 + $0x8] sm:$0xff]
        %v417 = vld [vmem:[#allocation2 + $0x10] sm:$0xff]
        %v418 = vld [vmem:[#allocation2 + $0x18] sm:$0xff]
        %v419 = vld [vmem:[%s322] sm:$0xf]
        %v420 = vld [vmem:[%s322 + $0x4] sm:$0xf]
        %v421 = vld [vmem:[%s322 + $0x8] sm:$0xf]
        %v422 = vld [vmem:[%s322 + $0xc] sm:$0xf]
        %v423 = vld [vmem:[%s380] sm:$0xf]
        %v424 = vld [vmem:[%s380 + $0x4] sm:$0xf]
        %v425 = vld [vmem:[%s380 + $0x8] sm:$0xf]
        %v426 = vld [vmem:[%s380 + $0xc] sm:$0xf]
        %v427 = vld [vmem:[%s380 + $0x10] sm:$0xf]
        %v428 = vld [vmem:[%s380 + $0x14] sm:$0xf]
        %v429 = vld [vmem:[%s380 + $0x18] sm:$0xf]
        %v430 = vld [vmem:[%s380 + $0x1c] sm:$0xf]
        %v431 = vld [vmem:[%s380 + $0x20] sm:$0xf]
        %v432 = vld [vmem:[%s380 + $0x24] sm:$0xf]
        %v433 = vld [vmem:[%s380 + $0x28] sm:$0xf]
        %v434 = vld [vmem:[%s380 + $0x2c] sm:$0xf]
        %v435 = vld [vmem:[%s380 + $0x30] sm:$0xf]
        %v436 = vld [vmem:[%s380 + $0x34] sm:$0xf]
        %v437 = vld [vmem:[%s380 + $0x38] sm:$0xf]
        %v438 = vld [vmem:[%s380 + $0x3c] sm:$0xf]
        %v443 = vunpack.c.l.b16 %v419
        %v444 = vunpack.c.l.b16 %v420
        %v445 = vunpack.c.l.b16 %v421
        %v446 = vunpack.c.l.b16 %v422
        %v447 = vpack.c.b16 %v444, %v443
        %v448 = vpack.c.b16 %v446, %v445
        %v467 = vunpack.c.l.b16 %v423
        %v468 = vunpack.c.l.b16 %v424
        %v469 = vunpack.c.l.b16 %v425
        %v470 = vunpack.c.l.b16 %v426
        %v471 = vunpack.c.l.b16 %v427
        %v472 = vunpack.c.l.b16 %v428
        %v473 = vunpack.c.l.b16 %v429
        %v474 = vunpack.c.l.b16 %v430
        %v475 = vunpack.c.l.b16 %v431
        %v476 = vunpack.c.l.b16 %v432
        %v477 = vunpack.c.l.b16 %v433
        %v478 = vunpack.c.l.b16 %v434
        %v479 = vunpack.c.l.b16 %v435
        %v480 = vunpack.c.l.b16 %v436
        %v481 = vunpack.c.l.b16 %v437
        %v482 = vunpack.c.l.b16 %v438
        %v483 = vpack.c.b16 %v468, %v467
        %v484 = vpack.c.b16 %v470, %v469
        %v485 = vpack.c.b16 %v472, %v471
        %v486 = vpack.c.b16 %v474, %v473
        %v487 = vpack.c.b16 %v476, %v475
        %v488 = vpack.c.b16 %v478, %v477
        %v489 = vpack.c.b16 %v480, %v479
        %v490 = vpack.c.b16 %v482, %v481
        %499 = vmatprep.subr.bf16.mxu0 0
        %500 = vmatpush1.bf16.msra.mxu0 %v483
        %501 = vmatprep.subr.bf16.mxu0 0
        %502 = vmatpush1.bf16.msra.mxu0 %v484
        %503 = vmatprep.subr.bf16.mxu0 0
        %504 = vmatpush1.bf16.msra.mxu0 %v485
        %505 = vmatprep.subr.bf16.mxu0 0
        %506 = vmatpush1.bf16.msra.mxu0 %v486
        %507 = vmatprep.subr.bf16.mxu0 0
        %508 = vmatpush1.bf16.msra.mxu0 %v487
        %509 = vmatprep.subr.bf16.mxu0 0
        %510 = vmatpush1.bf16.msra.mxu0 %v488
        %511 = vmatprep.subr.bf16.mxu0 0
        %512 = vmatpush1.bf16.msra.mxu0 %v489
        %513 = vmatprep.subr.bf16.mxu0 0
        %514 = vmatpush1.bf16.msra.mxu0 %v490
        %515 = vmatprep.subr.bf16.mxu0 0
        %516 = vmatpush1.bf16.msra.mxu0 0
        %517 = vmatprep.subr.bf16.mxu0 0
        %518 = vmatpush1.bf16.msra.mxu0 0
        %519 = vmatprep.subr.bf16.mxu0 0
        %520 = vmatpush1.bf16.msra.mxu0 0
        %521 = vmatprep.subr.bf16.mxu0 0
        %522 = vmatpush1.bf16.msra.mxu0 0
        %523 = vmatprep.subr.bf16.mxu0 0
        %524 = vmatpush1.bf16.msra.mxu0 0
        %525 = vmatprep.subr.bf16.mxu0 0
        %526 = vmatpush1.bf16.msra.mxu0 0
        %527 = vmatprep.subr.bf16.mxu0 0
        %528 = vmatpush1.bf16.msra.mxu0 0
        %529 = vmatprep.subr.bf16.mxu0 0
        %530 = vmatpush1.bf16.msra.mxu0 0
        %531 = vmatprep.mubr.bf16.mxu0 0
        %532 = vmatmul.mubr.bf16.gmra.mrb[0].mxu0 %v447
        %v533 = vpop.f32.mrb[0].mxu0
        %v534 = vadd.f32 0.0, %v533
        %v535 = vpop.f32.mrb[0].mxu0
        %v536 = vpop.f32.mrb[0].mxu0
        %v537 = vadd.f32 0.0, %v536
        %v538 = vpop.f32.mrb[0].mxu0
        %539 = vmatprep.mubr.bf16.mxu0 0
        %540 = vmatmul.mubr.bf16.gmra.mrb[0].mxu0 %v448
        %v541 = vpop.f32.mrb[0].mxu0
        %v542 = vadd.f32 0.0, %v541
        %v543 = vpop.f32.mrb[0].mxu0
        %v544 = vpop.f32.mrb[0].mxu0
        %v545 = vadd.f32 0.0, %v544
        %v546 = vpop.f32.mrb[0].mxu0
        %547 = vdwg.mxu0
        %v548 = vadd.f32 %v415, %v534
        %v549 = vadd.f32 %v416, %v537
        %v550 = vadd.f32 %v417, %v542
        %v551 = vadd.f32 %v418, %v545
        %552 = vst [vmem:[#allocation2] sm:$0xff] %v548
        %553 = vst [vmem:[#allocation2 + $0x8] sm:$0xff] %v549
        %554 = vst [vmem:[#allocation2 + $0x10] sm:$0xff] %v550
        %555 = vst [vmem:[#allocation2 + $0x18] sm:$0xff] %v551
        %p556 = scmp.eq.s32.totalorder %s23, 4
        // Predicated region
        $region86: #{_lambda_.16} parent=76 // pred_check
          %p557 = pneg %p556
        $region87: #{_lambda_.16} parent=76 // pred_check_branch
          %559 = sbr.rel (%p557) target = $region89
        $region88: #{_lambda_.16} parent=76 // pred_region
          %v560 = vld [vmem:[#allocation2] sm:$0xff]
          %v561 = vld [vmem:[#allocation2 + $0x8] sm:$0xff]
          %v562 = vld [vmem:[#allocation2 + $0x10] sm:$0xff]
          %v563 = vld [vmem:[#allocation2 + $0x18] sm:$0xff]
          %v564 = vld [vmem:[%s384] sm:$0x1]
          %v566 = vlaneseq
          %v567 = vshrl.u32 %v566, 7
          %v568 = vsub.s32 0, %v567
          %v569 = vrot.slane %v564, %v568
          %v571 = vmul.f32 %v560, %v569
          %v572 = vmul.f32 %v561, %v569
          %v573 = vmul.f32 %v562, %v569
          %v574 = vmul.f32 %v563, %v569
          %v575 = vld [vmem:[%s387] sm:$0x1]
          %v577 = vlaneseq
          %v578 = vshrl.u32 %v577, 7
          %v579 = vsub.s32 0, %v578
          %v580 = vrot.slane %v575, %v579
          %v582 = vadd.f32 %v571, %v580
          %v583 = vadd.f32 %v572, %v580
          %v584 = vadd.f32 %v573, %v580
          %v585 = vadd.f32 %v574, %v580
          %v586 = vld [vmem:[%s395] sm:$0xff]
          %v587 = vld [vmem:[%s395 + $0x8] sm:$0xff]
          %v588 = vld [vmem:[%s395 + $0x10] sm:$0xff]
          %v589 = vld [vmem:[%s395 + $0x18] sm:$0xff]
          %v590 = vadd.f32 %v582, %v586
          %v591 = vadd.f32 %v583, %v587
          %v592 = vadd.f32 %v584, %v588
          %v593 = vadd.f32 %v585, %v589
          %v594 = vmax.f32 %v590, 0.0
          %v595 = vmax.f32 %v591, 0.0
          %v596 = vmax.f32 %v592, 0.0
          %v597 = vmax.f32 %v593, 0.0
          %598 = vst [vmem:[%s404] sm:$0xff] %v594
          %599 = vst [vmem:[%s404 + $0x8] sm:$0xff] %v595
          %600 = vst [vmem:[%s404 + $0x10] sm:$0xff] %v596
          %601 = vst [vmem:[%s404 + $0x18] sm:$0xff] %v597
        $region89: #{_lambda_.16} parent=76 // pred_fallthru
          _
        %s602 = smul.u32 4, %s21
        %p603 = scmp.lt.s32.totalorder %s602, 3
        %s604 = scalar_select %p603, %s602, 3
        %p605 = scmp.lt.s32.totalorder %s22, 0
        %s606 = scalar_select %p605, %s22, 0
        %s607 = sadd.s32 %s606, %s604
        %s608 = smul.addr %s607, 8
        %s609 = scalar_lea.vmem %s5, %s608
        // Predicated region
        $region90: #{_lambda_.16} parent=76 // pred_check
          %p610 = pneg %p191
        $region91: #{_lambda_.16} parent=76 // pred_check_branch
          %612 = sbr.rel (%p610) target = $region93
        $region92: #{_lambda_.16} parent=76 // pred_region
          %s613 = smul.u32 4, %s21
        $region93: #{_lambda_.16} parent=76 // pred_fallthru
          _
        // Predicated region
        $region94: #{_lambda_.16} parent=76 // pred_check
          %p614 = pneg %p191
        $region95: #{_lambda_.16} parent=76 // pred_check_branch
          %616 = sbr.rel (%p614) target = $region97
        $region96: #{_lambda_.16} parent=76 // pred_region
          %s617 = smul.u32 4, %s21
          %p618 = scmp.lt.s32.totalorder %s617, 3
          %s619 = scalar_select %p618, %s617, 3
          %p620 = scmp.lt.s32.totalorder %s22, 0
          %s621 = scalar_select %p620, %s22, 0
          %s622 = sadd.s32 %s621, %s619
          %s623 = smul.addr %s622, 8
          %s624 = scalar_lea.vmem %s5, %s623
        $region97: #{_lambda_.16} parent=76 // pred_fallthru
          _
      $region77: #{_lambda_.16} parent=5 // pred_fallthru
        _
      %p625 = scmp.le.s32.totalorder 2, %s11
      // Predicated region
      $region98: #{_lambda_.16} parent=5 // pred_check
        %p626 = pneg %p625
      $region99: #{_lambda_.16} parent=5 // pred_check_branch
        %628 = sbr.rel (%p626) target = $region101
      $region100: #{_lambda_.16} parent=5 // pred_region
        %s629 = ssub.s32 %s11, 2
      $region101: #{_lambda_.16} parent=5 // pred_fallthru
        _
    $region6: #{_lambda_.16} parent=1 // loop_footer
      %s15 = sadd.s32 1, %s11
    $region7: #{_lambda_.16} parent=1 // loop_footer_branch
      %10 = sbr.rel target = $region3
    $region8: #{_lambda_.16} parent=1 // loop_exit
      _

// kernel: _lambda_.18
$region0: #{_lambda_.18}
  #allocation0 [shape = 'u32[]', space=smem, size = 0x4, offset = 0x4, fixed_abs, tag = 'smem constant byte address 0x4 - core index']
  #allocation1 [shape = 'u32[144,128]{1,0:T(1,128)}', space=vmem, size = 0x12000, scoped, tag = 'internal scratch']
  #allocation2 [shape = 'f32[8,128]{1,0:T(8,128)}', space=vmem, size = 0x1000, scoped, tag = 'scratch operand']
  %s0 = inlined_call_operand.vmem [shape: bf16[8,640], index: 0, kind: input, shape index: {}]
  %s1 = inlined_call_operand.vmem [shape: bf16[640,128], index: 1, kind: input, shape index: {}]
  %s2 = inlined_call_operand.vmem [shape: f32[1,128], index: 2, kind: input, shape index: {}]
  %s3 = inlined_call_operand.vmem [shape: f32[1,128], index: 3, kind: input, shape index: {}]
  %s4 = inlined_call_operand.vmem [shape: f32[8,128], index: 4, kind: output, shape index: {}]
  %s5 = sld [smem:[#allocation0]]
  $region57: #{_lambda_.18} parent=0
    _
  %s7 = ssub.s32 1, %s5
  %s8 = scalar_select 0, %s7, %s5
  loop: start=0, step=1, limit=7
  $region2: #{_lambda_.18} parent=0 // loop_pre_header
    _
  $region3: #{_lambda_.18} parent=0 // loop_header
    %s10 = sphi 0, %s14
    %p11 = scmp.ge.s32.totalorder %s10, 7
    %s17 = sphi 0, %s36
    %s18 = sphi 0, %s32
    %s19 = sphi 0, %s28
    %s20 = sphi 0, %s17
    %s21 = sphi 0, %s18
    %s22 = sphi 0, %s19
    %s23 = sphi 0, %s20
    %s24 = sphi 0, %s21
    %s25 = sphi 0, %s22
    %s41 = sphi 0, %s43
    %s44 = sphi 0, %s41
    %s45 = sphi 0, %s44
    %s61 = sphi 0, %s45
    %s69 = sphi 0, %s71
    %s72 = sphi 0, %s69
    %s73 = sphi 0, %s72
    %s89 = sphi 0, %s73
    %s95 = sphi 0, %s97
    %s98 = sphi 0, %s95
    %s99 = sphi 0, %s98
    %s115 = sphi 0, %s99
    %s121 = sphi 0, %s123
    %s124 = sphi 0, %s121
    %s125 = sphi 0, %s124
    %s141 = sphi 0, %s125
    %s149 = sphi 0, %s151
    %s152 = sphi 0, %s149
    %s153 = sphi 0, %s152
    %s169 = sphi 0, %s153
  $region4: #{_lambda_.18} parent=0 // loop_header_branch
    %13 = sbr.rel (%p11) target = $region8
  $region5: #{_lambda_.18} parent=0 // loop_body
    %s15 = ssub.s32 %s10, 1
    %s16 = ssub.s32 %s10, 2
    %s26 = sadd.s32 1, %s19
    %p27 = scmp.ge.s32.totalorder %s26, 5
    %s28 = scalar_select %p27, 0, %s26
    %s29 = sadd.s32 1, %s18
    %s30 = scalar_select %p27, %s29, %s18
    %p31 = scmp.ge.s32.totalorder %s30, 1
    %s32 = scalar_select %p31, 0, %s30
    %s33 = sadd.s32 1, %s17
    %s34 = scalar_select %p31, %s33, %s17
    %p35 = scmp.ge.s32.totalorder %s34, 1
    %s36 = scalar_select %p35, 0, %s34
    %s37 = ssub.s32 %s17, %s36
    %s38 = ssub.s32 %s19, %s28
    %s39 = sor.u32 %s37, %s38
    %p40 = scmp.eq.s32.totalorder %s39, 0
    %s42 = sadd.s32 %s41, 1
    %s43 = scalar_select %p40, %s41, %s42
    %p46 = pneg %p40
    %p47 = scmp.eq.s32.totalorder %s10, 4
    %p48 = por %p46, %p47
    %p49 = scmp.ne.s32.totalorder %s41, %s44
    %p50 = scmp.eq.s32.totalorder %s10, 0
    %p51 = por %p49, %p50
    %p52 = scmp.ne.s32.totalorder %s41, %s44
    %p53 = scmp.eq.s32.totalorder %s15, 4
    %p54 = por %p52, %p53
    %p55 = scmp.ne.s32.totalorder %s44, %s45
    %p56 = scmp.eq.s32.totalorder %s15, 0
    %p57 = por %p55, %p56
    %p58 = scmp.ne.s32.totalorder %s44, %s45
    %p59 = scmp.eq.s32.totalorder %s16, 4
    %p60 = por %p58, %p59
    %p62 = scmp.ne.s32.totalorder %s45, %s61
    %p63 = scmp.eq.s32.totalorder %s16, 0
    %p64 = por %p62, %p63
    %s65 = ssub.s32 %s19, %s28
    %s66 = ssub.s32 %s18, %s32
    %s67 = sor.u32 %s65, %s66
    %p68 = scmp.eq.s32.totalorder %s67, 0
    %s70 = sadd.s32 %s69, 1
    %s71 = scalar_select %p68, %s69, %s70
    %p74 = pneg %p68
    %p75 = scmp.eq.s32.totalorder %s10, 4
    %p76 = por %p74, %p75
    %p77 = scmp.ne.s32.totalorder %s69, %s72
    %p78 = scmp.eq.s32.totalorder %s10, 0
    %p79 = por %p77, %p78
    %p80 = scmp.ne.s32.totalorder %s69, %s72
    %p81 = scmp.eq.s32.totalorder %s15, 4
    %p82 = por %p80, %p81
    %p83 = scmp.ne.s32.totalorder %s72, %s73
    %p84 = scmp.eq.s32.totalorder %s15, 0
    %p85 = por %p83, %p84
    %p86 = scmp.ne.s32.totalorder %s72, %s73
    %p87 = scmp.eq.s32.totalorder %s16, 4
    %p88 = por %p86, %p87
    %p90 = scmp.ne.s32.totalorder %s73, %s89
    %p91 = scmp.eq.s32.totalorder %s16, 0
    %p92 = por %p90, %p91
    %s93 = ssub.s32 %s18, %s32
    %p94 = scmp.eq.s32.totalorder %s93, 0
    %s96 = sadd.s32 %s95, 1
    %s97 = scalar_select %p94, %s95, %s96
    %p100 = pneg %p94
    %p101 = scmp.eq.s32.totalorder %s10, 4
    %p102 = por %p100, %p101
    %p103 = scmp.ne.s32.totalorder %s95, %s98
    %p104 = scmp.eq.s32.totalorder %s10, 0
    %p105 = por %p103, %p104
    %p106 = scmp.ne.s32.totalorder %s95, %s98
    %p107 = scmp.eq.s32.totalorder %s15, 4
    %p108 = por %p106, %p107
    %p109 = scmp.ne.s32.totalorder %s98, %s99
    %p110 = scmp.eq.s32.totalorder %s15, 0
    %p111 = por %p109, %p110
    %p112 = scmp.ne.s32.totalorder %s98, %s99
    %p113 = scmp.eq.s32.totalorder %s16, 4
    %p114 = por %p112, %p113
    %p116 = scmp.ne.s32.totalorder %s99, %s115
    %p117 = scmp.eq.s32.totalorder %s16, 0
    %p118 = por %p116, %p117
    %s119 = ssub.s32 %s18, %s32
    %p120 = scmp.eq.s32.totalorder %s119, 0
    %s122 = sadd.s32 %s121, 1
    %s123 = scalar_select %p120, %s121, %s122
    %p126 = pneg %p120
    %p127 = scmp.eq.s32.totalorder %s10, 4
    %p128 = por %p126, %p127
    %p129 = scmp.ne.s32.totalorder %s121, %s124
    %p130 = scmp.eq.s32.totalorder %s10, 0
    %p131 = por %p129, %p130
    %p132 = scmp.ne.s32.totalorder %s121, %s124
    %p133 = scmp.eq.s32.totalorder %s15, 4
    %p134 = por %p132, %p133
    %p135 = scmp.ne.s32.totalorder %s124, %s125
    %p136 = scmp.eq.s32.totalorder %s15, 0
    %p137 = por %p135, %p136
    %p138 = scmp.ne.s32.totalorder %s124, %s125
    %p139 = scmp.eq.s32.totalorder %s16, 4
    %p140 = por %p138, %p139
    %p142 = scmp.ne.s32.totalorder %s125, %s141
    %p143 = scmp.eq.s32.totalorder %s16, 0
    %p144 = por %p142, %p143
    %s145 = ssub.s32 %s17, %s36
    %s146 = ssub.s32 %s18, %s32
    %s147 = sor.u32 %s145, %s146
    %p148 = scmp.eq.s32.totalorder %s147, 0
    %s150 = sadd.s32 %s149, 1
    %s151 = scalar_select %p148, %s149, %s150
    %p154 = pneg %p148
    %p155 = scmp.eq.s32.totalorder %s10, 4
    %p156 = por %p154, %p155
    %p157 = scmp.ne.s32.totalorder %s149, %s152
    %p158 = scmp.eq.s32.totalorder %s10, 0
    %p159 = por %p157, %p158
    %p160 = scmp.ne.s32.totalorder %s149, %s152
    %p161 = scmp.eq.s32.totalorder %s15, 4
    %p162 = por %p160, %p161
    %p163 = scmp.ne.s32.totalorder %s152, %s153
    %p164 = scmp.eq.s32.totalorder %s15, 0
    %p165 = por %p163, %p164
    %p166 = scmp.ne.s32.totalorder %s152, %s153
    %p167 = scmp.eq.s32.totalorder %s16, 4
    %p168 = por %p166, %p167
    %p170 = scmp.ne.s32.totalorder %s153, %s169
    %p171 = scmp.eq.s32.totalorder %s16, 0
    %p172 = por %p170, %p171
    %p173 = scmp.le.s32.totalorder 1, %s10
    %p174 = scmp.lt.s32.totalorder %s10, 6
    %p175 = pnand %p173, %p174
    %p176 = pneg %p175
    // Predicated region
    $region9: #{_lambda_.18} parent=5 // pred_check
      _
    $region10: #{_lambda_.18} parent=5 // pred_check_branch
      %178 = sbr.rel (%p175) target = $region12
    $region11: #{_lambda_.18} parent=5 // pred_region
      %s179 = ssub.s32 %s10, 1
      // Predicated region
      $region13: #{_lambda_.18} parent=11 // pred_check
        %p180 = pneg %p111
      $region14: #{_lambda_.18} parent=11 // pred_check_branch
        %182 = sbr.rel (%p180) target = $region16
      $region15: #{_lambda_.18} parent=11 // pred_region
        %p183 = scmp.lt.s32.totalorder %s21, 0
        %s184 = scalar_select %p183, %s21, 0
        %s185 = scalar_lea.vmem %s2, %s184
      $region16: #{_lambda_.18} parent=11 // pred_fallthru
        _
      // Predicated region
      $region17: #{_lambda_.18} parent=11 // pred_check
        %p186 = pneg %p137
      $region18: #{_lambda_.18} parent=11 // pred_check_branch
        %188 = sbr.rel (%p186) target = $region20
      $region19: #{_lambda_.18} parent=11 // pred_region
        %p189 = scmp.lt.s32.totalorder %s21, 0
        %s190 = scalar_select %p189, %s21, 0
        %s191 = scalar_lea.vmem %s3, %s190
      $region20: #{_lambda_.18} parent=11 // pred_fallthru
        _
    $region12: #{_lambda_.18} parent=5 // pred_fallthru
      _
    %p192 = scmp.lt.s32.totalorder %s10, 5
    // Predicated region
    $region21: #{_lambda_.18} parent=5 // pred_check
      %p193 = pneg %p192
    $region22: #{_lambda_.18} parent=5 // pred_check_branch
      %195 = sbr.rel (%p193) target = $region24
    $region23: #{_lambda_.18} parent=5 // pred_region
      // Predicated region
      $region25: #{_lambda_.18} parent=23 // pred_check
        %p196 = pneg %p51
      $region26: #{_lambda_.18} parent=23 // pred_check_branch
        %198 = sbr.rel (%p196) target = $region28
      $region27: #{_lambda_.18} parent=23 // pred_region
        %p199 = scmp.lt.s32.totalorder %s17, 0
        %s200 = scalar_select %p199, %s17, 0
        %p201 = scmp.lt.s32.totalorder %s19, 4
        %s202 = scalar_select %p201, %s19, 4
        %s203 = smul.addr %s200, 5
        %s204 = sadd.s32 %s202, %s203
        %s205 = smul.addr %s204, 4
        %s206 = scalar_lea.vmem %s0, %s205
      $region28: #{_lambda_.18} parent=23 // pred_fallthru
        _
      // Predicated region
      $region29: #{_lambda_.18} parent=23 // pred_check
        %p207 = pneg %p79
      $region30: #{_lambda_.18} parent=23 // pred_check_branch
        %209 = sbr.rel (%p207) target = $region32
      $region31: #{_lambda_.18} parent=23 // pred_region
        %s210 = smul.u32 16, %s19
        %p211 = scmp.lt.s32.totalorder %s210, 79
        %s212 = scalar_select %p211, %s210, 79
        %p213 = scmp.lt.s32.totalorder %s18, 0
        %s214 = scalar_select %p213, %s18, 0
        %s215 = sadd.s32 %s214, %s212
        %s216 = smul.addr %s215, 4
        %s217 = scalar_lea.vmem %s1, %s216
        %s218 = smul.u32 16, %s19
      $region32: #{_lambda_.18} parent=23 // pred_fallthru
        _
    $region24: #{_lambda_.18} parent=5 // pred_fallthru
      _
    %p219 = scmp.le.s32.totalorder 1, %s10
    %p220 = scmp.lt.s32.totalorder %s10, 6
    %p221 = pnand %p219, %p220
    %p222 = pneg %p221
    // Predicated region
    $region33: #{_lambda_.18} parent=5 // pred_check
      _
    $region34: #{_lambda_.18} parent=5 // pred_check_branch
      %224 = sbr.rel (%p221) target = $region36
    $region35: #{_lambda_.18} parent=5 // pred_region
      %s225 = ssub.s32 %s10, 1
      %p226 = scmp.lt.s32.totalorder %s20, 0
      %s227 = scalar_select %p226, %s20, 0
      %p228 = scmp.lt.s32.totalorder %s22, 4
      %s229 = scalar_select %p228, %s22, 4
      %s230 = smul.addr %s227, 5
      %s231 = sadd.s32 %s229, %s230
      %s232 = smul.addr %s231, 4
      %s233 = scalar_lea.vmem %s0, %s232
      %p234 = pneg %p57
      %p235 = pneg %p54
      %s236 = smul.u32 16, %s22
      %p237 = scmp.lt.s32.totalorder %s236, 79
      %s238 = scalar_select %p237, %s236, 79
      %p239 = scmp.lt.s32.totalorder %s21, 0
      %s240 = scalar_select %p239, %s21, 0
      %s241 = sadd.s32 %s240, %s238
      %s242 = smul.addr %s241, 4
      %s243 = scalar_lea.vmem %s1, %s242
      %p244 = pneg %p85
      %p245 = pneg %p82
      %p246 = scmp.lt.s32.totalorder %s21, 0
      %s247 = scalar_select %p246, %s21, 0
      %s248 = scalar_lea.vmem %s2, %s247
      %p249 = pneg %p111
      %p250 = pneg %p108
      %p251 = scmp.lt.s32.totalorder %s21, 0
      %s252 = scalar_select %p251, %s21, 0
      %s253 = scalar_lea.vmem %s3, %s252
      %p254 = pneg %p137
      %p255 = pneg %p134
      %p256 = pneg %p165
      %p257 = pneg %p162
      %p258 = scmp.lt.s32.totalorder %s20, 0
      %s259 = scalar_select %p258, %s20, 0
      %p260 = scmp.lt.s32.totalorder %s21, 0
      %s261 = scalar_select %p260, %s21, 0
      %s262 = sadd.s32 %s261, %s259
      %s263 = smul.addr %s262, 8
      %s264 = scalar_lea.vmem %s4, %s263
      %p265 = scmp.lt.s32.totalorder %s20, 0
      %s266 = scalar_select %p265, %s20, 0
      %p267 = scmp.lt.s32.totalorder %s22, 4
      %s268 = scalar_select %p267, %s22, 4
      %s269 = smul.addr %s266, 5
      %s270 = sadd.s32 %s268, %s269
      %s271 = smul.addr %s270, 4
      %s272 = scalar_lea.vmem %s0, %s271
      %s273 = smul.u32 16, %s22
      %p274 = scmp.lt.s32.totalorder %s273, 79
      %s275 = scalar_select %p274, %s273, 79
      %p276 = scmp.lt.s32.totalorder %s21, 0
      %s277 = scalar_select %p276, %s21, 0
      %s278 = sadd.s32 %s277, %s275
      %s279 = smul.addr %s278, 4
      %s280 = scalar_lea.vmem %s1, %s279
      %s281 = smul.u32 16, %s22
      %p282 = scmp.lt.s32.totalorder %s21, 0
      %s283 = scalar_select %p282, %s21, 0
      %s284 = scalar_lea.vmem %s2, %s283
      %p285 = scmp.lt.s32.totalorder %s21, 0
      %s286 = scalar_select %p285, %s21, 0
      %s287 = scalar_lea.vmem %s3, %s286
      %p288 = scmp.lt.s32.totalorder %s20, 0
      %s289 = scalar_select %p288, %s20, 0
      %p290 = scmp.lt.s32.totalorder %s21, 0
      %s291 = scalar_select %p290, %s21, 0
      %s292 = sadd.s32 %s291, %s289
      %s293 = smul.addr %s292, 8
      %s294 = scalar_lea.vmem %s4, %s293
      %p296 = scmp.eq.s32.totalorder %s22, 0
      // Predicated region
      $region37: #{_lambda_.18} parent=35 // pred_check
        %p297 = pneg %p296
      $region38: #{_lambda_.18} parent=35 // pred_check_branch
        %299 = sbr.rel (%p297) target = $region40
      $region39: #{_lambda_.18} parent=35 // pred_region
        %300 = vst [vmem:[#allocation2] sm:$0xff] 0.0
      $region40: #{_lambda_.18} parent=35 // pred_fallthru
        _
      %v301 = vld [vmem:[#allocation2] sm:$0xff]
      %v302 = vld [vmem:[%s272] sm:$0xf]
      %v303 = vld [vmem:[%s280] sm:$0xf]
      %v304 = vld [vmem:[%s280 + $0x4] sm:$0xf]
      %v305 = vld [vmem:[%s280 + $0x8] sm:$0xf]
      %v306 = vld [vmem:[%s280 + $0xc] sm:$0xf]
      %v307 = vld [vmem:[%s280 + $0x10] sm:$0xf]
      %v308 = vld [vmem:[%s280 + $0x14] sm:$0xf]
      %v309 = vld [vmem:[%s280 + $0x18] sm:$0xf]
      %v310 = vld [vmem:[%s280 + $0x1c] sm:$0xf]
      %v311 = vld [vmem:[%s280 + $0x20] sm:$0xf]
      %v312 = vld [vmem:[%s280 + $0x24] sm:$0xf]
      %v313 = vld [vmem:[%s280 + $0x28] sm:$0xf]
      %v314 = vld [vmem:[%s280 + $0x2c] sm:$0xf]
      %v315 = vld [vmem:[%s280 + $0x30] sm:$0xf]
      %v316 = vld [vmem:[%s280 + $0x34] sm:$0xf]
      %v317 = vld [vmem:[%s280 + $0x38] sm:$0xf]
      %v318 = vld [vmem:[%s280 + $0x3c] sm:$0xf]
      %v335 = vunpack.c.l.b16 %v303
      %v336 = vunpack.c.l.b16 %v304
      %v337 = vunpack.c.l.b16 %v305
      %v338 = vunpack.c.l.b16 %v306
      %v339 = vunpack.c.l.b16 %v307
      %v340 = vunpack.c.l.b16 %v308
      %v341 = vunpack.c.l.b16 %v309
      %v342 = vunpack.c.l.b16 %v310
      %v343 = vunpack.c.l.b16 %v311
      %v344 = vunpack.c.l.b16 %v312
      %v345 = vunpack.c.l.b16 %v313
      %v346 = vunpack.c.l.b16 %v314
      %v347 = vunpack.c.l.b16 %v315
      %v348 = vunpack.c.l.b16 %v316
      %v349 = vunpack.c.l.b16 %v317
      %v350 = vunpack.c.l.b16 %v318
      %v351 = vpack.c.b16 %v336, %v335
      %v352 = vpack.c.b16 %v338, %v337
      %v353 = vpack.c.b16 %v340, %v339
      %v354 = vpack.c.b16 %v342, %v341
      %v355 = vpack.c.b16 %v344, %v343
      %v356 = vpack.c.b16 %v346, %v345
      %v357 = vpack.c.b16 %v348, %v347
      %v358 = vpack.c.b16 %v350, %v349
      %367 = vmatprep.subr.bf16.mxu0 0
      %368 = vmatpush1.bf16.msra.mxu0 %v351
      %369 = vmatprep.subr.bf16.mxu0 0
      %370 = vmatpush1.bf16.msra.mxu0 %v352
      %371 = vmatprep.subr.bf16.mxu0 0
      %372 = vmatpush1.bf16.msra.mxu0 %v353
      %373 = vmatprep.subr.bf16.mxu0 0
      %374 = vmatpush1.bf16.msra.mxu0 %v354
      %375 = vmatprep.subr.bf16.mxu0 0
      %376 = vmatpush1.bf16.msra.mxu0 %v355
      %377 = vmatprep.subr.bf16.mxu0 0
      %378 = vmatpush1.bf16.msra.mxu0 %v356
      %379 = vmatprep.subr.bf16.mxu0 0
      %380 = vmatpush1.bf16.msra.mxu0 %v357
      %381 = vmatprep.subr.bf16.mxu0 0
      %382 = vmatpush1.bf16.msra.mxu0 %v358
      %383 = vmatprep.subr.bf16.mxu0 0
      %384 = vmatpush1.bf16.msra.mxu0 0
      %385 = vmatprep.subr.bf16.mxu0 0
      %386 = vmatpush1.bf16.msra.mxu0 0
      %387 = vmatprep.subr.bf16.mxu0 0
      %388 = vmatpush1.bf16.msra.mxu0 0
      %389 = vmatprep.subr.bf16.mxu0 0
      %390 = vmatpush1.bf16.msra.mxu0 0
      %391 = vmatprep.subr.bf16.mxu0 0
      %392 = vmatpush1.bf16.msra.mxu0 0
      %393 = vmatprep.subr.bf16.mxu0 0
      %394 = vmatpush1.bf16.msra.mxu0 0
      %395 = vmatprep.subr.bf16.mxu0 0
      %396 = vmatpush1.bf16.msra.mxu0 0
      %397 = vmatprep.subr.bf16.mxu0 0
      %398 = vmatpush1.bf16.msra.mxu0 0
      %399 = vmatprep.mubr.bf16.mxu0 0
      %400 = vmatmul.mubr.bf16.gmra.mrb[0].mxu0 %v302
      %v401 = vpop.f32.mrb[0].mxu0
      %v402 = vadd.f32 0.0, %v401
      %v403 = vpop.f32.mrb[0].mxu0
      %v404 = vpop.f32.mrb[0].mxu0
      %v405 = vpop.f32.mrb[0].mxu0
      %406 = vdwg.mxu0
      %v407 = vadd.f32 %v301, %v402
      %408 = vst [vmem:[#allocation2] sm:$0xff] %v407
      %p409 = scmp.eq.s32.totalorder %s22, 4
      // Predicated region
      $region41: #{_lambda_.18} parent=35 // pred_check
        %p410 = pneg %p409
      $region42: #{_lambda_.18} parent=35 // pred_check_branch
        %412 = sbr.rel (%p410) target = $region44
      $region43: #{_lambda_.18} parent=35 // pred_region
        %v413 = vld [vmem:[#allocation2] sm:$0xff]
        %v414 = vld [vmem:[%s284] sm:$0x1]
        %v416 = vlaneseq
        %v417 = vshrl.u32 %v416, 7
        %v418 = vsub.s32 0, %v417
        %v419 = vrot.slane %v414, %v418
        %v421 = vmul.f32 %v413, %v419
        %v422 = vld [vmem:[%s287] sm:$0x1]
        %v424 = vlaneseq
        %v425 = vshrl.u32 %v424, 7
        %v426 = vsub.s32 0, %v425
        %v427 = vrot.slane %v422, %v426
        %v429 = vadd.f32 %v421, %v427
        %v430 = vmax.f32 %v429, 0.0
        %431 = vst [vmem:[%s294] sm:$0xff] %v430
      $region44: #{_lambda_.18} parent=35 // pred_fallthru
        _
      %p432 = scmp.lt.s32.totalorder %s20, 0
      %s433 = scalar_select %p432, %s20, 0
      %p434 = scmp.lt.s32.totalorder %s21, 0
      %s435 = scalar_select %p434, %s21, 0
      %s436 = sadd.s32 %s435, %s433
      %s437 = smul.addr %s436, 8
      %s438 = scalar_lea.vmem %s4, %s437
      // Predicated region
      $region45: #{_lambda_.18} parent=35 // pred_check
        %p439 = pneg %p162
      $region46: #{_lambda_.18} parent=35 // pred_check_branch
        %441 = sbr.rel (%p439) target = $region48
      $region47: #{_lambda_.18} parent=35 // pred_region
        _
      $region48: #{_lambda_.18} parent=35 // pred_fallthru
        _
      // Predicated region
      $region49: #{_lambda_.18} parent=35 // pred_check
        %p442 = pneg %p162
      $region50: #{_lambda_.18} parent=35 // pred_check_branch
        %444 = sbr.rel (%p442) target = $region52
      $region51: #{_lambda_.18} parent=35 // pred_region
        %p445 = scmp.lt.s32.totalorder %s20, 0
        %s446 = scalar_select %p445, %s20, 0
        %p447 = scmp.lt.s32.totalorder %s21, 0
        %s448 = scalar_select %p447, %s21, 0
        %s449 = sadd.s32 %s448, %s446
        %s450 = smul.addr %s449, 8
        %s451 = scalar_lea.vmem %s4, %s450
      $region52: #{_lambda_.18} parent=35 // pred_fallthru
        _
    $region36: #{_lambda_.18} parent=5 // pred_fallthru
      _
    %p452 = scmp.le.s32.totalorder 2, %s10
    // Predicated region
    $region53: #{_lambda_.18} parent=5 // pred_check
      %p453 = pneg %p452
    $region54: #{_lambda_.18} parent=5 // pred_check_branch
      %455 = sbr.rel (%p453) target = $region56
    $region55: #{_lambda_.18} parent=5 // pred_region
      %s456 = ssub.s32 %s10, 2
    $region56: #{_lambda_.18} parent=5 // pred_fallthru
      _
  $region6: #{_lambda_.18} parent=0 // loop_footer
    %s14 = sadd.s32 1, %s10
  $region7: #{_lambda_.18} parent=0 // loop_footer_branch
    %9 = sbr.rel target = $region3
  $region8: #{_lambda_.18} parent=0 // loop_exit
    _

// kernel: _lambda_.19
$region0: #{_lambda_.19}
  #allocation0 [shape = 'u32[]', space=smem, size = 0x4, offset = 0x4, fixed_abs, tag = 'smem constant byte address 0x4 - core index']
  #allocation1 [shape = 'u32[144,128]{1,0:T(1,128)}', space=vmem, size = 0x12000, scoped, tag = 'internal scratch']
  #allocation2 [shape = 'f32[8,128]{1,0:T(8,128)}', space=vmem, size = 0x1000, scoped, tag = 'scratch operand']
  %s0 = inlined_call_operand.vmem [shape: bf16[8,1152], index: 0, kind: input, shape index: {}]
  %s1 = inlined_call_operand.vmem [shape: bf16[1152,128], index: 1, kind: input, shape index: {}]
  %s2 = inlined_call_operand.vmem [shape: f32[1,128], index: 2, kind: input, shape index: {}]
  %s3 = inlined_call_operand.vmem [shape: f32[1,128], index: 3, kind: input, shape index: {}]
  %s4 = inlined_call_operand.vmem [shape: f32[8,128], index: 4, kind: input, shape index: {}]
  %s5 = inlined_call_operand.vmem [shape: f32[8,128], index: 5, kind: output, shape index: {}]
  %s6 = sld [smem:[#allocation0]]
  $region61: #{_lambda_.19} parent=0
    _
  %s8 = ssub.s32 1, %s6
  %s9 = scalar_select 0, %s8, %s6
  loop: start=0, step=1, limit=5
  $region2: #{_lambda_.19} parent=0 // loop_pre_header
    _
  $region3: #{_lambda_.19} parent=0 // loop_header
    %s11 = sphi 0, %s15
    %p12 = scmp.ge.s32.totalorder %s11, 5
    %s18 = sphi 0, %s37
    %s19 = sphi 0, %s33
    %s20 = sphi 0, %s29
    %s21 = sphi 0, %s18
    %s22 = sphi 0, %s19
    %s23 = sphi 0, %s20
    %s24 = sphi 0, %s21
    %s25 = sphi 0, %s22
    %s26 = sphi 0, %s23
    %s42 = sphi 0, %s44
    %s45 = sphi 0, %s42
    %s46 = sphi 0, %s45
    %s62 = sphi 0, %s46
    %s70 = sphi 0, %s72
    %s73 = sphi 0, %s70
    %s74 = sphi 0, %s73
    %s90 = sphi 0, %s74
    %s96 = sphi 0, %s98
    %s99 = sphi 0, %s96
    %s100 = sphi 0, %s99
    %s116 = sphi 0, %s100
    %s122 = sphi 0, %s124
    %s125 = sphi 0, %s122
    %s126 = sphi 0, %s125
    %s142 = sphi 0, %s126
    %s150 = sphi 0, %s152
    %s153 = sphi 0, %s150
    %s154 = sphi 0, %s153
    %s170 = sphi 0, %s154
    %s178 = sphi 0, %s180
    %s181 = sphi 0, %s178
    %s182 = sphi 0, %s181
    %s198 = sphi 0, %s182
  $region4: #{_lambda_.19} parent=0 // loop_header_branch
    %14 = sbr.rel (%p12) target = $region8
  $region5: #{_lambda_.19} parent=0 // loop_body
    %s16 = ssub.s32 %s11, 1
    %s17 = ssub.s32 %s11, 2
    %s27 = sadd.s32 1, %s20
    %p28 = scmp.ge.s32.totalorder %s27, 3
    %s29 = scalar_select %p28, 0, %s27
    %s30 = sadd.s32 1, %s19
    %s31 = scalar_select %p28, %s30, %s19
    %p32 = scmp.ge.s32.totalorder %s31, 1
    %s33 = scalar_select %p32, 0, %s31
    %s34 = sadd.s32 1, %s18
    %s35 = scalar_select %p32, %s34, %s18
    %p36 = scmp.ge.s32.totalorder %s35, 1
    %s37 = scalar_select %p36, 0, %s35
    %s38 = ssub.s32 %s18, %s37
    %s39 = ssub.s32 %s20, %s29
    %s40 = sor.u32 %s38, %s39
    %p41 = scmp.eq.s32.totalorder %s40, 0
    %s43 = sadd.s32 %s42, 1
    %s44 = scalar_select %p41, %s42, %s43
    %p47 = pneg %p41
    %p48 = scmp.eq.s32.totalorder %s11, 2
    %p49 = por %p47, %p48
    %p50 = scmp.ne.s32.totalorder %s42, %s45
    %p51 = scmp.eq.s32.totalorder %s11, 0
    %p52 = por %p50, %p51
    %p53 = scmp.ne.s32.totalorder %s42, %s45
    %p54 = scmp.eq.s32.totalorder %s16, 2
    %p55 = por %p53, %p54
    %p56 = scmp.ne.s32.totalorder %s45, %s46
    %p57 = scmp.eq.s32.totalorder %s16, 0
    %p58 = por %p56, %p57
    %p59 = scmp.ne.s32.totalorder %s45, %s46
    %p60 = scmp.eq.s32.totalorder %s17, 2
    %p61 = por %p59, %p60
    %p63 = scmp.ne.s32.totalorder %s46, %s62
    %p64 = scmp.eq.s32.totalorder %s17, 0
    %p65 = por %p63, %p64
    %s66 = ssub.s32 %s20, %s29
    %s67 = ssub.s32 %s19, %s33
    %s68 = sor.u32 %s66, %s67
    %p69 = scmp.eq.s32.totalorder %s68, 0
    %s71 = sadd.s32 %s70, 1
    %s72 = scalar_select %p69, %s70, %s71
    %p75 = pneg %p69
    %p76 = scmp.eq.s32.totalorder %s11, 2
    %p77 = por %p75, %p76
    %p78 = scmp.ne.s32.totalorder %s70, %s73
    %p79 = scmp.eq.s32.totalorder %s11, 0
    %p80 = por %p78, %p79
    %p81 = scmp.ne.s32.totalorder %s70, %s73
    %p82 = scmp.eq.s32.totalorder %s16, 2
    %p83 = por %p81, %p82
    %p84 = scmp.ne.s32.totalorder %s73, %s74
    %p85 = scmp.eq.s32.totalorder %s16, 0
    %p86 = por %p84, %p85
    %p87 = scmp.ne.s32.totalorder %s73, %s74
    %p88 = scmp.eq.s32.totalorder %s17, 2
    %p89 = por %p87, %p88
    %p91 = scmp.ne.s32.totalorder %s74, %s90
    %p92 = scmp.eq.s32.totalorder %s17, 0
    %p93 = por %p91, %p92
    %s94 = ssub.s32 %s19, %s33
    %p95 = scmp.eq.s32.totalorder %s94, 0
    %s97 = sadd.s32 %s96, 1
    %s98 = scalar_select %p95, %s96, %s97
    %p101 = pneg %p95
    %p102 = scmp.eq.s32.totalorder %s11, 2
    %p103 = por %p101, %p102
    %p104 = scmp.ne.s32.totalorder %s96, %s99
    %p105 = scmp.eq.s32.totalorder %s11, 0
    %p106 = por %p104, %p105
    %p107 = scmp.ne.s32.totalorder %s96, %s99
    %p108 = scmp.eq.s32.totalorder %s16, 2
    %p109 = por %p107, %p108
    %p110 = scmp.ne.s32.totalorder %s99, %s100
    %p111 = scmp.eq.s32.totalorder %s16, 0
    %p112 = por %p110, %p111
    %p113 = scmp.ne.s32.totalorder %s99, %s100
    %p114 = scmp.eq.s32.totalorder %s17, 2
    %p115 = por %p113, %p114
    %p117 = scmp.ne.s32.totalorder %s100, %s116
    %p118 = scmp.eq.s32.totalorder %s17, 0
    %p119 = por %p117, %p118
    %s120 = ssub.s32 %s19, %s33
    %p121 = scmp.eq.s32.totalorder %s120, 0
    %s123 = sadd.s32 %s122, 1
    %s124 = scalar_select %p121, %s122, %s123
    %p127 = pneg %p121
    %p128 = scmp.eq.s32.totalorder %s11, 2
    %p129 = por %p127, %p128
    %p130 = scmp.ne.s32.totalorder %s122, %s125
    %p131 = scmp.eq.s32.totalorder %s11, 0
    %p132 = por %p130, %p131
    %p133 = scmp.ne.s32.totalorder %s122, %s125
    %p134 = scmp.eq.s32.totalorder %s16, 2
    %p135 = por %p133, %p134
    %p136 = scmp.ne.s32.totalorder %s125, %s126
    %p137 = scmp.eq.s32.totalorder %s16, 0
    %p138 = por %p136, %p137
    %p139 = scmp.ne.s32.totalorder %s125, %s126
    %p140 = scmp.eq.s32.totalorder %s17, 2
    %p141 = por %p139, %p140
    %p143 = scmp.ne.s32.totalorder %s126, %s142
    %p144 = scmp.eq.s32.totalorder %s17, 0
    %p145 = por %p143, %p144
    %s146 = ssub.s32 %s18, %s37
    %s147 = ssub.s32 %s19, %s33
    %s148 = sor.u32 %s146, %s147
    %p149 = scmp.eq.s32.totalorder %s148, 0
    %s151 = sadd.s32 %s150, 1
    %s152 = scalar_select %p149, %s150, %s151
    %p155 = pneg %p149
    %p156 = scmp.eq.s32.totalorder %s11, 2
    %p157 = por %p155, %p156
    %p158 = scmp.ne.s32.totalorder %s150, %s153
    %p159 = scmp.eq.s32.totalorder %s11, 0
    %p160 = por %p158, %p159
    %p161 = scmp.ne.s32.totalorder %s150, %s153
    %p162 = scmp.eq.s32.totalorder %s16, 2
    %p163 = por %p161, %p162
    %p164 = scmp.ne.s32.totalorder %s153, %s154
    %p165 = scmp.eq.s32.totalorder %s16, 0
    %p166 = por %p164, %p165
    %p167 = scmp.ne.s32.totalorder %s153, %s154
    %p168 = scmp.eq.s32.totalorder %s17, 2
    %p169 = por %p167, %p168
    %p171 = scmp.ne.s32.totalorder %s154, %s170
    %p172 = scmp.eq.s32.totalorder %s17, 0
    %p173 = por %p171, %p172
    %s174 = ssub.s32 %s18, %s37
    %s175 = ssub.s32 %s19, %s33
    %s176 = sor.u32 %s174, %s175
    %p177 = scmp.eq.s32.totalorder %s176, 0
    %s179 = sadd.s32 %s178, 1
    %s180 = scalar_select %p177, %s178, %s179
    %p183 = pneg %p177
    %p184 = scmp.eq.s32.totalorder %s11, 2
    %p185 = por %p183, %p184
    %p186 = scmp.ne.s32.totalorder %s178, %s181
    %p187 = scmp.eq.s32.totalorder %s11, 0
    %p188 = por %p186, %p187
    %p189 = scmp.ne.s32.totalorder %s178, %s181
    %p190 = scmp.eq.s32.totalorder %s16, 2
    %p191 = por %p189, %p190
    %p192 = scmp.ne.s32.totalorder %s181, %s182
    %p193 = scmp.eq.s32.totalorder %s16, 0
    %p194 = por %p192, %p193
    %p195 = scmp.ne.s32.totalorder %s181, %s182
    %p196 = scmp.eq.s32.totalorder %s17, 2
    %p197 = por %p195, %p196
    %p199 = scmp.ne.s32.totalorder %s182, %s198
    %p200 = scmp.eq.s32.totalorder %s17, 0
    %p201 = por %p199, %p200
    %p202 = scmp.le.s32.totalorder 1, %s11
    %p203 = scmp.lt.s32.totalorder %s11, 4
    %p204 = pnand %p202, %p203
    %p205 = pneg %p204
    // Predicated region
    $region9: #{_lambda_.19} parent=5 // pred_check
      _
    $region10: #{_lambda_.19} parent=5 // pred_check_branch
      %207 = sbr.rel (%p204) target = $region12
    $region11: #{_lambda_.19} parent=5 // pred_region
      %s208 = ssub.s32 %s11, 1
      // Predicated region
      $region13: #{_lambda_.19} parent=11 // pred_check
        %p209 = pneg %p112
      $region14: #{_lambda_.19} parent=11 // pred_check_branch
        %211 = sbr.rel (%p209) target = $region16
      $region15: #{_lambda_.19} parent=11 // pred_region
        %p212 = scmp.lt.s32.totalorder %s22, 0
        %s213 = scalar_select %p212, %s22, 0
        %s214 = scalar_lea.vmem %s2, %s213
      $region16: #{_lambda_.19} parent=11 // pred_fallthru
        _
      // Predicated region
      $region17: #{_lambda_.19} parent=11 // pred_check
        %p215 = pneg %p138
      $region18: #{_lambda_.19} parent=11 // pred_check_branch
        %217 = sbr.rel (%p215) target = $region20
      $region19: #{_lambda_.19} parent=11 // pred_region
        %p218 = scmp.lt.s32.totalorder %s22, 0
        %s219 = scalar_select %p218, %s22, 0
        %s220 = scalar_lea.vmem %s3, %s219
      $region20: #{_lambda_.19} parent=11 // pred_fallthru
        _
      // Predicated region
      $region21: #{_lambda_.19} parent=11 // pred_check
        %p221 = pneg %p166
      $region22: #{_lambda_.19} parent=11 // pred_check_branch
        %223 = sbr.rel (%p221) target = $region24
      $region23: #{_lambda_.19} parent=11 // pred_region
        %p224 = scmp.lt.s32.totalorder %s21, 0
        %s225 = scalar_select %p224, %s21, 0
        %p226 = scmp.lt.s32.totalorder %s22, 0
        %s227 = scalar_select %p226, %s22, 0
        %s228 = sadd.s32 %s227, %s225
        %s229 = smul.addr %s228, 8
        %s230 = scalar_lea.vmem %s4, %s229
      $region24: #{_lambda_.19} parent=11 // pred_fallthru
        _
    $region12: #{_lambda_.19} parent=5 // pred_fallthru
      _
    %p231 = scmp.lt.s32.totalorder %s11, 3
    // Predicated region
    $region25: #{_lambda_.19} parent=5 // pred_check
      %p232 = pneg %p231
    $region26: #{_lambda_.19} parent=5 // pred_check_branch
      %234 = sbr.rel (%p232) target = $region28
    $region27: #{_lambda_.19} parent=5 // pred_region
      // Predicated region
      $region29: #{_lambda_.19} parent=27 // pred_check
        %p235 = pneg %p52
      $region30: #{_lambda_.19} parent=27 // pred_check_branch
        %237 = sbr.rel (%p235) target = $region32
      $region31: #{_lambda_.19} parent=27 // pred_region
        %s238 = smul.u32 3, %s20
        %p239 = scmp.lt.s32.totalorder %s18, 0
        %s240 = scalar_select %p239, %s18, 0
        %p241 = scmp.lt.s32.totalorder %s238, 8
        %s242 = scalar_select %p241, %s238, 8
        %s243 = smul.addr %s240, 9
        %s244 = sadd.s32 %s242, %s243
        %s245 = smul.addr %s244, 4
        %s246 = scalar_lea.vmem %s0, %s245
        %s247 = smul.u32 3, %s20
      $region32: #{_lambda_.19} parent=27 // pred_fallthru
        _
      // Predicated region
      $region33: #{_lambda_.19} parent=27 // pred_check
        %p248 = pneg %p80
      $region34: #{_lambda_.19} parent=27 // pred_check_branch
        %250 = sbr.rel (%p248) target = $region36
      $region35: #{_lambda_.19} parent=27 // pred_region
        %s251 = smul.u32 48, %s20
        %p252 = scmp.lt.s32.totalorder %s251, 143
        %s253 = scalar_select %p252, %s251, 143
        %p254 = scmp.lt.s32.totalorder %s19, 0
        %s255 = scalar_select %p254, %s19, 0
        %s256 = sadd.s32 %s255, %s253
        %s257 = smul.addr %s256, 4
        %s258 = scalar_lea.vmem %s1, %s257
        %s259 = smul.u32 48, %s20
      $region36: #{_lambda_.19} parent=27 // pred_fallthru
        _
    $region28: #{_lambda_.19} parent=5 // pred_fallthru
      _
    %p260 = scmp.le.s32.totalorder 1, %s11
    %p261 = scmp.lt.s32.totalorder %s11, 4
    %p262 = pnand %p260, %p261
    %p263 = pneg %p262
    // Predicated region
    $region37: #{_lambda_.19} parent=5 // pred_check
      _
    $region38: #{_lambda_.19} parent=5 // pred_check_branch
      %265 = sbr.rel (%p262) target = $region40
    $region39: #{_lambda_.19} parent=5 // pred_region
      %s266 = ssub.s32 %s11, 1
      %s267 = smul.u32 3, %s23
      %p268 = scmp.lt.s32.totalorder %s21, 0
      %s269 = scalar_select %p268, %s21, 0
      %p270 = scmp.lt.s32.totalorder %s267, 8
      %s271 = scalar_select %p270, %s267, 8
      %s272 = smul.addr %s269, 9
      %s273 = sadd.s32 %s271, %s272
      %s274 = smul.addr %s273, 4
      %s275 = scalar_lea.vmem %s0, %s274
      %p276 = pneg %p58
      %p277 = pneg %p55
      %s278 = smul.u32 48, %s23
      %p279 = scmp.lt.s32.totalorder %s278, 143
      %s280 = scalar_select %p279, %s278, 143
      %p281 = scmp.lt.s32.totalorder %s22, 0
      %s282 = scalar_select %p281, %s22, 0
      %s283 = sadd.s32 %s282, %s280
      %s284 = smul.addr %s283, 4
      %s285 = scalar_lea.vmem %s1, %s284
      %p286 = pneg %p86
      %p287 = pneg %p83
      %p288 = scmp.lt.s32.totalorder %s22, 0
      %s289 = scalar_select %p288, %s22, 0
      %s290 = scalar_lea.vmem %s2, %s289
      %p291 = pneg %p112
      %p292 = pneg %p109
      %p293 = scmp.lt.s32.totalorder %s22, 0
      %s294 = scalar_select %p293, %s22, 0
      %s295 = scalar_lea.vmem %s3, %s294
      %p296 = pneg %p138
      %p297 = pneg %p135
      %p298 = scmp.lt.s32.totalorder %s21, 0
      %s299 = scalar_select %p298, %s21, 0
      %p300 = scmp.lt.s32.totalorder %s22, 0
      %s301 = scalar_select %p300, %s22, 0
      %s302 = sadd.s32 %s301, %s299
      %s303 = smul.addr %s302, 8
      %s304 = scalar_lea.vmem %s4, %s303
      %p305 = pneg %p166
      %p306 = pneg %p163
      %p307 = pneg %p194
      %p308 = pneg %p191
      %p309 = scmp.lt.s32.totalorder %s21, 0
      %s310 = scalar_select %p309, %s21, 0
      %p311 = scmp.lt.s32.totalorder %s22, 0
      %s312 = scalar_select %p311, %s22, 0
      %s313 = sadd.s32 %s312, %s310
      %s314 = smul.addr %s313, 8
      %s315 = scalar_lea.vmem %s5, %s314
      %s316 = smul.u32 3, %s23
      %p317 = scmp.lt.s32.totalorder %s21, 0
      %s318 = scalar_select %p317, %s21, 0
      %p319 = scmp.lt.s32.totalorder %s316, 8
      %s320 = scalar_select %p319, %s316, 8
      %s321 = smul.addr %s318, 9
      %s322 = sadd.s32 %s320, %s321
      %s323 = smul.addr %s322, 4
      %s324 = scalar_lea.vmem %s0, %s323
      %s325 = smul.u32 3, %s23
      %s326 = smul.u32 48, %s23
      %p327 = scmp.lt.s32.totalorder %s326, 143
      %s328 = scalar_select %p327, %s326, 143
      %p329 = scmp.lt.s32.totalorder %s22, 0
      %s330 = scalar_select %p329, %s22, 0
      %s331 = sadd.s32 %s330, %s328
      %s332 = smul.addr %s331, 4
      %s333 = scalar_lea.vmem %s1, %s332
      %s334 = smul.u32 48, %s23
      %p335 = scmp.lt.s32.totalorder %s22, 0
      %s336 = scalar_select %p335, %s22, 0
      %s337 = scalar_lea.vmem %s2, %s336
      %p338 = scmp.lt.s32.totalorder %s22, 0
      %s339 = scalar_select %p338, %s22, 0
      %s340 = scalar_lea.vmem %s3, %s339
      %p341 = scmp.lt.s32.totalorder %s21, 0
      %s342 = scalar_select %p341, %s21, 0
      %p343 = scmp.lt.s32.totalorder %s22, 0
      %s344 = scalar_select %p343, %s22, 0
      %s345 = sadd.s32 %s344, %s342
      %s346 = smul.addr %s345, 8
      %s347 = scalar_lea.vmem %s4, %s346
      %p348 = scmp.lt.s32.totalorder %s21, 0
      %s349 = scalar_select %p348, %s21, 0
      %p350 = scmp.lt.s32.totalorder %s22, 0
      %s351 = scalar_select %p350, %s22, 0
      %s352 = sadd.s32 %s351, %s349
      %s353 = smul.addr %s352, 8
      %s354 = scalar_lea.vmem %s5, %s353
      %p356 = scmp.eq.s32.totalorder %s23, 0
      // Predicated region
      $region41: #{_lambda_.19} parent=39 // pred_check
        %p357 = pneg %p356
      $region42: #{_lambda_.19} parent=39 // pred_check_branch
        %359 = sbr.rel (%p357) target = $region44
      $region43: #{_lambda_.19} parent=39 // pred_region
        %360 = vst [vmem:[#allocation2] sm:$0xff] 0.0
      $region44: #{_lambda_.19} parent=39 // pred_fallthru
        _
      %v361 = vld [vmem:[#allocation2] sm:$0xff]
      %v362 = vld [vmem:[%s324] sm:$0xff]
      %v363 = vld [vmem:[%s324 + $0x8] sm:$0xf]
      %v364 = vld [vmem:[%s333] sm:$0xf]
      %v365 = vld [vmem:[%s333 + $0x4] sm:$0xf]
      %v366 = vld [vmem:[%s333 + $0x8] sm:$0xf]
      %v367 = vld [vmem:[%s333 + $0xc] sm:$0xf]
      %v368 = vld [vmem:[%s333 + $0x10] sm:$0xf]
      %v369 = vld [vmem:[%s333 + $0x14] sm:$0xf]
      %v370 = vld [vmem:[%s333 + $0x18] sm:$0xf]
      %v371 = vld [vmem:[%s333 + $0x1c] sm:$0xf]
      %v372 = vld [vmem:[%s333 + $0x20] sm:$0xf]
      %v373 = vld [vmem:[%s333 + $0x24] sm:$0xf]
      %v374 = vld [vmem:[%s333 + $0x28] sm:$0xf]
      %v375 = vld [vmem:[%s333 + $0x2c] sm:$0xf]
      %v376 = vld [vmem:[%s333 + $0x30] sm:$0xf]
      %v377 = vld [vmem:[%s333 + $0x34] sm:$0xf]
      %v378 = vld [vmem:[%s333 + $0x38] sm:$0xf]
      %v379 = vld [vmem:[%s333 + $0x3c] sm:$0xf]
      %v380 = vld [vmem:[%s333 + $0x40] sm:$0xf]
      %v381 = vld [vmem:[%s333 + $0x44] sm:$0xf]
      %v382 = vld [vmem:[%s333 + $0x48] sm:$0xf]
      %v383 = vld [vmem:[%s333 + $0x4c] sm:$0xf]
      %v384 = vld [vmem:[%s333 + $0x50] sm:$0xf]
      %v385 = vld [vmem:[%s333 + $0x54] sm:$0xf]
      %v386 = vld [vmem:[%s333 + $0x58] sm:$0xf]
      %v387 = vld [vmem:[%s333 + $0x5c] sm:$0xf]
      %v388 = vld [vmem:[%s333 + $0x60] sm:$0xf]
      %v389 = vld [vmem:[%s333 + $0x64] sm:$0xf]
      %v390 = vld [vmem:[%s333 + $0x68] sm:$0xf]
      %v391 = vld [vmem:[%s333 + $0x6c] sm:$0xf]
      %v392 = vld [vmem:[%s333 + $0x70] sm:$0xf]
      %v393 = vld [vmem:[%s333 + $0x74] sm:$0xf]
      %v394 = vld [vmem:[%s333 + $0x78] sm:$0xf]
      %v395 = vld [vmem:[%s333 + $0x7c] sm:$0xf]
      %v396 = vld [vmem:[%s333 + $0x80] sm:$0xf]
      %v397 = vld [vmem:[%s333 + $0x84] sm:$0xf]
      %v398 = vld [vmem:[%s333 + $0x88] sm:$0xf]
      %v399 = vld [vmem:[%s333 + $0x8c] sm:$0xf]
      %v400 = vld [vmem:[%s333 + $0x90] sm:$0xf]
      %v401 = vld [vmem:[%s333 + $0x94] sm:$0xf]
      %v402 = vld [vmem:[%s333 + $0x98] sm:$0xf]
      %v403 = vld [vmem:[%s333 + $0x9c] sm:$0xf]
      %v404 = vld [vmem:[%s333 + $0xa0] sm:$0xf]
      %v405 = vld [vmem:[%s333 + $0xa4] sm:$0xf]
      %v406 = vld [vmem:[%s333 + $0xa8] sm:$0xf]
      %v407 = vld [vmem:[%s333 + $0xac] sm:$0xf]
      %v408 = vld [vmem:[%s333 + $0xb0] sm:$0xf]
      %v409 = vld [vmem:[%s333 + $0xb4] sm:$0xf]
      %v410 = vld [vmem:[%s333 + $0xb8] sm:$0xf]
      %v411 = vld [vmem:[%s333 + $0xbc] sm:$0xf]
      %v414 = vunpack.c.l.b16 %v362
      %v415 = vunpack.c.h.b16 %v362
      %v416 = vunpack.c.l.b16 %v363
      %v417 = vpack.c.b16 %v414, %v414
      %v418 = vpack.c.b16 %v415, %v415
      %v419 = vpack.c.b16 %v416, %v416
      %v471 = vunpack.c.l.b16 %v364
      %v472 = vunpack.c.l.b16 %v365
      %v473 = vunpack.c.l.b16 %v366
      %v474 = vunpack.c.l.b16 %v367
      %v475 = vunpack.c.l.b16 %v368
      %v476 = vunpack.c.l.b16 %v369
      %v477 = vunpack.c.l.b16 %v370
      %v478 = vunpack.c.l.b16 %v371
      %v479 = vunpack.c.l.b16 %v372
      %v480 = vunpack.c.l.b16 %v373
      %v481 = vunpack.c.l.b16 %v374
      %v482 = vunpack.c.l.b16 %v375
      %v483 = vunpack.c.l.b16 %v376
      %v484 = vunpack.c.l.b16 %v377
      %v485 = vunpack.c.l.b16 %v378
      %v486 = vunpack.c.l.b16 %v379
      %v487 = vunpack.c.l.b16 %v380
      %v488 = vunpack.c.l.b16 %v381
      %v489 = vunpack.c.l.b16 %v382
      %v490 = vunpack.c.l.b16 %v383
      %v491 = vunpack.c.l.b16 %v384
      %v492 = vunpack.c.l.b16 %v385
      %v493 = vunpack.c.l.b16 %v386
      %v494 = vunpack.c.l.b16 %v387
      %v495 = vunpack.c.l.b16 %v388
      %v496 = vunpack.c.l.b16 %v389
      %v497 = vunpack.c.l.b16 %v390
      %v498 = vunpack.c.l.b16 %v391
      %v499 = vunpack.c.l.b16 %v392
      %v500 = vunpack.c.l.b16 %v393
      %v501 = vunpack.c.l.b16 %v394
      %v502 = vunpack.c.l.b16 %v395
      %v503 = vunpack.c.l.b16 %v396
      %v504 = vunpack.c.l.b16 %v397
      %v505 = vunpack.c.l.b16 %v398
      %v506 = vunpack.c.l.b16 %v399
      %v507 = vunpack.c.l.b16 %v400
      %v508 = vunpack.c.l.b16 %v401
      %v509 = vunpack.c.l.b16 %v402
      %v510 = vunpack.c.l.b16 %v403
      %v511 = vunpack.c.l.b16 %v404
      %v512 = vunpack.c.l.b16 %v405
      %v513 = vunpack.c.l.b16 %v406
      %v514 = vunpack.c.l.b16 %v407
      %v515 = vunpack.c.l.b16 %v408
      %v516 = vunpack.c.l.b16 %v409
      %v517 = vunpack.c.l.b16 %v410
      %v518 = vunpack.c.l.b16 %v411
      %v519 = vpack.c.b16 %v472, %v471
      %v520 = vpack.c.b16 %v474, %v473
      %v521 = vpack.c.b16 %v476, %v475
      %v522 = vpack.c.b16 %v478, %v477
      %v523 = vpack.c.b16 %v480, %v479
      %v524 = vpack.c.b16 %v482, %v481
      %v525 = vpack.c.b16 %v484, %v483
      %v526 = vpack.c.b16 %v486, %v485
      %v527 = vpack.c.b16 %v488, %v487
      %v528 = vpack.c.b16 %v490, %v489
      %v529 = vpack.c.b16 %v492, %v491
      %v530 = vpack.c.b16 %v494, %v493
      %v531 = vpack.c.b16 %v496, %v495
      %v532 = vpack.c.b16 %v498, %v497
      %v533 = vpack.c.b16 %v500, %v499
      %v534 = vpack.c.b16 %v502, %v501
      %v535 = vpack.c.b16 %v504, %v503
      %v536 = vpack.c.b16 %v506, %v505
      %v537 = vpack.c.b16 %v508, %v507
      %v538 = vpack.c.b16 %v510, %v509
      %v539 = vpack.c.b16 %v512, %v511
      %v540 = vpack.c.b16 %v514, %v513
      %v541 = vpack.c.b16 %v516, %v515
      %v542 = vpack.c.b16 %v518, %v517
      %567 = vmatprep.subr.bf16.mxu0 0
      %568 = vmatpush1.bf16.msra.mxu0 %v519
      %569 = vmatprep.subr.bf16.mxu0 0
      %570 = vmatpush1.bf16.msra.mxu0 %v520
      %571 = vmatprep.subr.bf16.mxu0 0
      %572 = vmatpush1.bf16.msra.mxu0 %v521
      %573 = vmatprep.subr.bf16.mxu0 0
      %574 = vmatpush1.bf16.msra.mxu0 %v522
      %575 = vmatprep.subr.bf16.mxu0 0
      %576 = vmatpush1.bf16.msra.mxu0 %v523
      %577 = vmatprep.subr.bf16.mxu0 0
      %578 = vmatpush1.bf16.msra.mxu0 %v524
      %579 = vmatprep.subr.bf16.mxu0 0
      %580 = vmatpush1.bf16.msra.mxu0 %v525
      %581 = vmatprep.subr.bf16.mxu0 0
      %582 = vmatpush1.bf16.msra.mxu0 %v526
      %583 = vmatprep.subr.bf16.mxu0 0
      %584 = vmatpush1.bf16.msra.mxu0 %v527
      %585 = vmatprep.subr.bf16.mxu0 0
      %586 = vmatpush1.bf16.msra.mxu0 %v528
      %587 = vmatprep.subr.bf16.mxu0 0
      %588 = vmatpush1.bf16.msra.mxu0 %v529
      %589 = vmatprep.subr.bf16.mxu0 0
      %590 = vmatpush1.bf16.msra.mxu0 %v530
      %591 = vmatprep.subr.bf16.mxu0 0
      %592 = vmatpush1.bf16.msra.mxu0 %v531
      %593 = vmatprep.subr.bf16.mxu0 0
      %594 = vmatpush1.bf16.msra.mxu0 %v532
      %595 = vmatprep.subr.bf16.mxu0 0
      %596 = vmatpush1.bf16.msra.mxu0 %v533
      %597 = vmatprep.subr.bf16.mxu0 0
      %598 = vmatpush1.bf16.msra.mxu0 %v534
      %599 = vmatprep.mubr.bf16.mxu0 %v418
      %600 = vmatmul.mubr.bf16.gmra.mrb[0].mxu0 %v417
      %v601 = vpop.f32.mrb[0].mxu0
      %v602 = vadd.f32 0.0, %v601
      %v603 = vpop.f32.mrb[0].mxu0
      %v604 = vpop.f32.mrb[0].mxu0
      %v605 = vpop.f32.mrb[0].mxu0
      %606 = vdwg.mxu0
      %607 = vmatprep.subr.bf16.mxu0 0
      %608 = vmatpush1.bf16.msra.mxu0 %v535
      %609 = vmatprep.subr.bf16.mxu0 0
      %610 = vmatpush1.bf16.msra.mxu0 %v536
      %611 = vmatprep.subr.bf16.mxu0 0
      %612 = vmatpush1.bf16.msra.mxu0 %v537
      %613 = vmatprep.subr.bf16.mxu0 0
      %614 = vmatpush1.bf16.msra.mxu0 %v538
      %615 = vmatprep.subr.bf16.mxu0 0
      %616 = vmatpush1.bf16.msra.mxu0 %v539
      %617 = vmatprep.subr.bf16.mxu0 0
      %618 = vmatpush1.bf16.msra.mxu0 %v540
      %619 = vmatprep.subr.bf16.mxu0 0
      %620 = vmatpush1.bf16.msra.mxu0 %v541
      %621 = vmatprep.subr.bf16.mxu0 0
      %622 = vmatpush1.bf16.msra.mxu0 %v542
      %623 = vmatprep.subr.bf16.mxu0 0
      %624 = vmatpush1.bf16.msra.mxu0 0
      %625 = vmatprep.subr.bf16.mxu0 0
      %626 = vmatpush1.bf16.msra.mxu0 0
      %627 = vmatprep.subr.bf16.mxu0 0
      %628 = vmatpush1.bf16.msra.mxu0 0
      %629 = vmatprep.subr.bf16.mxu0 0
      %630 = vmatpush1.bf16.msra.mxu0 0
      %631 = vmatprep.subr.bf16.mxu0 0
      %632 = vmatpush1.bf16.msra.mxu0 0
      %633 = vmatprep.subr.bf16.mxu0 0
      %634 = vmatpush1.bf16.msra.mxu0 0
      %635 = vmatprep.subr.bf16.mxu0 0
      %636 = vmatpush1.bf16.msra.mxu0 0
      %637 = vmatprep.subr.bf16.mxu0 0
      %638 = vmatpush1.bf16.msra.mxu0 0
      %639 = vmatprep.mubr.bf16.mxu0 0
      %640 = vmatmul.mubr.bf16.gmra.mrb[0].mxu0 %v419
      %v641 = vpop.f32.mrb[0].mxu0
      %v642 = vadd.f32 %v602, %v641
      %v643 = vpop.f32.mrb[0].mxu0
      %v644 = vpop.f32.mrb[0].mxu0
      %v645 = vpop.f32.mrb[0].mxu0
      %646 = vdwg.mxu0
      %v647 = vadd.f32 %v361, %v642
      %648 = vst [vmem:[#allocation2] sm:$0xff] %v647
      %p649 = scmp.eq.s32.totalorder %s23, 2
      // Predicated region
      $region45: #{_lambda_.19} parent=39 // pred_check
        %p650 = pneg %p649
      $region46: #{_lambda_.19} parent=39 // pred_check_branch
        %652 = sbr.rel (%p650) target = $region48
      $region47: #{_lambda_.19} parent=39 // pred_region
        %v653 = vld [vmem:[#allocation2] sm:$0xff]
        %v654 = vld [vmem:[%s337] sm:$0x1]
        %v656 = vlaneseq
        %v657 = vshrl.u32 %v656, 7
        %v658 = vsub.s32 0, %v657
        %v659 = vrot.slane %v654, %v658
        %v661 = vmul.f32 %v653, %v659
        %v662 = vld [vmem:[%s340] sm:$0x1]
        %v664 = vlaneseq
        %v665 = vshrl.u32 %v664, 7
        %v666 = vsub.s32 0, %v665
        %v667 = vrot.slane %v662, %v666
        %v669 = vadd.f32 %v661, %v667
        %v670 = vld [vmem:[%s347] sm:$0xff]
        %v671 = vadd.f32 %v669, %v670
        %v672 = vmax.f32 %v671, 0.0
        %673 = vst [vmem:[%s354] sm:$0xff] %v672
      $region48: #{_lambda_.19} parent=39 // pred_fallthru
        _
      %p674 = scmp.lt.s32.totalorder %s21, 0
      %s675 = scalar_select %p674, %s21, 0
      %p676 = scmp.lt.s32.totalorder %s22, 0
      %s677 = scalar_select %p676, %s22, 0
      %s678 = sadd.s32 %s677, %s675
      %s679 = smul.addr %s678, 8
      %s680 = scalar_lea.vmem %s5, %s679
      // Predicated region
      $region49: #{_lambda_.19} parent=39 // pred_check
        %p681 = pneg %p191
      $region50: #{_lambda_.19} parent=39 // pred_check_branch
        %683 = sbr.rel (%p681) target = $region52
      $region51: #{_lambda_.19} parent=39 // pred_region
        _
      $region52: #{_lambda_.19} parent=39 // pred_fallthru
        _
      // Predicated region
      $region53: #{_lambda_.19} parent=39 // pred_check
        %p684 = pneg %p191
      $region54: #{_lambda_.19} parent=39 // pred_check_branch
        %686 = sbr.rel (%p684) target = $region56
      $region55: #{_lambda_.19} parent=39 // pred_region
        %p687 = scmp.lt.s32.totalorder %s21, 0
        %s688 = scalar_select %p687, %s21, 0
        %p689 = scmp.lt.s32.totalorder %s22, 0
        %s690 = scalar_select %p689, %s22, 0
        %s691 = sadd.s32 %s690, %s688
        %s692 = smul.addr %s691, 8
        %s693 = scalar_lea.vmem %s5, %s692
      $region56: #{_lambda_.19} parent=39 // pred_fallthru
        _
    $region40: #{_lambda_.19} parent=5 // pred_fallthru
      _
    %p694 = scmp.le.s32.totalorder 2, %s11
    // Predicated region
    $region57: #{_lambda_.19} parent=5 // pred_check
      %p695 = pneg %p694
    $region58: #{_lambda_.19} parent=5 // pred_check_branch
      %697 = sbr.rel (%p695) target = $region60
    $region59: #{_lambda_.19} parent=5 // pred_region
      %s698 = ssub.s32 %s11, 2
    $region60: #{_lambda_.19} parent=5 // pred_fallthru
      _
  $region6: #{_lambda_.19} parent=0 // loop_footer
    %s15 = sadd.s32 1, %s11
  $region7: #{_lambda_.19} parent=0 // loop_footer_branch
    %10 = sbr.rel target = $region3
  $region8: #{_lambda_.19} parent=0 // loop_exit
    _

// kernel: _lambda_.20
$region0: #{_lambda_.20}
  #allocation0 [shape = 'u32[]', space=smem, size = 0x4, offset = 0x4, fixed_abs, tag = 'smem constant byte address 0x4 - core index']
  #allocation1 [shape = 'u32[144,128]{1,0:T(1,128)}', space=vmem, size = 0x12000, scoped, tag = 'internal scratch']
  #allocation2 [shape = 'f32[8,256]{1,0:T(8,128)}', space=vmem, size = 0x2000, scoped, tag = 'scratch operand']
  %s0 = inlined_call_operand.vmem [shape: bf16[8,128], index: 0, kind: input, shape index: {}]
  %s1 = inlined_call_operand.vmem [shape: bf16[128,256], index: 1, kind: input, shape index: {}]
  %s2 = inlined_call_operand.vmem [shape: f32[1,256], index: 2, kind: input, shape index: {}]
  %s3 = inlined_call_operand.vmem [shape: f32[1,256], index: 3, kind: input, shape index: {}]
  %s4 = inlined_call_operand.vmem [shape: f32[8,256], index: 4, kind: output, shape index: {}]
  %s5 = sld [smem:[#allocation0]]
  $region34: #{_lambda_.20} parent=0
    _
  %s7 = ssub.s32 1, %s5
  %s8 = scalar_select 0, %s7, %s5
  // Predicated region
  $region2: #{_lambda_.20} parent=0 // pred_check
    _
  $region3: #{_lambda_.20} parent=0 // pred_check_branch
    %10 = sbr.rel (0) target = $region5
  $region4: #{_lambda_.20} parent=0 // pred_region
    _
  $region5: #{_lambda_.20} parent=0 // pred_fallthru
    _
  // Predicated region
  $region6: #{_lambda_.20} parent=0 // pred_check
    _
  $region7: #{_lambda_.20} parent=0 // pred_check_branch
    %12 = sbr.rel (0) target = $region9
  $region8: #{_lambda_.20} parent=0 // pred_region
    _
  $region9: #{_lambda_.20} parent=0 // pred_fallthru
    _
  // Predicated region
  $region10: #{_lambda_.20} parent=0 // pred_check
    _
  $region11: #{_lambda_.20} parent=0 // pred_check_branch
    %14 = sbr.rel (0) target = $region13
  $region12: #{_lambda_.20} parent=0 // pred_region
    _
  $region13: #{_lambda_.20} parent=0 // pred_fallthru
    _
  // Predicated region
  $region14: #{_lambda_.20} parent=0 // pred_check
    _
  $region15: #{_lambda_.20} parent=0 // pred_check_branch
    %16 = sbr.rel (0) target = $region17
  $region16: #{_lambda_.20} parent=0 // pred_region
    _
  $region17: #{_lambda_.20} parent=0 // pred_fallthru
    _
  %p18 = scmp.eq.s32.totalorder 0, 0
  // Predicated region
  $region18: #{_lambda_.20} parent=0 // pred_check
    %p19 = pneg %p18
  $region19: #{_lambda_.20} parent=0 // pred_check_branch
    %21 = sbr.rel (%p19) target = $region21
  $region20: #{_lambda_.20} parent=0 // pred_region
    %22 = vst [vmem:[#allocation2] sm:$0xff] 0.0
    %23 = vst [vmem:[#allocation2 + $0x8] sm:$0xff] 0.0
  $region21: #{_lambda_.20} parent=0 // pred_fallthru
    _
  %v24 = vld [vmem:[#allocation2] sm:$0xff]
  %v25 = vld [vmem:[#allocation2 + $0x8] sm:$0xff]
  %v26 = vld [vmem:[%s0] sm:$0xf]
  %v27 = vld [vmem:[%s1] sm:$0xff]
  %v28 = vld [vmem:[%s1 + $0x8] sm:$0xff]
  %v29 = vld [vmem:[%s1 + $0x10] sm:$0xff]
  %v30 = vld [vmem:[%s1 + $0x18] sm:$0xff]
  %v31 = vld [vmem:[%s1 + $0x20] sm:$0xff]
  %v32 = vld [vmem:[%s1 + $0x28] sm:$0xff]
  %v33 = vld [vmem:[%s1 + $0x30] sm:$0xff]
  %v34 = vld [vmem:[%s1 + $0x38] sm:$0xff]
  %v35 = vld [vmem:[%s1 + $0x40] sm:$0xff]
  %v36 = vld [vmem:[%s1 + $0x48] sm:$0xff]
  %v37 = vld [vmem:[%s1 + $0x50] sm:$0xff]
  %v38 = vld [vmem:[%s1 + $0x58] sm:$0xff]
  %v39 = vld [vmem:[%s1 + $0x60] sm:$0xff]
  %v40 = vld [vmem:[%s1 + $0x68] sm:$0xff]
  %v41 = vld [vmem:[%s1 + $0x70] sm:$0xff]
  %v42 = vld [vmem:[%s1 + $0x78] sm:$0xff]
  %v59 = vunpack.c.l.b16 %v27
  %v60 = vunpack.c.h.b16 %v27
  %v61 = vunpack.c.l.b16 %v28
  %v62 = vunpack.c.h.b16 %v28
  %v63 = vunpack.c.l.b16 %v29
  %v64 = vunpack.c.h.b16 %v29
  %v65 = vunpack.c.l.b16 %v30
  %v66 = vunpack.c.h.b16 %v30
  %v67 = vunpack.c.l.b16 %v31
  %v68 = vunpack.c.h.b16 %v31
  %v69 = vunpack.c.l.b16 %v32
  %v70 = vunpack.c.h.b16 %v32
  %v71 = vunpack.c.l.b16 %v33
  %v72 = vunpack.c.h.b16 %v33
  %v73 = vunpack.c.l.b16 %v34
  %v74 = vunpack.c.h.b16 %v34
  %v75 = vunpack.c.l.b16 %v35
  %v76 = vunpack.c.h.b16 %v35
  %v77 = vunpack.c.l.b16 %v36
  %v78 = vunpack.c.h.b16 %v36
  %v79 = vunpack.c.l.b16 %v37
  %v80 = vunpack.c.h.b16 %v37
  %v81 = vunpack.c.l.b16 %v38
  %v82 = vunpack.c.h.b16 %v38
  %v83 = vunpack.c.l.b16 %v39
  %v84 = vunpack.c.h.b16 %v39
  %v85 = vunpack.c.l.b16 %v40
  %v86 = vunpack.c.h.b16 %v40
  %v87 = vunpack.c.l.b16 %v41
  %v88 = vunpack.c.h.b16 %v41
  %v89 = vunpack.c.l.b16 %v42
  %v90 = vunpack.c.h.b16 %v42
  %v91 = vpack.c.b16 %v61, %v59
  %v92 = vpack.c.b16 %v62, %v60
  %v93 = vpack.c.b16 %v65, %v63
  %v94 = vpack.c.b16 %v66, %v64
  %v95 = vpack.c.b16 %v69, %v67
  %v96 = vpack.c.b16 %v70, %v68
  %v97 = vpack.c.b16 %v73, %v71
  %v98 = vpack.c.b16 %v74, %v72
  %v99 = vpack.c.b16 %v77, %v75
  %v100 = vpack.c.b16 %v78, %v76
  %v101 = vpack.c.b16 %v81, %v79
  %v102 = vpack.c.b16 %v82, %v80
  %v103 = vpack.c.b16 %v85, %v83
  %v104 = vpack.c.b16 %v86, %v84
  %v105 = vpack.c.b16 %v89, %v87
  %v106 = vpack.c.b16 %v90, %v88
  %123 = vmatprep.subr.bf16.mxu0 %v92
  %124 = vmatpush1.bf16.msra.mxu0 %v91
  %125 = vmatprep.subr.bf16.mxu0 %v94
  %126 = vmatpush1.bf16.msra.mxu0 %v93
  %127 = vmatprep.subr.bf16.mxu0 %v96
  %128 = vmatpush1.bf16.msra.mxu0 %v95
  %129 = vmatprep.subr.bf16.mxu0 %v98
  %130 = vmatpush1.bf16.msra.mxu0 %v97
  %131 = vmatprep.subr.bf16.mxu0 %v100
  %132 = vmatpush1.bf16.msra.mxu0 %v99
  %133 = vmatprep.subr.bf16.mxu0 %v102
  %134 = vmatpush1.bf16.msra.mxu0 %v101
  %135 = vmatprep.subr.bf16.mxu0 %v104
  %136 = vmatpush1.bf16.msra.mxu0 %v103
  %137 = vmatprep.subr.bf16.mxu0 %v106
  %138 = vmatpush1.bf16.msra.mxu0 %v105
  %139 = vmatprep.subr.bf16.mxu0 0
  %140 = vmatpush1.bf16.msra.mxu0 0
  %141 = vmatprep.subr.bf16.mxu0 0
  %142 = vmatpush1.bf16.msra.mxu0 0
  %143 = vmatprep.subr.bf16.mxu0 0
  %144 = vmatpush1.bf16.msra.mxu0 0
  %145 = vmatprep.subr.bf16.mxu0 0
  %146 = vmatpush1.bf16.msra.mxu0 0
  %147 = vmatprep.subr.bf16.mxu0 0
  %148 = vmatpush1.bf16.msra.mxu0 0
  %149 = vmatprep.subr.bf16.mxu0 0
  %150 = vmatpush1.bf16.msra.mxu0 0
  %151 = vmatprep.subr.bf16.mxu0 0
  %152 = vmatpush1.bf16.msra.mxu0 0
  %153 = vmatprep.subr.bf16.mxu0 0
  %154 = vmatpush1.bf16.msra.mxu0 0
  %155 = vmatprep.mubr.bf16.mxu0 0
  %156 = vmatmul.mubr.bf16.gmra.mrb[0].mxu0 %v26
  %v157 = vpop.f32.mrb[0].mxu0
  %v158 = vadd.f32 0.0, %v157
  %v159 = vpop.f32.mrb[0].mxu0
  %v160 = vadd.f32 0.0, %v159
  %v161 = vpop.f32.mrb[0].mxu0
  %v162 = vpop.f32.mrb[0].mxu0
  %163 = vdwg.mxu0
  %v164 = vadd.f32 %v24, %v158
  %v165 = vadd.f32 %v25, %v160
  %166 = vst [vmem:[#allocation2] sm:$0xff] %v164
  %167 = vst [vmem:[#allocation2 + $0x8] sm:$0xff] %v165
  // Predicated region
  $region22: #{_lambda_.20} parent=0 // pred_check
    %p168 = pneg %p18
  $region23: #{_lambda_.20} parent=0 // pred_check_branch
    %170 = sbr.rel (%p168) target = $region25
  $region24: #{_lambda_.20} parent=0 // pred_region
    %v171 = vld [vmem:[#allocation2] sm:$0xff]
    %v172 = vld [vmem:[#allocation2 + $0x8] sm:$0xff]
    %v173 = vld [vmem:[%s2] sm:$0x3]
    %v175 = vlaneseq
    %v176 = vshrl.u32 %v175, 7
    %v177 = vsub.s32 0, %v176
    %v178 = vrot.slane %v173, %v177
    %v179 = vlaneseq
    %v180 = vshrl.u32 %v179, 7
    %v181 = vsub.s32 1, %v180
    %v182 = vrot.slane %v173, %v181
    %v185 = vmul.f32 %v171, %v178
    %v186 = vmul.f32 %v172, %v182
    %v187 = vld [vmem:[%s3] sm:$0x3]
    %v189 = vlaneseq
    %v190 = vshrl.u32 %v189, 7
    %v191 = vsub.s32 0, %v190
    %v192 = vrot.slane %v187, %v191
    %v193 = vlaneseq
    %v194 = vshrl.u32 %v193, 7
    %v195 = vsub.s32 1, %v194
    %v196 = vrot.slane %v187, %v195
    %v199 = vadd.f32 %v185, %v192
    %v200 = vadd.f32 %v186, %v196
    %201 = vst [vmem:[%s4] sm:$0xff] %v199
    %202 = vst [vmem:[%s4 + $0x8] sm:$0xff] %v200
  $region25: #{_lambda_.20} parent=0 // pred_fallthru
    _
  // Predicated region
  $region26: #{_lambda_.20} parent=0 // pred_check
    _
  $region27: #{_lambda_.20} parent=0 // pred_check_branch
    %204 = sbr.rel (0) target = $region29
  $region28: #{_lambda_.20} parent=0 // pred_region
    _
  $region29: #{_lambda_.20} parent=0 // pred_fallthru
    _
  // Predicated region
  $region30: #{_lambda_.20} parent=0 // pred_check
    _
  $region31: #{_lambda_.20} parent=0 // pred_check_branch
    %206 = sbr.rel (0) target = $region33
  $region32: #{_lambda_.20} parent=0 // pred_region
    _
  $region33: #{_lambda_.20} parent=0 // pred_fallthru
    _

// kernel: _lambda_.21
$region0: #{_lambda_.21}
  #allocation0 [shape = 'u32[]', space=smem, size = 0x4, offset = 0x4, fixed_abs, tag = 'smem constant byte address 0x4 - core index']
  #allocation1 [shape = 'u32[144,128]{1,0:T(1,128)}', space=vmem, size = 0x12000, scoped, tag = 'internal scratch']
  #allocation2 [shape = 'f32[8,256]{1,0:T(8,128)}', space=vmem, size = 0x2000, scoped, tag = 'scratch operand']
  %s0 = inlined_call_operand.vmem [shape: bf16[8,1152], index: 0, kind: input, shape index: {}]
  %s1 = inlined_call_operand.vmem [shape: bf16[1152,256], index: 1, kind: input, shape index: {}]
  %s2 = inlined_call_operand.vmem [shape: f32[1,256], index: 2, kind: input, shape index: {}]
  %s3 = inlined_call_operand.vmem [shape: f32[1,256], index: 3, kind: input, shape index: {}]
  %s4 = inlined_call_operand.vmem [shape: f32[8,256], index: 4, kind: output, shape index: {}]
  %s5 = sld [smem:[#allocation0]]
  $region57: #{_lambda_.21} parent=0
    _
  %s7 = ssub.s32 1, %s5
  %s8 = scalar_select 0, %s7, %s5
  loop: start=0, step=1, limit=5
  $region2: #{_lambda_.21} parent=0 // loop_pre_header
    _
  $region3: #{_lambda_.21} parent=0 // loop_header
    %s10 = sphi 0, %s14
    %p11 = scmp.ge.s32.totalorder %s10, 5
    %s17 = sphi 0, %s36
    %s18 = sphi 0, %s32
    %s19 = sphi 0, %s28
    %s20 = sphi 0, %s17
    %s21 = sphi 0, %s18
    %s22 = sphi 0, %s19
    %s23 = sphi 0, %s20
    %s24 = sphi 0, %s21
    %s25 = sphi 0, %s22
    %s41 = sphi 0, %s43
    %s44 = sphi 0, %s41
    %s45 = sphi 0, %s44
    %s61 = sphi 0, %s45
    %s69 = sphi 0, %s71
    %s72 = sphi 0, %s69
    %s73 = sphi 0, %s72
    %s89 = sphi 0, %s73
    %s95 = sphi 0, %s97
    %s98 = sphi 0, %s95
    %s99 = sphi 0, %s98
    %s115 = sphi 0, %s99
    %s121 = sphi 0, %s123
    %s124 = sphi 0, %s121
    %s125 = sphi 0, %s124
    %s141 = sphi 0, %s125
    %s149 = sphi 0, %s151
    %s152 = sphi 0, %s149
    %s153 = sphi 0, %s152
    %s169 = sphi 0, %s153
  $region4: #{_lambda_.21} parent=0 // loop_header_branch
    %13 = sbr.rel (%p11) target = $region8
  $region5: #{_lambda_.21} parent=0 // loop_body
    %s15 = ssub.s32 %s10, 1
    %s16 = ssub.s32 %s10, 2
    %s26 = sadd.s32 1, %s19
    %p27 = scmp.ge.s32.totalorder %s26, 3
    %s28 = scalar_select %p27, 0, %s26
    %s29 = sadd.s32 1, %s18
    %s30 = scalar_select %p27, %s29, %s18
    %p31 = scmp.ge.s32.totalorder %s30, 1
    %s32 = scalar_select %p31, 0, %s30
    %s33 = sadd.s32 1, %s17
    %s34 = scalar_select %p31, %s33, %s17
    %p35 = scmp.ge.s32.totalorder %s34, 1
    %s36 = scalar_select %p35, 0, %s34
    %s37 = ssub.s32 %s17, %s36
    %s38 = ssub.s32 %s19, %s28
    %s39 = sor.u32 %s37, %s38
    %p40 = scmp.eq.s32.totalorder %s39, 0
    %s42 = sadd.s32 %s41, 1
    %s43 = scalar_select %p40, %s41, %s42
    %p46 = pneg %p40
    %p47 = scmp.eq.s32.totalorder %s10, 2
    %p48 = por %p46, %p47
    %p49 = scmp.ne.s32.totalorder %s41, %s44
    %p50 = scmp.eq.s32.totalorder %s10, 0
    %p51 = por %p49, %p50
    %p52 = scmp.ne.s32.totalorder %s41, %s44
    %p53 = scmp.eq.s32.totalorder %s15, 2
    %p54 = por %p52, %p53
    %p55 = scmp.ne.s32.totalorder %s44, %s45
    %p56 = scmp.eq.s32.totalorder %s15, 0
    %p57 = por %p55, %p56
    %p58 = scmp.ne.s32.totalorder %s44, %s45
    %p59 = scmp.eq.s32.totalorder %s16, 2
    %p60 = por %p58, %p59
    %p62 = scmp.ne.s32.totalorder %s45, %s61
    %p63 = scmp.eq.s32.totalorder %s16, 0
    %p64 = por %p62, %p63
    %s65 = ssub.s32 %s19, %s28
    %s66 = ssub.s32 %s18, %s32
    %s67 = sor.u32 %s65, %s66
    %p68 = scmp.eq.s32.totalorder %s67, 0
    %s70 = sadd.s32 %s69, 1
    %s71 = scalar_select %p68, %s69, %s70
    %p74 = pneg %p68
    %p75 = scmp.eq.s32.totalorder %s10, 2
    %p76 = por %p74, %p75
    %p77 = scmp.ne.s32.totalorder %s69, %s72
    %p78 = scmp.eq.s32.totalorder %s10, 0
    %p79 = por %p77, %p78
    %p80 = scmp.ne.s32.totalorder %s69, %s72
    %p81 = scmp.eq.s32.totalorder %s15, 2
    %p82 = por %p80, %p81
    %p83 = scmp.ne.s32.totalorder %s72, %s73
    %p84 = scmp.eq.s32.totalorder %s15, 0
    %p85 = por %p83, %p84
    %p86 = scmp.ne.s32.totalorder %s72, %s73
    %p87 = scmp.eq.s32.totalorder %s16, 2
    %p88 = por %p86, %p87
    %p90 = scmp.ne.s32.totalorder %s73, %s89
    %p91 = scmp.eq.s32.totalorder %s16, 0
    %p92 = por %p90, %p91
    %s93 = ssub.s32 %s18, %s32
    %p94 = scmp.eq.s32.totalorder %s93, 0
    %s96 = sadd.s32 %s95, 1
    %s97 = scalar_select %p94, %s95, %s96
    %p100 = pneg %p94
    %p101 = scmp.eq.s32.totalorder %s10, 2
    %p102 = por %p100, %p101
    %p103 = scmp.ne.s32.totalorder %s95, %s98
    %p104 = scmp.eq.s32.totalorder %s10, 0
    %p105 = por %p103, %p104
    %p106 = scmp.ne.s32.totalorder %s95, %s98
    %p107 = scmp.eq.s32.totalorder %s15, 2
    %p108 = por %p106, %p107
    %p109 = scmp.ne.s32.totalorder %s98, %s99
    %p110 = scmp.eq.s32.totalorder %s15, 0
    %p111 = por %p109, %p110
    %p112 = scmp.ne.s32.totalorder %s98, %s99
    %p113 = scmp.eq.s32.totalorder %s16, 2
    %p114 = por %p112, %p113
    %p116 = scmp.ne.s32.totalorder %s99, %s115
    %p117 = scmp.eq.s32.totalorder %s16, 0
    %p118 = por %p116, %p117
    %s119 = ssub.s32 %s18, %s32
    %p120 = scmp.eq.s32.totalorder %s119, 0
    %s122 = sadd.s32 %s121, 1
    %s123 = scalar_select %p120, %s121, %s122
    %p126 = pneg %p120
    %p127 = scmp.eq.s32.totalorder %s10, 2
    %p128 = por %p126, %p127
    %p129 = scmp.ne.s32.totalorder %s121, %s124
    %p130 = scmp.eq.s32.totalorder %s10, 0
    %p131 = por %p129, %p130
    %p132 = scmp.ne.s32.totalorder %s121, %s124
    %p133 = scmp.eq.s32.totalorder %s15, 2
    %p134 = por %p132, %p133
    %p135 = scmp.ne.s32.totalorder %s124, %s125
    %p136 = scmp.eq.s32.totalorder %s15, 0
    %p137 = por %p135, %p136
    %p138 = scmp.ne.s32.totalorder %s124, %s125
    %p139 = scmp.eq.s32.totalorder %s16, 2
    %p140 = por %p138, %p139
    %p142 = scmp.ne.s32.totalorder %s125, %s141
    %p143 = scmp.eq.s32.totalorder %s16, 0
    %p144 = por %p142, %p143
    %s145 = ssub.s32 %s17, %s36
    %s146 = ssub.s32 %s18, %s32
    %s147 = sor.u32 %s145, %s146
    %p148 = scmp.eq.s32.totalorder %s147, 0
    %s150 = sadd.s32 %s149, 1
    %s151 = scalar_select %p148, %s149, %s150
    %p154 = pneg %p148
    %p155 = scmp.eq.s32.totalorder %s10, 2
    %p156 = por %p154, %p155
    %p157 = scmp.ne.s32.totalorder %s149, %s152
    %p158 = scmp.eq.s32.totalorder %s10, 0
    %p159 = por %p157, %p158
    %p160 = scmp.ne.s32.totalorder %s149, %s152
    %p161 = scmp.eq.s32.totalorder %s15, 2
    %p162 = por %p160, %p161
    %p163 = scmp.ne.s32.totalorder %s152, %s153
    %p164 = scmp.eq.s32.totalorder %s15, 0
    %p165 = por %p163, %p164
    %p166 = scmp.ne.s32.totalorder %s152, %s153
    %p167 = scmp.eq.s32.totalorder %s16, 2
    %p168 = por %p166, %p167
    %p170 = scmp.ne.s32.totalorder %s153, %s169
    %p171 = scmp.eq.s32.totalorder %s16, 0
    %p172 = por %p170, %p171
    %p173 = scmp.le.s32.totalorder 1, %s10
    %p174 = scmp.lt.s32.totalorder %s10, 4
    %p175 = pnand %p173, %p174
    %p176 = pneg %p175
    // Predicated region
    $region9: #{_lambda_.21} parent=5 // pred_check
      _
    $region10: #{_lambda_.21} parent=5 // pred_check_branch
      %178 = sbr.rel (%p175) target = $region12
    $region11: #{_lambda_.21} parent=5 // pred_region
      %s179 = ssub.s32 %s10, 1
      // Predicated region
      $region13: #{_lambda_.21} parent=11 // pred_check
        %p180 = pneg %p111
      $region14: #{_lambda_.21} parent=11 // pred_check_branch
        %182 = sbr.rel (%p180) target = $region16
      $region15: #{_lambda_.21} parent=11 // pred_region
        %s183 = smul.u32 2, %s21
        %p184 = scmp.lt.s32.totalorder %s183, 1
        %s185 = scalar_select %p184, %s183, 1
        %s186 = scalar_lea.vmem %s2, %s185
        %s187 = smul.u32 2, %s21
      $region16: #{_lambda_.21} parent=11 // pred_fallthru
        _
      // Predicated region
      $region17: #{_lambda_.21} parent=11 // pred_check
        %p188 = pneg %p137
      $region18: #{_lambda_.21} parent=11 // pred_check_branch
        %190 = sbr.rel (%p188) target = $region20
      $region19: #{_lambda_.21} parent=11 // pred_region
        %s191 = smul.u32 2, %s21
        %p192 = scmp.lt.s32.totalorder %s191, 1
        %s193 = scalar_select %p192, %s191, 1
        %s194 = scalar_lea.vmem %s3, %s193
        %s195 = smul.u32 2, %s21
      $region20: #{_lambda_.21} parent=11 // pred_fallthru
        _
    $region12: #{_lambda_.21} parent=5 // pred_fallthru
      _
    %p196 = scmp.lt.s32.totalorder %s10, 3
    // Predicated region
    $region21: #{_lambda_.21} parent=5 // pred_check
      %p197 = pneg %p196
    $region22: #{_lambda_.21} parent=5 // pred_check_branch
      %199 = sbr.rel (%p197) target = $region24
    $region23: #{_lambda_.21} parent=5 // pred_region
      // Predicated region
      $region25: #{_lambda_.21} parent=23 // pred_check
        %p200 = pneg %p51
      $region26: #{_lambda_.21} parent=23 // pred_check_branch
        %202 = sbr.rel (%p200) target = $region28
      $region27: #{_lambda_.21} parent=23 // pred_region
        %s203 = smul.u32 3, %s19
        %p204 = scmp.lt.s32.totalorder %s17, 0
        %s205 = scalar_select %p204, %s17, 0
        %p206 = scmp.lt.s32.totalorder %s203, 8
        %s207 = scalar_select %p206, %s203, 8
        %s208 = smul.addr %s205, 9
        %s209 = sadd.s32 %s207, %s208
        %s210 = smul.addr %s209, 4
        %s211 = scalar_lea.vmem %s0, %s210
        %s212 = smul.u32 3, %s19
      $region28: #{_lambda_.21} parent=23 // pred_fallthru
        _
      // Predicated region
      $region29: #{_lambda_.21} parent=23 // pred_check
        %p213 = pneg %p79
      $region30: #{_lambda_.21} parent=23 // pred_check_branch
        %215 = sbr.rel (%p213) target = $region32
      $region31: #{_lambda_.21} parent=23 // pred_region
        %s216 = smul.u32 48, %s19
        %s217 = smul.u32 2, %s18
        %p218 = scmp.lt.s32.totalorder %s216, 143
        %s219 = scalar_select %p218, %s216, 143
        %p220 = scmp.lt.s32.totalorder %s217, 1
        %s221 = scalar_select %p220, %s217, 1
        %s222 = smul.addr %s219, 2
        %s223 = sadd.s32 %s221, %s222
        %s224 = smul.addr %s223, 4
        %s225 = scalar_lea.vmem %s1, %s224
        %s226 = smul.u32 48, %s19
        %s227 = smul.u32 2, %s18
      $region32: #{_lambda_.21} parent=23 // pred_fallthru
        _
    $region24: #{_lambda_.21} parent=5 // pred_fallthru
      _
    %p228 = scmp.le.s32.totalorder 1, %s10
    %p229 = scmp.lt.s32.totalorder %s10, 4
    %p230 = pnand %p228, %p229
    %p231 = pneg %p230
    // Predicated region
    $region33: #{_lambda_.21} parent=5 // pred_check
      _
    $region34: #{_lambda_.21} parent=5 // pred_check_branch
      %233 = sbr.rel (%p230) target = $region36
    $region35: #{_lambda_.21} parent=5 // pred_region
      %s234 = ssub.s32 %s10, 1
      %s235 = smul.u32 3, %s22
      %p236 = scmp.lt.s32.totalorder %s20, 0
      %s237 = scalar_select %p236, %s20, 0
      %p238 = scmp.lt.s32.totalorder %s235, 8
      %s239 = scalar_select %p238, %s235, 8
      %s240 = smul.addr %s237, 9
      %s241 = sadd.s32 %s239, %s240
      %s242 = smul.addr %s241, 4
      %s243 = scalar_lea.vmem %s0, %s242
      %p244 = pneg %p57
      %p245 = pneg %p54
      %s246 = smul.u32 48, %s22
      %s247 = smul.u32 2, %s21
      %p248 = scmp.lt.s32.totalorder %s246, 143
      %s249 = scalar_select %p248, %s246, 143
      %p250 = scmp.lt.s32.totalorder %s247, 1
      %s251 = scalar_select %p250, %s247, 1
      %s252 = smul.addr %s249, 2
      %s253 = sadd.s32 %s251, %s252
      %s254 = smul.addr %s253, 4
      %s255 = scalar_lea.vmem %s1, %s254
      %p256 = pneg %p85
      %p257 = pneg %p82
      %s258 = smul.u32 2, %s21
      %p259 = scmp.lt.s32.totalorder %s258, 1
      %s260 = scalar_select %p259, %s258, 1
      %s261 = scalar_lea.vmem %s2, %s260
      %p262 = pneg %p111
      %p263 = pneg %p108
      %s264 = smul.u32 2, %s21
      %p265 = scmp.lt.s32.totalorder %s264, 1
      %s266 = scalar_select %p265, %s264, 1
      %s267 = scalar_lea.vmem %s3, %s266
      %p268 = pneg %p137
      %p269 = pneg %p134
      %p270 = pneg %p165
      %p271 = pneg %p162
      %s272 = smul.u32 2, %s21
      %p273 = scmp.lt.s32.totalorder %s20, 0
      %s274 = scalar_select %p273, %s20, 0
      %p275 = scmp.lt.s32.totalorder %s272, 1
      %s276 = scalar_select %p275, %s272, 1
      %s277 = smul.addr %s274, 2
      %s278 = sadd.s32 %s276, %s277
      %s279 = smul.addr %s278, 8
      %s280 = scalar_lea.vmem %s4, %s279
      %s281 = smul.u32 3, %s22
      %p282 = scmp.lt.s32.totalorder %s20, 0
      %s283 = scalar_select %p282, %s20, 0
      %p284 = scmp.lt.s32.totalorder %s281, 8
      %s285 = scalar_select %p284, %s281, 8
      %s286 = smul.addr %s283, 9
      %s287 = sadd.s32 %s285, %s286
      %s288 = smul.addr %s287, 4
      %s289 = scalar_lea.vmem %s0, %s288
      %s290 = smul.u32 3, %s22
      %s291 = smul.u32 48, %s22
      %s292 = smul.u32 2, %s21
      %p293 = scmp.lt.s32.totalorder %s291, 143
      %s294 = scalar_select %p293, %s291, 143
      %p295 = scmp.lt.s32.totalorder %s292, 1
      %s296 = scalar_select %p295, %s292, 1
      %s297 = smul.addr %s294, 2
      %s298 = sadd.s32 %s296, %s297
      %s299 = smul.addr %s298, 4
      %s300 = scalar_lea.vmem %s1, %s299
      %s301 = smul.u32 48, %s22
      %s302 = smul.u32 2, %s21
      %s303 = smul.u32 2, %s21
      %p304 = scmp.lt.s32.totalorder %s303, 1
      %s305 = scalar_select %p304, %s303, 1
      %s306 = scalar_lea.vmem %s2, %s305
      %s307 = smul.u32 2, %s21
      %s308 = smul.u32 2, %s21
      %p309 = scmp.lt.s32.totalorder %s308, 1
      %s310 = scalar_select %p309, %s308, 1
      %s311 = scalar_lea.vmem %s3, %s310
      %s312 = smul.u32 2, %s21
      %s313 = smul.u32 2, %s21
      %p314 = scmp.lt.s32.totalorder %s20, 0
      %s315 = scalar_select %p314, %s20, 0
      %p316 = scmp.lt.s32.totalorder %s313, 1
      %s317 = scalar_select %p316, %s313, 1
      %s318 = smul.addr %s315, 2
      %s319 = sadd.s32 %s317, %s318
      %s320 = smul.addr %s319, 8
      %s321 = scalar_lea.vmem %s4, %s320
      %s322 = smul.u32 2, %s21
      %p324 = scmp.eq.s32.totalorder %s22, 0
      // Predicated region
      $region37: #{_lambda_.21} parent=35 // pred_check
        %p325 = pneg %p324
      $region38: #{_lambda_.21} parent=35 // pred_check_branch
        %327 = sbr.rel (%p325) target = $region40
      $region39: #{_lambda_.21} parent=35 // pred_region
        %328 = vst [vmem:[#allocation2] sm:$0xff] 0.0
        %329 = vst [vmem:[#allocation2 + $0x8] sm:$0xff] 0.0
      $region40: #{_lambda_.21} parent=35 // pred_fallthru
        _
      %v330 = vld [vmem:[#allocation2] sm:$0xff]
      %v331 = vld [vmem:[#allocation2 + $0x8] sm:$0xff]
      %v332 = vld [vmem:[%s289] sm:$0xff]
      %v333 = vld [vmem:[%s289 + $0x8] sm:$0xf]
      %v334 = vld [vmem:[%s300] sm:$0xff]
      %v335 = vld [vmem:[%s300 + $0x8] sm:$0xff]
      %v336 = vld [vmem:[%s300 + $0x10] sm:$0xff]
      %v337 = vld [vmem:[%s300 + $0x18] sm:$0xff]
      %v338 = vld [vmem:[%s300 + $0x20] sm:$0xff]
      %v339 = vld [vmem:[%s300 + $0x28] sm:$0xff]
      %v340 = vld [vmem:[%s300 + $0x30] sm:$0xff]
      %v341 = vld [vmem:[%s300 + $0x38] sm:$0xff]
      %v342 = vld [vmem:[%s300 + $0x40] sm:$0xff]
      %v343 = vld [vmem:[%s300 + $0x48] sm:$0xff]
      %v344 = vld [vmem:[%s300 + $0x50] sm:$0xff]
      %v345 = vld [vmem:[%s300 + $0x58] sm:$0xff]
      %v346 = vld [vmem:[%s300 + $0x60] sm:$0xff]
      %v347 = vld [vmem:[%s300 + $0x68] sm:$0xff]
      %v348 = vld [vmem:[%s300 + $0x70] sm:$0xff]
      %v349 = vld [vmem:[%s300 + $0x78] sm:$0xff]
      %v350 = vld [vmem:[%s300 + $0x80] sm:$0xff]
      %v351 = vld [vmem:[%s300 + $0x88] sm:$0xff]
      %v352 = vld [vmem:[%s300 + $0x90] sm:$0xff]
      %v353 = vld [vmem:[%s300 + $0x98] sm:$0xff]
      %v354 = vld [vmem:[%s300 + $0xa0] sm:$0xff]
      %v355 = vld [vmem:[%s300 + $0xa8] sm:$0xff]
      %v356 = vld [vmem:[%s300 + $0xb0] sm:$0xff]
      %v357 = vld [vmem:[%s300 + $0xb8] sm:$0xff]
      %v358 = vld [vmem:[%s300 + $0xc0] sm:$0xff]
      %v359 = vld [vmem:[%s300 + $0xc8] sm:$0xff]
      %v360 = vld [vmem:[%s300 + $0xd0] sm:$0xff]
      %v361 = vld [vmem:[%s300 + $0xd8] sm:$0xff]
      %v362 = vld [vmem:[%s300 + $0xe0] sm:$0xff]
      %v363 = vld [vmem:[%s300 + $0xe8] sm:$0xff]
      %v364 = vld [vmem:[%s300 + $0xf0] sm:$0xff]
      %v365 = vld [vmem:[%s300 + $0xf8] sm:$0xff]
      %v366 = vld [vmem:[%s300 + $0x100] sm:$0xff]
      %v367 = vld [vmem:[%s300 + $0x108] sm:$0xff]
      %v368 = vld [vmem:[%s300 + $0x110] sm:$0xff]
      %v369 = vld [vmem:[%s300 + $0x118] sm:$0xff]
      %v370 = vld [vmem:[%s300 + $0x120] sm:$0xff]
      %v371 = vld [vmem:[%s300 + $0x128] sm:$0xff]
      %v372 = vld [vmem:[%s300 + $0x130] sm:$0xff]
      %v373 = vld [vmem:[%s300 + $0x138] sm:$0xff]
      %v374 = vld [vmem:[%s300 + $0x140] sm:$0xff]
      %v375 = vld [vmem:[%s300 + $0x148] sm:$0xff]
      %v376 = vld [vmem:[%s300 + $0x150] sm:$0xff]
      %v377 = vld [vmem:[%s300 + $0x158] sm:$0xff]
      %v378 = vld [vmem:[%s300 + $0x160] sm:$0xff]
      %v379 = vld [vmem:[%s300 + $0x168] sm:$0xff]
      %v380 = vld [vmem:[%s300 + $0x170] sm:$0xff]
      %v381 = vld [vmem:[%s300 + $0x178] sm:$0xff]
      %v384 = vunpack.c.l.b16 %v332
      %v385 = vunpack.c.h.b16 %v332
      %v386 = vunpack.c.l.b16 %v333
      %v387 = vpack.c.b16 %v384, %v384
      %v388 = vpack.c.b16 %v385, %v385
      %v389 = vpack.c.b16 %v386, %v386
      %v441 = vunpack.c.l.b16 %v334
      %v442 = vunpack.c.h.b16 %v334
      %v443 = vunpack.c.l.b16 %v335
      %v444 = vunpack.c.h.b16 %v335
      %v445 = vunpack.c.l.b16 %v336
      %v446 = vunpack.c.h.b16 %v336
      %v447 = vunpack.c.l.b16 %v337
      %v448 = vunpack.c.h.b16 %v337
      %v449 = vunpack.c.l.b16 %v338
      %v450 = vunpack.c.h.b16 %v338
      %v451 = vunpack.c.l.b16 %v339
      %v452 = vunpack.c.h.b16 %v339
      %v453 = vunpack.c.l.b16 %v340
      %v454 = vunpack.c.h.b16 %v340
      %v455 = vunpack.c.l.b16 %v341
      %v456 = vunpack.c.h.b16 %v341
      %v457 = vunpack.c.l.b16 %v342
      %v458 = vunpack.c.h.b16 %v342
      %v459 = vunpack.c.l.b16 %v343
      %v460 = vunpack.c.h.b16 %v343
      %v461 = vunpack.c.l.b16 %v344
      %v462 = vunpack.c.h.b16 %v344
      %v463 = vunpack.c.l.b16 %v345
      %v464 = vunpack.c.h.b16 %v345
      %v465 = vunpack.c.l.b16 %v346
      %v466 = vunpack.c.h.b16 %v346
      %v467 = vunpack.c.l.b16 %v347
      %v468 = vunpack.c.h.b16 %v347
      %v469 = vunpack.c.l.b16 %v348
      %v470 = vunpack.c.h.b16 %v348
      %v471 = vunpack.c.l.b16 %v349
      %v472 = vunpack.c.h.b16 %v349
      %v473 = vunpack.c.l.b16 %v350
      %v474 = vunpack.c.h.b16 %v350
      %v475 = vunpack.c.l.b16 %v351
      %v476 = vunpack.c.h.b16 %v351
      %v477 = vunpack.c.l.b16 %v352
      %v478 = vunpack.c.h.b16 %v352
      %v479 = vunpack.c.l.b16 %v353
      %v480 = vunpack.c.h.b16 %v353
      %v481 = vunpack.c.l.b16 %v354
      %v482 = vunpack.c.h.b16 %v354
      %v483 = vunpack.c.l.b16 %v355
      %v484 = vunpack.c.h.b16 %v355
      %v485 = vunpack.c.l.b16 %v356
      %v486 = vunpack.c.h.b16 %v356
      %v487 = vunpack.c.l.b16 %v357
      %v488 = vunpack.c.h.b16 %v357
      %v489 = vunpack.c.l.b16 %v358
      %v490 = vunpack.c.h.b16 %v358
      %v491 = vunpack.c.l.b16 %v359
      %v492 = vunpack.c.h.b16 %v359
      %v493 = vunpack.c.l.b16 %v360
      %v494 = vunpack.c.h.b16 %v360
      %v495 = vunpack.c.l.b16 %v361
      %v496 = vunpack.c.h.b16 %v361
      %v497 = vunpack.c.l.b16 %v362
      %v498 = vunpack.c.h.b16 %v362
      %v499 = vunpack.c.l.b16 %v363
      %v500 = vunpack.c.h.b16 %v363
      %v501 = vunpack.c.l.b16 %v364
      %v502 = vunpack.c.h.b16 %v364
      %v503 = vunpack.c.l.b16 %v365
      %v504 = vunpack.c.h.b16 %v365
      %v505 = vunpack.c.l.b16 %v366
      %v506 = vunpack.c.h.b16 %v366
      %v507 = vunpack.c.l.b16 %v367
      %v508 = vunpack.c.h.b16 %v367
      %v509 = vunpack.c.l.b16 %v368
      %v510 = vunpack.c.h.b16 %v368
      %v511 = vunpack.c.l.b16 %v369
      %v512 = vunpack.c.h.b16 %v369
      %v513 = vunpack.c.l.b16 %v370
      %v514 = vunpack.c.h.b16 %v370
      %v515 = vunpack.c.l.b16 %v371
      %v516 = vunpack.c.h.b16 %v371
      %v517 = vunpack.c.l.b16 %v372
      %v518 = vunpack.c.h.b16 %v372
      %v519 = vunpack.c.l.b16 %v373
      %v520 = vunpack.c.h.b16 %v373
      %v521 = vunpack.c.l.b16 %v374
      %v522 = vunpack.c.h.b16 %v374
      %v523 = vunpack.c.l.b16 %v375
      %v524 = vunpack.c.h.b16 %v375
      %v525 = vunpack.c.l.b16 %v376
      %v526 = vunpack.c.h.b16 %v376
      %v527 = vunpack.c.l.b16 %v377
      %v528 = vunpack.c.h.b16 %v377
      %v529 = vunpack.c.l.b16 %v378
      %v530 = vunpack.c.h.b16 %v378
      %v531 = vunpack.c.l.b16 %v379
      %v532 = vunpack.c.h.b16 %v379
      %v533 = vunpack.c.l.b16 %v380
      %v534 = vunpack.c.h.b16 %v380
      %v535 = vunpack.c.l.b16 %v381
      %v536 = vunpack.c.h.b16 %v381
      %v537 = vpack.c.b16 %v443, %v441
      %v538 = vpack.c.b16 %v444, %v442
      %v539 = vpack.c.b16 %v447, %v445
      %v540 = vpack.c.b16 %v448, %v446
      %v541 = vpack.c.b16 %v451, %v449
      %v542 = vpack.c.b16 %v452, %v450
      %v543 = vpack.c.b16 %v455, %v453
      %v544 = vpack.c.b16 %v456, %v454
      %v545 = vpack.c.b16 %v459, %v457
      %v546 = vpack.c.b16 %v460, %v458
      %v547 = vpack.c.b16 %v463, %v461
      %v548 = vpack.c.b16 %v464, %v462
      %v549 = vpack.c.b16 %v467, %v465
      %v550 = vpack.c.b16 %v468, %v466
      %v551 = vpack.c.b16 %v471, %v469
      %v552 = vpack.c.b16 %v472, %v470
      %v553 = vpack.c.b16 %v475, %v473
      %v554 = vpack.c.b16 %v476, %v474
      %v555 = vpack.c.b16 %v479, %v477
      %v556 = vpack.c.b16 %v480, %v478
      %v557 = vpack.c.b16 %v483, %v481
      %v558 = vpack.c.b16 %v484, %v482
      %v559 = vpack.c.b16 %v487, %v485
      %v560 = vpack.c.b16 %v488, %v486
      %v561 = vpack.c.b16 %v491, %v489
      %v562 = vpack.c.b16 %v492, %v490
      %v563 = vpack.c.b16 %v495, %v493
      %v564 = vpack.c.b16 %v496, %v494
      %v565 = vpack.c.b16 %v499, %v497
      %v566 = vpack.c.b16 %v500, %v498
      %v567 = vpack.c.b16 %v503, %v501
      %v568 = vpack.c.b16 %v504, %v502
      %v569 = vpack.c.b16 %v507, %v505
      %v570 = vpack.c.b16 %v508, %v506
      %v571 = vpack.c.b16 %v511, %v509
      %v572 = vpack.c.b16 %v512, %v510
      %v573 = vpack.c.b16 %v515, %v513
      %v574 = vpack.c.b16 %v516, %v514
      %v575 = vpack.c.b16 %v519, %v517
      %v576 = vpack.c.b16 %v520, %v518
      %v577 = vpack.c.b16 %v523, %v521
      %v578 = vpack.c.b16 %v524, %v522
      %v579 = vpack.c.b16 %v527, %v525
      %v580 = vpack.c.b16 %v528, %v526
      %v581 = vpack.c.b16 %v531, %v529
      %v582 = vpack.c.b16 %v532, %v530
      %v583 = vpack.c.b16 %v535, %v533
      %v584 = vpack.c.b16 %v536, %v534
      %633 = vmatprep.subr.bf16.mxu0 %v538
      %634 = vmatpush1.bf16.msra.mxu0 %v537
      %635 = vmatprep.subr.bf16.mxu0 %v540
      %636 = vmatpush1.bf16.msra.mxu0 %v539
      %637 = vmatprep.subr.bf16.mxu0 %v542
      %638 = vmatpush1.bf16.msra.mxu0 %v541
      %639 = vmatprep.subr.bf16.mxu0 %v544
      %640 = vmatpush1.bf16.msra.mxu0 %v543
      %641 = vmatprep.subr.bf16.mxu0 %v546
      %642 = vmatpush1.bf16.msra.mxu0 %v545
      %643 = vmatprep.subr.bf16.mxu0 %v548
      %644 = vmatpush1.bf16.msra.mxu0 %v547
      %645 = vmatprep.subr.bf16.mxu0 %v550
      %646 = vmatpush1.bf16.msra.mxu0 %v549
      %647 = vmatprep.subr.bf16.mxu0 %v552
      %648 = vmatpush1.bf16.msra.mxu0 %v551
      %649 = vmatprep.subr.bf16.mxu0 %v554
      %650 = vmatpush1.bf16.msra.mxu0 %v553
      %651 = vmatprep.subr.bf16.mxu0 %v556
      %652 = vmatpush1.bf16.msra.mxu0 %v555
      %653 = vmatprep.subr.bf16.mxu0 %v558
      %654 = vmatpush1.bf16.msra.mxu0 %v557
      %655 = vmatprep.subr.bf16.mxu0 %v560
      %656 = vmatpush1.bf16.msra.mxu0 %v559
      %657 = vmatprep.subr.bf16.mxu0 %v562
      %658 = vmatpush1.bf16.msra.mxu0 %v561
      %659 = vmatprep.subr.bf16.mxu0 %v564
      %660 = vmatpush1.bf16.msra.mxu0 %v563
      %661 = vmatprep.subr.bf16.mxu0 %v566
      %662 = vmatpush1.bf16.msra.mxu0 %v565
      %663 = vmatprep.subr.bf16.mxu0 %v568
      %664 = vmatpush1.bf16.msra.mxu0 %v567
      %665 = vmatprep.mubr.bf16.mxu0 %v388
      %666 = vmatmul.mubr.bf16.gmra.mrb[0].mxu0 %v387
      %v667 = vpop.f32.mrb[0].mxu0
      %v668 = vadd.f32 0.0, %v667
      %v669 = vpop.f32.mrb[0].mxu0
      %v670 = vadd.f32 0.0, %v669
      %v671 = vpop.f32.mrb[0].mxu0
      %v672 = vpop.f32.mrb[0].mxu0
      %673 = vdwg.mxu0
      %674 = vmatprep.subr.bf16.mxu0 %v570
      %675 = vmatpush1.bf16.msra.mxu0 %v569
      %676 = vmatprep.subr.bf16.mxu0 %v572
      %677 = vmatpush1.bf16.msra.mxu0 %v571
      %678 = vmatprep.subr.bf16.mxu0 %v574
      %679 = vmatpush1.bf16.msra.mxu0 %v573
      %680 = vmatprep.subr.bf16.mxu0 %v576
      %681 = vmatpush1.bf16.msra.mxu0 %v575
      %682 = vmatprep.subr.bf16.mxu0 %v578
      %683 = vmatpush1.bf16.msra.mxu0 %v577
      %684 = vmatprep.subr.bf16.mxu0 %v580
      %685 = vmatpush1.bf16.msra.mxu0 %v579
      %686 = vmatprep.subr.bf16.mxu0 %v582
      %687 = vmatpush1.bf16.msra.mxu0 %v581
      %688 = vmatprep.subr.bf16.mxu0 %v584
      %689 = vmatpush1.bf16.msra.mxu0 %v583
      %690 = vmatprep.subr.bf16.mxu0 0
      %691 = vmatpush1.bf16.msra.mxu0 0
      %692 = vmatprep.subr.bf16.mxu0 0
      %693 = vmatpush1.bf16.msra.mxu0 0
      %694 = vmatprep.subr.bf16.mxu0 0
      %695 = vmatpush1.bf16.msra.mxu0 0
      %696 = vmatprep.subr.bf16.mxu0 0
      %697 = vmatpush1.bf16.msra.mxu0 0
      %698 = vmatprep.subr.bf16.mxu0 0
      %699 = vmatpush1.bf16.msra.mxu0 0
      %700 = vmatprep.subr.bf16.mxu0 0
      %701 = vmatpush1.bf16.msra.mxu0 0
      %702 = vmatprep.subr.bf16.mxu0 0
      %703 = vmatpush1.bf16.msra.mxu0 0
      %704 = vmatprep.subr.bf16.mxu0 0
      %705 = vmatpush1.bf16.msra.mxu0 0
      %706 = vmatprep.mubr.bf16.mxu0 0
      %707 = vmatmul.mubr.bf16.gmra.mrb[0].mxu0 %v389
      %v708 = vpop.f32.mrb[0].mxu0
      %v709 = vadd.f32 %v668, %v708
      %v710 = vpop.f32.mrb[0].mxu0
      %v711 = vadd.f32 %v670, %v710
      %v712 = vpop.f32.mrb[0].mxu0
      %v713 = vpop.f32.mrb[0].mxu0
      %714 = vdwg.mxu0
      %v715 = vadd.f32 %v330, %v709
      %v716 = vadd.f32 %v331, %v711
      %717 = vst [vmem:[#allocation2] sm:$0xff] %v715
      %718 = vst [vmem:[#allocation2 + $0x8] sm:$0xff] %v716
      %p719 = scmp.eq.s32.totalorder %s22, 2
      // Predicated region
      $region41: #{_lambda_.21} parent=35 // pred_check
        %p720 = pneg %p719
      $region42: #{_lambda_.21} parent=35 // pred_check_branch
        %722 = sbr.rel (%p720) target = $region44
      $region43: #{_lambda_.21} parent=35 // pred_region
        %v723 = vld [vmem:[#allocation2] sm:$0xff]
        %v724 = vld [vmem:[#allocation2 + $0x8] sm:$0xff]
        %v725 = vld [vmem:[%s306] sm:$0x3]
        %v727 = vlaneseq
        %v728 = vshrl.u32 %v727, 7
        %v729 = vsub.s32 0, %v728
        %v730 = vrot.slane %v725, %v729
        %v731 = vlaneseq
        %v732 = vshrl.u32 %v731, 7
        %v733 = vsub.s32 1, %v732
        %v734 = vrot.slane %v725, %v733
        %v737 = vmul.f32 %v723, %v730
        %v738 = vmul.f32 %v724, %v734
        %v739 = vld [vmem:[%s311] sm:$0x3]
        %v741 = vlaneseq
        %v742 = vshrl.u32 %v741, 7
        %v743 = vsub.s32 0, %v742
        %v744 = vrot.slane %v739, %v743
        %v745 = vlaneseq
        %v746 = vshrl.u32 %v745, 7
        %v747 = vsub.s32 1, %v746
        %v748 = vrot.slane %v739, %v747
        %v751 = vadd.f32 %v737, %v744
        %v752 = vadd.f32 %v738, %v748
        %v753 = vmax.f32 %v751, 0.0
        %v754 = vmax.f32 %v752, 0.0
        %755 = vst [vmem:[%s321] sm:$0xff] %v753
        %756 = vst [vmem:[%s321 + $0x8] sm:$0xff] %v754
      $region44: #{_lambda_.21} parent=35 // pred_fallthru
        _
      %s757 = smul.u32 2, %s21
      %p758 = scmp.lt.s32.totalorder %s20, 0
      %s759 = scalar_select %p758, %s20, 0
      %p760 = scmp.lt.s32.totalorder %s757, 1
      %s761 = scalar_select %p760, %s757, 1
      %s762 = smul.addr %s759, 2
      %s763 = sadd.s32 %s761, %s762
      %s764 = smul.addr %s763, 8
      %s765 = scalar_lea.vmem %s4, %s764
      // Predicated region
      $region45: #{_lambda_.21} parent=35 // pred_check
        %p766 = pneg %p162
      $region46: #{_lambda_.21} parent=35 // pred_check_branch
        %768 = sbr.rel (%p766) target = $region48
      $region47: #{_lambda_.21} parent=35 // pred_region
        %s769 = smul.u32 2, %s21
      $region48: #{_lambda_.21} parent=35 // pred_fallthru
        _
      // Predicated region
      $region49: #{_lambda_.21} parent=35 // pred_check
        %p770 = pneg %p162
      $region50: #{_lambda_.21} parent=35 // pred_check_branch
        %772 = sbr.rel (%p770) target = $region52
      $region51: #{_lambda_.21} parent=35 // pred_region
        %s773 = smul.u32 2, %s21
        %p774 = scmp.lt.s32.totalorder %s20, 0
        %s775 = scalar_select %p774, %s20, 0
        %p776 = scmp.lt.s32.totalorder %s773, 1
        %s777 = scalar_select %p776, %s773, 1
        %s778 = smul.addr %s775, 2
        %s779 = sadd.s32 %s777, %s778
        %s780 = smul.addr %s779, 8
        %s781 = scalar_lea.vmem %s4, %s780
      $region52: #{_lambda_.21} parent=35 // pred_fallthru
        _
    $region36: #{_lambda_.21} parent=5 // pred_fallthru
      _
    %p782 = scmp.le.s32.totalorder 2, %s10
    // Predicated region
    $region53: #{_lambda_.21} parent=5 // pred_check
      %p783 = pneg %p782
    $region54: #{_lambda_.21} parent=5 // pred_check_branch
      %785 = sbr.rel (%p783) target = $region56
    $region55: #{_lambda_.21} parent=5 // pred_region
      %s786 = ssub.s32 %s10, 2
    $region56: #{_lambda_.21} parent=5 // pred_fallthru
      _
  $region6: #{_lambda_.21} parent=0 // loop_footer
    %s14 = sadd.s32 1, %s10
  $region7: #{_lambda_.21} parent=0 // loop_footer_branch
    %9 = sbr.rel target = $region3
  $region8: #{_lambda_.21} parent=0 // loop_exit
    _

// kernel: _lambda_.23
$region0: #{_lambda_.23}
  #allocation0 [shape = 'u32[]', space=smem, size = 0x4, offset = 0x4, fixed_abs, tag = 'smem constant byte address 0x4 - core index']
  #allocation1 [shape = 'u32[144,128]{1,0:T(1,128)}', space=vmem, size = 0x12000, scoped, tag = 'internal scratch']
  #allocation2 [shape = 'f32[8,256]{1,0:T(8,128)}', space=vmem, size = 0x2000, scoped, tag = 'scratch operand']
  %s0 = inlined_call_operand.vmem [shape: bf16[8,256], index: 0, kind: input, shape index: {}]
  %s1 = inlined_call_operand.vmem [shape: bf16[256,512], index: 1, kind: input, shape index: {}]
  %s2 = inlined_call_operand.vmem [shape: f32[1,512], index: 2, kind: input, shape index: {}]
  %s3 = inlined_call_operand.vmem [shape: f32[1,512], index: 3, kind: input, shape index: {}]
  %s4 = inlined_call_operand.vmem [shape: f32[8,512], index: 4, kind: output, shape index: {}]
  %s5 = sld [smem:[#allocation0]]
  $region95: #{_lambda_.23} parent=0
    _
  %s7 = ssub.s32 1, %s5
  %s8 = scalar_select 0, %s7, %s5
  $region1: #{_lambda_.23} parent=0
    #allocation3 [shape = 'u8[262144]{0}', space=vmem, size = 0x40000, scoped, tag = 'input window, operand 1']
    loop: start=0, step=1, limit=4
    $region2: #{_lambda_.23} parent=1 // loop_pre_header
      _
    $region3: #{_lambda_.23} parent=1 // loop_header
      %s10 = sphi 0, %s14
      %p11 = scmp.ge.s32.totalorder %s10, 4
      %s17 = sphi 0, %s36
      %s18 = sphi 0, %s32
      %s19 = sphi 0, %s28
      %s20 = sphi 0, %s17
      %s21 = sphi 0, %s18
      %s22 = sphi 0, %s19
      %s23 = sphi 0, %s20
      %s24 = sphi 0, %s21
      %s25 = sphi 0, %s22
      %s41 = sphi 0, %s43
      %s44 = sphi 0, %s41
      %s45 = sphi 0, %s44
      %s61 = sphi 0, %s45
      %s69 = sphi 0, %s71
      %s72 = sphi 0, %s69
      %s73 = sphi 0, %s72
      %s89 = sphi 0, %s73
      %s95 = sphi 0, %s97
      %s98 = sphi 0, %s95
      %s99 = sphi 0, %s98
      %s115 = sphi 0, %s99
      %s121 = sphi 0, %s123
      %s124 = sphi 0, %s121
      %s125 = sphi 0, %s124
      %s141 = sphi 0, %s125
      %s149 = sphi 0, %s151
      %s152 = sphi 0, %s149
      %s153 = sphi 0, %s152
      %s169 = sphi 0, %s153
    $region4: #{_lambda_.23} parent=1 // loop_header_branch
      %13 = sbr.rel (%p11) target = $region8
    $region5: #{_lambda_.23} parent=1 // loop_body
      %s15 = ssub.s32 %s10, 1
      %s16 = ssub.s32 %s10, 2
      %s26 = sadd.s32 1, %s19
      %p27 = scmp.ge.s32.totalorder %s26, 1
      %s28 = scalar_select %p27, 0, %s26
      %s29 = sadd.s32 1, %s18
      %s30 = scalar_select %p27, %s29, %s18
      %p31 = scmp.ge.s32.totalorder %s30, 2
      %s32 = scalar_select %p31, 0, %s30
      %s33 = sadd.s32 1, %s17
      %s34 = scalar_select %p31, %s33, %s17
      %p35 = scmp.ge.s32.totalorder %s34, 1
      %s36 = scalar_select %p35, 0, %s34
      %s37 = ssub.s32 %s17, %s36
      %s38 = ssub.s32 %s19, %s28
      %s39 = sor.u32 %s37, %s38
      %p40 = scmp.eq.s32.totalorder %s39, 0
      %s42 = sadd.s32 %s41, 1
      %s43 = scalar_select %p40, %s41, %s42
      %p46 = pneg %p40
      %p47 = scmp.eq.s32.totalorder %s10, 1
      %p48 = por %p46, %p47
      %p49 = scmp.ne.s32.totalorder %s41, %s44
      %p50 = scmp.eq.s32.totalorder %s10, 0
      %p51 = por %p49, %p50
      %p52 = scmp.ne.s32.totalorder %s41, %s44
      %p53 = scmp.eq.s32.totalorder %s15, 1
      %p54 = por %p52, %p53
      %p55 = scmp.ne.s32.totalorder %s44, %s45
      %p56 = scmp.eq.s32.totalorder %s15, 0
      %p57 = por %p55, %p56
      %p58 = scmp.ne.s32.totalorder %s44, %s45
      %p59 = scmp.eq.s32.totalorder %s16, 1
      %p60 = por %p58, %p59
      %p62 = scmp.ne.s32.totalorder %s45, %s61
      %p63 = scmp.eq.s32.totalorder %s16, 0
      %p64 = por %p62, %p63
      %s65 = ssub.s32 %s19, %s28
      %s66 = ssub.s32 %s18, %s32
      %s67 = sor.u32 %s65, %s66
      %p68 = scmp.eq.s32.totalorder %s67, 0
      %s70 = sadd.s32 %s69, 1
      %s71 = scalar_select %p68, %s69, %s70
      %p74 = pneg %p68
      %p75 = scmp.eq.s32.totalorder %s10, 1
      %p76 = por %p74, %p75
      %p77 = scmp.ne.s32.totalorder %s69, %s72
      %p78 = scmp.eq.s32.totalorder %s10, 0
      %p79 = por %p77, %p78
      %p80 = scmp.ne.s32.totalorder %s69, %s72
      %p81 = scmp.eq.s32.totalorder %s15, 1
      %p82 = por %p80, %p81
      %p83 = scmp.ne.s32.totalorder %s72, %s73
      %p84 = scmp.eq.s32.totalorder %s15, 0
      %p85 = por %p83, %p84
      %p86 = scmp.ne.s32.totalorder %s72, %s73
      %p87 = scmp.eq.s32.totalorder %s16, 1
      %p88 = por %p86, %p87
      %p90 = scmp.ne.s32.totalorder %s73, %s89
      %p91 = scmp.eq.s32.totalorder %s16, 0
      %p92 = por %p90, %p91
      %s93 = ssub.s32 %s18, %s32
      %p94 = scmp.eq.s32.totalorder %s93, 0
      %s96 = sadd.s32 %s95, 1
      %s97 = scalar_select %p94, %s95, %s96
      %p100 = pneg %p94
      %p101 = scmp.eq.s32.totalorder %s10, 1
      %p102 = por %p100, %p101
      %p103 = scmp.ne.s32.totalorder %s95, %s98
      %p104 = scmp.eq.s32.totalorder %s10, 0
      %p105 = por %p103, %p104
      %p106 = scmp.ne.s32.totalorder %s95, %s98
      %p107 = scmp.eq.s32.totalorder %s15, 1
      %p108 = por %p106, %p107
      %p109 = scmp.ne.s32.totalorder %s98, %s99
      %p110 = scmp.eq.s32.totalorder %s15, 0
      %p111 = por %p109, %p110
      %p112 = scmp.ne.s32.totalorder %s98, %s99
      %p113 = scmp.eq.s32.totalorder %s16, 1
      %p114 = por %p112, %p113
      %p116 = scmp.ne.s32.totalorder %s99, %s115
      %p117 = scmp.eq.s32.totalorder %s16, 0
      %p118 = por %p116, %p117
      %s119 = ssub.s32 %s18, %s32
      %p120 = scmp.eq.s32.totalorder %s119, 0
      %s122 = sadd.s32 %s121, 1
      %s123 = scalar_select %p120, %s121, %s122
      %p126 = pneg %p120
      %p127 = scmp.eq.s32.totalorder %s10, 1
      %p128 = por %p126, %p127
      %p129 = scmp.ne.s32.totalorder %s121, %s124
      %p130 = scmp.eq.s32.totalorder %s10, 0
      %p131 = por %p129, %p130
      %p132 = scmp.ne.s32.totalorder %s121, %s124
      %p133 = scmp.eq.s32.totalorder %s15, 1
      %p134 = por %p132, %p133
      %p135 = scmp.ne.s32.totalorder %s124, %s125
      %p136 = scmp.eq.s32.totalorder %s15, 0
      %p137 = por %p135, %p136
      %p138 = scmp.ne.s32.totalorder %s124, %s125
      %p139 = scmp.eq.s32.totalorder %s16, 1
      %p140 = por %p138, %p139
      %p142 = scmp.ne.s32.totalorder %s125, %s141
      %p143 = scmp.eq.s32.totalorder %s16, 0
      %p144 = por %p142, %p143
      %s145 = ssub.s32 %s17, %s36
      %s146 = ssub.s32 %s18, %s32
      %s147 = sor.u32 %s145, %s146
      %p148 = scmp.eq.s32.totalorder %s147, 0
      %s150 = sadd.s32 %s149, 1
      %s151 = scalar_select %p148, %s149, %s150
      %p154 = pneg %p148
      %p155 = scmp.eq.s32.totalorder %s10, 1
      %p156 = por %p154, %p155
      %p157 = scmp.ne.s32.totalorder %s149, %s152
      %p158 = scmp.eq.s32.totalorder %s10, 0
      %p159 = por %p157, %p158
      %p160 = scmp.ne.s32.totalorder %s149, %s152
      %p161 = scmp.eq.s32.totalorder %s15, 1
      %p162 = por %p160, %p161
      %p163 = scmp.ne.s32.totalorder %s152, %s153
      %p164 = scmp.eq.s32.totalorder %s15, 0
      %p165 = por %p163, %p164
      %p166 = scmp.ne.s32.totalorder %s152, %s153
      %p167 = scmp.eq.s32.totalorder %s16, 1
      %p168 = por %p166, %p167
      %p170 = scmp.ne.s32.totalorder %s153, %s169
      %p171 = scmp.eq.s32.totalorder %s16, 0
      %p172 = por %p170, %p171
      %p173 = scmp.le.s32.totalorder 1, %s10
      %p174 = scmp.lt.s32.totalorder %s10, 3
      %p175 = pnand %p173, %p174
      %p176 = pneg %p175
      // Predicated region
      $region9: #{_lambda_.23} parent=5 // pred_check
        _
      $region10: #{_lambda_.23} parent=5 // pred_check_branch
        %178 = sbr.rel (%p175) target = $region12
      $region11: #{_lambda_.23} parent=5 // pred_region
        %s179 = ssub.s32 %s10, 1
        // Predicated region
        $region13: #{_lambda_.23} parent=11 // pred_check
          %p180 = pneg %p57
        $region14: #{_lambda_.23} parent=11 // pred_check_branch
          %182 = sbr.rel (%p180) target = $region16
        $region15: #{_lambda_.23} parent=11 // pred_region
          %s183 = smul.u32 2, %s22
          %p184 = scmp.lt.s32.totalorder %s20, 0
          %s185 = scalar_select %p184, %s20, 0
          %p186 = scmp.lt.s32.totalorder %s183, 1
          %s187 = scalar_select %p186, %s183, 1
          %s188 = smul.addr %s185, 2
          %s189 = sadd.s32 %s187, %s188
          %s190 = smul.addr %s189, 4
          %s191 = scalar_lea.vmem %s0, %s190
          %s192 = smul.u32 2, %s22
        $region16: #{_lambda_.23} parent=11 // pred_fallthru
          _
      $region12: #{_lambda_.23} parent=5 // pred_fallthru
        _
      %p193 = scmp.lt.s32.totalorder %s10, 2
      // Predicated region
      $region17: #{_lambda_.23} parent=5 // pred_check
        %p194 = pneg %p193
      $region18: #{_lambda_.23} parent=5 // pred_check_branch
        %196 = sbr.rel (%p194) target = $region20
      $region19: #{_lambda_.23} parent=5 // pred_region
        // Predicated region
        $region21: #{_lambda_.23} parent=19 // pred_check
          %p197 = pneg %p79
        $region22: #{_lambda_.23} parent=19 // pred_check_branch
          %199 = sbr.rel (%p197) target = $region24
        $region23: #{_lambda_.23} parent=19 // pred_region
          %s200 = sand.u32 %s69, 1
          %s201 = sand.u32 %s69, 1
          %s202 = smul.addr %s201, 256
          %s203 = scalar_lea.vmem [#allocation3], %s202
          %s204 = smul.u32 32, %s19
          %s205 = smul.u32 2, %s18
          %s206 = smul.addr %s204, 4
          %s207 = sadd.s32 %s205, %s206
          %s208 = smul.addr %s207, 4
          %s209 = scalar_lea.vmem %s1, %s208
          // Predicated region
          $region25: #{_lambda_.23} parent=23 // pred_check
            _
          $region26: #{_lambda_.23} parent=23 // pred_check_branch
            %211 = sbr.rel (0) target = $region28
          $region27: #{_lambda_.23} parent=23 // pred_region
            // Predicated region
            $region29: #{_lambda_.23} parent=27 // pred_check
              _
            $region30: #{_lambda_.23} parent=27 // pred_check_branch
              %213 = sbr.rel (0) target = $region32
            $region31: #{_lambda_.23} parent=27 // pred_region
              // Predicated region
              $region44: #{_lambda_.23} parent=31 // pred_check
                _
              $region45: #{_lambda_.23} parent=31 // pred_check_branch
                %290 = sbr.rel (0) target = $region47
              $region46: #{_lambda_.23} parent=31 // pred_region
                loop: start=0, step=1, limit=1
                $region48: #{_lambda_.23} parent=46 // loop_pre_header
                  _
                $region49: #{_lambda_.23} parent=46 // loop_header
                  %s292 = sphi 0, %s296
                  %p293 = scmp.ge.s32.totalorder %s292, 1
                  %s297 = sphi %s209, %s209
                  %s298 = sphi %s203, %s203
                $region50: #{_lambda_.23} parent=46 // loop_header_branch
                  %295 = sbr.rel (%p293) target = $region54
                $region51: #{_lambda_.23} parent=46 // loop_body
                  %v299 = vld [vmem:[%s297] sm:$0xff]
                  %300 = vst [vmem:[%s298] sm:$0xff] %v299
                  %v301 = vld [vmem:[%s297 + $0x10] sm:$0xff]
                  %302 = vst [vmem:[%s298 + $0x8] sm:$0xff] %v301
                  %v303 = vld [vmem:[%s297 + $0x20] sm:$0xff]
                  %304 = vst [vmem:[%s298 + $0x10] sm:$0xff] %v303
                  %v305 = vld [vmem:[%s297 + $0x30] sm:$0xff]
                  %306 = vst [vmem:[%s298 + $0x18] sm:$0xff] %v305
                  %v307 = vld [vmem:[%s297 + $0x40] sm:$0xff]
                  %308 = vst [vmem:[%s298 + $0x20] sm:$0xff] %v307
                  %v309 = vld [vmem:[%s297 + $0x50] sm:$0xff]
                  %310 = vst [vmem:[%s298 + $0x28] sm:$0xff] %v309
                  %v311 = vld [vmem:[%s297 + $0x60] sm:$0xff]
                  %312 = vst [vmem:[%s298 + $0x30] sm:$0xff] %v311
                  %v313 = vld [vmem:[%s297 + $0x70] sm:$0xff]
                  %314 = vst [vmem:[%s298 + $0x38] sm:$0xff] %v313
                  %v315 = vld [vmem:[%s297 + $0x80] sm:$0xff]
                  %316 = vst [vmem:[%s298 + $0x40] sm:$0xff] %v315
                  %v317 = vld [vmem:[%s297 + $0x90] sm:$0xff]
                  %318 = vst [vmem:[%s298 + $0x48] sm:$0xff] %v317
                  %v319 = vld [vmem:[%s297 + $0xa0] sm:$0xff]
                  %320 = vst [vmem:[%s298 + $0x50] sm:$0xff] %v319
                  %v321 = vld [vmem:[%s297 + $0xb0] sm:$0xff]
                  %322 = vst [vmem:[%s298 + $0x58] sm:$0xff] %v321
                  %v323 = vld [vmem:[%s297 + $0xc0] sm:$0xff]
                  %324 = vst [vmem:[%s298 + $0x60] sm:$0xff] %v323
                  %v325 = vld [vmem:[%s297 + $0xd0] sm:$0xff]
                  %326 = vst [vmem:[%s298 + $0x68] sm:$0xff] %v325
                  %v327 = vld [vmem:[%s297 + $0xe0] sm:$0xff]
                  %328 = vst [vmem:[%s298 + $0x70] sm:$0xff] %v327
                  %v329 = vld [vmem:[%s297 + $0xf0] sm:$0xff]
                  %330 = vst [vmem:[%s298 + $0x78] sm:$0xff] %v329
                  %v331 = vld [vmem:[%s297 + $0x100] sm:$0xff]
                  %332 = vst [vmem:[%s298 + $0x80] sm:$0xff] %v331
                  %v333 = vld [vmem:[%s297 + $0x110] sm:$0xff]
                  %334 = vst [vmem:[%s298 + $0x88] sm:$0xff] %v333
                  %v335 = vld [vmem:[%s297 + $0x120] sm:$0xff]
                  %336 = vst [vmem:[%s298 + $0x90] sm:$0xff] %v335
                  %v337 = vld [vmem:[%s297 + $0x130] sm:$0xff]
                  %338 = vst [vmem:[%s298 + $0x98] sm:$0xff] %v337
                  %v339 = vld [vmem:[%s297 + $0x140] sm:$0xff]
                  %340 = vst [vmem:[%s298 + $0xa0] sm:$0xff] %v339
                  %v341 = vld [vmem:[%s297 + $0x150] sm:$0xff]
                  %342 = vst [vmem:[%s298 + $0xa8] sm:$0xff] %v341
                  %v343 = vld [vmem:[%s297 + $0x160] sm:$0xff]
                  %344 = vst [vmem:[%s298 + $0xb0] sm:$0xff] %v343
                  %v345 = vld [vmem:[%s297 + $0x170] sm:$0xff]
                  %346 = vst [vmem:[%s298 + $0xb8] sm:$0xff] %v345
                  %v347 = vld [vmem:[%s297 + $0x180] sm:$0xff]
                  %348 = vst [vmem:[%s298 + $0xc0] sm:$0xff] %v347
                  %v349 = vld [vmem:[%s297 + $0x190] sm:$0xff]
                  %350 = vst [vmem:[%s298 + $0xc8] sm:$0xff] %v349
                  %v351 = vld [vmem:[%s297 + $0x1a0] sm:$0xff]
                  %352 = vst [vmem:[%s298 + $0xd0] sm:$0xff] %v351
                  %v353 = vld [vmem:[%s297 + $0x1b0] sm:$0xff]
                  %354 = vst [vmem:[%s298 + $0xd8] sm:$0xff] %v353
                  %v355 = vld [vmem:[%s297 + $0x1c0] sm:$0xff]
                  %356 = vst [vmem:[%s298 + $0xe0] sm:$0xff] %v355
                  %v357 = vld [vmem:[%s297 + $0x1d0] sm:$0xff]
                  %358 = vst [vmem:[%s298 + $0xe8] sm:$0xff] %v357
                  %v359 = vld [vmem:[%s297 + $0x1e0] sm:$0xff]
                  %360 = vst [vmem:[%s298 + $0xf0] sm:$0xff] %v359
                  %v361 = vld [vmem:[%s297 + $0x1f0] sm:$0xff]
                  %362 = vst [vmem:[%s298 + $0xf8] sm:$0xff] %v361
                $region52: #{_lambda_.23} parent=46 // loop_footer
                  %s296 = sadd.s32 1, %s292
                $region53: #{_lambda_.23} parent=46 // loop_footer_branch
                  %291 = sbr.rel target = $region49
                $region54: #{_lambda_.23} parent=46 // loop_exit
                  _
              $region47: #{_lambda_.23} parent=31 // pred_fallthru
                _
              // Predicated region
              $region55: #{_lambda_.23} parent=31 // pred_check
                _
              $region56: #{_lambda_.23} parent=31 // pred_check_branch
                %364 = sbr.rel target = $region58
              $region57: #{_lambda_.23} parent=31 // pred_region
                _
              $region58: #{_lambda_.23} parent=31 // pred_fallthru
                _
            $region32: #{_lambda_.23} parent=27 // pred_fallthru
              _
            // Predicated region
            $region33: #{_lambda_.23} parent=27 // pred_check
              _
            $region34: #{_lambda_.23} parent=27 // pred_check_branch
              %215 = sbr.rel target = $region36
            $region35: #{_lambda_.23} parent=27 // pred_region
              loop: start=0, step=1, limit=1
              $region37: #{_lambda_.23} parent=35 // loop_pre_header
                _
              $region38: #{_lambda_.23} parent=35 // loop_header
                %s218 = sphi 0, %s222
                %p219 = scmp.ge.s32.totalorder %s218, 1
                %s223 = sphi %s209, %s209
                %s224 = sphi %s203, %s203
              $region39: #{_lambda_.23} parent=35 // loop_header_branch
                %221 = sbr.rel (%p219) target = $region43
              $region40: #{_lambda_.23} parent=35 // loop_body
                %v225 = vld [vmem:[%s223] sm:$0xff]
                %226 = vst [vmem:[%s224] sm:$0xff] %v225
                %v227 = vld [vmem:[%s223 + $0x10] sm:$0xff]
                %228 = vst [vmem:[%s224 + $0x8] sm:$0xff] %v227
                %v229 = vld [vmem:[%s223 + $0x20] sm:$0xff]
                %230 = vst [vmem:[%s224 + $0x10] sm:$0xff] %v229
                %v231 = vld [vmem:[%s223 + $0x30] sm:$0xff]
                %232 = vst [vmem:[%s224 + $0x18] sm:$0xff] %v231
                %v233 = vld [vmem:[%s223 + $0x40] sm:$0xff]
                %234 = vst [vmem:[%s224 + $0x20] sm:$0xff] %v233
                %v235 = vld [vmem:[%s223 + $0x50] sm:$0xff]
                %236 = vst [vmem:[%s224 + $0x28] sm:$0xff] %v235
                %v237 = vld [vmem:[%s223 + $0x60] sm:$0xff]
                %238 = vst [vmem:[%s224 + $0x30] sm:$0xff] %v237
                %v239 = vld [vmem:[%s223 + $0x70] sm:$0xff]
                %240 = vst [vmem:[%s224 + $0x38] sm:$0xff] %v239
                %v241 = vld [vmem:[%s223 + $0x80] sm:$0xff]
                %242 = vst [vmem:[%s224 + $0x40] sm:$0xff] %v241
                %v243 = vld [vmem:[%s223 + $0x90] sm:$0xff]
                %244 = vst [vmem:[%s224 + $0x48] sm:$0xff] %v243
                %v245 = vld [vmem:[%s223 + $0xa0] sm:$0xff]
                %246 = vst [vmem:[%s224 + $0x50] sm:$0xff] %v245
                %v247 = vld [vmem:[%s223 + $0xb0] sm:$0xff]
                %248 = vst [vmem:[%s224 + $0x58] sm:$0xff] %v247
                %v249 = vld [vmem:[%s223 + $0xc0] sm:$0xff]
                %250 = vst [vmem:[%s224 + $0x60] sm:$0xff] %v249
                %v251 = vld [vmem:[%s223 + $0xd0] sm:$0xff]
                %252 = vst [vmem:[%s224 + $0x68] sm:$0xff] %v251
                %v253 = vld [vmem:[%s223 + $0xe0] sm:$0xff]
                %254 = vst [vmem:[%s224 + $0x70] sm:$0xff] %v253
                %v255 = vld [vmem:[%s223 + $0xf0] sm:$0xff]
                %256 = vst [vmem:[%s224 + $0x78] sm:$0xff] %v255
                %v257 = vld [vmem:[%s223 + $0x100] sm:$0xff]
                %258 = vst [vmem:[%s224 + $0x80] sm:$0xff] %v257
                %v259 = vld [vmem:[%s223 + $0x110] sm:$0xff]
                %260 = vst [vmem:[%s224 + $0x88] sm:$0xff] %v259
                %v261 = vld [vmem:[%s223 + $0x120] sm:$0xff]
                %262 = vst [vmem:[%s224 + $0x90] sm:$0xff] %v261
                %v263 = vld [vmem:[%s223 + $0x130] sm:$0xff]
                %264 = vst [vmem:[%s224 + $0x98] sm:$0xff] %v263
                %v265 = vld [vmem:[%s223 + $0x140] sm:$0xff]
                %266 = vst [vmem:[%s224 + $0xa0] sm:$0xff] %v265
                %v267 = vld [vmem:[%s223 + $0x150] sm:$0xff]
                %268 = vst [vmem:[%s224 + $0xa8] sm:$0xff] %v267
                %v269 = vld [vmem:[%s223 + $0x160] sm:$0xff]
                %270 = vst [vmem:[%s224 + $0xb0] sm:$0xff] %v269
                %v271 = vld [vmem:[%s223 + $0x170] sm:$0xff]
                %272 = vst [vmem:[%s224 + $0xb8] sm:$0xff] %v271
                %v273 = vld [vmem:[%s223 + $0x180] sm:$0xff]
                %274 = vst [vmem:[%s224 + $0xc0] sm:$0xff] %v273
                %v275 = vld [vmem:[%s223 + $0x190] sm:$0xff]
                %276 = vst [vmem:[%s224 + $0xc8] sm:$0xff] %v275
                %v277 = vld [vmem:[%s223 + $0x1a0] sm:$0xff]
                %278 = vst [vmem:[%s224 + $0xd0] sm:$0xff] %v277
                %v279 = vld [vmem:[%s223 + $0x1b0] sm:$0xff]
                %280 = vst [vmem:[%s224 + $0xd8] sm:$0xff] %v279
                %v281 = vld [vmem:[%s223 + $0x1c0] sm:$0xff]
                %282 = vst [vmem:[%s224 + $0xe0] sm:$0xff] %v281
                %v283 = vld [vmem:[%s223 + $0x1d0] sm:$0xff]
                %284 = vst [vmem:[%s224 + $0xe8] sm:$0xff] %v283
                %v285 = vld [vmem:[%s223 + $0x1e0] sm:$0xff]
                %286 = vst [vmem:[%s224 + $0xf0] sm:$0xff] %v285
                %v287 = vld [vmem:[%s223 + $0x1f0] sm:$0xff]
                %288 = vst [vmem:[%s224 + $0xf8] sm:$0xff] %v287
              $region41: #{_lambda_.23} parent=35 // loop_footer
                %s222 = sadd.s32 1, %s218
              $region42: #{_lambda_.23} parent=35 // loop_footer_branch
                %217 = sbr.rel target = $region38
              $region43: #{_lambda_.23} parent=35 // loop_exit
                _
            $region36: #{_lambda_.23} parent=27 // pred_fallthru
              _
          $region28: #{_lambda_.23} parent=23 // pred_fallthru
            _
          %365 = vnop
        $region24: #{_lambda_.23} parent=19 // pred_fallthru
          _
        // Predicated region
        $region59: #{_lambda_.23} parent=19 // pred_check
          %p366 = pneg %p105
        $region60: #{_lambda_.23} parent=19 // pred_check_branch
          %368 = sbr.rel (%p366) target = $region62
        $region61: #{_lambda_.23} parent=19 // pred_region
          %s369 = smul.u32 2, %s18
          %p370 = scmp.lt.s32.totalorder %s369, 3
          %s371 = scalar_select %p370, %s369, 3
          %s372 = scalar_lea.vmem %s2, %s371
          %s373 = smul.u32 2, %s18
        $region62: #{_lambda_.23} parent=19 // pred_fallthru
          _
        // Predicated region
        $region63: #{_lambda_.23} parent=19 // pred_check
          %p374 = pneg %p131
        $region64: #{_lambda_.23} parent=19 // pred_check_branch
          %376 = sbr.rel (%p374) target = $region66
        $region65: #{_lambda_.23} parent=19 // pred_region
          %s377 = smul.u32 2, %s18
          %p378 = scmp.lt.s32.totalorder %s377, 3
          %s379 = scalar_select %p378, %s377, 3
          %s380 = scalar_lea.vmem %s3, %s379
          %s381 = smul.u32 2, %s18
        $region66: #{_lambda_.23} parent=19 // pred_fallthru
          _
      $region20: #{_lambda_.23} parent=5 // pred_fallthru
        _
      %p382 = scmp.le.s32.totalorder 1, %s10
      %p383 = scmp.lt.s32.totalorder %s10, 3
      %p384 = pnand %p382, %p383
      %p385 = pneg %p384
      // Predicated region
      $region67: #{_lambda_.23} parent=5 // pred_check
        _
      $region68: #{_lambda_.23} parent=5 // pred_check_branch
        %387 = sbr.rel (%p384) target = $region70
      $region69: #{_lambda_.23} parent=5 // pred_region
        %s388 = ssub.s32 %s10, 1
        %s389 = sand.u32 %s72, 1
        %s390 = sand.u32 %s72, 1
        %s391 = smul.addr %s390, 256
        %s392 = scalar_lea.vmem [#allocation3], %s391
        // Predicated region
        $region71: #{_lambda_.23} parent=69 // pred_check
          %p393 = pneg %p85
        $region72: #{_lambda_.23} parent=69 // pred_check_branch
          %395 = sbr.rel (%p393) target = $region74
        $region73: #{_lambda_.23} parent=69 // pred_region
          _
        $region74: #{_lambda_.23} parent=69 // pred_fallthru
          _
        %s396 = smul.u32 2, %s22
        %p397 = scmp.lt.s32.totalorder %s20, 0
        %s398 = scalar_select %p397, %s20, 0
        %p399 = scmp.lt.s32.totalorder %s396, 1
        %s400 = scalar_select %p399, %s396, 1
        %s401 = smul.addr %s398, 2
        %s402 = sadd.s32 %s400, %s401
        %s403 = smul.addr %s402, 4
        %s404 = scalar_lea.vmem %s0, %s403
        %p405 = pneg %p57
        %p406 = pneg %p54
        %s407 = sand.u32 %s72, 1
        %s408 = sand.u32 %s72, 1
        %s409 = smul.addr %s408, 256
        %s410 = scalar_lea.vmem [#allocation3], %s409
        %p411 = pneg %p85
        %p412 = pneg %p82
        %s413 = smul.u32 2, %s21
        %p414 = scmp.lt.s32.totalorder %s413, 3
        %s415 = scalar_select %p414, %s413, 3
        %s416 = scalar_lea.vmem %s2, %s415
        %p417 = pneg %p111
        %p418 = pneg %p108
        %s419 = smul.u32 2, %s21
        %p420 = scmp.lt.s32.totalorder %s419, 3
        %s421 = scalar_select %p420, %s419, 3
        %s422 = scalar_lea.vmem %s3, %s421
        %p423 = pneg %p137
        %p424 = pneg %p134
        %p425 = pneg %p165
        %p426 = pneg %p162
        %s427 = smul.u32 2, %s21
        %p428 = scmp.lt.s32.totalorder %s20, 0
        %s429 = scalar_select %p428, %s20, 0
        %p430 = scmp.lt.s32.totalorder %s427, 3
        %s431 = scalar_select %p430, %s427, 3
        %s432 = smul.addr %s429, 4
        %s433 = sadd.s32 %s431, %s432
        %s434 = smul.addr %s433, 8
        %s435 = scalar_lea.vmem %s4, %s434
        %s436 = smul.u32 2, %s22
        %p437 = scmp.lt.s32.totalorder %s20, 0
        %s438 = scalar_select %p437, %s20, 0
        %p439 = scmp.lt.s32.totalorder %s436, 1
        %s440 = scalar_select %p439, %s436, 1
        %s441 = smul.addr %s438, 2
        %s442 = sadd.s32 %s440, %s441
        %s443 = smul.addr %s442, 4
        %s444 = scalar_lea.vmem %s0, %s443
        %s445 = smul.u32 2, %s22
        %s446 = smul.u32 32, %s22
        %s447 = smul.u32 2, %s21
        %s448 = smul.u32 2, %s21
        %p449 = scmp.lt.s32.totalorder %s448, 3
        %s450 = scalar_select %p449, %s448, 3
        %s451 = scalar_lea.vmem %s2, %s450
        %s452 = smul.u32 2, %s21
        %s453 = smul.u32 2, %s21
        %p454 = scmp.lt.s32.totalorder %s453, 3
        %s455 = scalar_select %p454, %s453, 3
        %s456 = scalar_lea.vmem %s3, %s455
        %s457 = smul.u32 2, %s21
        %s458 = smul.u32 2, %s21
        %p459 = scmp.lt.s32.totalorder %s20, 0
        %s460 = scalar_select %p459, %s20, 0
        %p461 = scmp.lt.s32.totalorder %s458, 3
        %s462 = scalar_select %p461, %s458, 3
        %s463 = smul.addr %s460, 4
        %s464 = sadd.s32 %s462, %s463
        %s465 = smul.addr %s464, 8
        %s466 = scalar_lea.vmem %s4, %s465
        %s467 = smul.u32 2, %s21
        %p468 = scmp.eq.s32.totalorder %s22, 0
        // Predicated region
        $region75: #{_lambda_.23} parent=69 // pred_check
          %p469 = pneg %p468
        $region76: #{_lambda_.23} parent=69 // pred_check_branch
          %471 = sbr.rel (%p469) target = $region78
        $region77: #{_lambda_.23} parent=69 // pred_region
          %472 = vst [vmem:[#allocation2] sm:$0xff] 0.0
          %473 = vst [vmem:[#allocation2 + $0x8] sm:$0xff] 0.0
        $region78: #{_lambda_.23} parent=69 // pred_fallthru
          _
        %v474 = vld [vmem:[#allocation2] sm:$0xff]
        %v475 = vld [vmem:[#allocation2 + $0x8] sm:$0xff]
        %v476 = vld [vmem:[%s444] sm:$0xff]
        %v477 = vld [vmem:[%s392] sm:$0xff]
        %v478 = vld [vmem:[%s392 + $0x8] sm:$0xff]
        %v479 = vld [vmem:[%s392 + $0x10] sm:$0xff]
        %v480 = vld [vmem:[%s392 + $0x18] sm:$0xff]
        %v481 = vld [vmem:[%s392 + $0x20] sm:$0xff]
        %v482 = vld [vmem:[%s392 + $0x28] sm:$0xff]
        %v483 = vld [vmem:[%s392 + $0x30] sm:$0xff]
        %v484 = vld [vmem:[%s392 + $0x38] sm:$0xff]
        %v485 = vld [vmem:[%s392 + $0x40] sm:$0xff]
        %v486 = vld [vmem:[%s392 + $0x48] sm:$0xff]
        %v487 = vld [vmem:[%s392 + $0x50] sm:$0xff]
        %v488 = vld [vmem:[%s392 + $0x58] sm:$0xff]
        %v489 = vld [vmem:[%s392 + $0x60] sm:$0xff]
        %v490 = vld [vmem:[%s392 + $0x68] sm:$0xff]
        %v491 = vld [vmem:[%s392 + $0x70] sm:$0xff]
        %v492 = vld [vmem:[%s392 + $0x78] sm:$0xff]
        %v493 = vld [vmem:[%s392 + $0x80] sm:$0xff]
        %v494 = vld [vmem:[%s392 + $0x88] sm:$0xff]
        %v495 = vld [vmem:[%s392 + $0x90] sm:$0xff]
        %v496 = vld [vmem:[%s392 + $0x98] sm:$0xff]
        %v497 = vld [vmem:[%s392 + $0xa0] sm:$0xff]
        %v498 = vld [vmem:[%s392 + $0xa8] sm:$0xff]
        %v499 = vld [vmem:[%s392 + $0xb0] sm:$0xff]
        %v500 = vld [vmem:[%s392 + $0xb8] sm:$0xff]
        %v501 = vld [vmem:[%s392 + $0xc0] sm:$0xff]
        %v502 = vld [vmem:[%s392 + $0xc8] sm:$0xff]
        %v503 = vld [vmem:[%s392 + $0xd0] sm:$0xff]
        %v504 = vld [vmem:[%s392 + $0xd8] sm:$0xff]
        %v505 = vld [vmem:[%s392 + $0xe0] sm:$0xff]
        %v506 = vld [vmem:[%s392 + $0xe8] sm:$0xff]
        %v507 = vld [vmem:[%s392 + $0xf0] sm:$0xff]
        %v508 = vld [vmem:[%s392 + $0xf8] sm:$0xff]
        %v510 = vunpack.c.l.b16 %v476
        %v511 = vunpack.c.h.b16 %v476
        %v512 = vpack.c.b16 %v510, %v510
        %v513 = vpack.c.b16 %v511, %v511
        %v548 = vunpack.c.l.b16 %v477
        %v549 = vunpack.c.h.b16 %v477
        %v550 = vunpack.c.l.b16 %v478
        %v551 = vunpack.c.h.b16 %v478
        %v552 = vunpack.c.l.b16 %v479
        %v553 = vunpack.c.h.b16 %v479
        %v554 = vunpack.c.l.b16 %v480
        %v555 = vunpack.c.h.b16 %v480
        %v556 = vunpack.c.l.b16 %v481
        %v557 = vunpack.c.h.b16 %v481
        %v558 = vunpack.c.l.b16 %v482
        %v559 = vunpack.c.h.b16 %v482
        %v560 = vunpack.c.l.b16 %v483
        %v561 = vunpack.c.h.b16 %v483
        %v562 = vunpack.c.l.b16 %v484
        %v563 = vunpack.c.h.b16 %v484
        %v564 = vunpack.c.l.b16 %v485
        %v565 = vunpack.c.h.b16 %v485
        %v566 = vunpack.c.l.b16 %v486
        %v567 = vunpack.c.h.b16 %v486
        %v568 = vunpack.c.l.b16 %v487
        %v569 = vunpack.c.h.b16 %v487
        %v570 = vunpack.c.l.b16 %v488
        %v571 = vunpack.c.h.b16 %v488
        %v572 = vunpack.c.l.b16 %v489
        %v573 = vunpack.c.h.b16 %v489
        %v574 = vunpack.c.l.b16 %v490
        %v575 = vunpack.c.h.b16 %v490
        %v576 = vunpack.c.l.b16 %v491
        %v577 = vunpack.c.h.b16 %v491
        %v578 = vunpack.c.l.b16 %v492
        %v579 = vunpack.c.h.b16 %v492
        %v580 = vunpack.c.l.b16 %v493
        %v581 = vunpack.c.h.b16 %v493
        %v582 = vunpack.c.l.b16 %v494
        %v583 = vunpack.c.h.b16 %v494
        %v584 = vunpack.c.l.b16 %v495
        %v585 = vunpack.c.h.b16 %v495
        %v586 = vunpack.c.l.b16 %v496
        %v587 = vunpack.c.h.b16 %v496
        %v588 = vunpack.c.l.b16 %v497
        %v589 = vunpack.c.h.b16 %v497
        %v590 = vunpack.c.l.b16 %v498
        %v591 = vunpack.c.h.b16 %v498
        %v592 = vunpack.c.l.b16 %v499
        %v593 = vunpack.c.h.b16 %v499
        %v594 = vunpack.c.l.b16 %v500
        %v595 = vunpack.c.h.b16 %v500
        %v596 = vunpack.c.l.b16 %v501
        %v597 = vunpack.c.h.b16 %v501
        %v598 = vunpack.c.l.b16 %v502
        %v599 = vunpack.c.h.b16 %v502
        %v600 = vunpack.c.l.b16 %v503
        %v601 = vunpack.c.h.b16 %v503
        %v602 = vunpack.c.l.b16 %v504
        %v603 = vunpack.c.h.b16 %v504
        %v604 = vunpack.c.l.b16 %v505
        %v605 = vunpack.c.h.b16 %v505
        %v606 = vunpack.c.l.b16 %v506
        %v607 = vunpack.c.h.b16 %v506
        %v608 = vunpack.c.l.b16 %v507
        %v609 = vunpack.c.h.b16 %v507
        %v610 = vunpack.c.l.b16 %v508
        %v611 = vunpack.c.h.b16 %v508
        %v612 = vpack.c.b16 %v550, %v548
        %v613 = vpack.c.b16 %v551, %v549
        %v614 = vpack.c.b16 %v554, %v552
        %v615 = vpack.c.b16 %v555, %v553
        %v616 = vpack.c.b16 %v558, %v556
        %v617 = vpack.c.b16 %v559, %v557
        %v618 = vpack.c.b16 %v562, %v560
        %v619 = vpack.c.b16 %v563, %v561
        %v620 = vpack.c.b16 %v566, %v564
        %v621 = vpack.c.b16 %v567, %v565
        %v622 = vpack.c.b16 %v570, %v568
        %v623 = vpack.c.b16 %v571, %v569
        %v624 = vpack.c.b16 %v574, %v572
        %v625 = vpack.c.b16 %v575, %v573
        %v626 = vpack.c.b16 %v578, %v576
        %v627 = vpack.c.b16 %v579, %v577
        %v628 = vpack.c.b16 %v582, %v580
        %v629 = vpack.c.b16 %v583, %v581
        %v630 = vpack.c.b16 %v586, %v584
        %v631 = vpack.c.b16 %v587, %v585
        %v632 = vpack.c.b16 %v590, %v588
        %v633 = vpack.c.b16 %v591, %v589
        %v634 = vpack.c.b16 %v594, %v592
        %v635 = vpack.c.b16 %v595, %v593
        %v636 = vpack.c.b16 %v598, %v596
        %v637 = vpack.c.b16 %v599, %v597
        %v638 = vpack.c.b16 %v602, %v600
        %v639 = vpack.c.b16 %v603, %v601
        %v640 = vpack.c.b16 %v606, %v604
        %v641 = vpack.c.b16 %v607, %v605
        %v642 = vpack.c.b16 %v610, %v608
        %v643 = vpack.c.b16 %v611, %v609
        %676 = vmatprep.subr.bf16.mxu0 %v613
        %677 = vmatpush1.bf16.msra.mxu0 %v612
        %678 = vmatprep.subr.bf16.mxu0 %v615
        %679 = vmatpush1.bf16.msra.mxu0 %v614
        %680 = vmatprep.subr.bf16.mxu0 %v617
        %681 = vmatpush1.bf16.msra.mxu0 %v616
        %682 = vmatprep.subr.bf16.mxu0 %v619
        %683 = vmatpush1.bf16.msra.mxu0 %v618
        %684 = vmatprep.subr.bf16.mxu0 %v621
        %685 = vmatpush1.bf16.msra.mxu0 %v620
        %686 = vmatprep.subr.bf16.mxu0 %v623
        %687 = vmatpush1.bf16.msra.mxu0 %v622
        %688 = vmatprep.subr.bf16.mxu0 %v625
        %689 = vmatpush1.bf16.msra.mxu0 %v624
        %690 = vmatprep.subr.bf16.mxu0 %v627
        %691 = vmatpush1.bf16.msra.mxu0 %v626
        %692 = vmatprep.subr.bf16.mxu0 %v629
        %693 = vmatpush1.bf16.msra.mxu0 %v628
        %694 = vmatprep.subr.bf16.mxu0 %v631
        %695 = vmatpush1.bf16.msra.mxu0 %v630
        %696 = vmatprep.subr.bf16.mxu0 %v633
        %697 = vmatpush1.bf16.msra.mxu0 %v632
        %698 = vmatprep.subr.bf16.mxu0 %v635
        %699 = vmatpush1.bf16.msra.mxu0 %v634
        %700 = vmatprep.subr.bf16.mxu0 %v637
        %701 = vmatpush1.bf16.msra.mxu0 %v636
        %702 = vmatprep.subr.bf16.mxu0 %v639
        %703 = vmatpush1.bf16.msra.mxu0 %v638
        %704 = vmatprep.subr.bf16.mxu0 %v641
        %705 = vmatpush1.bf16.msra.mxu0 %v640
        %706 = vmatprep.subr.bf16.mxu0 %v643
        %707 = vmatpush1.bf16.msra.mxu0 %v642
        %708 = vmatprep.mubr.bf16.mxu0 %v513
        %709 = vmatmul.mubr.bf16.gmra.mrb[0].mxu0 %v512
        %v710 = vpop.f32.mrb[0].mxu0
        %v711 = vadd.f32 0.0, %v710
        %v712 = vpop.f32.mrb[0].mxu0
        %v713 = vadd.f32 0.0, %v712
        %v714 = vpop.f32.mrb[0].mxu0
        %v715 = vpop.f32.mrb[0].mxu0
        %716 = vdwg.mxu0
        %v717 = vadd.f32 %v474, %v711
        %v718 = vadd.f32 %v475, %v713
        %719 = vst [vmem:[#allocation2] sm:$0xff] %v717
        %720 = vst [vmem:[#allocation2 + $0x8] sm:$0xff] %v718
        // Predicated region
        $region79: #{_lambda_.23} parent=69 // pred_check
          %p721 = pneg %p468
        $region80: #{_lambda_.23} parent=69 // pred_check_branch
          %723 = sbr.rel (%p721) target = $region82
        $region81: #{_lambda_.23} parent=69 // pred_region
          %v724 = vld [vmem:[#allocation2] sm:$0xff]
          %v725 = vld [vmem:[#allocation2 + $0x8] sm:$0xff]
          %v726 = vld [vmem:[%s451] sm:$0x3]
          %v728 = vlaneseq
          %v729 = vshrl.u32 %v728, 7
          %v730 = vsub.s32 0, %v729
          %v731 = vrot.slane %v726, %v730
          %v732 = vlaneseq
          %v733 = vshrl.u32 %v732, 7
          %v734 = vsub.s32 1, %v733
          %v735 = vrot.slane %v726, %v734
          %v738 = vmul.f32 %v724, %v731
          %v739 = vmul.f32 %v725, %v735
          %v740 = vld [vmem:[%s456] sm:$0x3]
          %v742 = vlaneseq
          %v743 = vshrl.u32 %v742, 7
          %v744 = vsub.s32 0, %v743
          %v745 = vrot.slane %v740, %v744
          %v746 = vlaneseq
          %v747 = vshrl.u32 %v746, 7
          %v748 = vsub.s32 1, %v747
          %v749 = vrot.slane %v740, %v748
          %v752 = vadd.f32 %v738, %v745
          %v753 = vadd.f32 %v739, %v749
          %754 = vst [vmem:[%s466] sm:$0xff] %v752
          %755 = vst [vmem:[%s466 + $0x8] sm:$0xff] %v753
        $region82: #{_lambda_.23} parent=69 // pred_fallthru
          _
        %s756 = smul.u32 2, %s21
        %p757 = scmp.lt.s32.totalorder %s20, 0
        %s758 = scalar_select %p757, %s20, 0
        %p759 = scmp.lt.s32.totalorder %s756, 3
        %s760 = scalar_select %p759, %s756, 3
        %s761 = smul.addr %s758, 4
        %s762 = sadd.s32 %s760, %s761
        %s763 = smul.addr %s762, 8
        %s764 = scalar_lea.vmem %s4, %s763
        // Predicated region
        $region83: #{_lambda_.23} parent=69 // pred_check
          %p765 = pneg %p162
        $region84: #{_lambda_.23} parent=69 // pred_check_branch
          %767 = sbr.rel (%p765) target = $region86
        $region85: #{_lambda_.23} parent=69 // pred_region
          %s768 = smul.u32 2, %s21
        $region86: #{_lambda_.23} parent=69 // pred_fallthru
          _
      $region70: #{_lambda_.23} parent=5 // pred_fallthru
        _
      %p769 = scmp.le.s32.totalorder 2, %s10
      // Predicated region
      $region87: #{_lambda_.23} parent=5 // pred_check
        %p770 = pneg %p769
      $region88: #{_lambda_.23} parent=5 // pred_check_branch
        %772 = sbr.rel (%p770) target = $region90
      $region89: #{_lambda_.23} parent=5 // pred_region
        %s773 = ssub.s32 %s10, 2
        // Predicated region
        $region91: #{_lambda_.23} parent=89 // pred_check
          %p774 = pneg %p168
        $region92: #{_lambda_.23} parent=89 // pred_check_branch
          %776 = sbr.rel (%p774) target = $region94
        $region93: #{_lambda_.23} parent=89 // pred_region
          %s777 = smul.u32 2, %s24
          %p778 = scmp.lt.s32.totalorder %s23, 0
          %s779 = scalar_select %p778, %s23, 0
          %p780 = scmp.lt.s32.totalorder %s777, 3
          %s781 = scalar_select %p780, %s777, 3
          %s782 = smul.addr %s779, 4
          %s783 = sadd.s32 %s781, %s782
          %s784 = smul.addr %s783, 8
          %s785 = scalar_lea.vmem %s4, %s784
        $region94: #{_lambda_.23} parent=89 // pred_fallthru
          _
      $region90: #{_lambda_.23} parent=5 // pred_fallthru
        _
    $region6: #{_lambda_.23} parent=1 // loop_footer
      %s14 = sadd.s32 1, %s10
    $region7: #{_lambda_.23} parent=1 // loop_footer_branch
      %9 = sbr.rel target = $region3
    $region8: #{_lambda_.23} parent=1 // loop_exit
      _

// kernel: _lambda_.22
$region0: #{_lambda_.22}
  #allocation0 [shape = 'u32[]', space=smem, size = 0x4, offset = 0x4, fixed_abs, tag = 'smem constant byte address 0x4 - core index']
  #allocation1 [shape = 'u32[144,128]{1,0:T(1,128)}', space=vmem, size = 0x12000, scoped, tag = 'internal scratch']
  #allocation2 [shape = 'f32[8,256]{1,0:T(8,128)}', space=vmem, size = 0x2000, scoped, tag = 'scratch operand']
  %s0 = inlined_call_operand.vmem [shape: bf16[8,2304], index: 0, kind: input, shape index: {}]
  %s1 = inlined_call_operand.vmem [shape: bf16[2304,256], index: 1, kind: input, shape index: {}]
  %s2 = inlined_call_operand.vmem [shape: f32[1,256], index: 2, kind: input, shape index: {}]
  %s3 = inlined_call_operand.vmem [shape: f32[1,256], index: 3, kind: input, shape index: {}]
  %s4 = inlined_call_operand.vmem [shape: f32[8,256], index: 4, kind: input, shape index: {}]
  %s5 = inlined_call_operand.vmem [shape: f32[8,256], index: 5, kind: output, shape index: {}]
  %s6 = sld [smem:[#allocation0]]
  $region61: #{_lambda_.22} parent=0
    _
  %s8 = ssub.s32 1, %s6
  %s9 = scalar_select 0, %s8, %s6
  loop: start=0, step=1, limit=8
  $region2: #{_lambda_.22} parent=0 // loop_pre_header
    _
  $region3: #{_lambda_.22} parent=0 // loop_header
    %s11 = sphi 0, %s15
    %p12 = scmp.ge.s32.totalorder %s11, 8
    %s18 = sphi 0, %s37
    %s19 = sphi 0, %s33
    %s20 = sphi 0, %s29
    %s21 = sphi 0, %s18
    %s22 = sphi 0, %s19
    %s23 = sphi 0, %s20
    %s24 = sphi 0, %s21
    %s25 = sphi 0, %s22
    %s26 = sphi 0, %s23
    %s42 = sphi 0, %s44
    %s45 = sphi 0, %s42
    %s46 = sphi 0, %s45
    %s62 = sphi 0, %s46
    %s70 = sphi 0, %s72
    %s73 = sphi 0, %s70
    %s74 = sphi 0, %s73
    %s90 = sphi 0, %s74
    %s96 = sphi 0, %s98
    %s99 = sphi 0, %s96
    %s100 = sphi 0, %s99
    %s116 = sphi 0, %s100
    %s122 = sphi 0, %s124
    %s125 = sphi 0, %s122
    %s126 = sphi 0, %s125
    %s142 = sphi 0, %s126
    %s150 = sphi 0, %s152
    %s153 = sphi 0, %s150
    %s154 = sphi 0, %s153
    %s170 = sphi 0, %s154
    %s178 = sphi 0, %s180
    %s181 = sphi 0, %s178
    %s182 = sphi 0, %s181
    %s198 = sphi 0, %s182
  $region4: #{_lambda_.22} parent=0 // loop_header_branch
    %14 = sbr.rel (%p12) target = $region8
  $region5: #{_lambda_.22} parent=0 // loop_body
    %s16 = ssub.s32 %s11, 1
    %s17 = ssub.s32 %s11, 2
    %s27 = sadd.s32 1, %s20
    %p28 = scmp.ge.s32.totalorder %s27, 6
    %s29 = scalar_select %p28, 0, %s27
    %s30 = sadd.s32 1, %s19
    %s31 = scalar_select %p28, %s30, %s19
    %p32 = scmp.ge.s32.totalorder %s31, 1
    %s33 = scalar_select %p32, 0, %s31
    %s34 = sadd.s32 1, %s18
    %s35 = scalar_select %p32, %s34, %s18
    %p36 = scmp.ge.s32.totalorder %s35, 1
    %s37 = scalar_select %p36, 0, %s35
    %s38 = ssub.s32 %s18, %s37
    %s39 = ssub.s32 %s20, %s29
    %s40 = sor.u32 %s38, %s39
    %p41 = scmp.eq.s32.totalorder %s40, 0
    %s43 = sadd.s32 %s42, 1
    %s44 = scalar_select %p41, %s42, %s43
    %p47 = pneg %p41
    %p48 = scmp.eq.s32.totalorder %s11, 5
    %p49 = por %p47, %p48
    %p50 = scmp.ne.s32.totalorder %s42, %s45
    %p51 = scmp.eq.s32.totalorder %s11, 0
    %p52 = por %p50, %p51
    %p53 = scmp.ne.s32.totalorder %s42, %s45
    %p54 = scmp.eq.s32.totalorder %s16, 5
    %p55 = por %p53, %p54
    %p56 = scmp.ne.s32.totalorder %s45, %s46
    %p57 = scmp.eq.s32.totalorder %s16, 0
    %p58 = por %p56, %p57
    %p59 = scmp.ne.s32.totalorder %s45, %s46
    %p60 = scmp.eq.s32.totalorder %s17, 5
    %p61 = por %p59, %p60
    %p63 = scmp.ne.s32.totalorder %s46, %s62
    %p64 = scmp.eq.s32.totalorder %s17, 0
    %p65 = por %p63, %p64
    %s66 = ssub.s32 %s20, %s29
    %s67 = ssub.s32 %s19, %s33
    %s68 = sor.u32 %s66, %s67
    %p69 = scmp.eq.s32.totalorder %s68, 0
    %s71 = sadd.s32 %s70, 1
    %s72 = scalar_select %p69, %s70, %s71
    %p75 = pneg %p69
    %p76 = scmp.eq.s32.totalorder %s11, 5
    %p77 = por %p75, %p76
    %p78 = scmp.ne.s32.totalorder %s70, %s73
    %p79 = scmp.eq.s32.totalorder %s11, 0
    %p80 = por %p78, %p79
    %p81 = scmp.ne.s32.totalorder %s70, %s73
    %p82 = scmp.eq.s32.totalorder %s16, 5
    %p83 = por %p81, %p82
    %p84 = scmp.ne.s32.totalorder %s73, %s74
    %p85 = scmp.eq.s32.totalorder %s16, 0
    %p86 = por %p84, %p85
    %p87 = scmp.ne.s32.totalorder %s73, %s74
    %p88 = scmp.eq.s32.totalorder %s17, 5
    %p89 = por %p87, %p88
    %p91 = scmp.ne.s32.totalorder %s74, %s90
    %p92 = scmp.eq.s32.totalorder %s17, 0
    %p93 = por %p91, %p92
    %s94 = ssub.s32 %s19, %s33
    %p95 = scmp.eq.s32.totalorder %s94, 0
    %s97 = sadd.s32 %s96, 1
    %s98 = scalar_select %p95, %s96, %s97
    %p101 = pneg %p95
    %p102 = scmp.eq.s32.totalorder %s11, 5
    %p103 = por %p101, %p102
    %p104 = scmp.ne.s32.totalorder %s96, %s99
    %p105 = scmp.eq.s32.totalorder %s11, 0
    %p106 = por %p104, %p105
    %p107 = scmp.ne.s32.totalorder %s96, %s99
    %p108 = scmp.eq.s32.totalorder %s16, 5
    %p109 = por %p107, %p108
    %p110 = scmp.ne.s32.totalorder %s99, %s100
    %p111 = scmp.eq.s32.totalorder %s16, 0
    %p112 = por %p110, %p111
    %p113 = scmp.ne.s32.totalorder %s99, %s100
    %p114 = scmp.eq.s32.totalorder %s17, 5
    %p115 = por %p113, %p114
    %p117 = scmp.ne.s32.totalorder %s100, %s116
    %p118 = scmp.eq.s32.totalorder %s17, 0
    %p119 = por %p117, %p118
    %s120 = ssub.s32 %s19, %s33
    %p121 = scmp.eq.s32.totalorder %s120, 0
    %s123 = sadd.s32 %s122, 1
    %s124 = scalar_select %p121, %s122, %s123
    %p127 = pneg %p121
    %p128 = scmp.eq.s32.totalorder %s11, 5
    %p129 = por %p127, %p128
    %p130 = scmp.ne.s32.totalorder %s122, %s125
    %p131 = scmp.eq.s32.totalorder %s11, 0
    %p132 = por %p130, %p131
    %p133 = scmp.ne.s32.totalorder %s122, %s125
    %p134 = scmp.eq.s32.totalorder %s16, 5
    %p135 = por %p133, %p134
    %p136 = scmp.ne.s32.totalorder %s125, %s126
    %p137 = scmp.eq.s32.totalorder %s16, 0
    %p138 = por %p136, %p137
    %p139 = scmp.ne.s32.totalorder %s125, %s126
    %p140 = scmp.eq.s32.totalorder %s17, 5
    %p141 = por %p139, %p140
    %p143 = scmp.ne.s32.totalorder %s126, %s142
    %p144 = scmp.eq.s32.totalorder %s17, 0
    %p145 = por %p143, %p144
    %s146 = ssub.s32 %s18, %s37
    %s147 = ssub.s32 %s19, %s33
    %s148 = sor.u32 %s146, %s147
    %p149 = scmp.eq.s32.totalorder %s148, 0
    %s151 = sadd.s32 %s150, 1
    %s152 = scalar_select %p149, %s150, %s151
    %p155 = pneg %p149
    %p156 = scmp.eq.s32.totalorder %s11, 5
    %p157 = por %p155, %p156
    %p158 = scmp.ne.s32.totalorder %s150, %s153
    %p159 = scmp.eq.s32.totalorder %s11, 0
    %p160 = por %p158, %p159
    %p161 = scmp.ne.s32.totalorder %s150, %s153
    %p162 = scmp.eq.s32.totalorder %s16, 5
    %p163 = por %p161, %p162
    %p164 = scmp.ne.s32.totalorder %s153, %s154
    %p165 = scmp.eq.s32.totalorder %s16, 0
    %p166 = por %p164, %p165
    %p167 = scmp.ne.s32.totalorder %s153, %s154
    %p168 = scmp.eq.s32.totalorder %s17, 5
    %p169 = por %p167, %p168
    %p171 = scmp.ne.s32.totalorder %s154, %s170
    %p172 = scmp.eq.s32.totalorder %s17, 0
    %p173 = por %p171, %p172
    %s174 = ssub.s32 %s18, %s37
    %s175 = ssub.s32 %s19, %s33
    %s176 = sor.u32 %s174, %s175
    %p177 = scmp.eq.s32.totalorder %s176, 0
    %s179 = sadd.s32 %s178, 1
    %s180 = scalar_select %p177, %s178, %s179
    %p183 = pneg %p177
    %p184 = scmp.eq.s32.totalorder %s11, 5
    %p185 = por %p183, %p184
    %p186 = scmp.ne.s32.totalorder %s178, %s181
    %p187 = scmp.eq.s32.totalorder %s11, 0
    %p188 = por %p186, %p187
    %p189 = scmp.ne.s32.totalorder %s178, %s181
    %p190 = scmp.eq.s32.totalorder %s16, 5
    %p191 = por %p189, %p190
    %p192 = scmp.ne.s32.totalorder %s181, %s182
    %p193 = scmp.eq.s32.totalorder %s16, 0
    %p194 = por %p192, %p193
    %p195 = scmp.ne.s32.totalorder %s181, %s182
    %p196 = scmp.eq.s32.totalorder %s17, 5
    %p197 = por %p195, %p196
    %p199 = scmp.ne.s32.totalorder %s182, %s198
    %p200 = scmp.eq.s32.totalorder %s17, 0
    %p201 = por %p199, %p200
    %p202 = scmp.le.s32.totalorder 1, %s11
    %p203 = scmp.lt.s32.totalorder %s11, 7
    %p204 = pnand %p202, %p203
    %p205 = pneg %p204
    // Predicated region
    $region9: #{_lambda_.22} parent=5 // pred_check
      _
    $region10: #{_lambda_.22} parent=5 // pred_check_branch
      %207 = sbr.rel (%p204) target = $region12
    $region11: #{_lambda_.22} parent=5 // pred_region
      %s208 = ssub.s32 %s11, 1
      // Predicated region
      $region13: #{_lambda_.22} parent=11 // pred_check
        %p209 = pneg %p112
      $region14: #{_lambda_.22} parent=11 // pred_check_branch
        %211 = sbr.rel (%p209) target = $region16
      $region15: #{_lambda_.22} parent=11 // pred_region
        %s212 = smul.u32 2, %s22
        %p213 = scmp.lt.s32.totalorder %s212, 1
        %s214 = scalar_select %p213, %s212, 1
        %s215 = scalar_lea.vmem %s2, %s214
        %s216 = smul.u32 2, %s22
      $region16: #{_lambda_.22} parent=11 // pred_fallthru
        _
      // Predicated region
      $region17: #{_lambda_.22} parent=11 // pred_check
        %p217 = pneg %p138
      $region18: #{_lambda_.22} parent=11 // pred_check_branch
        %219 = sbr.rel (%p217) target = $region20
      $region19: #{_lambda_.22} parent=11 // pred_region
        %s220 = smul.u32 2, %s22
        %p221 = scmp.lt.s32.totalorder %s220, 1
        %s222 = scalar_select %p221, %s220, 1
        %s223 = scalar_lea.vmem %s3, %s222
        %s224 = smul.u32 2, %s22
      $region20: #{_lambda_.22} parent=11 // pred_fallthru
        _
      // Predicated region
      $region21: #{_lambda_.22} parent=11 // pred_check
        %p225 = pneg %p166
      $region22: #{_lambda_.22} parent=11 // pred_check_branch
        %227 = sbr.rel (%p225) target = $region24
      $region23: #{_lambda_.22} parent=11 // pred_region
        %s228 = smul.u32 2, %s22
        %p229 = scmp.lt.s32.totalorder %s21, 0
        %s230 = scalar_select %p229, %s21, 0
        %p231 = scmp.lt.s32.totalorder %s228, 1
        %s232 = scalar_select %p231, %s228, 1
        %s233 = smul.addr %s230, 2
        %s234 = sadd.s32 %s232, %s233
        %s235 = smul.addr %s234, 8
        %s236 = scalar_lea.vmem %s4, %s235
        %s237 = smul.u32 2, %s22
      $region24: #{_lambda_.22} parent=11 // pred_fallthru
        _
    $region12: #{_lambda_.22} parent=5 // pred_fallthru
      _
    %p238 = scmp.lt.s32.totalorder %s11, 6
    // Predicated region
    $region25: #{_lambda_.22} parent=5 // pred_check
      %p239 = pneg %p238
    $region26: #{_lambda_.22} parent=5 // pred_check_branch
      %241 = sbr.rel (%p239) target = $region28
    $region27: #{_lambda_.22} parent=5 // pred_region
      // Predicated region
      $region29: #{_lambda_.22} parent=27 // pred_check
        %p242 = pneg %p52
      $region30: #{_lambda_.22} parent=27 // pred_check_branch
        %244 = sbr.rel (%p242) target = $region32
      $region31: #{_lambda_.22} parent=27 // pred_region
        %s245 = smul.u32 3, %s20
        %p246 = scmp.lt.s32.totalorder %s18, 0
        %s247 = scalar_select %p246, %s18, 0
        %p248 = scmp.lt.s32.totalorder %s245, 17
        %s249 = scalar_select %p248, %s245, 17
        %s250 = smul.addr %s247, 18
        %s251 = sadd.s32 %s249, %s250
        %s252 = smul.addr %s251, 4
        %s253 = scalar_lea.vmem %s0, %s252
        %s254 = smul.u32 3, %s20
      $region32: #{_lambda_.22} parent=27 // pred_fallthru
        _
      // Predicated region
      $region33: #{_lambda_.22} parent=27 // pred_check
        %p255 = pneg %p80
      $region34: #{_lambda_.22} parent=27 // pred_check_branch
        %257 = sbr.rel (%p255) target = $region36
      $region35: #{_lambda_.22} parent=27 // pred_region
        %s258 = smul.u32 48, %s20
        %s259 = smul.u32 2, %s19
        %p260 = scmp.lt.s32.totalorder %s258, 287
        %s261 = scalar_select %p260, %s258, 287
        %p262 = scmp.lt.s32.totalorder %s259, 1
        %s263 = scalar_select %p262, %s259, 1
        %s264 = smul.addr %s261, 2
        %s265 = sadd.s32 %s263, %s264
        %s266 = smul.addr %s265, 4
        %s267 = scalar_lea.vmem %s1, %s266
        %s268 = smul.u32 48, %s20
        %s269 = smul.u32 2, %s19
      $region36: #{_lambda_.22} parent=27 // pred_fallthru
        _
    $region28: #{_lambda_.22} parent=5 // pred_fallthru
      _
    %p270 = scmp.le.s32.totalorder 1, %s11
    %p271 = scmp.lt.s32.totalorder %s11, 7
    %p272 = pnand %p270, %p271
    %p273 = pneg %p272
    // Predicated region
    $region37: #{_lambda_.22} parent=5 // pred_check
      _
    $region38: #{_lambda_.22} parent=5 // pred_check_branch
      %275 = sbr.rel (%p272) target = $region40
    $region39: #{_lambda_.22} parent=5 // pred_region
      %s276 = ssub.s32 %s11, 1
      %s277 = smul.u32 3, %s23
      %p278 = scmp.lt.s32.totalorder %s21, 0
      %s279 = scalar_select %p278, %s21, 0
      %p280 = scmp.lt.s32.totalorder %s277, 17
      %s281 = scalar_select %p280, %s277, 17
      %s282 = smul.addr %s279, 18
      %s283 = sadd.s32 %s281, %s282
      %s284 = smul.addr %s283, 4
      %s285 = scalar_lea.vmem %s0, %s284
      %p286 = pneg %p58
      %p287 = pneg %p55
      %s288 = smul.u32 48, %s23
      %s289 = smul.u32 2, %s22
      %p290 = scmp.lt.s32.totalorder %s288, 287
      %s291 = scalar_select %p290, %s288, 287
      %p292 = scmp.lt.s32.totalorder %s289, 1
      %s293 = scalar_select %p292, %s289, 1
      %s294 = smul.addr %s291, 2
      %s295 = sadd.s32 %s293, %s294
      %s296 = smul.addr %s295, 4
      %s297 = scalar_lea.vmem %s1, %s296
      %p298 = pneg %p86
      %p299 = pneg %p83
      %s300 = smul.u32 2, %s22
      %p301 = scmp.lt.s32.totalorder %s300, 1
      %s302 = scalar_select %p301, %s300, 1
      %s303 = scalar_lea.vmem %s2, %s302
      %p304 = pneg %p112
      %p305 = pneg %p109
      %s306 = smul.u32 2, %s22
      %p307 = scmp.lt.s32.totalorder %s306, 1
      %s308 = scalar_select %p307, %s306, 1
      %s309 = scalar_lea.vmem %s3, %s308
      %p310 = pneg %p138
      %p311 = pneg %p135
      %s312 = smul.u32 2, %s22
      %p313 = scmp.lt.s32.totalorder %s21, 0
      %s314 = scalar_select %p313, %s21, 0
      %p315 = scmp.lt.s32.totalorder %s312, 1
      %s316 = scalar_select %p315, %s312, 1
      %s317 = smul.addr %s314, 2
      %s318 = sadd.s32 %s316, %s317
      %s319 = smul.addr %s318, 8
      %s320 = scalar_lea.vmem %s4, %s319
      %p321 = pneg %p166
      %p322 = pneg %p163
      %p323 = pneg %p194
      %p324 = pneg %p191
      %s325 = smul.u32 2, %s22
      %p326 = scmp.lt.s32.totalorder %s21, 0
      %s327 = scalar_select %p326, %s21, 0
      %p328 = scmp.lt.s32.totalorder %s325, 1
      %s329 = scalar_select %p328, %s325, 1
      %s330 = smul.addr %s327, 2
      %s331 = sadd.s32 %s329, %s330
      %s332 = smul.addr %s331, 8
      %s333 = scalar_lea.vmem %s5, %s332
      %s334 = smul.u32 3, %s23
      %p335 = scmp.lt.s32.totalorder %s21, 0
      %s336 = scalar_select %p335, %s21, 0
      %p337 = scmp.lt.s32.totalorder %s334, 17
      %s338 = scalar_select %p337, %s334, 17
      %s339 = smul.addr %s336, 18
      %s340 = sadd.s32 %s338, %s339
      %s341 = smul.addr %s340, 4
      %s342 = scalar_lea.vmem %s0, %s341
      %s343 = smul.u32 3, %s23
      %s344 = smul.u32 48, %s23
      %s345 = smul.u32 2, %s22
      %p346 = scmp.lt.s32.totalorder %s344, 287
      %s347 = scalar_select %p346, %s344, 287
      %p348 = scmp.lt.s32.totalorder %s345, 1
      %s349 = scalar_select %p348, %s345, 1
      %s350 = smul.addr %s347, 2
      %s351 = sadd.s32 %s349, %s350
      %s352 = smul.addr %s351, 4
      %s353 = scalar_lea.vmem %s1, %s352
      %s354 = smul.u32 48, %s23
      %s355 = smul.u32 2, %s22
      %s356 = smul.u32 2, %s22
      %p357 = scmp.lt.s32.totalorder %s356, 1
      %s358 = scalar_select %p357, %s356, 1
      %s359 = scalar_lea.vmem %s2, %s358
      %s360 = smul.u32 2, %s22
      %s361 = smul.u32 2, %s22
      %p362 = scmp.lt.s32.totalorder %s361, 1
      %s363 = scalar_select %p362, %s361, 1
      %s364 = scalar_lea.vmem %s3, %s363
      %s365 = smul.u32 2, %s22
      %s366 = smul.u32 2, %s22
      %p367 = scmp.lt.s32.totalorder %s21, 0
      %s368 = scalar_select %p367, %s21, 0
      %p369 = scmp.lt.s32.totalorder %s366, 1
      %s370 = scalar_select %p369, %s366, 1
      %s371 = smul.addr %s368, 2
      %s372 = sadd.s32 %s370, %s371
      %s373 = smul.addr %s372, 8
      %s374 = scalar_lea.vmem %s4, %s373
      %s375 = smul.u32 2, %s22
      %s376 = smul.u32 2, %s22
      %p377 = scmp.lt.s32.totalorder %s21, 0
      %s378 = scalar_select %p377, %s21, 0
      %p379 = scmp.lt.s32.totalorder %s376, 1
      %s380 = scalar_select %p379, %s376, 1
      %s381 = smul.addr %s378, 2
      %s382 = sadd.s32 %s380, %s381
      %s383 = smul.addr %s382, 8
      %s384 = scalar_lea.vmem %s5, %s383
      %s385 = smul.u32 2, %s22
      %p387 = scmp.eq.s32.totalorder %s23, 0
      // Predicated region
      $region41: #{_lambda_.22} parent=39 // pred_check
        %p388 = pneg %p387
      $region42: #{_lambda_.22} parent=39 // pred_check_branch
        %390 = sbr.rel (%p388) target = $region44
      $region43: #{_lambda_.22} parent=39 // pred_region
        %391 = vst [vmem:[#allocation2] sm:$0xff] 0.0
        %392 = vst [vmem:[#allocation2 + $0x8] sm:$0xff] 0.0
      $region44: #{_lambda_.22} parent=39 // pred_fallthru
        _
      %v393 = vld [vmem:[#allocation2] sm:$0xff]
      %v394 = vld [vmem:[#allocation2 + $0x8] sm:$0xff]
      %v395 = vld [vmem:[%s342] sm:$0xff]
      %v396 = vld [vmem:[%s342 + $0x8] sm:$0xf]
      %v397 = vld [vmem:[%s353] sm:$0xff]
      %v398 = vld [vmem:[%s353 + $0x8] sm:$0xff]
      %v399 = vld [vmem:[%s353 + $0x10] sm:$0xff]
      %v400 = vld [vmem:[%s353 + $0x18] sm:$0xff]
      %v401 = vld [vmem:[%s353 + $0x20] sm:$0xff]
      %v402 = vld [vmem:[%s353 + $0x28] sm:$0xff]
      %v403 = vld [vmem:[%s353 + $0x30] sm:$0xff]
      %v404 = vld [vmem:[%s353 + $0x38] sm:$0xff]
      %v405 = vld [vmem:[%s353 + $0x40] sm:$0xff]
      %v406 = vld [vmem:[%s353 + $0x48] sm:$0xff]
      %v407 = vld [vmem:[%s353 + $0x50] sm:$0xff]
      %v408 = vld [vmem:[%s353 + $0x58] sm:$0xff]
      %v409 = vld [vmem:[%s353 + $0x60] sm:$0xff]
      %v410 = vld [vmem:[%s353 + $0x68] sm:$0xff]
      %v411 = vld [vmem:[%s353 + $0x70] sm:$0xff]
      %v412 = vld [vmem:[%s353 + $0x78] sm:$0xff]
      %v413 = vld [vmem:[%s353 + $0x80] sm:$0xff]
      %v414 = vld [vmem:[%s353 + $0x88] sm:$0xff]
      %v415 = vld [vmem:[%s353 + $0x90] sm:$0xff]
      %v416 = vld [vmem:[%s353 + $0x98] sm:$0xff]
      %v417 = vld [vmem:[%s353 + $0xa0] sm:$0xff]
      %v418 = vld [vmem:[%s353 + $0xa8] sm:$0xff]
      %v419 = vld [vmem:[%s353 + $0xb0] sm:$0xff]
      %v420 = vld [vmem:[%s353 + $0xb8] sm:$0xff]
      %v421 = vld [vmem:[%s353 + $0xc0] sm:$0xff]
      %v422 = vld [vmem:[%s353 + $0xc8] sm:$0xff]
      %v423 = vld [vmem:[%s353 + $0xd0] sm:$0xff]
      %v424 = vld [vmem:[%s353 + $0xd8] sm:$0xff]
      %v425 = vld [vmem:[%s353 + $0xe0] sm:$0xff]
      %v426 = vld [vmem:[%s353 + $0xe8] sm:$0xff]
      %v427 = vld [vmem:[%s353 + $0xf0] sm:$0xff]
      %v428 = vld [vmem:[%s353 + $0xf8] sm:$0xff]
      %v429 = vld [vmem:[%s353 + $0x100] sm:$0xff]
      %v430 = vld [vmem:[%s353 + $0x108] sm:$0xff]
      %v431 = vld [vmem:[%s353 + $0x110] sm:$0xff]
      %v432 = vld [vmem:[%s353 + $0x118] sm:$0xff]
      %v433 = vld [vmem:[%s353 + $0x120] sm:$0xff]
      %v434 = vld [vmem:[%s353 + $0x128] sm:$0xff]
      %v435 = vld [vmem:[%s353 + $0x130] sm:$0xff]
      %v436 = vld [vmem:[%s353 + $0x138] sm:$0xff]
      %v437 = vld [vmem:[%s353 + $0x140] sm:$0xff]
      %v438 = vld [vmem:[%s353 + $0x148] sm:$0xff]
      %v439 = vld [vmem:[%s353 + $0x150] sm:$0xff]
      %v440 = vld [vmem:[%s353 + $0x158] sm:$0xff]
      %v441 = vld [vmem:[%s353 + $0x160] sm:$0xff]
      %v442 = vld [vmem:[%s353 + $0x168] sm:$0xff]
      %v443 = vld [vmem:[%s353 + $0x170] sm:$0xff]
      %v444 = vld [vmem:[%s353 + $0x178] sm:$0xff]
      %v447 = vunpack.c.l.b16 %v395
      %v448 = vunpack.c.h.b16 %v395
      %v449 = vunpack.c.l.b16 %v396
      %v450 = vpack.c.b16 %v447, %v447
      %v451 = vpack.c.b16 %v448, %v448
      %v452 = vpack.c.b16 %v449, %v449
      %v504 = vunpack.c.l.b16 %v397
      %v505 = vunpack.c.h.b16 %v397
      %v506 = vunpack.c.l.b16 %v398
      %v507 = vunpack.c.h.b16 %v398
      %v508 = vunpack.c.l.b16 %v399
      %v509 = vunpack.c.h.b16 %v399
      %v510 = vunpack.c.l.b16 %v400
      %v511 = vunpack.c.h.b16 %v400
      %v512 = vunpack.c.l.b16 %v401
      %v513 = vunpack.c.h.b16 %v401
      %v514 = vunpack.c.l.b16 %v402
      %v515 = vunpack.c.h.b16 %v402
      %v516 = vunpack.c.l.b16 %v403
      %v517 = vunpack.c.h.b16 %v403
      %v518 = vunpack.c.l.b16 %v404
      %v519 = vunpack.c.h.b16 %v404
      %v520 = vunpack.c.l.b16 %v405
      %v521 = vunpack.c.h.b16 %v405
      %v522 = vunpack.c.l.b16 %v406
      %v523 = vunpack.c.h.b16 %v406
      %v524 = vunpack.c.l.b16 %v407
      %v525 = vunpack.c.h.b16 %v407
      %v526 = vunpack.c.l.b16 %v408
      %v527 = vunpack.c.h.b16 %v408
      %v528 = vunpack.c.l.b16 %v409
      %v529 = vunpack.c.h.b16 %v409
      %v530 = vunpack.c.l.b16 %v410
      %v531 = vunpack.c.h.b16 %v410
      %v532 = vunpack.c.l.b16 %v411
      %v533 = vunpack.c.h.b16 %v411
      %v534 = vunpack.c.l.b16 %v412
      %v535 = vunpack.c.h.b16 %v412
      %v536 = vunpack.c.l.b16 %v413
      %v537 = vunpack.c.h.b16 %v413
      %v538 = vunpack.c.l.b16 %v414
      %v539 = vunpack.c.h.b16 %v414
      %v540 = vunpack.c.l.b16 %v415
      %v541 = vunpack.c.h.b16 %v415
      %v542 = vunpack.c.l.b16 %v416
      %v543 = vunpack.c.h.b16 %v416
      %v544 = vunpack.c.l.b16 %v417
      %v545 = vunpack.c.h.b16 %v417
      %v546 = vunpack.c.l.b16 %v418
      %v547 = vunpack.c.h.b16 %v418
      %v548 = vunpack.c.l.b16 %v419
      %v549 = vunpack.c.h.b16 %v419
      %v550 = vunpack.c.l.b16 %v420
      %v551 = vunpack.c.h.b16 %v420
      %v552 = vunpack.c.l.b16 %v421
      %v553 = vunpack.c.h.b16 %v421
      %v554 = vunpack.c.l.b16 %v422
      %v555 = vunpack.c.h.b16 %v422
      %v556 = vunpack.c.l.b16 %v423
      %v557 = vunpack.c.h.b16 %v423
      %v558 = vunpack.c.l.b16 %v424
      %v559 = vunpack.c.h.b16 %v424
      %v560 = vunpack.c.l.b16 %v425
      %v561 = vunpack.c.h.b16 %v425
      %v562 = vunpack.c.l.b16 %v426
      %v563 = vunpack.c.h.b16 %v426
      %v564 = vunpack.c.l.b16 %v427
      %v565 = vunpack.c.h.b16 %v427
      %v566 = vunpack.c.l.b16 %v428
      %v567 = vunpack.c.h.b16 %v428
      %v568 = vunpack.c.l.b16 %v429
      %v569 = vunpack.c.h.b16 %v429
      %v570 = vunpack.c.l.b16 %v430
      %v571 = vunpack.c.h.b16 %v430
      %v572 = vunpack.c.l.b16 %v431
      %v573 = vunpack.c.h.b16 %v431
      %v574 = vunpack.c.l.b16 %v432
      %v575 = vunpack.c.h.b16 %v432
      %v576 = vunpack.c.l.b16 %v433
      %v577 = vunpack.c.h.b16 %v433
      %v578 = vunpack.c.l.b16 %v434
      %v579 = vunpack.c.h.b16 %v434
      %v580 = vunpack.c.l.b16 %v435
      %v581 = vunpack.c.h.b16 %v435
      %v582 = vunpack.c.l.b16 %v436
      %v583 = vunpack.c.h.b16 %v436
      %v584 = vunpack.c.l.b16 %v437
      %v585 = vunpack.c.h.b16 %v437
      %v586 = vunpack.c.l.b16 %v438
      %v587 = vunpack.c.h.b16 %v438
      %v588 = vunpack.c.l.b16 %v439
      %v589 = vunpack.c.h.b16 %v439
      %v590 = vunpack.c.l.b16 %v440
      %v591 = vunpack.c.h.b16 %v440
      %v592 = vunpack.c.l.b16 %v441
      %v593 = vunpack.c.h.b16 %v441
      %v594 = vunpack.c.l.b16 %v442
      %v595 = vunpack.c.h.b16 %v442
      %v596 = vunpack.c.l.b16 %v443
      %v597 = vunpack.c.h.b16 %v443
      %v598 = vunpack.c.l.b16 %v444
      %v599 = vunpack.c.h.b16 %v444
      %v600 = vpack.c.b16 %v506, %v504
      %v601 = vpack.c.b16 %v507, %v505
      %v602 = vpack.c.b16 %v510, %v508
      %v603 = vpack.c.b16 %v511, %v509
      %v604 = vpack.c.b16 %v514, %v512
      %v605 = vpack.c.b16 %v515, %v513
      %v606 = vpack.c.b16 %v518, %v516
      %v607 = vpack.c.b16 %v519, %v517
      %v608 = vpack.c.b16 %v522, %v520
      %v609 = vpack.c.b16 %v523, %v521
      %v610 = vpack.c.b16 %v526, %v524
      %v611 = vpack.c.b16 %v527, %v525
      %v612 = vpack.c.b16 %v530, %v528
      %v613 = vpack.c.b16 %v531, %v529
      %v614 = vpack.c.b16 %v534, %v532
      %v615 = vpack.c.b16 %v535, %v533
      %v616 = vpack.c.b16 %v538, %v536
      %v617 = vpack.c.b16 %v539, %v537
      %v618 = vpack.c.b16 %v542, %v540
      %v619 = vpack.c.b16 %v543, %v541
      %v620 = vpack.c.b16 %v546, %v544
      %v621 = vpack.c.b16 %v547, %v545
      %v622 = vpack.c.b16 %v550, %v548
      %v623 = vpack.c.b16 %v551, %v549
      %v624 = vpack.c.b16 %v554, %v552
      %v625 = vpack.c.b16 %v555, %v553
      %v626 = vpack.c.b16 %v558, %v556
      %v627 = vpack.c.b16 %v559, %v557
      %v628 = vpack.c.b16 %v562, %v560
      %v629 = vpack.c.b16 %v563, %v561
      %v630 = vpack.c.b16 %v566, %v564
      %v631 = vpack.c.b16 %v567, %v565
      %v632 = vpack.c.b16 %v570, %v568
      %v633 = vpack.c.b16 %v571, %v569
      %v634 = vpack.c.b16 %v574, %v572
      %v635 = vpack.c.b16 %v575, %v573
      %v636 = vpack.c.b16 %v578, %v576
      %v637 = vpack.c.b16 %v579, %v577
      %v638 = vpack.c.b16 %v582, %v580
      %v639 = vpack.c.b16 %v583, %v581
      %v640 = vpack.c.b16 %v586, %v584
      %v641 = vpack.c.b16 %v587, %v585
      %v642 = vpack.c.b16 %v590, %v588
      %v643 = vpack.c.b16 %v591, %v589
      %v644 = vpack.c.b16 %v594, %v592
      %v645 = vpack.c.b16 %v595, %v593
      %v646 = vpack.c.b16 %v598, %v596
      %v647 = vpack.c.b16 %v599, %v597
      %696 = vmatprep.subr.bf16.mxu0 %v601
      %697 = vmatpush1.bf16.msra.mxu0 %v600
      %698 = vmatprep.subr.bf16.mxu0 %v603
      %699 = vmatpush1.bf16.msra.mxu0 %v602
      %700 = vmatprep.subr.bf16.mxu0 %v605
      %701 = vmatpush1.bf16.msra.mxu0 %v604
      %702 = vmatprep.subr.bf16.mxu0 %v607
      %703 = vmatpush1.bf16.msra.mxu0 %v606
      %704 = vmatprep.subr.bf16.mxu0 %v609
      %705 = vmatpush1.bf16.msra.mxu0 %v608
      %706 = vmatprep.subr.bf16.mxu0 %v611
      %707 = vmatpush1.bf16.msra.mxu0 %v610
      %708 = vmatprep.subr.bf16.mxu0 %v613
      %709 = vmatpush1.bf16.msra.mxu0 %v612
      %710 = vmatprep.subr.bf16.mxu0 %v615
      %711 = vmatpush1.bf16.msra.mxu0 %v614
      %712 = vmatprep.subr.bf16.mxu0 %v617
      %713 = vmatpush1.bf16.msra.mxu0 %v616
      %714 = vmatprep.subr.bf16.mxu0 %v619
      %715 = vmatpush1.bf16.msra.mxu0 %v618
      %716 = vmatprep.subr.bf16.mxu0 %v621
      %717 = vmatpush1.bf16.msra.mxu0 %v620
      %718 = vmatprep.subr.bf16.mxu0 %v623
      %719 = vmatpush1.bf16.msra.mxu0 %v622
      %720 = vmatprep.subr.bf16.mxu0 %v625
      %721 = vmatpush1.bf16.msra.mxu0 %v624
      %722 = vmatprep.subr.bf16.mxu0 %v627
      %723 = vmatpush1.bf16.msra.mxu0 %v626
      %724 = vmatprep.subr.bf16.mxu0 %v629
      %725 = vmatpush1.bf16.msra.mxu0 %v628
      %726 = vmatprep.subr.bf16.mxu0 %v631
      %727 = vmatpush1.bf16.msra.mxu0 %v630
      %728 = vmatprep.mubr.bf16.mxu0 %v451
      %729 = vmatmul.mubr.bf16.gmra.mrb[0].mxu0 %v450
      %v730 = vpop.f32.mrb[0].mxu0
      %v731 = vadd.f32 0.0, %v730
      %v732 = vpop.f32.mrb[0].mxu0
      %v733 = vadd.f32 0.0, %v732
      %v734 = vpop.f32.mrb[0].mxu0
      %v735 = vpop.f32.mrb[0].mxu0
      %736 = vdwg.mxu0
      %737 = vmatprep.subr.bf16.mxu0 %v633
      %738 = vmatpush1.bf16.msra.mxu0 %v632
      %739 = vmatprep.subr.bf16.mxu0 %v635
      %740 = vmatpush1.bf16.msra.mxu0 %v634
      %741 = vmatprep.subr.bf16.mxu0 %v637
      %742 = vmatpush1.bf16.msra.mxu0 %v636
      %743 = vmatprep.subr.bf16.mxu0 %v639
      %744 = vmatpush1.bf16.msra.mxu0 %v638
      %745 = vmatprep.subr.bf16.mxu0 %v641
      %746 = vmatpush1.bf16.msra.mxu0 %v640
      %747 = vmatprep.subr.bf16.mxu0 %v643
      %748 = vmatpush1.bf16.msra.mxu0 %v642
      %749 = vmatprep.subr.bf16.mxu0 %v645
      %750 = vmatpush1.bf16.msra.mxu0 %v644
      %751 = vmatprep.subr.bf16.mxu0 %v647
      %752 = vmatpush1.bf16.msra.mxu0 %v646
      %753 = vmatprep.subr.bf16.mxu0 0
      %754 = vmatpush1.bf16.msra.mxu0 0
      %755 = vmatprep.subr.bf16.mxu0 0
      %756 = vmatpush1.bf16.msra.mxu0 0
      %757 = vmatprep.subr.bf16.mxu0 0
      %758 = vmatpush1.bf16.msra.mxu0 0
      %759 = vmatprep.subr.bf16.mxu0 0
      %760 = vmatpush1.bf16.msra.mxu0 0
      %761 = vmatprep.subr.bf16.mxu0 0
      %762 = vmatpush1.bf16.msra.mxu0 0
      %763 = vmatprep.subr.bf16.mxu0 0
      %764 = vmatpush1.bf16.msra.mxu0 0
      %765 = vmatprep.subr.bf16.mxu0 0
      %766 = vmatpush1.bf16.msra.mxu0 0
      %767 = vmatprep.subr.bf16.mxu0 0
      %768 = vmatpush1.bf16.msra.mxu0 0
      %769 = vmatprep.mubr.bf16.mxu0 0
      %770 = vmatmul.mubr.bf16.gmra.mrb[0].mxu0 %v452
      %v771 = vpop.f32.mrb[0].mxu0
      %v772 = vadd.f32 %v731, %v771
      %v773 = vpop.f32.mrb[0].mxu0
      %v774 = vadd.f32 %v733, %v773
      %v775 = vpop.f32.mrb[0].mxu0
      %v776 = vpop.f32.mrb[0].mxu0
      %777 = vdwg.mxu0
      %v778 = vadd.f32 %v393, %v772
      %v779 = vadd.f32 %v394, %v774
      %780 = vst [vmem:[#allocation2] sm:$0xff] %v778
      %781 = vst [vmem:[#allocation2 + $0x8] sm:$0xff] %v779
      %p782 = scmp.eq.s32.totalorder %s23, 5
      // Predicated region
      $region45: #{_lambda_.22} parent=39 // pred_check
        %p783 = pneg %p782
      $region46: #{_lambda_.22} parent=39 // pred_check_branch
        %785 = sbr.rel (%p783) target = $region48
      $region47: #{_lambda_.22} parent=39 // pred_region
        %v786 = vld [vmem:[#allocation2] sm:$0xff]
        %v787 = vld [vmem:[#allocation2 + $0x8] sm:$0xff]
        %v788 = vld [vmem:[%s359] sm:$0x3]
        %v790 = vlaneseq
        %v791 = vshrl.u32 %v790, 7
        %v792 = vsub.s32 0, %v791
        %v793 = vrot.slane %v788, %v792
        %v794 = vlaneseq
        %v795 = vshrl.u32 %v794, 7
        %v796 = vsub.s32 1, %v795
        %v797 = vrot.slane %v788, %v796
        %v800 = vmul.f32 %v786, %v793
        %v801 = vmul.f32 %v787, %v797
        %v802 = vld [vmem:[%s364] sm:$0x3]
        %v804 = vlaneseq
        %v805 = vshrl.u32 %v804, 7
        %v806 = vsub.s32 0, %v805
        %v807 = vrot.slane %v802, %v806
        %v808 = vlaneseq
        %v809 = vshrl.u32 %v808, 7
        %v810 = vsub.s32 1, %v809
        %v811 = vrot.slane %v802, %v810
        %v814 = vadd.f32 %v800, %v807
        %v815 = vadd.f32 %v801, %v811
        %v816 = vld [vmem:[%s374] sm:$0xff]
        %v817 = vld [vmem:[%s374 + $0x8] sm:$0xff]
        %v818 = vadd.f32 %v814, %v816
        %v819 = vadd.f32 %v815, %v817
        %v820 = vmax.f32 %v818, 0.0
        %v821 = vmax.f32 %v819, 0.0
        %822 = vst [vmem:[%s384] sm:$0xff] %v820
        %823 = vst [vmem:[%s384 + $0x8] sm:$0xff] %v821
      $region48: #{_lambda_.22} parent=39 // pred_fallthru
        _
      %s824 = smul.u32 2, %s22
      %p825 = scmp.lt.s32.totalorder %s21, 0
      %s826 = scalar_select %p825, %s21, 0
      %p827 = scmp.lt.s32.totalorder %s824, 1
      %s828 = scalar_select %p827, %s824, 1
      %s829 = smul.addr %s826, 2
      %s830 = sadd.s32 %s828, %s829
      %s831 = smul.addr %s830, 8
      %s832 = scalar_lea.vmem %s5, %s831
      // Predicated region
      $region49: #{_lambda_.22} parent=39 // pred_check
        %p833 = pneg %p191
      $region50: #{_lambda_.22} parent=39 // pred_check_branch
        %835 = sbr.rel (%p833) target = $region52
      $region51: #{_lambda_.22} parent=39 // pred_region
        %s836 = smul.u32 2, %s22
      $region52: #{_lambda_.22} parent=39 // pred_fallthru
        _
      // Predicated region
      $region53: #{_lambda_.22} parent=39 // pred_check
        %p837 = pneg %p191
      $region54: #{_lambda_.22} parent=39 // pred_check_branch
        %839 = sbr.rel (%p837) target = $region56
      $region55: #{_lambda_.22} parent=39 // pred_region
        %s840 = smul.u32 2, %s22
        %p841 = scmp.lt.s32.totalorder %s21, 0
        %s842 = scalar_select %p841, %s21, 0
        %p843 = scmp.lt.s32.totalorder %s840, 1
        %s844 = scalar_select %p843, %s840, 1
        %s845 = smul.addr %s842, 2
        %s846 = sadd.s32 %s844, %s845
        %s847 = smul.addr %s846, 8
        %s848 = scalar_lea.vmem %s5, %s847
      $region56: #{_lambda_.22} parent=39 // pred_fallthru
        _
    $region40: #{_lambda_.22} parent=5 // pred_fallthru
      _
    %p849 = scmp.le.s32.totalorder 2, %s11
    // Predicated region
    $region57: #{_lambda_.22} parent=5 // pred_check
      %p850 = pneg %p849
    $region58: #{_lambda_.22} parent=5 // pred_check_branch
      %852 = sbr.rel (%p850) target = $region60
    $region59: #{_lambda_.22} parent=5 // pred_region
      %s853 = ssub.s32 %s11, 2
    $region60: #{_lambda_.22} parent=5 // pred_fallthru
      _
  $region6: #{_lambda_.22} parent=0 // loop_footer
    %s15 = sadd.s32 1, %s11
  $region7: #{_lambda_.22} parent=0 // loop_footer_branch
    %10 = sbr.rel target = $region3
  $region8: #{_lambda_.22} parent=0 // loop_exit
    _

// kernel: _lambda_.24
$region0: #{_lambda_.24}
  #allocation0 [shape = 'u32[]', space=smem, size = 0x4, offset = 0x4, fixed_abs, tag = 'smem constant byte address 0x4 - core index']
  #allocation1 [shape = 'u32[144,128]{1,0:T(1,128)}', space=vmem, size = 0x12000, scoped, tag = 'internal scratch']
  #allocation2 [shape = 'f32[8,256]{1,0:T(8,128)}', space=vmem, size = 0x2000, scoped, tag = 'scratch operand']
  %s0 = inlined_call_operand.vmem [shape: bf16[8,2304], index: 0, kind: input, shape index: {}]
  %s1 = inlined_call_operand.vmem [shape: bf16[2304,512], index: 1, kind: input, shape index: {}]
  %s2 = inlined_call_operand.vmem [shape: f32[1,512], index: 2, kind: input, shape index: {}]
  %s3 = inlined_call_operand.vmem [shape: f32[1,512], index: 3, kind: input, shape index: {}]
  %s4 = inlined_call_operand.vmem [shape: f32[8,512], index: 4, kind: output, shape index: {}]
  %s5 = sld [smem:[#allocation0]]
  $region95: #{_lambda_.24} parent=0
    _
  %s7 = ssub.s32 1, %s5
  %s8 = scalar_select 0, %s7, %s5
  $region1: #{_lambda_.24} parent=0
    #allocation3 [shape = 'u8[393216]{0}', space=vmem, size = 0x60000, scoped, tag = 'input window, operand 1']
    loop: start=0, step=1, limit=14
    $region2: #{_lambda_.24} parent=1 // loop_pre_header
      _
    $region3: #{_lambda_.24} parent=1 // loop_header
      %s10 = sphi 0, %s14
      %p11 = scmp.ge.s32.totalorder %s10, 14
      %s17 = sphi 0, %s36
      %s18 = sphi 0, %s32
      %s19 = sphi 0, %s28
      %s20 = sphi 0, %s17
      %s21 = sphi 0, %s18
      %s22 = sphi 0, %s19
      %s23 = sphi 0, %s20
      %s24 = sphi 0, %s21
      %s25 = sphi 0, %s22
      %s41 = sphi 0, %s43
      %s44 = sphi 0, %s41
      %s45 = sphi 0, %s44
      %s61 = sphi 0, %s45
      %s69 = sphi 0, %s71
      %s72 = sphi 0, %s69
      %s73 = sphi 0, %s72
      %s89 = sphi 0, %s73
      %s95 = sphi 0, %s97
      %s98 = sphi 0, %s95
      %s99 = sphi 0, %s98
      %s115 = sphi 0, %s99
      %s121 = sphi 0, %s123
      %s124 = sphi 0, %s121
      %s125 = sphi 0, %s124
      %s141 = sphi 0, %s125
      %s149 = sphi 0, %s151
      %s152 = sphi 0, %s149
      %s153 = sphi 0, %s152
      %s169 = sphi 0, %s153
    $region4: #{_lambda_.24} parent=1 // loop_header_branch
      %13 = sbr.rel (%p11) target = $region8
    $region5: #{_lambda_.24} parent=1 // loop_body
      %s15 = ssub.s32 %s10, 1
      %s16 = ssub.s32 %s10, 2
      %s26 = sadd.s32 1, %s19
      %p27 = scmp.ge.s32.totalorder %s26, 6
      %s28 = scalar_select %p27, 0, %s26
      %s29 = sadd.s32 1, %s18
      %s30 = scalar_select %p27, %s29, %s18
      %p31 = scmp.ge.s32.totalorder %s30, 2
      %s32 = scalar_select %p31, 0, %s30
      %s33 = sadd.s32 1, %s17
      %s34 = scalar_select %p31, %s33, %s17
      %p35 = scmp.ge.s32.totalorder %s34, 1
      %s36 = scalar_select %p35, 0, %s34
      %s37 = ssub.s32 %s17, %s36
      %s38 = ssub.s32 %s19, %s28
      %s39 = sor.u32 %s37, %s38
      %p40 = scmp.eq.s32.totalorder %s39, 0
      %s42 = sadd.s32 %s41, 1
      %s43 = scalar_select %p40, %s41, %s42
      %p46 = pneg %p40
      %p47 = scmp.eq.s32.totalorder %s10, 11
      %p48 = por %p46, %p47
      %p49 = scmp.ne.s32.totalorder %s41, %s44
      %p50 = scmp.eq.s32.totalorder %s10, 0
      %p51 = por %p49, %p50
      %p52 = scmp.ne.s32.totalorder %s41, %s44
      %p53 = scmp.eq.s32.totalorder %s15, 11
      %p54 = por %p52, %p53
      %p55 = scmp.ne.s32.totalorder %s44, %s45
      %p56 = scmp.eq.s32.totalorder %s15, 0
      %p57 = por %p55, %p56
      %p58 = scmp.ne.s32.totalorder %s44, %s45
      %p59 = scmp.eq.s32.totalorder %s16, 11
      %p60 = por %p58, %p59
      %p62 = scmp.ne.s32.totalorder %s45, %s61
      %p63 = scmp.eq.s32.totalorder %s16, 0
      %p64 = por %p62, %p63
      %s65 = ssub.s32 %s19, %s28
      %s66 = ssub.s32 %s18, %s32
      %s67 = sor.u32 %s65, %s66
      %p68 = scmp.eq.s32.totalorder %s67, 0
      %s70 = sadd.s32 %s69, 1
      %s71 = scalar_select %p68, %s69, %s70
      %p74 = pneg %p68
      %p75 = scmp.eq.s32.totalorder %s10, 11
      %p76 = por %p74, %p75
      %p77 = scmp.ne.s32.totalorder %s69, %s72
      %p78 = scmp.eq.s32.totalorder %s10, 0
      %p79 = por %p77, %p78
      %p80 = scmp.ne.s32.totalorder %s69, %s72
      %p81 = scmp.eq.s32.totalorder %s15, 11
      %p82 = por %p80, %p81
      %p83 = scmp.ne.s32.totalorder %s72, %s73
      %p84 = scmp.eq.s32.totalorder %s15, 0
      %p85 = por %p83, %p84
      %p86 = scmp.ne.s32.totalorder %s72, %s73
      %p87 = scmp.eq.s32.totalorder %s16, 11
      %p88 = por %p86, %p87
      %p90 = scmp.ne.s32.totalorder %s73, %s89
      %p91 = scmp.eq.s32.totalorder %s16, 0
      %p92 = por %p90, %p91
      %s93 = ssub.s32 %s18, %s32
      %p94 = scmp.eq.s32.totalorder %s93, 0
      %s96 = sadd.s32 %s95, 1
      %s97 = scalar_select %p94, %s95, %s96
      %p100 = pneg %p94
      %p101 = scmp.eq.s32.totalorder %s10, 11
      %p102 = por %p100, %p101
      %p103 = scmp.ne.s32.totalorder %s95, %s98
      %p104 = scmp.eq.s32.totalorder %s10, 0
      %p105 = por %p103, %p104
      %p106 = scmp.ne.s32.totalorder %s95, %s98
      %p107 = scmp.eq.s32.totalorder %s15, 11
      %p108 = por %p106, %p107
      %p109 = scmp.ne.s32.totalorder %s98, %s99
      %p110 = scmp.eq.s32.totalorder %s15, 0
      %p111 = por %p109, %p110
      %p112 = scmp.ne.s32.totalorder %s98, %s99
      %p113 = scmp.eq.s32.totalorder %s16, 11
      %p114 = por %p112, %p113
      %p116 = scmp.ne.s32.totalorder %s99, %s115
      %p117 = scmp.eq.s32.totalorder %s16, 0
      %p118 = por %p116, %p117
      %s119 = ssub.s32 %s18, %s32
      %p120 = scmp.eq.s32.totalorder %s119, 0
      %s122 = sadd.s32 %s121, 1
      %s123 = scalar_select %p120, %s121, %s122
      %p126 = pneg %p120
      %p127 = scmp.eq.s32.totalorder %s10, 11
      %p128 = por %p126, %p127
      %p129 = scmp.ne.s32.totalorder %s121, %s124
      %p130 = scmp.eq.s32.totalorder %s10, 0
      %p131 = por %p129, %p130
      %p132 = scmp.ne.s32.totalorder %s121, %s124
      %p133 = scmp.eq.s32.totalorder %s15, 11
      %p134 = por %p132, %p133
      %p135 = scmp.ne.s32.totalorder %s124, %s125
      %p136 = scmp.eq.s32.totalorder %s15, 0
      %p137 = por %p135, %p136
      %p138 = scmp.ne.s32.totalorder %s124, %s125
      %p139 = scmp.eq.s32.totalorder %s16, 11
      %p140 = por %p138, %p139
      %p142 = scmp.ne.s32.totalorder %s125, %s141
      %p143 = scmp.eq.s32.totalorder %s16, 0
      %p144 = por %p142, %p143
      %s145 = ssub.s32 %s17, %s36
      %s146 = ssub.s32 %s18, %s32
      %s147 = sor.u32 %s145, %s146
      %p148 = scmp.eq.s32.totalorder %s147, 0
      %s150 = sadd.s32 %s149, 1
      %s151 = scalar_select %p148, %s149, %s150
      %p154 = pneg %p148
      %p155 = scmp.eq.s32.totalorder %s10, 11
      %p156 = por %p154, %p155
      %p157 = scmp.ne.s32.totalorder %s149, %s152
      %p158 = scmp.eq.s32.totalorder %s10, 0
      %p159 = por %p157, %p158
      %p160 = scmp.ne.s32.totalorder %s149, %s152
      %p161 = scmp.eq.s32.totalorder %s15, 11
      %p162 = por %p160, %p161
      %p163 = scmp.ne.s32.totalorder %s152, %s153
      %p164 = scmp.eq.s32.totalorder %s15, 0
      %p165 = por %p163, %p164
      %p166 = scmp.ne.s32.totalorder %s152, %s153
      %p167 = scmp.eq.s32.totalorder %s16, 11
      %p168 = por %p166, %p167
      %p170 = scmp.ne.s32.totalorder %s153, %s169
      %p171 = scmp.eq.s32.totalorder %s16, 0
      %p172 = por %p170, %p171
      %p173 = scmp.le.s32.totalorder 1, %s10
      %p174 = scmp.lt.s32.totalorder %s10, 13
      %p175 = pnand %p173, %p174
      %p176 = pneg %p175
      // Predicated region
      $region9: #{_lambda_.24} parent=5 // pred_check
        _
      $region10: #{_lambda_.24} parent=5 // pred_check_branch
        %178 = sbr.rel (%p175) target = $region12
      $region11: #{_lambda_.24} parent=5 // pred_region
        %s179 = ssub.s32 %s10, 1
      $region12: #{_lambda_.24} parent=5 // pred_fallthru
        _
      %p180 = scmp.lt.s32.totalorder %s10, 12
      // Predicated region
      $region13: #{_lambda_.24} parent=5 // pred_check
        %p181 = pneg %p180
      $region14: #{_lambda_.24} parent=5 // pred_check_branch
        %183 = sbr.rel (%p181) target = $region16
      $region15: #{_lambda_.24} parent=5 // pred_region
        // Predicated region
        $region17: #{_lambda_.24} parent=15 // pred_check
          %p184 = pneg %p51
        $region18: #{_lambda_.24} parent=15 // pred_check_branch
          %186 = sbr.rel (%p184) target = $region20
        $region19: #{_lambda_.24} parent=15 // pred_region
          %s187 = smul.u32 3, %s19
          %p188 = scmp.lt.s32.totalorder %s17, 0
          %s189 = scalar_select %p188, %s17, 0
          %p190 = scmp.lt.s32.totalorder %s187, 17
          %s191 = scalar_select %p190, %s187, 17
          %s192 = smul.addr %s189, 18
          %s193 = sadd.s32 %s191, %s192
          %s194 = smul.addr %s193, 4
          %s195 = scalar_lea.vmem %s0, %s194
          %s196 = smul.u32 3, %s19
        $region20: #{_lambda_.24} parent=15 // pred_fallthru
          _
        // Predicated region
        $region21: #{_lambda_.24} parent=15 // pred_check
          %p197 = pneg %p79
        $region22: #{_lambda_.24} parent=15 // pred_check_branch
          %199 = sbr.rel (%p197) target = $region24
        $region23: #{_lambda_.24} parent=15 // pred_region
          %s200 = sand.u32 %s69, 1
          %s201 = sand.u32 %s69, 1
          %s202 = smul.addr %s201, 384
          %s203 = scalar_lea.vmem [#allocation3], %s202
          %s204 = smul.u32 48, %s19
          %s205 = smul.u32 2, %s18
          %s206 = smul.addr %s204, 4
          %s207 = sadd.s32 %s205, %s206
          %s208 = smul.addr %s207, 4
          %s209 = scalar_lea.vmem %s1, %s208
          // Predicated region
          $region25: #{_lambda_.24} parent=23 // pred_check
            _
          $region26: #{_lambda_.24} parent=23 // pred_check_branch
            %211 = sbr.rel (0) target = $region28
          $region27: #{_lambda_.24} parent=23 // pred_region
            // Predicated region
            $region29: #{_lambda_.24} parent=27 // pred_check
              _
            $region30: #{_lambda_.24} parent=27 // pred_check_branch
              %213 = sbr.rel (0) target = $region32
            $region31: #{_lambda_.24} parent=27 // pred_region
              // Predicated region
              $region44: #{_lambda_.24} parent=31 // pred_check
                _
              $region45: #{_lambda_.24} parent=31 // pred_check_branch
                %322 = sbr.rel (0) target = $region47
              $region46: #{_lambda_.24} parent=31 // pred_region
                loop: start=0, step=1, limit=1
                $region48: #{_lambda_.24} parent=46 // loop_pre_header
                  _
                $region49: #{_lambda_.24} parent=46 // loop_header
                  %s324 = sphi 0, %s328
                  %p325 = scmp.ge.s32.totalorder %s324, 1
                  %s329 = sphi %s209, %s209
                  %s330 = sphi %s203, %s203
                $region50: #{_lambda_.24} parent=46 // loop_header_branch
                  %327 = sbr.rel (%p325) target = $region54
                $region51: #{_lambda_.24} parent=46 // loop_body
                  %v331 = vld [vmem:[%s329] sm:$0xff]
                  %332 = vst [vmem:[%s330] sm:$0xff] %v331
                  %v333 = vld [vmem:[%s329 + $0x10] sm:$0xff]
                  %334 = vst [vmem:[%s330 + $0x8] sm:$0xff] %v333
                  %v335 = vld [vmem:[%s329 + $0x20] sm:$0xff]
                  %336 = vst [vmem:[%s330 + $0x10] sm:$0xff] %v335
                  %v337 = vld [vmem:[%s329 + $0x30] sm:$0xff]
                  %338 = vst [vmem:[%s330 + $0x18] sm:$0xff] %v337
                  %v339 = vld [vmem:[%s329 + $0x40] sm:$0xff]
                  %340 = vst [vmem:[%s330 + $0x20] sm:$0xff] %v339
                  %v341 = vld [vmem:[%s329 + $0x50] sm:$0xff]
                  %342 = vst [vmem:[%s330 + $0x28] sm:$0xff] %v341
                  %v343 = vld [vmem:[%s329 + $0x60] sm:$0xff]
                  %344 = vst [vmem:[%s330 + $0x30] sm:$0xff] %v343
                  %v345 = vld [vmem:[%s329 + $0x70] sm:$0xff]
                  %346 = vst [vmem:[%s330 + $0x38] sm:$0xff] %v345
                  %v347 = vld [vmem:[%s329 + $0x80] sm:$0xff]
                  %348 = vst [vmem:[%s330 + $0x40] sm:$0xff] %v347
                  %v349 = vld [vmem:[%s329 + $0x90] sm:$0xff]
                  %350 = vst [vmem:[%s330 + $0x48] sm:$0xff] %v349
                  %v351 = vld [vmem:[%s329 + $0xa0] sm:$0xff]
                  %352 = vst [vmem:[%s330 + $0x50] sm:$0xff] %v351
                  %v353 = vld [vmem:[%s329 + $0xb0] sm:$0xff]
                  %354 = vst [vmem:[%s330 + $0x58] sm:$0xff] %v353
                  %v355 = vld [vmem:[%s329 + $0xc0] sm:$0xff]
                  %356 = vst [vmem:[%s330 + $0x60] sm:$0xff] %v355
                  %v357 = vld [vmem:[%s329 + $0xd0] sm:$0xff]
                  %358 = vst [vmem:[%s330 + $0x68] sm:$0xff] %v357
                  %v359 = vld [vmem:[%s329 + $0xe0] sm:$0xff]
                  %360 = vst [vmem:[%s330 + $0x70] sm:$0xff] %v359
                  %v361 = vld [vmem:[%s329 + $0xf0] sm:$0xff]
                  %362 = vst [vmem:[%s330 + $0x78] sm:$0xff] %v361
                  %v363 = vld [vmem:[%s329 + $0x100] sm:$0xff]
                  %364 = vst [vmem:[%s330 + $0x80] sm:$0xff] %v363
                  %v365 = vld [vmem:[%s329 + $0x110] sm:$0xff]
                  %366 = vst [vmem:[%s330 + $0x88] sm:$0xff] %v365
                  %v367 = vld [vmem:[%s329 + $0x120] sm:$0xff]
                  %368 = vst [vmem:[%s330 + $0x90] sm:$0xff] %v367
                  %v369 = vld [vmem:[%s329 + $0x130] sm:$0xff]
                  %370 = vst [vmem:[%s330 + $0x98] sm:$0xff] %v369
                  %v371 = vld [vmem:[%s329 + $0x140] sm:$0xff]
                  %372 = vst [vmem:[%s330 + $0xa0] sm:$0xff] %v371
                  %v373 = vld [vmem:[%s329 + $0x150] sm:$0xff]
                  %374 = vst [vmem:[%s330 + $0xa8] sm:$0xff] %v373
                  %v375 = vld [vmem:[%s329 + $0x160] sm:$0xff]
                  %376 = vst [vmem:[%s330 + $0xb0] sm:$0xff] %v375
                  %v377 = vld [vmem:[%s329 + $0x170] sm:$0xff]
                  %378 = vst [vmem:[%s330 + $0xb8] sm:$0xff] %v377
                  %v379 = vld [vmem:[%s329 + $0x180] sm:$0xff]
                  %380 = vst [vmem:[%s330 + $0xc0] sm:$0xff] %v379
                  %v381 = vld [vmem:[%s329 + $0x190] sm:$0xff]
                  %382 = vst [vmem:[%s330 + $0xc8] sm:$0xff] %v381
                  %v383 = vld [vmem:[%s329 + $0x1a0] sm:$0xff]
                  %384 = vst [vmem:[%s330 + $0xd0] sm:$0xff] %v383
                  %v385 = vld [vmem:[%s329 + $0x1b0] sm:$0xff]
                  %386 = vst [vmem:[%s330 + $0xd8] sm:$0xff] %v385
                  %v387 = vld [vmem:[%s329 + $0x1c0] sm:$0xff]
                  %388 = vst [vmem:[%s330 + $0xe0] sm:$0xff] %v387
                  %v389 = vld [vmem:[%s329 + $0x1d0] sm:$0xff]
                  %390 = vst [vmem:[%s330 + $0xe8] sm:$0xff] %v389
                  %v391 = vld [vmem:[%s329 + $0x1e0] sm:$0xff]
                  %392 = vst [vmem:[%s330 + $0xf0] sm:$0xff] %v391
                  %v393 = vld [vmem:[%s329 + $0x1f0] sm:$0xff]
                  %394 = vst [vmem:[%s330 + $0xf8] sm:$0xff] %v393
                  %v395 = vld [vmem:[%s329 + $0x200] sm:$0xff]
                  %396 = vst [vmem:[%s330 + $0x100] sm:$0xff] %v395
                  %v397 = vld [vmem:[%s329 + $0x210] sm:$0xff]
                  %398 = vst [vmem:[%s330 + $0x108] sm:$0xff] %v397
                  %v399 = vld [vmem:[%s329 + $0x220] sm:$0xff]
                  %400 = vst [vmem:[%s330 + $0x110] sm:$0xff] %v399
                  %v401 = vld [vmem:[%s329 + $0x230] sm:$0xff]
                  %402 = vst [vmem:[%s330 + $0x118] sm:$0xff] %v401
                  %v403 = vld [vmem:[%s329 + $0x240] sm:$0xff]
                  %404 = vst [vmem:[%s330 + $0x120] sm:$0xff] %v403
                  %v405 = vld [vmem:[%s329 + $0x250] sm:$0xff]
                  %406 = vst [vmem:[%s330 + $0x128] sm:$0xff] %v405
                  %v407 = vld [vmem:[%s329 + $0x260] sm:$0xff]
                  %408 = vst [vmem:[%s330 + $0x130] sm:$0xff] %v407
                  %v409 = vld [vmem:[%s329 + $0x270] sm:$0xff]
                  %410 = vst [vmem:[%s330 + $0x138] sm:$0xff] %v409
                  %v411 = vld [vmem:[%s329 + $0x280] sm:$0xff]
                  %412 = vst [vmem:[%s330 + $0x140] sm:$0xff] %v411
                  %v413 = vld [vmem:[%s329 + $0x290] sm:$0xff]
                  %414 = vst [vmem:[%s330 + $0x148] sm:$0xff] %v413
                  %v415 = vld [vmem:[%s329 + $0x2a0] sm:$0xff]
                  %416 = vst [vmem:[%s330 + $0x150] sm:$0xff] %v415
                  %v417 = vld [vmem:[%s329 + $0x2b0] sm:$0xff]
                  %418 = vst [vmem:[%s330 + $0x158] sm:$0xff] %v417
                  %v419 = vld [vmem:[%s329 + $0x2c0] sm:$0xff]
                  %420 = vst [vmem:[%s330 + $0x160] sm:$0xff] %v419
                  %v421 = vld [vmem:[%s329 + $0x2d0] sm:$0xff]
                  %422 = vst [vmem:[%s330 + $0x168] sm:$0xff] %v421
                  %v423 = vld [vmem:[%s329 + $0x2e0] sm:$0xff]
                  %424 = vst [vmem:[%s330 + $0x170] sm:$0xff] %v423
                  %v425 = vld [vmem:[%s329 + $0x2f0] sm:$0xff]
                  %426 = vst [vmem:[%s330 + $0x178] sm:$0xff] %v425
                $region52: #{_lambda_.24} parent=46 // loop_footer
                  %s328 = sadd.s32 1, %s324
                $region53: #{_lambda_.24} parent=46 // loop_footer_branch
                  %323 = sbr.rel target = $region49
                $region54: #{_lambda_.24} parent=46 // loop_exit
                  _
              $region47: #{_lambda_.24} parent=31 // pred_fallthru
                _
              // Predicated region
              $region55: #{_lambda_.24} parent=31 // pred_check
                _
              $region56: #{_lambda_.24} parent=31 // pred_check_branch
                %428 = sbr.rel target = $region58
              $region57: #{_lambda_.24} parent=31 // pred_region
                _
              $region58: #{_lambda_.24} parent=31 // pred_fallthru
                _
            $region32: #{_lambda_.24} parent=27 // pred_fallthru
              _
            // Predicated region
            $region33: #{_lambda_.24} parent=27 // pred_check
              _
            $region34: #{_lambda_.24} parent=27 // pred_check_branch
              %215 = sbr.rel target = $region36
            $region35: #{_lambda_.24} parent=27 // pred_region
              loop: start=0, step=1, limit=1
              $region37: #{_lambda_.24} parent=35 // loop_pre_header
                _
              $region38: #{_lambda_.24} parent=35 // loop_header
                %s218 = sphi 0, %s222
                %p219 = scmp.ge.s32.totalorder %s218, 1
                %s223 = sphi %s209, %s209
                %s224 = sphi %s203, %s203
              $region39: #{_lambda_.24} parent=35 // loop_header_branch
                %221 = sbr.rel (%p219) target = $region43
              $region40: #{_lambda_.24} parent=35 // loop_body
                %v225 = vld [vmem:[%s223] sm:$0xff]
                %226 = vst [vmem:[%s224] sm:$0xff] %v225
                %v227 = vld [vmem:[%s223 + $0x10] sm:$0xff]
                %228 = vst [vmem:[%s224 + $0x8] sm:$0xff] %v227
                %v229 = vld [vmem:[%s223 + $0x20] sm:$0xff]
                %230 = vst [vmem:[%s224 + $0x10] sm:$0xff] %v229
                %v231 = vld [vmem:[%s223 + $0x30] sm:$0xff]
                %232 = vst [vmem:[%s224 + $0x18] sm:$0xff] %v231
                %v233 = vld [vmem:[%s223 + $0x40] sm:$0xff]
                %234 = vst [vmem:[%s224 + $0x20] sm:$0xff] %v233
                %v235 = vld [vmem:[%s223 + $0x50] sm:$0xff]
                %236 = vst [vmem:[%s224 + $0x28] sm:$0xff] %v235
                %v237 = vld [vmem:[%s223 + $0x60] sm:$0xff]
                %238 = vst [vmem:[%s224 + $0x30] sm:$0xff] %v237
                %v239 = vld [vmem:[%s223 + $0x70] sm:$0xff]
                %240 = vst [vmem:[%s224 + $0x38] sm:$0xff] %v239
                %v241 = vld [vmem:[%s223 + $0x80] sm:$0xff]
                %242 = vst [vmem:[%s224 + $0x40] sm:$0xff] %v241
                %v243 = vld [vmem:[%s223 + $0x90] sm:$0xff]
                %244 = vst [vmem:[%s224 + $0x48] sm:$0xff] %v243
                %v245 = vld [vmem:[%s223 + $0xa0] sm:$0xff]
                %246 = vst [vmem:[%s224 + $0x50] sm:$0xff] %v245
                %v247 = vld [vmem:[%s223 + $0xb0] sm:$0xff]
                %248 = vst [vmem:[%s224 + $0x58] sm:$0xff] %v247
                %v249 = vld [vmem:[%s223 + $0xc0] sm:$0xff]
                %250 = vst [vmem:[%s224 + $0x60] sm:$0xff] %v249
                %v251 = vld [vmem:[%s223 + $0xd0] sm:$0xff]
                %252 = vst [vmem:[%s224 + $0x68] sm:$0xff] %v251
                %v253 = vld [vmem:[%s223 + $0xe0] sm:$0xff]
                %254 = vst [vmem:[%s224 + $0x70] sm:$0xff] %v253
                %v255 = vld [vmem:[%s223 + $0xf0] sm:$0xff]
                %256 = vst [vmem:[%s224 + $0x78] sm:$0xff] %v255
                %v257 = vld [vmem:[%s223 + $0x100] sm:$0xff]
                %258 = vst [vmem:[%s224 + $0x80] sm:$0xff] %v257
                %v259 = vld [vmem:[%s223 + $0x110] sm:$0xff]
                %260 = vst [vmem:[%s224 + $0x88] sm:$0xff] %v259
                %v261 = vld [vmem:[%s223 + $0x120] sm:$0xff]
                %262 = vst [vmem:[%s224 + $0x90] sm:$0xff] %v261
                %v263 = vld [vmem:[%s223 + $0x130] sm:$0xff]
                %264 = vst [vmem:[%s224 + $0x98] sm:$0xff] %v263
                %v265 = vld [vmem:[%s223 + $0x140] sm:$0xff]
                %266 = vst [vmem:[%s224 + $0xa0] sm:$0xff] %v265
                %v267 = vld [vmem:[%s223 + $0x150] sm:$0xff]
                %268 = vst [vmem:[%s224 + $0xa8] sm:$0xff] %v267
                %v269 = vld [vmem:[%s223 + $0x160] sm:$0xff]
                %270 = vst [vmem:[%s224 + $0xb0] sm:$0xff] %v269
                %v271 = vld [vmem:[%s223 + $0x170] sm:$0xff]
                %272 = vst [vmem:[%s224 + $0xb8] sm:$0xff] %v271
                %v273 = vld [vmem:[%s223 + $0x180] sm:$0xff]
                %274 = vst [vmem:[%s224 + $0xc0] sm:$0xff] %v273
                %v275 = vld [vmem:[%s223 + $0x190] sm:$0xff]
                %276 = vst [vmem:[%s224 + $0xc8] sm:$0xff] %v275
                %v277 = vld [vmem:[%s223 + $0x1a0] sm:$0xff]
                %278 = vst [vmem:[%s224 + $0xd0] sm:$0xff] %v277
                %v279 = vld [vmem:[%s223 + $0x1b0] sm:$0xff]
                %280 = vst [vmem:[%s224 + $0xd8] sm:$0xff] %v279
                %v281 = vld [vmem:[%s223 + $0x1c0] sm:$0xff]
                %282 = vst [vmem:[%s224 + $0xe0] sm:$0xff] %v281
                %v283 = vld [vmem:[%s223 + $0x1d0] sm:$0xff]
                %284 = vst [vmem:[%s224 + $0xe8] sm:$0xff] %v283
                %v285 = vld [vmem:[%s223 + $0x1e0] sm:$0xff]
                %286 = vst [vmem:[%s224 + $0xf0] sm:$0xff] %v285
                %v287 = vld [vmem:[%s223 + $0x1f0] sm:$0xff]
                %288 = vst [vmem:[%s224 + $0xf8] sm:$0xff] %v287
                %v289 = vld [vmem:[%s223 + $0x200] sm:$0xff]
                %290 = vst [vmem:[%s224 + $0x100] sm:$0xff] %v289
                %v291 = vld [vmem:[%s223 + $0x210] sm:$0xff]
                %292 = vst [vmem:[%s224 + $0x108] sm:$0xff] %v291
                %v293 = vld [vmem:[%s223 + $0x220] sm:$0xff]
                %294 = vst [vmem:[%s224 + $0x110] sm:$0xff] %v293
                %v295 = vld [vmem:[%s223 + $0x230] sm:$0xff]
                %296 = vst [vmem:[%s224 + $0x118] sm:$0xff] %v295
                %v297 = vld [vmem:[%s223 + $0x240] sm:$0xff]
                %298 = vst [vmem:[%s224 + $0x120] sm:$0xff] %v297
                %v299 = vld [vmem:[%s223 + $0x250] sm:$0xff]
                %300 = vst [vmem:[%s224 + $0x128] sm:$0xff] %v299
                %v301 = vld [vmem:[%s223 + $0x260] sm:$0xff]
                %302 = vst [vmem:[%s224 + $0x130] sm:$0xff] %v301
                %v303 = vld [vmem:[%s223 + $0x270] sm:$0xff]
                %304 = vst [vmem:[%s224 + $0x138] sm:$0xff] %v303
                %v305 = vld [vmem:[%s223 + $0x280] sm:$0xff]
                %306 = vst [vmem:[%s224 + $0x140] sm:$0xff] %v305
                %v307 = vld [vmem:[%s223 + $0x290] sm:$0xff]
                %308 = vst [vmem:[%s224 + $0x148] sm:$0xff] %v307
                %v309 = vld [vmem:[%s223 + $0x2a0] sm:$0xff]
                %310 = vst [vmem:[%s224 + $0x150] sm:$0xff] %v309
                %v311 = vld [vmem:[%s223 + $0x2b0] sm:$0xff]
                %312 = vst [vmem:[%s224 + $0x158] sm:$0xff] %v311
                %v313 = vld [vmem:[%s223 + $0x2c0] sm:$0xff]
                %314 = vst [vmem:[%s224 + $0x160] sm:$0xff] %v313
                %v315 = vld [vmem:[%s223 + $0x2d0] sm:$0xff]
                %316 = vst [vmem:[%s224 + $0x168] sm:$0xff] %v315
                %v317 = vld [vmem:[%s223 + $0x2e0] sm:$0xff]
                %318 = vst [vmem:[%s224 + $0x170] sm:$0xff] %v317
                %v319 = vld [vmem:[%s223 + $0x2f0] sm:$0xff]
                %320 = vst [vmem:[%s224 + $0x178] sm:$0xff] %v319
              $region41: #{_lambda_.24} parent=35 // loop_footer
                %s222 = sadd.s32 1, %s218
              $region42: #{_lambda_.24} parent=35 // loop_footer_branch
                %217 = sbr.rel target = $region38
              $region43: #{_lambda_.24} parent=35 // loop_exit
                _
            $region36: #{_lambda_.24} parent=27 // pred_fallthru
              _
          $region28: #{_lambda_.24} parent=23 // pred_fallthru
            _
          %429 = vnop
        $region24: #{_lambda_.24} parent=15 // pred_fallthru
          _
        // Predicated region
        $region59: #{_lambda_.24} parent=15 // pred_check
          %p430 = pneg %p105
        $region60: #{_lambda_.24} parent=15 // pred_check_branch
          %432 = sbr.rel (%p430) target = $region62
        $region61: #{_lambda_.24} parent=15 // pred_region
          %s433 = smul.u32 2, %s18
          %p434 = scmp.lt.s32.totalorder %s433, 3
          %s435 = scalar_select %p434, %s433, 3
          %s436 = scalar_lea.vmem %s2, %s435
          %s437 = smul.u32 2, %s18
        $region62: #{_lambda_.24} parent=15 // pred_fallthru
          _
        // Predicated region
        $region63: #{_lambda_.24} parent=15 // pred_check
          %p438 = pneg %p131
        $region64: #{_lambda_.24} parent=15 // pred_check_branch
          %440 = sbr.rel (%p438) target = $region66
        $region65: #{_lambda_.24} parent=15 // pred_region
          %s441 = smul.u32 2, %s18
          %p442 = scmp.lt.s32.totalorder %s441, 3
          %s443 = scalar_select %p442, %s441, 3
          %s444 = scalar_lea.vmem %s3, %s443
          %s445 = smul.u32 2, %s18
        $region66: #{_lambda_.24} parent=15 // pred_fallthru
          _
      $region16: #{_lambda_.24} parent=5 // pred_fallthru
        _
      %p446 = scmp.le.s32.totalorder 1, %s10
      %p447 = scmp.lt.s32.totalorder %s10, 13
      %p448 = pnand %p446, %p447
      %p449 = pneg %p448
      // Predicated region
      $region67: #{_lambda_.24} parent=5 // pred_check
        _
      $region68: #{_lambda_.24} parent=5 // pred_check_branch
        %451 = sbr.rel (%p448) target = $region70
      $region69: #{_lambda_.24} parent=5 // pred_region
        %s452 = ssub.s32 %s10, 1
        %s453 = sand.u32 %s72, 1
        %s454 = sand.u32 %s72, 1
        %s455 = smul.addr %s454, 384
        %s456 = scalar_lea.vmem [#allocation3], %s455
        // Predicated region
        $region71: #{_lambda_.24} parent=69 // pred_check
          %p457 = pneg %p85
        $region72: #{_lambda_.24} parent=69 // pred_check_branch
          %459 = sbr.rel (%p457) target = $region74
        $region73: #{_lambda_.24} parent=69 // pred_region
          _
        $region74: #{_lambda_.24} parent=69 // pred_fallthru
          _
        %s460 = smul.u32 3, %s22
        %p461 = scmp.lt.s32.totalorder %s20, 0
        %s462 = scalar_select %p461, %s20, 0
        %p463 = scmp.lt.s32.totalorder %s460, 17
        %s464 = scalar_select %p463, %s460, 17
        %s465 = smul.addr %s462, 18
        %s466 = sadd.s32 %s464, %s465
        %s467 = smul.addr %s466, 4
        %s468 = scalar_lea.vmem %s0, %s467
        %p469 = pneg %p57
        %p470 = pneg %p54
        %s471 = sand.u32 %s72, 1
        %s472 = sand.u32 %s72, 1
        %s473 = smul.addr %s472, 384
        %s474 = scalar_lea.vmem [#allocation3], %s473
        %p475 = pneg %p85
        %p476 = pneg %p82
        %s477 = smul.u32 2, %s21
        %p478 = scmp.lt.s32.totalorder %s477, 3
        %s479 = scalar_select %p478, %s477, 3
        %s480 = scalar_lea.vmem %s2, %s479
        %p481 = pneg %p111
        %p482 = pneg %p108
        %s483 = smul.u32 2, %s21
        %p484 = scmp.lt.s32.totalorder %s483, 3
        %s485 = scalar_select %p484, %s483, 3
        %s486 = scalar_lea.vmem %s3, %s485
        %p487 = pneg %p137
        %p488 = pneg %p134
        %p489 = pneg %p165
        %p490 = pneg %p162
        %s491 = smul.u32 2, %s21
        %p492 = scmp.lt.s32.totalorder %s20, 0
        %s493 = scalar_select %p492, %s20, 0
        %p494 = scmp.lt.s32.totalorder %s491, 3
        %s495 = scalar_select %p494, %s491, 3
        %s496 = smul.addr %s493, 4
        %s497 = sadd.s32 %s495, %s496
        %s498 = smul.addr %s497, 8
        %s499 = scalar_lea.vmem %s4, %s498
        %s500 = smul.u32 3, %s22
        %p501 = scmp.lt.s32.totalorder %s20, 0
        %s502 = scalar_select %p501, %s20, 0
        %p503 = scmp.lt.s32.totalorder %s500, 17
        %s504 = scalar_select %p503, %s500, 17
        %s505 = smul.addr %s502, 18
        %s506 = sadd.s32 %s504, %s505
        %s507 = smul.addr %s506, 4
        %s508 = scalar_lea.vmem %s0, %s507
        %s509 = smul.u32 3, %s22
        %s510 = smul.u32 48, %s22
        %s511 = smul.u32 2, %s21
        %s512 = smul.u32 2, %s21
        %p513 = scmp.lt.s32.totalorder %s512, 3
        %s514 = scalar_select %p513, %s512, 3
        %s515 = scalar_lea.vmem %s2, %s514
        %s516 = smul.u32 2, %s21
        %s517 = smul.u32 2, %s21
        %p518 = scmp.lt.s32.totalorder %s517, 3
        %s519 = scalar_select %p518, %s517, 3
        %s520 = scalar_lea.vmem %s3, %s519
        %s521 = smul.u32 2, %s21
        %s522 = smul.u32 2, %s21
        %p523 = scmp.lt.s32.totalorder %s20, 0
        %s524 = scalar_select %p523, %s20, 0
        %p525 = scmp.lt.s32.totalorder %s522, 3
        %s526 = scalar_select %p525, %s522, 3
        %s527 = smul.addr %s524, 4
        %s528 = sadd.s32 %s526, %s527
        %s529 = smul.addr %s528, 8
        %s530 = scalar_lea.vmem %s4, %s529
        %s531 = smul.u32 2, %s21
        %p533 = scmp.eq.s32.totalorder %s22, 0
        // Predicated region
        $region75: #{_lambda_.24} parent=69 // pred_check
          %p534 = pneg %p533
        $region76: #{_lambda_.24} parent=69 // pred_check_branch
          %536 = sbr.rel (%p534) target = $region78
        $region77: #{_lambda_.24} parent=69 // pred_region
          %537 = vst [vmem:[#allocation2] sm:$0xff] 0.0
          %538 = vst [vmem:[#allocation2 + $0x8] sm:$0xff] 0.0
        $region78: #{_lambda_.24} parent=69 // pred_fallthru
          _
        %v539 = vld [vmem:[#allocation2] sm:$0xff]
        %v540 = vld [vmem:[#allocation2 + $0x8] sm:$0xff]
        %v541 = vld [vmem:[%s508] sm:$0xff]
        %v542 = vld [vmem:[%s508 + $0x8] sm:$0xf]
        %v543 = vld [vmem:[%s456] sm:$0xff]
        %v544 = vld [vmem:[%s456 + $0x8] sm:$0xff]
        %v545 = vld [vmem:[%s456 + $0x10] sm:$0xff]
        %v546 = vld [vmem:[%s456 + $0x18] sm:$0xff]
        %v547 = vld [vmem:[%s456 + $0x20] sm:$0xff]
        %v548 = vld [vmem:[%s456 + $0x28] sm:$0xff]
        %v549 = vld [vmem:[%s456 + $0x30] sm:$0xff]
        %v550 = vld [vmem:[%s456 + $0x38] sm:$0xff]
        %v551 = vld [vmem:[%s456 + $0x40] sm:$0xff]
        %v552 = vld [vmem:[%s456 + $0x48] sm:$0xff]
        %v553 = vld [vmem:[%s456 + $0x50] sm:$0xff]
        %v554 = vld [vmem:[%s456 + $0x58] sm:$0xff]
        %v555 = vld [vmem:[%s456 + $0x60] sm:$0xff]
        %v556 = vld [vmem:[%s456 + $0x68] sm:$0xff]
        %v557 = vld [vmem:[%s456 + $0x70] sm:$0xff]
        %v558 = vld [vmem:[%s456 + $0x78] sm:$0xff]
        %v559 = vld [vmem:[%s456 + $0x80] sm:$0xff]
        %v560 = vld [vmem:[%s456 + $0x88] sm:$0xff]
        %v561 = vld [vmem:[%s456 + $0x90] sm:$0xff]
        %v562 = vld [vmem:[%s456 + $0x98] sm:$0xff]
        %v563 = vld [vmem:[%s456 + $0xa0] sm:$0xff]
        %v564 = vld [vmem:[%s456 + $0xa8] sm:$0xff]
        %v565 = vld [vmem:[%s456 + $0xb0] sm:$0xff]
        %v566 = vld [vmem:[%s456 + $0xb8] sm:$0xff]
        %v567 = vld [vmem:[%s456 + $0xc0] sm:$0xff]
        %v568 = vld [vmem:[%s456 + $0xc8] sm:$0xff]
        %v569 = vld [vmem:[%s456 + $0xd0] sm:$0xff]
        %v570 = vld [vmem:[%s456 + $0xd8] sm:$0xff]
        %v571 = vld [vmem:[%s456 + $0xe0] sm:$0xff]
        %v572 = vld [vmem:[%s456 + $0xe8] sm:$0xff]
        %v573 = vld [vmem:[%s456 + $0xf0] sm:$0xff]
        %v574 = vld [vmem:[%s456 + $0xf8] sm:$0xff]
        %v575 = vld [vmem:[%s456 + $0x100] sm:$0xff]
        %v576 = vld [vmem:[%s456 + $0x108] sm:$0xff]
        %v577 = vld [vmem:[%s456 + $0x110] sm:$0xff]
        %v578 = vld [vmem:[%s456 + $0x118] sm:$0xff]
        %v579 = vld [vmem:[%s456 + $0x120] sm:$0xff]
        %v580 = vld [vmem:[%s456 + $0x128] sm:$0xff]
        %v581 = vld [vmem:[%s456 + $0x130] sm:$0xff]
        %v582 = vld [vmem:[%s456 + $0x138] sm:$0xff]
        %v583 = vld [vmem:[%s456 + $0x140] sm:$0xff]
        %v584 = vld [vmem:[%s456 + $0x148] sm:$0xff]
        %v585 = vld [vmem:[%s456 + $0x150] sm:$0xff]
        %v586 = vld [vmem:[%s456 + $0x158] sm:$0xff]
        %v587 = vld [vmem:[%s456 + $0x160] sm:$0xff]
        %v588 = vld [vmem:[%s456 + $0x168] sm:$0xff]
        %v589 = vld [vmem:[%s456 + $0x170] sm:$0xff]
        %v590 = vld [vmem:[%s456 + $0x178] sm:$0xff]
        %v593 = vunpack.c.l.b16 %v541
        %v594 = vunpack.c.h.b16 %v541
        %v595 = vunpack.c.l.b16 %v542
        %v596 = vpack.c.b16 %v593, %v593
        %v597 = vpack.c.b16 %v594, %v594
        %v598 = vpack.c.b16 %v595, %v595
        %v650 = vunpack.c.l.b16 %v543
        %v651 = vunpack.c.h.b16 %v543
        %v652 = vunpack.c.l.b16 %v544
        %v653 = vunpack.c.h.b16 %v544
        %v654 = vunpack.c.l.b16 %v545
        %v655 = vunpack.c.h.b16 %v545
        %v656 = vunpack.c.l.b16 %v546
        %v657 = vunpack.c.h.b16 %v546
        %v658 = vunpack.c.l.b16 %v547
        %v659 = vunpack.c.h.b16 %v547
        %v660 = vunpack.c.l.b16 %v548
        %v661 = vunpack.c.h.b16 %v548
        %v662 = vunpack.c.l.b16 %v549
        %v663 = vunpack.c.h.b16 %v549
        %v664 = vunpack.c.l.b16 %v550
        %v665 = vunpack.c.h.b16 %v550
        %v666 = vunpack.c.l.b16 %v551
        %v667 = vunpack.c.h.b16 %v551
        %v668 = vunpack.c.l.b16 %v552
        %v669 = vunpack.c.h.b16 %v552
        %v670 = vunpack.c.l.b16 %v553
        %v671 = vunpack.c.h.b16 %v553
        %v672 = vunpack.c.l.b16 %v554
        %v673 = vunpack.c.h.b16 %v554
        %v674 = vunpack.c.l.b16 %v555
        %v675 = vunpack.c.h.b16 %v555
        %v676 = vunpack.c.l.b16 %v556
        %v677 = vunpack.c.h.b16 %v556
        %v678 = vunpack.c.l.b16 %v557
        %v679 = vunpack.c.h.b16 %v557
        %v680 = vunpack.c.l.b16 %v558
        %v681 = vunpack.c.h.b16 %v558
        %v682 = vunpack.c.l.b16 %v559
        %v683 = vunpack.c.h.b16 %v559
        %v684 = vunpack.c.l.b16 %v560
        %v685 = vunpack.c.h.b16 %v560
        %v686 = vunpack.c.l.b16 %v561
        %v687 = vunpack.c.h.b16 %v561
        %v688 = vunpack.c.l.b16 %v562
        %v689 = vunpack.c.h.b16 %v562
        %v690 = vunpack.c.l.b16 %v563
        %v691 = vunpack.c.h.b16 %v563
        %v692 = vunpack.c.l.b16 %v564
        %v693 = vunpack.c.h.b16 %v564
        %v694 = vunpack.c.l.b16 %v565
        %v695 = vunpack.c.h.b16 %v565
        %v696 = vunpack.c.l.b16 %v566
        %v697 = vunpack.c.h.b16 %v566
        %v698 = vunpack.c.l.b16 %v567
        %v699 = vunpack.c.h.b16 %v567
        %v700 = vunpack.c.l.b16 %v568
        %v701 = vunpack.c.h.b16 %v568
        %v702 = vunpack.c.l.b16 %v569
        %v703 = vunpack.c.h.b16 %v569
        %v704 = vunpack.c.l.b16 %v570
        %v705 = vunpack.c.h.b16 %v570
        %v706 = vunpack.c.l.b16 %v571
        %v707 = vunpack.c.h.b16 %v571
        %v708 = vunpack.c.l.b16 %v572
        %v709 = vunpack.c.h.b16 %v572
        %v710 = vunpack.c.l.b16 %v573
        %v711 = vunpack.c.h.b16 %v573
        %v712 = vunpack.c.l.b16 %v574
        %v713 = vunpack.c.h.b16 %v574
        %v714 = vunpack.c.l.b16 %v575
        %v715 = vunpack.c.h.b16 %v575
        %v716 = vunpack.c.l.b16 %v576
        %v717 = vunpack.c.h.b16 %v576
        %v718 = vunpack.c.l.b16 %v577
        %v719 = vunpack.c.h.b16 %v577
        %v720 = vunpack.c.l.b16 %v578
        %v721 = vunpack.c.h.b16 %v578
        %v722 = vunpack.c.l.b16 %v579
        %v723 = vunpack.c.h.b16 %v579
        %v724 = vunpack.c.l.b16 %v580
        %v725 = vunpack.c.h.b16 %v580
        %v726 = vunpack.c.l.b16 %v581
        %v727 = vunpack.c.h.b16 %v581
        %v728 = vunpack.c.l.b16 %v582
        %v729 = vunpack.c.h.b16 %v582
        %v730 = vunpack.c.l.b16 %v583
        %v731 = vunpack.c.h.b16 %v583
        %v732 = vunpack.c.l.b16 %v584
        %v733 = vunpack.c.h.b16 %v584
        %v734 = vunpack.c.l.b16 %v585
        %v735 = vunpack.c.h.b16 %v585
        %v736 = vunpack.c.l.b16 %v586
        %v737 = vunpack.c.h.b16 %v586
        %v738 = vunpack.c.l.b16 %v587
        %v739 = vunpack.c.h.b16 %v587
        %v740 = vunpack.c.l.b16 %v588
        %v741 = vunpack.c.h.b16 %v588
        %v742 = vunpack.c.l.b16 %v589
        %v743 = vunpack.c.h.b16 %v589
        %v744 = vunpack.c.l.b16 %v590
        %v745 = vunpack.c.h.b16 %v590
        %v746 = vpack.c.b16 %v652, %v650
        %v747 = vpack.c.b16 %v653, %v651
        %v748 = vpack.c.b16 %v656, %v654
        %v749 = vpack.c.b16 %v657, %v655
        %v750 = vpack.c.b16 %v660, %v658
        %v751 = vpack.c.b16 %v661, %v659
        %v752 = vpack.c.b16 %v664, %v662
        %v753 = vpack.c.b16 %v665, %v663
        %v754 = vpack.c.b16 %v668, %v666
        %v755 = vpack.c.b16 %v669, %v667
        %v756 = vpack.c.b16 %v672, %v670
        %v757 = vpack.c.b16 %v673, %v671
        %v758 = vpack.c.b16 %v676, %v674
        %v759 = vpack.c.b16 %v677, %v675
        %v760 = vpack.c.b16 %v680, %v678
        %v761 = vpack.c.b16 %v681, %v679
        %v762 = vpack.c.b16 %v684, %v682
        %v763 = vpack.c.b16 %v685, %v683
        %v764 = vpack.c.b16 %v688, %v686
        %v765 = vpack.c.b16 %v689, %v687
        %v766 = vpack.c.b16 %v692, %v690
        %v767 = vpack.c.b16 %v693, %v691
        %v768 = vpack.c.b16 %v696, %v694
        %v769 = vpack.c.b16 %v697, %v695
        %v770 = vpack.c.b16 %v700, %v698
        %v771 = vpack.c.b16 %v701, %v699
        %v772 = vpack.c.b16 %v704, %v702
        %v773 = vpack.c.b16 %v705, %v703
        %v774 = vpack.c.b16 %v708, %v706
        %v775 = vpack.c.b16 %v709, %v707
        %v776 = vpack.c.b16 %v712, %v710
        %v777 = vpack.c.b16 %v713, %v711
        %v778 = vpack.c.b16 %v716, %v714
        %v779 = vpack.c.b16 %v717, %v715
        %v780 = vpack.c.b16 %v720, %v718
        %v781 = vpack.c.b16 %v721, %v719
        %v782 = vpack.c.b16 %v724, %v722
        %v783 = vpack.c.b16 %v725, %v723
        %v784 = vpack.c.b16 %v728, %v726
        %v785 = vpack.c.b16 %v729, %v727
        %v786 = vpack.c.b16 %v732, %v730
        %v787 = vpack.c.b16 %v733, %v731
        %v788 = vpack.c.b16 %v736, %v734
        %v789 = vpack.c.b16 %v737, %v735
        %v790 = vpack.c.b16 %v740, %v738
        %v791 = vpack.c.b16 %v741, %v739
        %v792 = vpack.c.b16 %v744, %v742
        %v793 = vpack.c.b16 %v745, %v743
        %842 = vmatprep.subr.bf16.mxu0 %v747
        %843 = vmatpush1.bf16.msra.mxu0 %v746
        %844 = vmatprep.subr.bf16.mxu0 %v749
        %845 = vmatpush1.bf16.msra.mxu0 %v748
        %846 = vmatprep.subr.bf16.mxu0 %v751
        %847 = vmatpush1.bf16.msra.mxu0 %v750
        %848 = vmatprep.subr.bf16.mxu0 %v753
        %849 = vmatpush1.bf16.msra.mxu0 %v752
        %850 = vmatprep.subr.bf16.mxu0 %v755
        %851 = vmatpush1.bf16.msra.mxu0 %v754
        %852 = vmatprep.subr.bf16.mxu0 %v757
        %853 = vmatpush1.bf16.msra.mxu0 %v756
        %854 = vmatprep.subr.bf16.mxu0 %v759
        %855 = vmatpush1.bf16.msra.mxu0 %v758
        %856 = vmatprep.subr.bf16.mxu0 %v761
        %857 = vmatpush1.bf16.msra.mxu0 %v760
        %858 = vmatprep.subr.bf16.mxu0 %v763
        %859 = vmatpush1.bf16.msra.mxu0 %v762
        %860 = vmatprep.subr.bf16.mxu0 %v765
        %861 = vmatpush1.bf16.msra.mxu0 %v764
        %862 = vmatprep.subr.bf16.mxu0 %v767
        %863 = vmatpush1.bf16.msra.mxu0 %v766
        %864 = vmatprep.subr.bf16.mxu0 %v769
        %865 = vmatpush1.bf16.msra.mxu0 %v768
        %866 = vmatprep.subr.bf16.mxu0 %v771
        %867 = vmatpush1.bf16.msra.mxu0 %v770
        %868 = vmatprep.subr.bf16.mxu0 %v773
        %869 = vmatpush1.bf16.msra.mxu0 %v772
        %870 = vmatprep.subr.bf16.mxu0 %v775
        %871 = vmatpush1.bf16.msra.mxu0 %v774
        %872 = vmatprep.subr.bf16.mxu0 %v777
        %873 = vmatpush1.bf16.msra.mxu0 %v776
        %874 = vmatprep.mubr.bf16.mxu0 %v597
        %875 = vmatmul.mubr.bf16.gmra.mrb[0].mxu0 %v596
        %v876 = vpop.f32.mrb[0].mxu0
        %v877 = vadd.f32 0.0, %v876
        %v878 = vpop.f32.mrb[0].mxu0
        %v879 = vadd.f32 0.0, %v878
        %v880 = vpop.f32.mrb[0].mxu0
        %v881 = vpop.f32.mrb[0].mxu0
        %882 = vdwg.mxu0
        %883 = vmatprep.subr.bf16.mxu0 %v779
        %884 = vmatpush1.bf16.msra.mxu0 %v778
        %885 = vmatprep.subr.bf16.mxu0 %v781
        %886 = vmatpush1.bf16.msra.mxu0 %v780
        %887 = vmatprep.subr.bf16.mxu0 %v783
        %888 = vmatpush1.bf16.msra.mxu0 %v782
        %889 = vmatprep.subr.bf16.mxu0 %v785
        %890 = vmatpush1.bf16.msra.mxu0 %v784
        %891 = vmatprep.subr.bf16.mxu0 %v787
        %892 = vmatpush1.bf16.msra.mxu0 %v786
        %893 = vmatprep.subr.bf16.mxu0 %v789
        %894 = vmatpush1.bf16.msra.mxu0 %v788
        %895 = vmatprep.subr.bf16.mxu0 %v791
        %896 = vmatpush1.bf16.msra.mxu0 %v790
        %897 = vmatprep.subr.bf16.mxu0 %v793
        %898 = vmatpush1.bf16.msra.mxu0 %v792
        %899 = vmatprep.subr.bf16.mxu0 0
        %900 = vmatpush1.bf16.msra.mxu0 0
        %901 = vmatprep.subr.bf16.mxu0 0
        %902 = vmatpush1.bf16.msra.mxu0 0
        %903 = vmatprep.subr.bf16.mxu0 0
        %904 = vmatpush1.bf16.msra.mxu0 0
        %905 = vmatprep.subr.bf16.mxu0 0
        %906 = vmatpush1.bf16.msra.mxu0 0
        %907 = vmatprep.subr.bf16.mxu0 0
        %908 = vmatpush1.bf16.msra.mxu0 0
        %909 = vmatprep.subr.bf16.mxu0 0
        %910 = vmatpush1.bf16.msra.mxu0 0
        %911 = vmatprep.subr.bf16.mxu0 0
        %912 = vmatpush1.bf16.msra.mxu0 0
        %913 = vmatprep.subr.bf16.mxu0 0
        %914 = vmatpush1.bf16.msra.mxu0 0
        %915 = vmatprep.mubr.bf16.mxu0 0
        %916 = vmatmul.mubr.bf16.gmra.mrb[0].mxu0 %v598
        %v917 = vpop.f32.mrb[0].mxu0
        %v918 = vadd.f32 %v877, %v917
        %v919 = vpop.f32.mrb[0].mxu0
        %v920 = vadd.f32 %v879, %v919
        %v921 = vpop.f32.mrb[0].mxu0
        %v922 = vpop.f32.mrb[0].mxu0
        %923 = vdwg.mxu0
        %v924 = vadd.f32 %v539, %v918
        %v925 = vadd.f32 %v540, %v920
        %926 = vst [vmem:[#allocation2] sm:$0xff] %v924
        %927 = vst [vmem:[#allocation2 + $0x8] sm:$0xff] %v925
        %p928 = scmp.eq.s32.totalorder %s22, 5
        // Predicated region
        $region79: #{_lambda_.24} parent=69 // pred_check
          %p929 = pneg %p928
        $region80: #{_lambda_.24} parent=69 // pred_check_branch
          %931 = sbr.rel (%p929) target = $region82
        $region81: #{_lambda_.24} parent=69 // pred_region
          %v932 = vld [vmem:[#allocation2] sm:$0xff]
          %v933 = vld [vmem:[#allocation2 + $0x8] sm:$0xff]
          %v934 = vld [vmem:[%s515] sm:$0x3]
          %v936 = vlaneseq
          %v937 = vshrl.u32 %v936, 7
          %v938 = vsub.s32 0, %v937
          %v939 = vrot.slane %v934, %v938
          %v940 = vlaneseq
          %v941 = vshrl.u32 %v940, 7
          %v942 = vsub.s32 1, %v941
          %v943 = vrot.slane %v934, %v942
          %v946 = vmul.f32 %v932, %v939
          %v947 = vmul.f32 %v933, %v943
          %v948 = vld [vmem:[%s520] sm:$0x3]
          %v950 = vlaneseq
          %v951 = vshrl.u32 %v950, 7
          %v952 = vsub.s32 0, %v951
          %v953 = vrot.slane %v948, %v952
          %v954 = vlaneseq
          %v955 = vshrl.u32 %v954, 7
          %v956 = vsub.s32 1, %v955
          %v957 = vrot.slane %v948, %v956
          %v960 = vadd.f32 %v946, %v953
          %v961 = vadd.f32 %v947, %v957
          %v962 = vmax.f32 %v960, 0.0
          %v963 = vmax.f32 %v961, 0.0
          %964 = vst [vmem:[%s530] sm:$0xff] %v962
          %965 = vst [vmem:[%s530 + $0x8] sm:$0xff] %v963
        $region82: #{_lambda_.24} parent=69 // pred_fallthru
          _
        %s966 = smul.u32 2, %s21
        %p967 = scmp.lt.s32.totalorder %s20, 0
        %s968 = scalar_select %p967, %s20, 0
        %p969 = scmp.lt.s32.totalorder %s966, 3
        %s970 = scalar_select %p969, %s966, 3
        %s971 = smul.addr %s968, 4
        %s972 = sadd.s32 %s970, %s971
        %s973 = smul.addr %s972, 8
        %s974 = scalar_lea.vmem %s4, %s973
        // Predicated region
        $region83: #{_lambda_.24} parent=69 // pred_check
          %p975 = pneg %p162
        $region84: #{_lambda_.24} parent=69 // pred_check_branch
          %977 = sbr.rel (%p975) target = $region86
        $region85: #{_lambda_.24} parent=69 // pred_region
          %s978 = smul.u32 2, %s21
        $region86: #{_lambda_.24} parent=69 // pred_fallthru
          _
      $region70: #{_lambda_.24} parent=5 // pred_fallthru
        _
      %p979 = scmp.le.s32.totalorder 2, %s10
      // Predicated region
      $region87: #{_lambda_.24} parent=5 // pred_check
        %p980 = pneg %p979
      $region88: #{_lambda_.24} parent=5 // pred_check_branch
        %982 = sbr.rel (%p980) target = $region90
      $region89: #{_lambda_.24} parent=5 // pred_region
        %s983 = ssub.s32 %s10, 2
        // Predicated region
        $region91: #{_lambda_.24} parent=89 // pred_check
          %p984 = pneg %p168
        $region92: #{_lambda_.24} parent=89 // pred_check_branch
          %986 = sbr.rel (%p984) target = $region94
        $region93: #{_lambda_.24} parent=89 // pred_region
          %s987 = smul.u32 2, %s24
          %p988 = scmp.lt.s32.totalorder %s23, 0
          %s989 = scalar_select %p988, %s23, 0
          %p990 = scmp.lt.s32.totalorder %s987, 3
          %s991 = scalar_select %p990, %s987, 3
          %s992 = smul.addr %s989, 4
          %s993 = sadd.s32 %s991, %s992
          %s994 = smul.addr %s993, 8
          %s995 = scalar_lea.vmem %s4, %s994
        $region94: #{_lambda_.24} parent=89 // pred_fallthru
          _
      $region90: #{_lambda_.24} parent=5 // pred_fallthru
        _
    $region6: #{_lambda_.24} parent=1 // loop_footer
      %s14 = sadd.s32 1, %s10
    $region7: #{_lambda_.24} parent=1 // loop_footer_branch
      %9 = sbr.rel target = $region3
    $region8: #{_lambda_.24} parent=1 // loop_exit
      _

// kernel: _lambda_.25
$region0: #{_lambda_.25}
  #allocation0 [shape = 'u32[]', space=smem, size = 0x4, offset = 0x4, fixed_abs, tag = 'smem constant byte address 0x4 - core index']
  #allocation1 [shape = 'u32[144,128]{1,0:T(1,128)}', space=vmem, size = 0x12000, scoped, tag = 'internal scratch']
  #allocation2 [shape = 'f32[8,256]{1,0:T(8,128)}', space=vmem, size = 0x2000, scoped, tag = 'scratch operand']
  %s0 = inlined_call_operand.vmem [shape: bf16[8,4608], index: 0, kind: input, shape index: {}]
  %s1 = inlined_call_operand.vmem [shape: bf16[4608,512], index: 1, kind: input, shape index: {}]
  %s2 = inlined_call_operand.vmem [shape: f32[1,512], index: 2, kind: input, shape index: {}]
  %s3 = inlined_call_operand.vmem [shape: f32[1,512], index: 3, kind: input, shape index: {}]
  %s4 = inlined_call_operand.vmem [shape: f32[8,512], index: 4, kind: input, shape index: {}]
  %s5 = inlined_call_operand.vmem [shape: f32[8,512], index: 5, kind: output, shape index: {}]
  %s6 = sld [smem:[#allocation0]]
  $region99: #{_lambda_.25} parent=0
    _
  %s8 = ssub.s32 1, %s6
  %s9 = scalar_select 0, %s8, %s6
  $region1: #{_lambda_.25} parent=0
    #allocation3 [shape = 'u8[524288]{0}', space=vmem, size = 0x80000, scoped, tag = 'input window, operand 1']
    loop: start=0, step=1, limit=20
    $region2: #{_lambda_.25} parent=1 // loop_pre_header
      _
    $region3: #{_lambda_.25} parent=1 // loop_header
      %s11 = sphi 0, %s15
      %p12 = scmp.ge.s32.totalorder %s11, 20
      %s18 = sphi 0, %s37
      %s19 = sphi 0, %s33
      %s20 = sphi 0, %s29
      %s21 = sphi 0, %s18
      %s22 = sphi 0, %s19
      %s23 = sphi 0, %s20
      %s24 = sphi 0, %s21
      %s25 = sphi 0, %s22
      %s26 = sphi 0, %s23
      %s42 = sphi 0, %s44
      %s45 = sphi 0, %s42
      %s46 = sphi 0, %s45
      %s62 = sphi 0, %s46
      %s70 = sphi 0, %s72
      %s73 = sphi 0, %s70
      %s74 = sphi 0, %s73
      %s90 = sphi 0, %s74
      %s96 = sphi 0, %s98
      %s99 = sphi 0, %s96
      %s100 = sphi 0, %s99
      %s116 = sphi 0, %s100
      %s122 = sphi 0, %s124
      %s125 = sphi 0, %s122
      %s126 = sphi 0, %s125
      %s142 = sphi 0, %s126
      %s150 = sphi 0, %s152
      %s153 = sphi 0, %s150
      %s154 = sphi 0, %s153
      %s170 = sphi 0, %s154
      %s178 = sphi 0, %s180
      %s181 = sphi 0, %s178
      %s182 = sphi 0, %s181
      %s198 = sphi 0, %s182
    $region4: #{_lambda_.25} parent=1 // loop_header_branch
      %14 = sbr.rel (%p12) target = $region8
    $region5: #{_lambda_.25} parent=1 // loop_body
      %s16 = ssub.s32 %s11, 1
      %s17 = ssub.s32 %s11, 2
      %s27 = sadd.s32 1, %s20
      %p28 = scmp.ge.s32.totalorder %s27, 9
      %s29 = scalar_select %p28, 0, %s27
      %s30 = sadd.s32 1, %s19
      %s31 = scalar_select %p28, %s30, %s19
      %p32 = scmp.ge.s32.totalorder %s31, 2
      %s33 = scalar_select %p32, 0, %s31
      %s34 = sadd.s32 1, %s18
      %s35 = scalar_select %p32, %s34, %s18
      %p36 = scmp.ge.s32.totalorder %s35, 1
      %s37 = scalar_select %p36, 0, %s35
      %s38 = ssub.s32 %s18, %s37
      %s39 = ssub.s32 %s20, %s29
      %s40 = sor.u32 %s38, %s39
      %p41 = scmp.eq.s32.totalorder %s40, 0
      %s43 = sadd.s32 %s42, 1
      %s44 = scalar_select %p41, %s42, %s43
      %p47 = pneg %p41
      %p48 = scmp.eq.s32.totalorder %s11, 17
      %p49 = por %p47, %p48
      %p50 = scmp.ne.s32.totalorder %s42, %s45
      %p51 = scmp.eq.s32.totalorder %s11, 0
      %p52 = por %p50, %p51
      %p53 = scmp.ne.s32.totalorder %s42, %s45
      %p54 = scmp.eq.s32.totalorder %s16, 17
      %p55 = por %p53, %p54
      %p56 = scmp.ne.s32.totalorder %s45, %s46
      %p57 = scmp.eq.s32.totalorder %s16, 0
      %p58 = por %p56, %p57
      %p59 = scmp.ne.s32.totalorder %s45, %s46
      %p60 = scmp.eq.s32.totalorder %s17, 17
      %p61 = por %p59, %p60
      %p63 = scmp.ne.s32.totalorder %s46, %s62
      %p64 = scmp.eq.s32.totalorder %s17, 0
      %p65 = por %p63, %p64
      %s66 = ssub.s32 %s20, %s29
      %s67 = ssub.s32 %s19, %s33
      %s68 = sor.u32 %s66, %s67
      %p69 = scmp.eq.s32.totalorder %s68, 0
      %s71 = sadd.s32 %s70, 1
      %s72 = scalar_select %p69, %s70, %s71
      %p75 = pneg %p69
      %p76 = scmp.eq.s32.totalorder %s11, 17
      %p77 = por %p75, %p76
      %p78 = scmp.ne.s32.totalorder %s70, %s73
      %p79 = scmp.eq.s32.totalorder %s11, 0
      %p80 = por %p78, %p79
      %p81 = scmp.ne.s32.totalorder %s70, %s73
      %p82 = scmp.eq.s32.totalorder %s16, 17
      %p83 = por %p81, %p82
      %p84 = scmp.ne.s32.totalorder %s73, %s74
      %p85 = scmp.eq.s32.totalorder %s16, 0
      %p86 = por %p84, %p85
      %p87 = scmp.ne.s32.totalorder %s73, %s74
      %p88 = scmp.eq.s32.totalorder %s17, 17
      %p89 = por %p87, %p88
      %p91 = scmp.ne.s32.totalorder %s74, %s90
      %p92 = scmp.eq.s32.totalorder %s17, 0
      %p93 = por %p91, %p92
      %s94 = ssub.s32 %s19, %s33
      %p95 = scmp.eq.s32.totalorder %s94, 0
      %s97 = sadd.s32 %s96, 1
      %s98 = scalar_select %p95, %s96, %s97
      %p101 = pneg %p95
      %p102 = scmp.eq.s32.totalorder %s11, 17
      %p103 = por %p101, %p102
      %p104 = scmp.ne.s32.totalorder %s96, %s99
      %p105 = scmp.eq.s32.totalorder %s11, 0
      %p106 = por %p104, %p105
      %p107 = scmp.ne.s32.totalorder %s96, %s99
      %p108 = scmp.eq.s32.totalorder %s16, 17
      %p109 = por %p107, %p108
      %p110 = scmp.ne.s32.totalorder %s99, %s100
      %p111 = scmp.eq.s32.totalorder %s16, 0
      %p112 = por %p110, %p111
      %p113 = scmp.ne.s32.totalorder %s99, %s100
      %p114 = scmp.eq.s32.totalorder %s17, 17
      %p115 = por %p113, %p114
      %p117 = scmp.ne.s32.totalorder %s100, %s116
      %p118 = scmp.eq.s32.totalorder %s17, 0
      %p119 = por %p117, %p118
      %s120 = ssub.s32 %s19, %s33
      %p121 = scmp.eq.s32.totalorder %s120, 0
      %s123 = sadd.s32 %s122, 1
      %s124 = scalar_select %p121, %s122, %s123
      %p127 = pneg %p121
      %p128 = scmp.eq.s32.totalorder %s11, 17
      %p129 = por %p127, %p128
      %p130 = scmp.ne.s32.totalorder %s122, %s125
      %p131 = scmp.eq.s32.totalorder %s11, 0
      %p132 = por %p130, %p131
      %p133 = scmp.ne.s32.totalorder %s122, %s125
      %p134 = scmp.eq.s32.totalorder %s16, 17
      %p135 = por %p133, %p134
      %p136 = scmp.ne.s32.totalorder %s125, %s126
      %p137 = scmp.eq.s32.totalorder %s16, 0
      %p138 = por %p136, %p137
      %p139 = scmp.ne.s32.totalorder %s125, %s126
      %p140 = scmp.eq.s32.totalorder %s17, 17
      %p141 = por %p139, %p140
      %p143 = scmp.ne.s32.totalorder %s126, %s142
      %p144 = scmp.eq.s32.totalorder %s17, 0
      %p145 = por %p143, %p144
      %s146 = ssub.s32 %s18, %s37
      %s147 = ssub.s32 %s19, %s33
      %s148 = sor.u32 %s146, %s147
      %p149 = scmp.eq.s32.totalorder %s148, 0
      %s151 = sadd.s32 %s150, 1
      %s152 = scalar_select %p149, %s150, %s151
      %p155 = pneg %p149
      %p156 = scmp.eq.s32.totalorder %s11, 17
      %p157 = por %p155, %p156
      %p158 = scmp.ne.s32.totalorder %s150, %s153
      %p159 = scmp.eq.s32.totalorder %s11, 0
      %p160 = por %p158, %p159
      %p161 = scmp.ne.s32.totalorder %s150, %s153
      %p162 = scmp.eq.s32.totalorder %s16, 17
      %p163 = por %p161, %p162
      %p164 = scmp.ne.s32.totalorder %s153, %s154
      %p165 = scmp.eq.s32.totalorder %s16, 0
      %p166 = por %p164, %p165
      %p167 = scmp.ne.s32.totalorder %s153, %s154
      %p168 = scmp.eq.s32.totalorder %s17, 17
      %p169 = por %p167, %p168
      %p171 = scmp.ne.s32.totalorder %s154, %s170
      %p172 = scmp.eq.s32.totalorder %s17, 0
      %p173 = por %p171, %p172
      %s174 = ssub.s32 %s18, %s37
      %s175 = ssub.s32 %s19, %s33
      %s176 = sor.u32 %s174, %s175
      %p177 = scmp.eq.s32.totalorder %s176, 0
      %s179 = sadd.s32 %s178, 1
      %s180 = scalar_select %p177, %s178, %s179
      %p183 = pneg %p177
      %p184 = scmp.eq.s32.totalorder %s11, 17
      %p185 = por %p183, %p184
      %p186 = scmp.ne.s32.totalorder %s178, %s181
      %p187 = scmp.eq.s32.totalorder %s11, 0
      %p188 = por %p186, %p187
      %p189 = scmp.ne.s32.totalorder %s178, %s181
      %p190 = scmp.eq.s32.totalorder %s16, 17
      %p191 = por %p189, %p190
      %p192 = scmp.ne.s32.totalorder %s181, %s182
      %p193 = scmp.eq.s32.totalorder %s16, 0
      %p194 = por %p192, %p193
      %p195 = scmp.ne.s32.totalorder %s181, %s182
      %p196 = scmp.eq.s32.totalorder %s17, 17
      %p197 = por %p195, %p196
      %p199 = scmp.ne.s32.totalorder %s182, %s198
      %p200 = scmp.eq.s32.totalorder %s17, 0
      %p201 = por %p199, %p200
      %p202 = scmp.le.s32.totalorder 1, %s11
      %p203 = scmp.lt.s32.totalorder %s11, 19
      %p204 = pnand %p202, %p203
      %p205 = pneg %p204
      // Predicated region
      $region9: #{_lambda_.25} parent=5 // pred_check
        _
      $region10: #{_lambda_.25} parent=5 // pred_check_branch
        %207 = sbr.rel (%p204) target = $region12
      $region11: #{_lambda_.25} parent=5 // pred_region
        %s208 = ssub.s32 %s11, 1
      $region12: #{_lambda_.25} parent=5 // pred_fallthru
        _
      %p209 = scmp.lt.s32.totalorder %s11, 18
      // Predicated region
      $region13: #{_lambda_.25} parent=5 // pred_check
        %p210 = pneg %p209
      $region14: #{_lambda_.25} parent=5 // pred_check_branch
        %212 = sbr.rel (%p210) target = $region16
      $region15: #{_lambda_.25} parent=5 // pred_region
        // Predicated region
        $region17: #{_lambda_.25} parent=15 // pred_check
          %p213 = pneg %p52
        $region18: #{_lambda_.25} parent=15 // pred_check_branch
          %215 = sbr.rel (%p213) target = $region20
        $region19: #{_lambda_.25} parent=15 // pred_region
          %s216 = smul.u32 4, %s20
          %p217 = scmp.lt.s32.totalorder %s18, 0
          %s218 = scalar_select %p217, %s18, 0
          %p219 = scmp.lt.s32.totalorder %s216, 35
          %s220 = scalar_select %p219, %s216, 35
          %s221 = smul.addr %s218, 36
          %s222 = sadd.s32 %s220, %s221
          %s223 = smul.addr %s222, 4
          %s224 = scalar_lea.vmem %s0, %s223
          %s225 = smul.u32 4, %s20
        $region20: #{_lambda_.25} parent=15 // pred_fallthru
          _
        // Predicated region
        $region21: #{_lambda_.25} parent=15 // pred_check
          %p226 = pneg %p80
        $region22: #{_lambda_.25} parent=15 // pred_check_branch
          %228 = sbr.rel (%p226) target = $region24
        $region23: #{_lambda_.25} parent=15 // pred_region
          %s229 = sand.u32 %s70, 1
          %s230 = sand.u32 %s70, 1
          %s231 = smul.addr %s230, 512
          %s232 = scalar_lea.vmem [#allocation3], %s231
          %s233 = smul.u32 64, %s20
          %s234 = smul.u32 2, %s19
          %s235 = smul.addr %s233, 4
          %s236 = sadd.s32 %s234, %s235
          %s237 = smul.addr %s236, 4
          %s238 = scalar_lea.vmem %s1, %s237
          // Predicated region
          $region25: #{_lambda_.25} parent=23 // pred_check
            _
          $region26: #{_lambda_.25} parent=23 // pred_check_branch
            %240 = sbr.rel (0) target = $region28
          $region27: #{_lambda_.25} parent=23 // pred_region
            // Predicated region
            $region29: #{_lambda_.25} parent=27 // pred_check
              _
            $region30: #{_lambda_.25} parent=27 // pred_check_branch
              %242 = sbr.rel (0) target = $region32
            $region31: #{_lambda_.25} parent=27 // pred_region
              // Predicated region
              $region44: #{_lambda_.25} parent=31 // pred_check
                _
              $region45: #{_lambda_.25} parent=31 // pred_check_branch
                %383 = sbr.rel (0) target = $region47
              $region46: #{_lambda_.25} parent=31 // pred_region
                loop: start=0, step=1, limit=1
                $region48: #{_lambda_.25} parent=46 // loop_pre_header
                  _
                $region49: #{_lambda_.25} parent=46 // loop_header
                  %s385 = sphi 0, %s389
                  %p386 = scmp.ge.s32.totalorder %s385, 1
                  %s390 = sphi %s238, %s238
                  %s391 = sphi %s232, %s232
                $region50: #{_lambda_.25} parent=46 // loop_header_branch
                  %388 = sbr.rel (%p386) target = $region54
                $region51: #{_lambda_.25} parent=46 // loop_body
                  %v392 = vld [vmem:[%s390] sm:$0xff]
                  %393 = vst [vmem:[%s391] sm:$0xff] %v392
                  %v394 = vld [vmem:[%s390 + $0x10] sm:$0xff]
                  %395 = vst [vmem:[%s391 + $0x8] sm:$0xff] %v394
                  %v396 = vld [vmem:[%s390 + $0x20] sm:$0xff]
                  %397 = vst [vmem:[%s391 + $0x10] sm:$0xff] %v396
                  %v398 = vld [vmem:[%s390 + $0x30] sm:$0xff]
                  %399 = vst [vmem:[%s391 + $0x18] sm:$0xff] %v398
                  %v400 = vld [vmem:[%s390 + $0x40] sm:$0xff]
                  %401 = vst [vmem:[%s391 + $0x20] sm:$0xff] %v400
                  %v402 = vld [vmem:[%s390 + $0x50] sm:$0xff]
                  %403 = vst [vmem:[%s391 + $0x28] sm:$0xff] %v402
                  %v404 = vld [vmem:[%s390 + $0x60] sm:$0xff]
                  %405 = vst [vmem:[%s391 + $0x30] sm:$0xff] %v404
                  %v406 = vld [vmem:[%s390 + $0x70] sm:$0xff]
                  %407 = vst [vmem:[%s391 + $0x38] sm:$0xff] %v406
                  %v408 = vld [vmem:[%s390 + $0x80] sm:$0xff]
                  %409 = vst [vmem:[%s391 + $0x40] sm:$0xff] %v408
                  %v410 = vld [vmem:[%s390 + $0x90] sm:$0xff]
                  %411 = vst [vmem:[%s391 + $0x48] sm:$0xff] %v410
                  %v412 = vld [vmem:[%s390 + $0xa0] sm:$0xff]
                  %413 = vst [vmem:[%s391 + $0x50] sm:$0xff] %v412
                  %v414 = vld [vmem:[%s390 + $0xb0] sm:$0xff]
                  %415 = vst [vmem:[%s391 + $0x58] sm:$0xff] %v414
                  %v416 = vld [vmem:[%s390 + $0xc0] sm:$0xff]
                  %417 = vst [vmem:[%s391 + $0x60] sm:$0xff] %v416
                  %v418 = vld [vmem:[%s390 + $0xd0] sm:$0xff]
                  %419 = vst [vmem:[%s391 + $0x68] sm:$0xff] %v418
                  %v420 = vld [vmem:[%s390 + $0xe0] sm:$0xff]
                  %421 = vst [vmem:[%s391 + $0x70] sm:$0xff] %v420
                  %v422 = vld [vmem:[%s390 + $0xf0] sm:$0xff]
                  %423 = vst [vmem:[%s391 + $0x78] sm:$0xff] %v422
                  %v424 = vld [vmem:[%s390 + $0x100] sm:$0xff]
                  %425 = vst [vmem:[%s391 + $0x80] sm:$0xff] %v424
                  %v426 = vld [vmem:[%s390 + $0x110] sm:$0xff]
                  %427 = vst [vmem:[%s391 + $0x88] sm:$0xff] %v426
                  %v428 = vld [vmem:[%s390 + $0x120] sm:$0xff]
                  %429 = vst [vmem:[%s391 + $0x90] sm:$0xff] %v428
                  %v430 = vld [vmem:[%s390 + $0x130] sm:$0xff]
                  %431 = vst [vmem:[%s391 + $0x98] sm:$0xff] %v430
                  %v432 = vld [vmem:[%s390 + $0x140] sm:$0xff]
                  %433 = vst [vmem:[%s391 + $0xa0] sm:$0xff] %v432
                  %v434 = vld [vmem:[%s390 + $0x150] sm:$0xff]
                  %435 = vst [vmem:[%s391 + $0xa8] sm:$0xff] %v434
                  %v436 = vld [vmem:[%s390 + $0x160] sm:$0xff]
                  %437 = vst [vmem:[%s391 + $0xb0] sm:$0xff] %v436
                  %v438 = vld [vmem:[%s390 + $0x170] sm:$0xff]
                  %439 = vst [vmem:[%s391 + $0xb8] sm:$0xff] %v438
                  %v440 = vld [vmem:[%s390 + $0x180] sm:$0xff]
                  %441 = vst [vmem:[%s391 + $0xc0] sm:$0xff] %v440
                  %v442 = vld [vmem:[%s390 + $0x190] sm:$0xff]
                  %443 = vst [vmem:[%s391 + $0xc8] sm:$0xff] %v442
                  %v444 = vld [vmem:[%s390 + $0x1a0] sm:$0xff]
                  %445 = vst [vmem:[%s391 + $0xd0] sm:$0xff] %v444
                  %v446 = vld [vmem:[%s390 + $0x1b0] sm:$0xff]
                  %447 = vst [vmem:[%s391 + $0xd8] sm:$0xff] %v446
                  %v448 = vld [vmem:[%s390 + $0x1c0] sm:$0xff]
                  %449 = vst [vmem:[%s391 + $0xe0] sm:$0xff] %v448
                  %v450 = vld [vmem:[%s390 + $0x1d0] sm:$0xff]
                  %451 = vst [vmem:[%s391 + $0xe8] sm:$0xff] %v450
                  %v452 = vld [vmem:[%s390 + $0x1e0] sm:$0xff]
                  %453 = vst [vmem:[%s391 + $0xf0] sm:$0xff] %v452
                  %v454 = vld [vmem:[%s390 + $0x1f0] sm:$0xff]
                  %455 = vst [vmem:[%s391 + $0xf8] sm:$0xff] %v454
                  %v456 = vld [vmem:[%s390 + $0x200] sm:$0xff]
                  %457 = vst [vmem:[%s391 + $0x100] sm:$0xff] %v456
                  %v458 = vld [vmem:[%s390 + $0x210] sm:$0xff]
                  %459 = vst [vmem:[%s391 + $0x108] sm:$0xff] %v458
                  %v460 = vld [vmem:[%s390 + $0x220] sm:$0xff]
                  %461 = vst [vmem:[%s391 + $0x110] sm:$0xff] %v460
                  %v462 = vld [vmem:[%s390 + $0x230] sm:$0xff]
                  %463 = vst [vmem:[%s391 + $0x118] sm:$0xff] %v462
                  %v464 = vld [vmem:[%s390 + $0x240] sm:$0xff]
                  %465 = vst [vmem:[%s391 + $0x120] sm:$0xff] %v464
                  %v466 = vld [vmem:[%s390 + $0x250] sm:$0xff]
                  %467 = vst [vmem:[%s391 + $0x128] sm:$0xff] %v466
                  %v468 = vld [vmem:[%s390 + $0x260] sm:$0xff]
                  %469 = vst [vmem:[%s391 + $0x130] sm:$0xff] %v468
                  %v470 = vld [vmem:[%s390 + $0x270] sm:$0xff]
                  %471 = vst [vmem:[%s391 + $0x138] sm:$0xff] %v470
                  %v472 = vld [vmem:[%s390 + $0x280] sm:$0xff]
                  %473 = vst [vmem:[%s391 + $0x140] sm:$0xff] %v472
                  %v474 = vld [vmem:[%s390 + $0x290] sm:$0xff]
                  %475 = vst [vmem:[%s391 + $0x148] sm:$0xff] %v474
                  %v476 = vld [vmem:[%s390 + $0x2a0] sm:$0xff]
                  %477 = vst [vmem:[%s391 + $0x150] sm:$0xff] %v476
                  %v478 = vld [vmem:[%s390 + $0x2b0] sm:$0xff]
                  %479 = vst [vmem:[%s391 + $0x158] sm:$0xff] %v478
                  %v480 = vld [vmem:[%s390 + $0x2c0] sm:$0xff]
                  %481 = vst [vmem:[%s391 + $0x160] sm:$0xff] %v480
                  %v482 = vld [vmem:[%s390 + $0x2d0] sm:$0xff]
                  %483 = vst [vmem:[%s391 + $0x168] sm:$0xff] %v482
                  %v484 = vld [vmem:[%s390 + $0x2e0] sm:$0xff]
                  %485 = vst [vmem:[%s391 + $0x170] sm:$0xff] %v484
                  %v486 = vld [vmem:[%s390 + $0x2f0] sm:$0xff]
                  %487 = vst [vmem:[%s391 + $0x178] sm:$0xff] %v486
                  %v488 = vld [vmem:[%s390 + $0x300] sm:$0xff]
                  %489 = vst [vmem:[%s391 + $0x180] sm:$0xff] %v488
                  %v490 = vld [vmem:[%s390 + $0x310] sm:$0xff]
                  %491 = vst [vmem:[%s391 + $0x188] sm:$0xff] %v490
                  %v492 = vld [vmem:[%s390 + $0x320] sm:$0xff]
                  %493 = vst [vmem:[%s391 + $0x190] sm:$0xff] %v492
                  %v494 = vld [vmem:[%s390 + $0x330] sm:$0xff]
                  %495 = vst [vmem:[%s391 + $0x198] sm:$0xff] %v494
                  %v496 = vld [vmem:[%s390 + $0x340] sm:$0xff]
                  %497 = vst [vmem:[%s391 + $0x1a0] sm:$0xff] %v496
                  %v498 = vld [vmem:[%s390 + $0x350] sm:$0xff]
                  %499 = vst [vmem:[%s391 + $0x1a8] sm:$0xff] %v498
                  %v500 = vld [vmem:[%s390 + $0x360] sm:$0xff]
                  %501 = vst [vmem:[%s391 + $0x1b0] sm:$0xff] %v500
                  %v502 = vld [vmem:[%s390 + $0x370] sm:$0xff]
                  %503 = vst [vmem:[%s391 + $0x1b8] sm:$0xff] %v502
                  %v504 = vld [vmem:[%s390 + $0x380] sm:$0xff]
                  %505 = vst [vmem:[%s391 + $0x1c0] sm:$0xff] %v504
                  %v506 = vld [vmem:[%s390 + $0x390] sm:$0xff]
                  %507 = vst [vmem:[%s391 + $0x1c8] sm:$0xff] %v506
                  %v508 = vld [vmem:[%s390 + $0x3a0] sm:$0xff]
                  %509 = vst [vmem:[%s391 + $0x1d0] sm:$0xff] %v508
                  %v510 = vld [vmem:[%s390 + $0x3b0] sm:$0xff]
                  %511 = vst [vmem:[%s391 + $0x1d8] sm:$0xff] %v510
                  %v512 = vld [vmem:[%s390 + $0x3c0] sm:$0xff]
                  %513 = vst [vmem:[%s391 + $0x1e0] sm:$0xff] %v512
                  %v514 = vld [vmem:[%s390 + $0x3d0] sm:$0xff]
                  %515 = vst [vmem:[%s391 + $0x1e8] sm:$0xff] %v514
                  %v516 = vld [vmem:[%s390 + $0x3e0] sm:$0xff]
                  %517 = vst [vmem:[%s391 + $0x1f0] sm:$0xff] %v516
                  %v518 = vld [vmem:[%s390 + $0x3f0] sm:$0xff]
                  %519 = vst [vmem:[%s391 + $0x1f8] sm:$0xff] %v518
                $region52: #{_lambda_.25} parent=46 // loop_footer
                  %s389 = sadd.s32 1, %s385
                $region53: #{_lambda_.25} parent=46 // loop_footer_branch
                  %384 = sbr.rel target = $region49
                $region54: #{_lambda_.25} parent=46 // loop_exit
                  _
              $region47: #{_lambda_.25} parent=31 // pred_fallthru
                _
              // Predicated region
              $region55: #{_lambda_.25} parent=31 // pred_check
                _
              $region56: #{_lambda_.25} parent=31 // pred_check_branch
                %521 = sbr.rel target = $region58
              $region57: #{_lambda_.25} parent=31 // pred_region
                _
              $region58: #{_lambda_.25} parent=31 // pred_fallthru
                _
            $region32: #{_lambda_.25} parent=27 // pred_fallthru
              _
            // Predicated region
            $region33: #{_lambda_.25} parent=27 // pred_check
              _
            $region34: #{_lambda_.25} parent=27 // pred_check_branch
              %244 = sbr.rel target = $region36
            $region35: #{_lambda_.25} parent=27 // pred_region
              loop: start=0, step=1, limit=1
              $region37: #{_lambda_.25} parent=35 // loop_pre_header
                _
              $region38: #{_lambda_.25} parent=35 // loop_header
                %s247 = sphi 0, %s251
                %p248 = scmp.ge.s32.totalorder %s247, 1
                %s252 = sphi %s238, %s238
                %s253 = sphi %s232, %s232
              $region39: #{_lambda_.25} parent=35 // loop_header_branch
                %250 = sbr.rel (%p248) target = $region43
              $region40: #{_lambda_.25} parent=35 // loop_body
                %v254 = vld [vmem:[%s252] sm:$0xff]
                %255 = vst [vmem:[%s253] sm:$0xff] %v254
                %v256 = vld [vmem:[%s252 + $0x10] sm:$0xff]
                %257 = vst [vmem:[%s253 + $0x8] sm:$0xff] %v256
                %v258 = vld [vmem:[%s252 + $0x20] sm:$0xff]
                %259 = vst [vmem:[%s253 + $0x10] sm:$0xff] %v258
                %v260 = vld [vmem:[%s252 + $0x30] sm:$0xff]
                %261 = vst [vmem:[%s253 + $0x18] sm:$0xff] %v260
                %v262 = vld [vmem:[%s252 + $0x40] sm:$0xff]
                %263 = vst [vmem:[%s253 + $0x20] sm:$0xff] %v262
                %v264 = vld [vmem:[%s252 + $0x50] sm:$0xff]
                %265 = vst [vmem:[%s253 + $0x28] sm:$0xff] %v264
                %v266 = vld [vmem:[%s252 + $0x60] sm:$0xff]
                %267 = vst [vmem:[%s253 + $0x30] sm:$0xff] %v266
                %v268 = vld [vmem:[%s252 + $0x70] sm:$0xff]
                %269 = vst [vmem:[%s253 + $0x38] sm:$0xff] %v268
                %v270 = vld [vmem:[%s252 + $0x80] sm:$0xff]
                %271 = vst [vmem:[%s253 + $0x40] sm:$0xff] %v270
                %v272 = vld [vmem:[%s252 + $0x90] sm:$0xff]
                %273 = vst [vmem:[%s253 + $0x48] sm:$0xff] %v272
                %v274 = vld [vmem:[%s252 + $0xa0] sm:$0xff]
                %275 = vst [vmem:[%s253 + $0x50] sm:$0xff] %v274
                %v276 = vld [vmem:[%s252 + $0xb0] sm:$0xff]
                %277 = vst [vmem:[%s253 + $0x58] sm:$0xff] %v276
                %v278 = vld [vmem:[%s252 + $0xc0] sm:$0xff]
                %279 = vst [vmem:[%s253 + $0x60] sm:$0xff] %v278
                %v280 = vld [vmem:[%s252 + $0xd0] sm:$0xff]
                %281 = vst [vmem:[%s253 + $0x68] sm:$0xff] %v280
                %v282 = vld [vmem:[%s252 + $0xe0] sm:$0xff]
                %283 = vst [vmem:[%s253 + $0x70] sm:$0xff] %v282
                %v284 = vld [vmem:[%s252 + $0xf0] sm:$0xff]
                %285 = vst [vmem:[%s253 + $0x78] sm:$0xff] %v284
                %v286 = vld [vmem:[%s252 + $0x100] sm:$0xff]
                %287 = vst [vmem:[%s253 + $0x80] sm:$0xff] %v286
                %v288 = vld [vmem:[%s252 + $0x110] sm:$0xff]
                %289 = vst [vmem:[%s253 + $0x88] sm:$0xff] %v288
                %v290 = vld [vmem:[%s252 + $0x120] sm:$0xff]
                %291 = vst [vmem:[%s253 + $0x90] sm:$0xff] %v290
                %v292 = vld [vmem:[%s252 + $0x130] sm:$0xff]
                %293 = vst [vmem:[%s253 + $0x98] sm:$0xff] %v292
                %v294 = vld [vmem:[%s252 + $0x140] sm:$0xff]
                %295 = vst [vmem:[%s253 + $0xa0] sm:$0xff] %v294
                %v296 = vld [vmem:[%s252 + $0x150] sm:$0xff]
                %297 = vst [vmem:[%s253 + $0xa8] sm:$0xff] %v296
                %v298 = vld [vmem:[%s252 + $0x160] sm:$0xff]
                %299 = vst [vmem:[%s253 + $0xb0] sm:$0xff] %v298
                %v300 = vld [vmem:[%s252 + $0x170] sm:$0xff]
                %301 = vst [vmem:[%s253 + $0xb8] sm:$0xff] %v300
                %v302 = vld [vmem:[%s252 + $0x180] sm:$0xff]
                %303 = vst [vmem:[%s253 + $0xc0] sm:$0xff] %v302
                %v304 = vld [vmem:[%s252 + $0x190] sm:$0xff]
                %305 = vst [vmem:[%s253 + $0xc8] sm:$0xff] %v304
                %v306 = vld [vmem:[%s252 + $0x1a0] sm:$0xff]
                %307 = vst [vmem:[%s253 + $0xd0] sm:$0xff] %v306
                %v308 = vld [vmem:[%s252 + $0x1b0] sm:$0xff]
                %309 = vst [vmem:[%s253 + $0xd8] sm:$0xff] %v308
                %v310 = vld [vmem:[%s252 + $0x1c0] sm:$0xff]
                %311 = vst [vmem:[%s253 + $0xe0] sm:$0xff] %v310
                %v312 = vld [vmem:[%s252 + $0x1d0] sm:$0xff]
                %313 = vst [vmem:[%s253 + $0xe8] sm:$0xff] %v312
                %v314 = vld [vmem:[%s252 + $0x1e0] sm:$0xff]
                %315 = vst [vmem:[%s253 + $0xf0] sm:$0xff] %v314
                %v316 = vld [vmem:[%s252 + $0x1f0] sm:$0xff]
                %317 = vst [vmem:[%s253 + $0xf8] sm:$0xff] %v316
                %v318 = vld [vmem:[%s252 + $0x200] sm:$0xff]
                %319 = vst [vmem:[%s253 + $0x100] sm:$0xff] %v318
                %v320 = vld [vmem:[%s252 + $0x210] sm:$0xff]
                %321 = vst [vmem:[%s253 + $0x108] sm:$0xff] %v320
                %v322 = vld [vmem:[%s252 + $0x220] sm:$0xff]
                %323 = vst [vmem:[%s253 + $0x110] sm:$0xff] %v322
                %v324 = vld [vmem:[%s252 + $0x230] sm:$0xff]
                %325 = vst [vmem:[%s253 + $0x118] sm:$0xff] %v324
                %v326 = vld [vmem:[%s252 + $0x240] sm:$0xff]
                %327 = vst [vmem:[%s253 + $0x120] sm:$0xff] %v326
                %v328 = vld [vmem:[%s252 + $0x250] sm:$0xff]
                %329 = vst [vmem:[%s253 + $0x128] sm:$0xff] %v328
                %v330 = vld [vmem:[%s252 + $0x260] sm:$0xff]
                %331 = vst [vmem:[%s253 + $0x130] sm:$0xff] %v330
                %v332 = vld [vmem:[%s252 + $0x270] sm:$0xff]
                %333 = vst [vmem:[%s253 + $0x138] sm:$0xff] %v332
                %v334 = vld [vmem:[%s252 + $0x280] sm:$0xff]
                %335 = vst [vmem:[%s253 + $0x140] sm:$0xff] %v334
                %v336 = vld [vmem:[%s252 + $0x290] sm:$0xff]
                %337 = vst [vmem:[%s253 + $0x148] sm:$0xff] %v336
                %v338 = vld [vmem:[%s252 + $0x2a0] sm:$0xff]
                %339 = vst [vmem:[%s253 + $0x150] sm:$0xff] %v338
                %v340 = vld [vmem:[%s252 + $0x2b0] sm:$0xff]
                %341 = vst [vmem:[%s253 + $0x158] sm:$0xff] %v340
                %v342 = vld [vmem:[%s252 + $0x2c0] sm:$0xff]
                %343 = vst [vmem:[%s253 + $0x160] sm:$0xff] %v342
                %v344 = vld [vmem:[%s252 + $0x2d0] sm:$0xff]
                %345 = vst [vmem:[%s253 + $0x168] sm:$0xff] %v344
                %v346 = vld [vmem:[%s252 + $0x2e0] sm:$0xff]
                %347 = vst [vmem:[%s253 + $0x170] sm:$0xff] %v346
                %v348 = vld [vmem:[%s252 + $0x2f0] sm:$0xff]
                %349 = vst [vmem:[%s253 + $0x178] sm:$0xff] %v348
                %v350 = vld [vmem:[%s252 + $0x300] sm:$0xff]
                %351 = vst [vmem:[%s253 + $0x180] sm:$0xff] %v350
                %v352 = vld [vmem:[%s252 + $0x310] sm:$0xff]
                %353 = vst [vmem:[%s253 + $0x188] sm:$0xff] %v352
                %v354 = vld [vmem:[%s252 + $0x320] sm:$0xff]
                %355 = vst [vmem:[%s253 + $0x190] sm:$0xff] %v354
                %v356 = vld [vmem:[%s252 + $0x330] sm:$0xff]
                %357 = vst [vmem:[%s253 + $0x198] sm:$0xff] %v356
                %v358 = vld [vmem:[%s252 + $0x340] sm:$0xff]
                %359 = vst [vmem:[%s253 + $0x1a0] sm:$0xff] %v358
                %v360 = vld [vmem:[%s252 + $0x350] sm:$0xff]
                %361 = vst [vmem:[%s253 + $0x1a8] sm:$0xff] %v360
                %v362 = vld [vmem:[%s252 + $0x360] sm:$0xff]
                %363 = vst [vmem:[%s253 + $0x1b0] sm:$0xff] %v362
                %v364 = vld [vmem:[%s252 + $0x370] sm:$0xff]
                %365 = vst [vmem:[%s253 + $0x1b8] sm:$0xff] %v364
                %v366 = vld [vmem:[%s252 + $0x380] sm:$0xff]
                %367 = vst [vmem:[%s253 + $0x1c0] sm:$0xff] %v366
                %v368 = vld [vmem:[%s252 + $0x390] sm:$0xff]
                %369 = vst [vmem:[%s253 + $0x1c8] sm:$0xff] %v368
                %v370 = vld [vmem:[%s252 + $0x3a0] sm:$0xff]
                %371 = vst [vmem:[%s253 + $0x1d0] sm:$0xff] %v370
                %v372 = vld [vmem:[%s252 + $0x3b0] sm:$0xff]
                %373 = vst [vmem:[%s253 + $0x1d8] sm:$0xff] %v372
                %v374 = vld [vmem:[%s252 + $0x3c0] sm:$0xff]
                %375 = vst [vmem:[%s253 + $0x1e0] sm:$0xff] %v374
                %v376 = vld [vmem:[%s252 + $0x3d0] sm:$0xff]
                %377 = vst [vmem:[%s253 + $0x1e8] sm:$0xff] %v376
                %v378 = vld [vmem:[%s252 + $0x3e0] sm:$0xff]
                %379 = vst [vmem:[%s253 + $0x1f0] sm:$0xff] %v378
                %v380 = vld [vmem:[%s252 + $0x3f0] sm:$0xff]
                %381 = vst [vmem:[%s253 + $0x1f8] sm:$0xff] %v380
              $region41: #{_lambda_.25} parent=35 // loop_footer
                %s251 = sadd.s32 1, %s247
              $region42: #{_lambda_.25} parent=35 // loop_footer_branch
                %246 = sbr.rel target = $region38
              $region43: #{_lambda_.25} parent=35 // loop_exit
                _
            $region36: #{_lambda_.25} parent=27 // pred_fallthru
              _
          $region28: #{_lambda_.25} parent=23 // pred_fallthru
            _
          %522 = vnop
        $region24: #{_lambda_.25} parent=15 // pred_fallthru
          _
        // Predicated region
        $region59: #{_lambda_.25} parent=15 // pred_check
          %p523 = pneg %p106
        $region60: #{_lambda_.25} parent=15 // pred_check_branch
          %525 = sbr.rel (%p523) target = $region62
        $region61: #{_lambda_.25} parent=15 // pred_region
          %s526 = smul.u32 2, %s19
          %p527 = scmp.lt.s32.totalorder %s526, 3
          %s528 = scalar_select %p527, %s526, 3
          %s529 = scalar_lea.vmem %s2, %s528
          %s530 = smul.u32 2, %s19
        $region62: #{_lambda_.25} parent=15 // pred_fallthru
          _
        // Predicated region
        $region63: #{_lambda_.25} parent=15 // pred_check
          %p531 = pneg %p132
        $region64: #{_lambda_.25} parent=15 // pred_check_branch
          %533 = sbr.rel (%p531) target = $region66
        $region65: #{_lambda_.25} parent=15 // pred_region
          %s534 = smul.u32 2, %s19
          %p535 = scmp.lt.s32.totalorder %s534, 3
          %s536 = scalar_select %p535, %s534, 3
          %s537 = scalar_lea.vmem %s3, %s536
          %s538 = smul.u32 2, %s19
        $region66: #{_lambda_.25} parent=15 // pred_fallthru
          _
        // Predicated region
        $region67: #{_lambda_.25} parent=15 // pred_check
          %p539 = pneg %p160
        $region68: #{_lambda_.25} parent=15 // pred_check_branch
          %541 = sbr.rel (%p539) target = $region70
        $region69: #{_lambda_.25} parent=15 // pred_region
          %s542 = smul.u32 2, %s19
          %p543 = scmp.lt.s32.totalorder %s18, 0
          %s544 = scalar_select %p543, %s18, 0
          %p545 = scmp.lt.s32.totalorder %s542, 3
          %s546 = scalar_select %p545, %s542, 3
          %s547 = smul.addr %s544, 4
          %s548 = sadd.s32 %s546, %s547
          %s549 = smul.addr %s548, 8
          %s550 = scalar_lea.vmem %s4, %s549
          %s551 = smul.u32 2, %s19
        $region70: #{_lambda_.25} parent=15 // pred_fallthru
          _
      $region16: #{_lambda_.25} parent=5 // pred_fallthru
        _
      %p552 = scmp.le.s32.totalorder 1, %s11
      %p553 = scmp.lt.s32.totalorder %s11, 19
      %p554 = pnand %p552, %p553
      %p555 = pneg %p554
      // Predicated region
      $region71: #{_lambda_.25} parent=5 // pred_check
        _
      $region72: #{_lambda_.25} parent=5 // pred_check_branch
        %557 = sbr.rel (%p554) target = $region74
      $region73: #{_lambda_.25} parent=5 // pred_region
        %s558 = ssub.s32 %s11, 1
        %s559 = sand.u32 %s73, 1
        %s560 = sand.u32 %s73, 1
        %s561 = smul.addr %s560, 512
        %s562 = scalar_lea.vmem [#allocation3], %s561
        // Predicated region
        $region75: #{_lambda_.25} parent=73 // pred_check
          %p563 = pneg %p86
        $region76: #{_lambda_.25} parent=73 // pred_check_branch
          %565 = sbr.rel (%p563) target = $region78
        $region77: #{_lambda_.25} parent=73 // pred_region
          _
        $region78: #{_lambda_.25} parent=73 // pred_fallthru
          _
        %s566 = smul.u32 4, %s23
        %p567 = scmp.lt.s32.totalorder %s21, 0
        %s568 = scalar_select %p567, %s21, 0
        %p569 = scmp.lt.s32.totalorder %s566, 35
        %s570 = scalar_select %p569, %s566, 35
        %s571 = smul.addr %s568, 36
        %s572 = sadd.s32 %s570, %s571
        %s573 = smul.addr %s572, 4
        %s574 = scalar_lea.vmem %s0, %s573
        %p575 = pneg %p58
        %p576 = pneg %p55
        %s577 = sand.u32 %s73, 1
        %s578 = sand.u32 %s73, 1
        %s579 = smul.addr %s578, 512
        %s580 = scalar_lea.vmem [#allocation3], %s579
        %p581 = pneg %p86
        %p582 = pneg %p83
        %s583 = smul.u32 2, %s22
        %p584 = scmp.lt.s32.totalorder %s583, 3
        %s585 = scalar_select %p584, %s583, 3
        %s586 = scalar_lea.vmem %s2, %s585
        %p587 = pneg %p112
        %p588 = pneg %p109
        %s589 = smul.u32 2, %s22
        %p590 = scmp.lt.s32.totalorder %s589, 3
        %s591 = scalar_select %p590, %s589, 3
        %s592 = scalar_lea.vmem %s3, %s591
        %p593 = pneg %p138
        %p594 = pneg %p135
        %s595 = smul.u32 2, %s22
        %p596 = scmp.lt.s32.totalorder %s21, 0
        %s597 = scalar_select %p596, %s21, 0
        %p598 = scmp.lt.s32.totalorder %s595, 3
        %s599 = scalar_select %p598, %s595, 3
        %s600 = smul.addr %s597, 4
        %s601 = sadd.s32 %s599, %s600
        %s602 = smul.addr %s601, 8
        %s603 = scalar_lea.vmem %s4, %s602
        %p604 = pneg %p166
        %p605 = pneg %p163
        %p606 = pneg %p194
        %p607 = pneg %p191
        %s608 = smul.u32 2, %s22
        %p609 = scmp.lt.s32.totalorder %s21, 0
        %s610 = scalar_select %p609, %s21, 0
        %p611 = scmp.lt.s32.totalorder %s608, 3
        %s612 = scalar_select %p611, %s608, 3
        %s613 = smul.addr %s610, 4
        %s614 = sadd.s32 %s612, %s613
        %s615 = smul.addr %s614, 8
        %s616 = scalar_lea.vmem %s5, %s615
        %s617 = smul.u32 4, %s23
        %p618 = scmp.lt.s32.totalorder %s21, 0
        %s619 = scalar_select %p618, %s21, 0
        %p620 = scmp.lt.s32.totalorder %s617, 35
        %s621 = scalar_select %p620, %s617, 35
        %s622 = smul.addr %s619, 36
        %s623 = sadd.s32 %s621, %s622
        %s624 = smul.addr %s623, 4
        %s625 = scalar_lea.vmem %s0, %s624
        %s626 = smul.u32 4, %s23
        %s627 = smul.u32 64, %s23
        %s628 = smul.u32 2, %s22
        %s629 = smul.u32 2, %s22
        %p630 = scmp.lt.s32.totalorder %s629, 3
        %s631 = scalar_select %p630, %s629, 3
        %s632 = scalar_lea.vmem %s2, %s631
        %s633 = smul.u32 2, %s22
        %s634 = smul.u32 2, %s22
        %p635 = scmp.lt.s32.totalorder %s634, 3
        %s636 = scalar_select %p635, %s634, 3
        %s637 = scalar_lea.vmem %s3, %s636
        %s638 = smul.u32 2, %s22
        %s639 = smul.u32 2, %s22
        %p640 = scmp.lt.s32.totalorder %s21, 0
        %s641 = scalar_select %p640, %s21, 0
        %p642 = scmp.lt.s32.totalorder %s639, 3
        %s643 = scalar_select %p642, %s639, 3
        %s644 = smul.addr %s641, 4
        %s645 = sadd.s32 %s643, %s644
        %s646 = smul.addr %s645, 8
        %s647 = scalar_lea.vmem %s4, %s646
        %s648 = smul.u32 2, %s22
        %s649 = smul.u32 2, %s22
        %p650 = scmp.lt.s32.totalorder %s21, 0
        %s651 = scalar_select %p650, %s21, 0
        %p652 = scmp.lt.s32.totalorder %s649, 3
        %s653 = scalar_select %p652, %s649, 3
        %s654 = smul.addr %s651, 4
        %s655 = sadd.s32 %s653, %s654
        %s656 = smul.addr %s655, 8
        %s657 = scalar_lea.vmem %s5, %s656
        %s658 = smul.u32 2, %s22
        %p659 = scmp.eq.s32.totalorder %s23, 0
        // Predicated region
        $region79: #{_lambda_.25} parent=73 // pred_check
          %p660 = pneg %p659
        $region80: #{_lambda_.25} parent=73 // pred_check_branch
          %662 = sbr.rel (%p660) target = $region82
        $region81: #{_lambda_.25} parent=73 // pred_region
          %663 = vst [vmem:[#allocation2] sm:$0xff] 0.0
          %664 = vst [vmem:[#allocation2 + $0x8] sm:$0xff] 0.0
        $region82: #{_lambda_.25} parent=73 // pred_fallthru
          _
        %v665 = vld [vmem:[#allocation2] sm:$0xff]
        %v666 = vld [vmem:[#allocation2 + $0x8] sm:$0xff]
        %v667 = vld [vmem:[%s625] sm:$0xff]
        %v668 = vld [vmem:[%s625 + $0x8] sm:$0xff]
        %v669 = vld [vmem:[%s562] sm:$0xff]
        %v670 = vld [vmem:[%s562 + $0x8] sm:$0xff]
        %v671 = vld [vmem:[%s562 + $0x10] sm:$0xff]
        %v672 = vld [vmem:[%s562 + $0x18] sm:$0xff]
        %v673 = vld [vmem:[%s562 + $0x20] sm:$0xff]
        %v674 = vld [vmem:[%s562 + $0x28] sm:$0xff]
        %v675 = vld [vmem:[%s562 + $0x30] sm:$0xff]
        %v676 = vld [vmem:[%s562 + $0x38] sm:$0xff]
        %v677 = vld [vmem:[%s562 + $0x40] sm:$0xff]
        %v678 = vld [vmem:[%s562 + $0x48] sm:$0xff]
        %v679 = vld [vmem:[%s562 + $0x50] sm:$0xff]
        %v680 = vld [vmem:[%s562 + $0x58] sm:$0xff]
        %v681 = vld [vmem:[%s562 + $0x60] sm:$0xff]
        %v682 = vld [vmem:[%s562 + $0x68] sm:$0xff]
        %v683 = vld [vmem:[%s562 + $0x70] sm:$0xff]
        %v684 = vld [vmem:[%s562 + $0x78] sm:$0xff]
        %v685 = vld [vmem:[%s562 + $0x80] sm:$0xff]
        %v686 = vld [vmem:[%s562 + $0x88] sm:$0xff]
        %v687 = vld [vmem:[%s562 + $0x90] sm:$0xff]
        %v688 = vld [vmem:[%s562 + $0x98] sm:$0xff]
        %v689 = vld [vmem:[%s562 + $0xa0] sm:$0xff]
        %v690 = vld [vmem:[%s562 + $0xa8] sm:$0xff]
        %v691 = vld [vmem:[%s562 + $0xb0] sm:$0xff]
        %v692 = vld [vmem:[%s562 + $0xb8] sm:$0xff]
        %v693 = vld [vmem:[%s562 + $0xc0] sm:$0xff]
        %v694 = vld [vmem:[%s562 + $0xc8] sm:$0xff]
        %v695 = vld [vmem:[%s562 + $0xd0] sm:$0xff]
        %v696 = vld [vmem:[%s562 + $0xd8] sm:$0xff]
        %v697 = vld [vmem:[%s562 + $0xe0] sm:$0xff]
        %v698 = vld [vmem:[%s562 + $0xe8] sm:$0xff]
        %v699 = vld [vmem:[%s562 + $0xf0] sm:$0xff]
        %v700 = vld [vmem:[%s562 + $0xf8] sm:$0xff]
        %v701 = vld [vmem:[%s562 + $0x100] sm:$0xff]
        %v702 = vld [vmem:[%s562 + $0x108] sm:$0xff]
        %v703 = vld [vmem:[%s562 + $0x110] sm:$0xff]
        %v704 = vld [vmem:[%s562 + $0x118] sm:$0xff]
        %v705 = vld [vmem:[%s562 + $0x120] sm:$0xff]
        %v706 = vld [vmem:[%s562 + $0x128] sm:$0xff]
        %v707 = vld [vmem:[%s562 + $0x130] sm:$0xff]
        %v708 = vld [vmem:[%s562 + $0x138] sm:$0xff]
        %v709 = vld [vmem:[%s562 + $0x140] sm:$0xff]
        %v710 = vld [vmem:[%s562 + $0x148] sm:$0xff]
        %v711 = vld [vmem:[%s562 + $0x150] sm:$0xff]
        %v712 = vld [vmem:[%s562 + $0x158] sm:$0xff]
        %v713 = vld [vmem:[%s562 + $0x160] sm:$0xff]
        %v714 = vld [vmem:[%s562 + $0x168] sm:$0xff]
        %v715 = vld [vmem:[%s562 + $0x170] sm:$0xff]
        %v716 = vld [vmem:[%s562 + $0x178] sm:$0xff]
        %v717 = vld [vmem:[%s562 + $0x180] sm:$0xff]
        %v718 = vld [vmem:[%s562 + $0x188] sm:$0xff]
        %v719 = vld [vmem:[%s562 + $0x190] sm:$0xff]
        %v720 = vld [vmem:[%s562 + $0x198] sm:$0xff]
        %v721 = vld [vmem:[%s562 + $0x1a0] sm:$0xff]
        %v722 = vld [vmem:[%s562 + $0x1a8] sm:$0xff]
        %v723 = vld [vmem:[%s562 + $0x1b0] sm:$0xff]
        %v724 = vld [vmem:[%s562 + $0x1b8] sm:$0xff]
        %v725 = vld [vmem:[%s562 + $0x1c0] sm:$0xff]
        %v726 = vld [vmem:[%s562 + $0x1c8] sm:$0xff]
        %v727 = vld [vmem:[%s562 + $0x1d0] sm:$0xff]
        %v728 = vld [vmem:[%s562 + $0x1d8] sm:$0xff]
        %v729 = vld [vmem:[%s562 + $0x1e0] sm:$0xff]
        %v730 = vld [vmem:[%s562 + $0x1e8] sm:$0xff]
        %v731 = vld [vmem:[%s562 + $0x1f0] sm:$0xff]
        %v732 = vld [vmem:[%s562 + $0x1f8] sm:$0xff]
        %v735 = vunpack.c.l.b16 %v667
        %v736 = vunpack.c.h.b16 %v667
        %v737 = vunpack.c.l.b16 %v668
        %v738 = vunpack.c.h.b16 %v668
        %v739 = vpack.c.b16 %v735, %v735
        %v740 = vpack.c.b16 %v736, %v736
        %v741 = vpack.c.b16 %v737, %v737
        %v742 = vpack.c.b16 %v738, %v738
        %v811 = vunpack.c.l.b16 %v669
        %v812 = vunpack.c.h.b16 %v669
        %v813 = vunpack.c.l.b16 %v670
        %v814 = vunpack.c.h.b16 %v670
        %v815 = vunpack.c.l.b16 %v671
        %v816 = vunpack.c.h.b16 %v671
        %v817 = vunpack.c.l.b16 %v672
        %v818 = vunpack.c.h.b16 %v672
        %v819 = vunpack.c.l.b16 %v673
        %v820 = vunpack.c.h.b16 %v673
        %v821 = vunpack.c.l.b16 %v674
        %v822 = vunpack.c.h.b16 %v674
        %v823 = vunpack.c.l.b16 %v675
        %v824 = vunpack.c.h.b16 %v675
        %v825 = vunpack.c.l.b16 %v676
        %v826 = vunpack.c.h.b16 %v676
        %v827 = vunpack.c.l.b16 %v677
        %v828 = vunpack.c.h.b16 %v677
        %v829 = vunpack.c.l.b16 %v678
        %v830 = vunpack.c.h.b16 %v678
        %v831 = vunpack.c.l.b16 %v679
        %v832 = vunpack.c.h.b16 %v679
        %v833 = vunpack.c.l.b16 %v680
        %v834 = vunpack.c.h.b16 %v680
        %v835 = vunpack.c.l.b16 %v681
        %v836 = vunpack.c.h.b16 %v681
        %v837 = vunpack.c.l.b16 %v682
        %v838 = vunpack.c.h.b16 %v682
        %v839 = vunpack.c.l.b16 %v683
        %v840 = vunpack.c.h.b16 %v683
        %v841 = vunpack.c.l.b16 %v684
        %v842 = vunpack.c.h.b16 %v684
        %v843 = vunpack.c.l.b16 %v685
        %v844 = vunpack.c.h.b16 %v685
        %v845 = vunpack.c.l.b16 %v686
        %v846 = vunpack.c.h.b16 %v686
        %v847 = vunpack.c.l.b16 %v687
        %v848 = vunpack.c.h.b16 %v687
        %v849 = vunpack.c.l.b16 %v688
        %v850 = vunpack.c.h.b16 %v688
        %v851 = vunpack.c.l.b16 %v689
        %v852 = vunpack.c.h.b16 %v689
        %v853 = vunpack.c.l.b16 %v690
        %v854 = vunpack.c.h.b16 %v690
        %v855 = vunpack.c.l.b16 %v691
        %v856 = vunpack.c.h.b16 %v691
        %v857 = vunpack.c.l.b16 %v692
        %v858 = vunpack.c.h.b16 %v692
        %v859 = vunpack.c.l.b16 %v693
        %v860 = vunpack.c.h.b16 %v693
        %v861 = vunpack.c.l.b16 %v694
        %v862 = vunpack.c.h.b16 %v694
        %v863 = vunpack.c.l.b16 %v695
        %v864 = vunpack.c.h.b16 %v695
        %v865 = vunpack.c.l.b16 %v696
        %v866 = vunpack.c.h.b16 %v696
        %v867 = vunpack.c.l.b16 %v697
        %v868 = vunpack.c.h.b16 %v697
        %v869 = vunpack.c.l.b16 %v698
        %v870 = vunpack.c.h.b16 %v698
        %v871 = vunpack.c.l.b16 %v699
        %v872 = vunpack.c.h.b16 %v699
        %v873 = vunpack.c.l.b16 %v700
        %v874 = vunpack.c.h.b16 %v700
        %v875 = vunpack.c.l.b16 %v701
        %v876 = vunpack.c.h.b16 %v701
        %v877 = vunpack.c.l.b16 %v702
        %v878 = vunpack.c.h.b16 %v702
        %v879 = vunpack.c.l.b16 %v703
        %v880 = vunpack.c.h.b16 %v703
        %v881 = vunpack.c.l.b16 %v704
        %v882 = vunpack.c.h.b16 %v704
        %v883 = vunpack.c.l.b16 %v705
        %v884 = vunpack.c.h.b16 %v705
        %v885 = vunpack.c.l.b16 %v706
        %v886 = vunpack.c.h.b16 %v706
        %v887 = vunpack.c.l.b16 %v707
        %v888 = vunpack.c.h.b16 %v707
        %v889 = vunpack.c.l.b16 %v708
        %v890 = vunpack.c.h.b16 %v708
        %v891 = vunpack.c.l.b16 %v709
        %v892 = vunpack.c.h.b16 %v709
        %v893 = vunpack.c.l.b16 %v710
        %v894 = vunpack.c.h.b16 %v710
        %v895 = vunpack.c.l.b16 %v711
        %v896 = vunpack.c.h.b16 %v711
        %v897 = vunpack.c.l.b16 %v712
        %v898 = vunpack.c.h.b16 %v712
        %v899 = vunpack.c.l.b16 %v713
        %v900 = vunpack.c.h.b16 %v713
        %v901 = vunpack.c.l.b16 %v714
        %v902 = vunpack.c.h.b16 %v714
        %v903 = vunpack.c.l.b16 %v715
        %v904 = vunpack.c.h.b16 %v715
        %v905 = vunpack.c.l.b16 %v716
        %v906 = vunpack.c.h.b16 %v716
        %v907 = vunpack.c.l.b16 %v717
        %v908 = vunpack.c.h.b16 %v717
        %v909 = vunpack.c.l.b16 %v718
        %v910 = vunpack.c.h.b16 %v718
        %v911 = vunpack.c.l.b16 %v719
        %v912 = vunpack.c.h.b16 %v719
        %v913 = vunpack.c.l.b16 %v720
        %v914 = vunpack.c.h.b16 %v720
        %v915 = vunpack.c.l.b16 %v721
        %v916 = vunpack.c.h.b16 %v721
        %v917 = vunpack.c.l.b16 %v722
        %v918 = vunpack.c.h.b16 %v722
        %v919 = vunpack.c.l.b16 %v723
        %v920 = vunpack.c.h.b16 %v723
        %v921 = vunpack.c.l.b16 %v724
        %v922 = vunpack.c.h.b16 %v724
        %v923 = vunpack.c.l.b16 %v725
        %v924 = vunpack.c.h.b16 %v725
        %v925 = vunpack.c.l.b16 %v726
        %v926 = vunpack.c.h.b16 %v726
        %v927 = vunpack.c.l.b16 %v727
        %v928 = vunpack.c.h.b16 %v727
        %v929 = vunpack.c.l.b16 %v728
        %v930 = vunpack.c.h.b16 %v728
        %v931 = vunpack.c.l.b16 %v729
        %v932 = vunpack.c.h.b16 %v729
        %v933 = vunpack.c.l.b16 %v730
        %v934 = vunpack.c.h.b16 %v730
        %v935 = vunpack.c.l.b16 %v731
        %v936 = vunpack.c.h.b16 %v731
        %v937 = vunpack.c.l.b16 %v732
        %v938 = vunpack.c.h.b16 %v732
        %v939 = vpack.c.b16 %v813, %v811
        %v940 = vpack.c.b16 %v814, %v812
        %v941 = vpack.c.b16 %v817, %v815
        %v942 = vpack.c.b16 %v818, %v816
        %v943 = vpack.c.b16 %v821, %v819
        %v944 = vpack.c.b16 %v822, %v820
        %v945 = vpack.c.b16 %v825, %v823
        %v946 = vpack.c.b16 %v826, %v824
        %v947 = vpack.c.b16 %v829, %v827
        %v948 = vpack.c.b16 %v830, %v828
        %v949 = vpack.c.b16 %v833, %v831
        %v950 = vpack.c.b16 %v834, %v832
        %v951 = vpack.c.b16 %v837, %v835
        %v952 = vpack.c.b16 %v838, %v836
        %v953 = vpack.c.b16 %v841, %v839
        %v954 = vpack.c.b16 %v842, %v840
        %v955 = vpack.c.b16 %v845, %v843
        %v956 = vpack.c.b16 %v846, %v844
        %v957 = vpack.c.b16 %v849, %v847
        %v958 = vpack.c.b16 %v850, %v848
        %v959 = vpack.c.b16 %v853, %v851
        %v960 = vpack.c.b16 %v854, %v852
        %v961 = vpack.c.b16 %v857, %v855
        %v962 = vpack.c.b16 %v858, %v856
        %v963 = vpack.c.b16 %v861, %v859
        %v964 = vpack.c.b16 %v862, %v860
        %v965 = vpack.c.b16 %v865, %v863
        %v966 = vpack.c.b16 %v866, %v864
        %v967 = vpack.c.b16 %v869, %v867
        %v968 = vpack.c.b16 %v870, %v868
        %v969 = vpack.c.b16 %v873, %v871
        %v970 = vpack.c.b16 %v874, %v872
        %v971 = vpack.c.b16 %v877, %v875
        %v972 = vpack.c.b16 %v878, %v876
        %v973 = vpack.c.b16 %v881, %v879
        %v974 = vpack.c.b16 %v882, %v880
        %v975 = vpack.c.b16 %v885, %v883
        %v976 = vpack.c.b16 %v886, %v884
        %v977 = vpack.c.b16 %v889, %v887
        %v978 = vpack.c.b16 %v890, %v888
        %v979 = vpack.c.b16 %v893, %v891
        %v980 = vpack.c.b16 %v894, %v892
        %v981 = vpack.c.b16 %v897, %v895
        %v982 = vpack.c.b16 %v898, %v896
        %v983 = vpack.c.b16 %v901, %v899
        %v984 = vpack.c.b16 %v902, %v900
        %v985 = vpack.c.b16 %v905, %v903
        %v986 = vpack.c.b16 %v906, %v904
        %v987 = vpack.c.b16 %v909, %v907
        %v988 = vpack.c.b16 %v910, %v908
        %v989 = vpack.c.b16 %v913, %v911
        %v990 = vpack.c.b16 %v914, %v912
        %v991 = vpack.c.b16 %v917, %v915
        %v992 = vpack.c.b16 %v918, %v916
        %v993 = vpack.c.b16 %v921, %v919
        %v994 = vpack.c.b16 %v922, %v920
        %v995 = vpack.c.b16 %v925, %v923
        %v996 = vpack.c.b16 %v926, %v924
        %v997 = vpack.c.b16 %v929, %v927
        %v998 = vpack.c.b16 %v930, %v928
        %v999 = vpack.c.b16 %v933, %v931
        %v1000 = vpack.c.b16 %v934, %v932
        %v1001 = vpack.c.b16 %v937, %v935
        %v1002 = vpack.c.b16 %v938, %v936
        %1067 = vmatprep.subr.bf16.mxu0 %v940
        %1068 = vmatpush1.bf16.msra.mxu0 %v939
        %1069 = vmatprep.subr.bf16.mxu0 %v942
        %1070 = vmatpush1.bf16.msra.mxu0 %v941
        %1071 = vmatprep.subr.bf16.mxu0 %v944
        %1072 = vmatpush1.bf16.msra.mxu0 %v943
        %1073 = vmatprep.subr.bf16.mxu0 %v946
        %1074 = vmatpush1.bf16.msra.mxu0 %v945
        %1075 = vmatprep.subr.bf16.mxu0 %v948
        %1076 = vmatpush1.bf16.msra.mxu0 %v947
        %1077 = vmatprep.subr.bf16.mxu0 %v950
        %1078 = vmatpush1.bf16.msra.mxu0 %v949
        %1079 = vmatprep.subr.bf16.mxu0 %v952
        %1080 = vmatpush1.bf16.msra.mxu0 %v951
        %1081 = vmatprep.subr.bf16.mxu0 %v954
        %1082 = vmatpush1.bf16.msra.mxu0 %v953
        %1083 = vmatprep.subr.bf16.mxu0 %v956
        %1084 = vmatpush1.bf16.msra.mxu0 %v955
        %1085 = vmatprep.subr.bf16.mxu0 %v958
        %1086 = vmatpush1.bf16.msra.mxu0 %v957
        %1087 = vmatprep.subr.bf16.mxu0 %v960
        %1088 = vmatpush1.bf16.msra.mxu0 %v959
        %1089 = vmatprep.subr.bf16.mxu0 %v962
        %1090 = vmatpush1.bf16.msra.mxu0 %v961
        %1091 = vmatprep.subr.bf16.mxu0 %v964
        %1092 = vmatpush1.bf16.msra.mxu0 %v963
        %1093 = vmatprep.subr.bf16.mxu0 %v966
        %1094 = vmatpush1.bf16.msra.mxu0 %v965
        %1095 = vmatprep.subr.bf16.mxu0 %v968
        %1096 = vmatpush1.bf16.msra.mxu0 %v967
        %1097 = vmatprep.subr.bf16.mxu0 %v970
        %1098 = vmatpush1.bf16.msra.mxu0 %v969
        %1099 = vmatprep.mubr.bf16.mxu0 %v740
        %1100 = vmatmul.mubr.bf16.gmra.mrb[0].mxu0 %v739
        %v1101 = vpop.f32.mrb[0].mxu0
        %v1102 = vadd.f32 0.0, %v1101
        %v1103 = vpop.f32.mrb[0].mxu0
        %v1104 = vadd.f32 0.0, %v1103
        %v1105 = vpop.f32.mrb[0].mxu0
        %v1106 = vpop.f32.mrb[0].mxu0
        %1107 = vdwg.mxu0
        %1108 = vmatprep.subr.bf16.mxu0 %v972
        %1109 = vmatpush1.bf16.msra.mxu0 %v971
        %1110 = vmatprep.subr.bf16.mxu0 %v974
        %1111 = vmatpush1.bf16.msra.mxu0 %v973
        %1112 = vmatprep.subr.bf16.mxu0 %v976
        %1113 = vmatpush1.bf16.msra.mxu0 %v975
        %1114 = vmatprep.subr.bf16.mxu0 %v978
        %1115 = vmatpush1.bf16.msra.mxu0 %v977
        %1116 = vmatprep.subr.bf16.mxu0 %v980
        %1117 = vmatpush1.bf16.msra.mxu0 %v979
        %1118 = vmatprep.subr.bf16.mxu0 %v982
        %1119 = vmatpush1.bf16.msra.mxu0 %v981
        %1120 = vmatprep.subr.bf16.mxu0 %v984
        %1121 = vmatpush1.bf16.msra.mxu0 %v983
        %1122 = vmatprep.subr.bf16.mxu0 %v986
        %1123 = vmatpush1.bf16.msra.mxu0 %v985
        %1124 = vmatprep.subr.bf16.mxu0 %v988
        %1125 = vmatpush1.bf16.msra.mxu0 %v987
        %1126 = vmatprep.subr.bf16.mxu0 %v990
        %1127 = vmatpush1.bf16.msra.mxu0 %v989
        %1128 = vmatprep.subr.bf16.mxu0 %v992
        %1129 = vmatpush1.bf16.msra.mxu0 %v991
        %1130 = vmatprep.subr.bf16.mxu0 %v994
        %1131 = vmatpush1.bf16.msra.mxu0 %v993
        %1132 = vmatprep.subr.bf16.mxu0 %v996
        %1133 = vmatpush1.bf16.msra.mxu0 %v995
        %1134 = vmatprep.subr.bf16.mxu0 %v998
        %1135 = vmatpush1.bf16.msra.mxu0 %v997
        %1136 = vmatprep.subr.bf16.mxu0 %v1000
        %1137 = vmatpush1.bf16.msra.mxu0 %v999
        %1138 = vmatprep.subr.bf16.mxu0 %v1002
        %1139 = vmatpush1.bf16.msra.mxu0 %v1001
        %1140 = vmatprep.mubr.bf16.mxu0 %v742
        %1141 = vmatmul.mubr.bf16.gmra.mrb[0].mxu0 %v741
        %v1142 = vpop.f32.mrb[0].mxu0
        %v1143 = vadd.f32 %v1102, %v1142
        %v1144 = vpop.f32.mrb[0].mxu0
        %v1145 = vadd.f32 %v1104, %v1144
        %v1146 = vpop.f32.mrb[0].mxu0
        %v1147 = vpop.f32.mrb[0].mxu0
        %1148 = vdwg.mxu0
        %v1149 = vadd.f32 %v665, %v1143
        %v1150 = vadd.f32 %v666, %v1145
        %1151 = vst [vmem:[#allocation2] sm:$0xff] %v1149
        %1152 = vst [vmem:[#allocation2 + $0x8] sm:$0xff] %v1150
        %p1153 = scmp.eq.s32.totalorder %s23, 8
        // Predicated region
        $region83: #{_lambda_.25} parent=73 // pred_check
          %p1154 = pneg %p1153
        $region84: #{_lambda_.25} parent=73 // pred_check_branch
          %1156 = sbr.rel (%p1154) target = $region86
        $region85: #{_lambda_.25} parent=73 // pred_region
          %v1157 = vld [vmem:[#allocation2] sm:$0xff]
          %v1158 = vld [vmem:[#allocation2 + $0x8] sm:$0xff]
          %v1159 = vld [vmem:[%s632] sm:$0x3]
          %v1161 = vlaneseq
          %v1162 = vshrl.u32 %v1161, 7
          %v1163 = vsub.s32 0, %v1162
          %v1164 = vrot.slane %v1159, %v1163
          %v1165 = vlaneseq
          %v1166 = vshrl.u32 %v1165, 7
          %v1167 = vsub.s32 1, %v1166
          %v1168 = vrot.slane %v1159, %v1167
          %v1171 = vmul.f32 %v1157, %v1164
          %v1172 = vmul.f32 %v1158, %v1168
          %v1173 = vld [vmem:[%s637] sm:$0x3]
          %v1175 = vlaneseq
          %v1176 = vshrl.u32 %v1175, 7
          %v1177 = vsub.s32 0, %v1176
          %v1178 = vrot.slane %v1173, %v1177
          %v1179 = vlaneseq
          %v1180 = vshrl.u32 %v1179, 7
          %v1181 = vsub.s32 1, %v1180
          %v1182 = vrot.slane %v1173, %v1181
          %v1185 = vadd.f32 %v1171, %v1178
          %v1186 = vadd.f32 %v1172, %v1182
          %v1187 = vld [vmem:[%s647] sm:$0xff]
          %v1188 = vld [vmem:[%s647 + $0x8] sm:$0xff]
          %v1189 = vadd.f32 %v1185, %v1187
          %v1190 = vadd.f32 %v1186, %v1188
          %v1191 = vmax.f32 %v1189, 0.0
          %v1192 = vmax.f32 %v1190, 0.0
          %1193 = vst [vmem:[%s657] sm:$0xff] %v1191
          %1194 = vst [vmem:[%s657 + $0x8] sm:$0xff] %v1192
        $region86: #{_lambda_.25} parent=73 // pred_fallthru
          _
        %s1195 = smul.u32 2, %s22
        %p1196 = scmp.lt.s32.totalorder %s21, 0
        %s1197 = scalar_select %p1196, %s21, 0
        %p1198 = scmp.lt.s32.totalorder %s1195, 3
        %s1199 = scalar_select %p1198, %s1195, 3
        %s1200 = smul.addr %s1197, 4
        %s1201 = sadd.s32 %s1199, %s1200
        %s1202 = smul.addr %s1201, 8
        %s1203 = scalar_lea.vmem %s5, %s1202
        // Predicated region
        $region87: #{_lambda_.25} parent=73 // pred_check
          %p1204 = pneg %p191
        $region88: #{_lambda_.25} parent=73 // pred_check_branch
          %1206 = sbr.rel (%p1204) target = $region90
        $region89: #{_lambda_.25} parent=73 // pred_region
          %s1207 = smul.u32 2, %s22
        $region90: #{_lambda_.25} parent=73 // pred_fallthru
          _
      $region74: #{_lambda_.25} parent=5 // pred_fallthru
        _
      %p1208 = scmp.le.s32.totalorder 2, %s11
      // Predicated region
      $region91: #{_lambda_.25} parent=5 // pred_check
        %p1209 = pneg %p1208
      $region92: #{_lambda_.25} parent=5 // pred_check_branch
        %1211 = sbr.rel (%p1209) target = $region94
      $region93: #{_lambda_.25} parent=5 // pred_region
        %s1212 = ssub.s32 %s11, 2
        // Predicated region
        $region95: #{_lambda_.25} parent=93 // pred_check
          %p1213 = pneg %p197
        $region96: #{_lambda_.25} parent=93 // pred_check_branch
          %1215 = sbr.rel (%p1213) target = $region98
        $region97: #{_lambda_.25} parent=93 // pred_region
          %s1216 = smul.u32 2, %s25
          %p1217 = scmp.lt.s32.totalorder %s24, 0
          %s1218 = scalar_select %p1217, %s24, 0
          %p1219 = scmp.lt.s32.totalorder %s1216, 3
          %s1220 = scalar_select %p1219, %s1216, 3
          %s1221 = smul.addr %s1218, 4
          %s1222 = sadd.s32 %s1220, %s1221
          %s1223 = smul.addr %s1222, 8
          %s1224 = scalar_lea.vmem %s5, %s1223
        $region98: #{_lambda_.25} parent=93 // pred_fallthru
          _
      $region94: #{_lambda_.25} parent=5 // pred_fallthru
        _
    $region6: #{_lambda_.25} parent=1 // loop_footer
      %s15 = sadd.s32 1, %s11
    $region7: #{_lambda_.25} parent=1 // loop_footer_branch
      %10 = sbr.rel target = $region3
    $region8: #{_lambda_.25} parent=1 // loop_exit
      _

</llo_original>
